<compile_context>
chip_gen: v5e
topology: v5e:2x2
jax: 0.10.0
libtpu: 0.0.40
codegen_flags: <defaults>
</compile_context>

<pallas_src>
import numpy as np

import jax
import jax.numpy as jnp
from jax.experimental import pallas as pl
from jax.experimental.pallas import tpu as pltpu

NUM_CLASSES = 10

_TAPS = [(ky, kx) for ky in range(3) for kx in range(3)]   # tap index t = ky*3 + kx


# ------------------------- fused Pallas kernel -------------------------

def _fused_cnn_kernel(xp_ref, w1_ref, b1_ref, w2_ref, b2_ref,
                      s1r_ref, s1c_ref, s2r_ref, s2c_ref,
                      wfc_ref, bf_ref,
                      out_ref,
                      p1_ref, p2_ref):
    # xp_ref : (1, 30, 30)  zero-padded input image
    # w1_ref : (8, 9)    SMEM   conv1 weights [co, ky*3+kx]
    # b1_ref : (8,)      SMEM
    # w2_ref : (16, 72)  SMEM   conv2 weights [co, ci*9 + ky*3 + kx]
    # b2_ref : (16,)     SMEM
    # s1r/s1c: (16,27)/(27,16)  pool1 selection (subsample even rows/cols + zero pad)
    # s2r/s2c: (7,13)/(13,7)    pool2 selection
    # wfc_ref: (16, 7, 70)      fc weights, pre-permuted: wfc[c, v, u*10+k]
    # bf_ref : (1, 10)
    # out_ref: (1, 1, 10)
    # p1_ref : (8, 16, 16)  VMEM scratch — pooled+padded conv1 activations
    # p2_ref : (16, 7, 7)   VMEM scratch — pooled conv2 activations

    x = xp_ref[0]                          # (30, 30)
    s1r = s1r_ref[...]
    s1c = s1c_ref[...]
    s2r = s2r_ref[...]
    s2c = s2c_ref[...]

    # ---- conv1 (1->8, 3x3, pad 1) + ReLU + 2x2 maxpool, fused per output channel ----
    xs = [x[ky:ky + 28, kx:kx + 28] for (ky, kx) in _TAPS]       # 9 shifted views
    for co in range(8):
        acc = w1_ref[co, 0] * xs[0]
        for t in range(1, 9):
            acc = acc + w1_ref[co, t] * xs[t]
        a = jnp.maximum(acc + b1_ref[co], 0.0)                   # (28, 28)
        # pairwise max over adjacent rows / cols, then select even positions
        rm = jnp.maximum(a[0:27, :], a[1:28, :])                 # (27, 28)
        cm = jnp.maximum(rm[:, 0:27], rm[:, 1:28])               # (27, 27)
        # (16,27) @ (27,27) @ (27,16) -> pooled, zero-padded (16,16) plane for conv2
        p1_ref[co] = jnp.dot(
            s1r, jnp.dot(cm, s1c, preferred_element_type=jnp.float32),
            preferred_element_type=jnp.float32)

    # ---- conv2 (8->16, 3x3, pad 1) + ReLU + 2x2 maxpool ----
    def conv2_body(co, carry):
        acc = jnp.zeros((14, 14), jnp.float32)
        for ci in range(8):
            pc = p1_ref[ci]                                      # (16, 16), zero border
            for t in range(9):
                ky, kx = _TAPS[t]
                acc = acc + w2_ref[co, ci * 9 + t] * pc[ky:ky + 14, kx:kx + 14]
        a = jnp.maximum(acc + b2_ref[co], 0.0)                   # (14, 14)
        rm = jnp.maximum(a[0:13, :], a[1:14, :])                 # (13, 14)
        cm = jnp.maximum(rm[:, 0:13], rm[:, 1:14])               # (13, 13)
        p2_ref[co] = jnp.dot(
            s2r, jnp.dot(cm, s2c, preferred_element_type=jnp.float32),
            preferred_element_type=jnp.float32)                  # (7, 7)
        return carry

    jax.lax.fori_loop(0, 16, conv2_body, 0)

    # ---- fc: out[k] = bf[k] + sum_{c,u,v} p2[c,u,v] * W[k, c*49 + u*7 + v] ----
    # wfc[c, v, u*10+k] holds the permuted fc weight, so per channel:
    #   y = p2_c @ wfc_c   with  y[u, u*10+k] = sum_v p2_c[u,v] * W[k, c, u, v]
    acc_out = bf_ref[...]                                        # (1, 10)
    for c in range(16):
        y = jnp.dot(p2_ref[c], wfc_ref[c], preferred_element_type=jnp.float32)  # (7, 70)
        for u in range(7):
            acc_out = acc_out + y[u:u + 1, u * 10:(u + 1) * 10]
    out_ref[...] = acc_out.reshape(1, 1, 10)


# ------------------------- trace-time helpers -------------------------

def _pool_selectors(h_in, pad):
    """0/1 matrices that pick the even rows/cols of the (h_in-1)x(h_in-1) pairwise-max
    array (== 2x2/stride-2 max pool) and optionally embed the result with a zero border."""
    hm = h_in - 1
    ho = h_in // 2
    rows = np.zeros((ho + 2 * pad, hm), np.float32)
    cols = np.zeros((hm, ho + 2 * pad), np.float32)
    for i in range(ho):
        rows[pad + i, 2 * i] = 1.0
        cols[2 * i, pad + i] = 1.0
    return jnp.asarray(rows), jnp.asarray(cols)


def init_params(key, in_channels=1, num_classes=NUM_CLASSES):
    # Deterministic synthetic parameters, PyTorch layouts (OIHW conv, (out,in) linear).
    k1, k2, k3, k4, k5, k6 = jax.random.split(key, 6)
    return {
        "conv1_w": 0.1 * jax.random.normal(k1, (8, in_channels, 3, 3), jnp.float32),
        "conv1_b": 0.1 * jax.random.normal(k2, (8,), jnp.float32),
        "conv2_w": 0.1 * jax.random.normal(k3, (16, 8, 3, 3), jnp.float32),
        "conv2_b": 0.1 * jax.random.normal(k4, (16,), jnp.float32),
        "fc1_w": 0.05 * jax.random.normal(k5, (num_classes, 16 * 7 * 7), jnp.float32),
        "fc1_b": 0.05 * jax.random.normal(k6, (num_classes,), jnp.float32),
    }


# ------------------------- forward pass -------------------------

def cnn_forward(params, x_nchw):
    n, cin, h, w = x_nchw.shape
    assert cin == 1 and h == 28 and w == 28, "fc1 expects 16*7*7 features (28x28 input)"

    # zero-pad the input once (tiny); everything else happens inside the fused kernel
    xp = jnp.pad(x_nchw[:, 0], ((0, 0), (1, 1), (1, 1)))         # (N, 30, 30)

    # weight repacking (trace-time only, tiny arrays)
    w1 = params["conv1_w"].reshape(8, 9)                         # [co, ky*3+kx]
    b1 = params["conv1_b"]
    w2 = params["conv2_w"].reshape(16, 72)                       # [co, ci*9+ky*3+kx]
    b2 = params["conv2_b"]
    w4 = params["fc1_w"].reshape(10, 16, 7, 7)                   # [k, c, u, v]
    wfc = jnp.transpose(w4, (1, 3, 2, 0)).reshape(16, 7, 70)     # [c, v, u*10+k]
    bf = params["fc1_b"].reshape(1, 10)

    s1r, s1c = _pool_selectors(28, pad=1)                        # (16,27), (27,16)
    s2r, s2c = _pool_selectors(14, pad=0)                        # (7,13), (13,7)

    smem = pl.BlockSpec(memory_space=pltpu.MemorySpace.SMEM)

    out = pl.pallas_call(
        _fused_cnn_kernel,
        out_shape=jax.ShapeDtypeStruct((n, 1, 10), jnp.float32),
        grid=(n,),
        in_specs=[
            pl.BlockSpec((1, 30, 30), lambda i: (i, 0, 0)),      # per-image input
            smem, smem, smem, smem,                              # conv weights/biases
            pl.BlockSpec((16, 27), lambda i: (0, 0)),            # pool1 selectors
            pl.BlockSpec((27, 16), lambda i: (0, 0)),
            pl.BlockSpec((7, 13), lambda i: (0, 0)),             # pool2 selectors
            pl.BlockSpec((13, 7), lambda i: (0, 0)),
            pl.BlockSpec((16, 7, 70), lambda i: (0, 0, 0)),      # fc weights (permuted)
            pl.BlockSpec((1, 10), lambda i: (0, 0)),             # fc bias
        ],
        out_specs=pl.BlockSpec((1, 1, 10), lambda i: (i, 0, 0)),
        scratch_shapes=[
            pltpu.VMEM((8, 16, 16), jnp.float32),                # pooled+padded conv1
            pltpu.VMEM((16, 7, 7), jnp.float32),                 # pooled conv2
        ],
        compiler_params=pltpu.CompilerParams(
            dimension_semantics=("parallel",)),
    )(xp, w1, b1, w2, b2, s1r, s1c, s2r, s2c, wfc, bf)

    return out.reshape(n, 10)


def cnn_reference(params, x_nchw):
    # Pure-JAX reference mirroring the PyTorch forward pass exactly.
    dn = ("NCHW", "OIHW", "NCHW")
    y = jax.lax.conv_general_dilated(x_nchw, params["conv1_w"], (1, 1),
                                     ((1, 1), (1, 1)), dimension_numbers=dn)
    y = jax.nn.relu(y + params["conv1_b"][None, :, None, None])
    y = jax.lax.reduce_window(y, -jnp.inf, jax.lax.max, (1, 1, 2, 2), (1, 1, 2, 2), "VALID")
    y = jax.lax.conv_general_dilated(y, params["conv2_w"], (1, 1),
                                     ((1, 1), (1, 1)), dimension_numbers=dn)
    y = jax.nn.relu(y + params["conv2_b"][None, :, None, None])
    y = jax.lax.reduce_window(y, -jnp.inf, jax.lax.max, (1, 1, 2, 2), (1, 1, 2, 2), "VALID")
    y = y.reshape(y.shape[0], -1)
    return y @ params["fc1_w"].T + params["fc1_b"]


if __name__ == "__main__":
    key = jax.random.PRNGKey(0)
    kx_, kp = jax.random.split(key)
    # fc1 expects 16*7*7 features, so spatial must be 28x28 (MNIST-like); batch=2.
    x = jax.random.normal(kx_, (2, 1, 28, 28), jnp.float32)
    params = init_params(kp)

    out = jax.jit(cnn_forward)(params, x)
    out = jax.block_until_ready(out)
    assert out.shape == (2, NUM_CLASSES)

    ref = cnn_reference(params, x)
    if not bool(jnp.allclose(out, ref, atol=1e-3, rtol=1e-3)):
        raise AssertionError("Pallas CNN output mismatch vs pure-JAX reference")

    print("KERNEL_OK")
</pallas_src>

<mosaic_0001>
module attributes {stable_mosaic.version = 11 : i64} {
  func.func @_fused_cnn_kernel(%arg0: i32, %arg1: memref<1x30x30xf32, #tpu.memory_space<vmem>>, %arg2: memref<8x9xf32, #tpu.memory_space<smem>>, %arg3: memref<8xf32, #tpu.memory_space<smem>>, %arg4: memref<16x72xf32, #tpu.memory_space<smem>>, %arg5: memref<16xf32, #tpu.memory_space<smem>>, %arg6: memref<16x27xf32, #tpu.memory_space<vmem>>, %arg7: memref<27x16xf32, #tpu.memory_space<vmem>>, %arg8: memref<7x13xf32, #tpu.memory_space<vmem>>, %arg9: memref<13x7xf32, #tpu.memory_space<vmem>>, %arg10: memref<16x7x70xf32, #tpu.memory_space<vmem>>, %arg11: memref<1x10xf32, #tpu.memory_space<vmem>>, %arg12: memref<1x1x10xf32, #tpu.memory_space<vmem>>, %arg13: memref<8x16x16xf32, #tpu.memory_space<vmem>>, %arg14: memref<16x7x7xf32, #tpu.memory_space<vmem>>) attributes {dimension_semantics = [#tpu.dimension_semantics<parallel>], iteration_bounds = array<i64: 2>, scalar_prefetch = 0 : i64, scratch_operands = 2 : i64, tpu.core_type = #tpu.core_type<tc>, window_params = [{transform_indices = @transform_0, window_bounds = array<i64: 1, 30, 30>}, {transform_indices = @transform_1, window_bounds = array<i64: 8, 9>}, {transform_indices = @transform_2, window_bounds = array<i64: 8>}, {transform_indices = @transform_3, window_bounds = array<i64: 16, 72>}, {transform_indices = @transform_4, window_bounds = array<i64: 16>}, {pipeline_mode = #tpu.pipeline_mode<synchronous>, transform_indices = @transform_5, window_bounds = array<i64: 16, 27>}, {pipeline_mode = #tpu.pipeline_mode<synchronous>, transform_indices = @transform_6, window_bounds = array<i64: 27, 16>}, {pipeline_mode = #tpu.pipeline_mode<synchronous>, transform_indices = @transform_7, window_bounds = array<i64: 7, 13>}, {pipeline_mode = #tpu.pipeline_mode<synchronous>, transform_indices = @transform_8, window_bounds = array<i64: 13, 7>}, {pipeline_mode = #tpu.pipeline_mode<synchronous>, transform_indices = @transform_9, window_bounds = array<i64: 16, 7, 70>}, {pipeline_mode = #tpu.pipeline_mode<synchronous>, transform_indices = @transform_10, window_bounds = array<i64: 1, 10>}, {transform_indices = @transform_11, window_bounds = array<i64: 1, 1, 10>}]} {
    %c0 = arith.constant 0 : index
    %c0_0 = arith.constant 0 : index
    %c0_1 = arith.constant 0 : index
    %0 = vector.load %arg1[%c0, %c0_0, %c0_1] : memref<1x30x30xf32, #tpu.memory_space<vmem>>, vector<1x30x30xf32>
    %1 = vector.shape_cast %0 : vector<1x30x30xf32> to vector<30x30xf32>
    %c0_2 = arith.constant 0 : index
    %c0_3 = arith.constant 0 : index
    %2 = vector.load %arg6[%c0_2, %c0_3] : memref<16x27xf32, #tpu.memory_space<vmem>>, vector<16x27xf32>
    %c0_4 = arith.constant 0 : index
    %c0_5 = arith.constant 0 : index
    %3 = vector.load %arg7[%c0_4, %c0_5] : memref<27x16xf32, #tpu.memory_space<vmem>>, vector<27x16xf32>
    %c0_6 = arith.constant 0 : index
    %c0_7 = arith.constant 0 : index
    %4 = vector.load %arg8[%c0_6, %c0_7] : memref<7x13xf32, #tpu.memory_space<vmem>>, vector<7x13xf32>
    %c0_8 = arith.constant 0 : index
    %c0_9 = arith.constant 0 : index
    %5 = vector.load %arg9[%c0_8, %c0_9] : memref<13x7xf32, #tpu.memory_space<vmem>>, vector<13x7xf32>
    %6 = vector.extract_strided_slice %1 {offsets = [0, 0], sizes = [28, 28], strides = [1, 1]} : vector<30x30xf32> to vector<28x28xf32>
    %7 = vector.extract_strided_slice %1 {offsets = [0, 1], sizes = [28, 28], strides = [1, 1]} : vector<30x30xf32> to vector<28x28xf32>
    %8 = vector.extract_strided_slice %1 {offsets = [0, 2], sizes = [28, 28], strides = [1, 1]} : vector<30x30xf32> to vector<28x28xf32>
    %9 = vector.extract_strided_slice %1 {offsets = [1, 0], sizes = [28, 28], strides = [1, 1]} : vector<30x30xf32> to vector<28x28xf32>
    %10 = vector.extract_strided_slice %1 {offsets = [1, 1], sizes = [28, 28], strides = [1, 1]} : vector<30x30xf32> to vector<28x28xf32>
    %11 = vector.extract_strided_slice %1 {offsets = [1, 2], sizes = [28, 28], strides = [1, 1]} : vector<30x30xf32> to vector<28x28xf32>
    %12 = vector.extract_strided_slice %1 {offsets = [2, 0], sizes = [28, 28], strides = [1, 1]} : vector<30x30xf32> to vector<28x28xf32>
    %13 = vector.extract_strided_slice %1 {offsets = [2, 1], sizes = [28, 28], strides = [1, 1]} : vector<30x30xf32> to vector<28x28xf32>
    %14 = vector.extract_strided_slice %1 {offsets = [2, 2], sizes = [28, 28], strides = [1, 1]} : vector<30x30xf32> to vector<28x28xf32>
    %c0_10 = arith.constant 0 : index
    %c0_11 = arith.constant 0 : index
    %15 = memref.load %arg2[%c0_10, %c0_11] : memref<8x9xf32, #tpu.memory_space<smem>>
    %16 = vector.broadcast %15 : f32 to vector<28x28xf32>
    %17 = arith.mulf %16, %6 : vector<28x28xf32>
    %c0_12 = arith.constant 0 : index
    %c1 = arith.constant 1 : index
    %18 = memref.load %arg2[%c0_12, %c1] : memref<8x9xf32, #tpu.memory_space<smem>>
    %19 = vector.broadcast %18 : f32 to vector<28x28xf32>
    %20 = arith.mulf %19, %7 : vector<28x28xf32>
    %21 = arith.addf %17, %20 : vector<28x28xf32>
    %c0_13 = arith.constant 0 : index
    %c2 = arith.constant 2 : index
    %22 = memref.load %arg2[%c0_13, %c2] : memref<8x9xf32, #tpu.memory_space<smem>>
    %23 = vector.broadcast %22 : f32 to vector<28x28xf32>
    %24 = arith.mulf %23, %8 : vector<28x28xf32>
    %25 = arith.addf %21, %24 : vector<28x28xf32>
    %c0_14 = arith.constant 0 : index
    %c3 = arith.constant 3 : index
    %26 = memref.load %arg2[%c0_14, %c3] : memref<8x9xf32, #tpu.memory_space<smem>>
    %27 = vector.broadcast %26 : f32 to vector<28x28xf32>
    %28 = arith.mulf %27, %9 : vector<28x28xf32>
    %29 = arith.addf %25, %28 : vector<28x28xf32>
    %c0_15 = arith.constant 0 : index
    %c4 = arith.constant 4 : index
    %30 = memref.load %arg2[%c0_15, %c4] : memref<8x9xf32, #tpu.memory_space<smem>>
    %31 = vector.broadcast %30 : f32 to vector<28x28xf32>
    %32 = arith.mulf %31, %10 : vector<28x28xf32>
    %33 = arith.addf %29, %32 : vector<28x28xf32>
    %c0_16 = arith.constant 0 : index
    %c5 = arith.constant 5 : index
    %34 = memref.load %arg2[%c0_16, %c5] : memref<8x9xf32, #tpu.memory_space<smem>>
    %35 = vector.broadcast %34 : f32 to vector<28x28xf32>
    %36 = arith.mulf %35, %11 : vector<28x28xf32>
    %37 = arith.addf %33, %36 : vector<28x28xf32>
    %c0_17 = arith.constant 0 : index
    %c6 = arith.constant 6 : index
    %38 = memref.load %arg2[%c0_17, %c6] : memref<8x9xf32, #tpu.memory_space<smem>>
    %39 = vector.broadcast %38 : f32 to vector<28x28xf32>
    %40 = arith.mulf %39, %12 : vector<28x28xf32>
    %41 = arith.addf %37, %40 : vector<28x28xf32>
    %c0_18 = arith.constant 0 : index
    %c7 = arith.constant 7 : index
    %42 = memref.load %arg2[%c0_18, %c7] : memref<8x9xf32, #tpu.memory_space<smem>>
    %43 = vector.broadcast %42 : f32 to vector<28x28xf32>
    %44 = arith.mulf %43, %13 : vector<28x28xf32>
    %45 = arith.addf %41, %44 : vector<28x28xf32>
    %c0_19 = arith.constant 0 : index
    %c8 = arith.constant 8 : index
    %46 = memref.load %arg2[%c0_19, %c8] : memref<8x9xf32, #tpu.memory_space<smem>>
    %47 = vector.broadcast %46 : f32 to vector<28x28xf32>
    %48 = arith.mulf %47, %14 : vector<28x28xf32>
    %49 = arith.addf %45, %48 : vector<28x28xf32>
    %c0_20 = arith.constant 0 : index
    %50 = memref.load %arg3[%c0_20] : memref<8xf32, #tpu.memory_space<smem>>
    %51 = vector.broadcast %50 : f32 to vector<28x28xf32>
    %52 = arith.addf %49, %51 : vector<28x28xf32>
    %cst = arith.constant 0.000000e+00 : f32
    %53 = vector.broadcast %cst : f32 to vector<28x28xf32>
    %54 = arith.maximumf %52, %53 : vector<28x28xf32>
    %55 = vector.extract_strided_slice %54 {offsets = [0, 0], sizes = [27, 28], strides = [1, 1]} : vector<28x28xf32> to vector<27x28xf32>
    %56 = vector.extract_strided_slice %54 {offsets = [1, 0], sizes = [27, 28], strides = [1, 1]} : vector<28x28xf32> to vector<27x28xf32>
    %57 = arith.maximumf %55, %56 : vector<27x28xf32>
    %58 = vector.extract_strided_slice %57 {offsets = [0, 0], sizes = [27, 27], strides = [1, 1]} : vector<27x28xf32> to vector<27x27xf32>
    %59 = vector.extract_strided_slice %57 {offsets = [0, 1], sizes = [27, 27], strides = [1, 1]} : vector<27x28xf32> to vector<27x27xf32>
    %60 = arith.maximumf %58, %59 : vector<27x27xf32>
    %cst_21 = arith.constant dense<0.000000e+00> : vector<27x16xf32>
    %61 = tpu.matmul %60, %3, %cst_21 {dimension_numbers = #tpu.dot_dimension_numbers<[1], [0], [0], [1], [0, 0, 1, 1], [], []>} : vector<27x27xf32>, vector<27x16xf32>, vector<27x16xf32> -> vector<27x16xf32>
    %cst_22 = arith.constant dense<0.000000e+00> : vector<16x16xf32>
    %62 = tpu.matmul %2, %61, %cst_22 {dimension_numbers = #tpu.dot_dimension_numbers<[1], [0], [0], [1], [0, 0, 1, 1], [], []>} : vector<16x27xf32>, vector<27x16xf32>, vector<16x16xf32> -> vector<16x16xf32>
    %c0_23 = arith.constant 0 : index
    %c0_24 = arith.constant 0 : index
    %c0_25 = arith.constant 0 : index
    %63 = vector.load %arg13[%c0_23, %c0_24, %c0_25] : memref<8x16x16xf32, #tpu.memory_space<vmem>>, vector<1x16x16xf32>
    %64 = vector.shape_cast %63 : vector<1x16x16xf32> to vector<16x16xf32>
    %65 = vector.shape_cast %62 : vector<16x16xf32> to vector<1x16x16xf32>
    tpu.vector_store %arg13[%c0_23, %c0_24, %c0_25], %65 {strides = array<i32>} : memref<8x16x16xf32, #tpu.memory_space<vmem>>, vector<1x16x16xf32>,
    %c1_26 = arith.constant 1 : index
    %c0_27 = arith.constant 0 : index
    %66 = memref.load %arg2[%c1_26, %c0_27] : memref<8x9xf32, #tpu.memory_space<smem>>
    %67 = vector.broadcast %66 : f32 to vector<28x28xf32>
    %68 = arith.mulf %67, %6 : vector<28x28xf32>
    %c1_28 = arith.constant 1 : index
    %c1_29 = arith.constant 1 : index
    %69 = memref.load %arg2[%c1_28, %c1_29] : memref<8x9xf32, #tpu.memory_space<smem>>
    %70 = vector.broadcast %69 : f32 to vector<28x28xf32>
    %71 = arith.mulf %70, %7 : vector<28x28xf32>
    %72 = arith.addf %68, %71 : vector<28x28xf32>
    %c1_30 = arith.constant 1 : index
    %c2_31 = arith.constant 2 : index
    %73 = memref.load %arg2[%c1_30, %c2_31] : memref<8x9xf32, #tpu.memory_space<smem>>
    %74 = vector.broadcast %73 : f32 to vector<28x28xf32>
    %75 = arith.mulf %74, %8 : vector<28x28xf32>
    %76 = arith.addf %72, %75 : vector<28x28xf32>
    %c1_32 = arith.constant 1 : index
    %c3_33 = arith.constant 3 : index
    %77 = memref.load %arg2[%c1_32, %c3_33] : memref<8x9xf32, #tpu.memory_space<smem>>
    %78 = vector.broadcast %77 : f32 to vector<28x28xf32>
    %79 = arith.mulf %78, %9 : vector<28x28xf32>
    %80 = arith.addf %76, %79 : vector<28x28xf32>
    %c1_34 = arith.constant 1 : index
    %c4_35 = arith.constant 4 : index
    %81 = memref.load %arg2[%c1_34, %c4_35] : memref<8x9xf32, #tpu.memory_space<smem>>
    %82 = vector.broadcast %81 : f32 to vector<28x28xf32>
    %83 = arith.mulf %82, %10 : vector<28x28xf32>
    %84 = arith.addf %80, %83 : vector<28x28xf32>
    %c1_36 = arith.constant 1 : index
    %c5_37 = arith.constant 5 : index
    %85 = memref.load %arg2[%c1_36, %c5_37] : memref<8x9xf32, #tpu.memory_space<smem>>
    %86 = vector.broadcast %85 : f32 to vector<28x28xf32>
    %87 = arith.mulf %86, %11 : vector<28x28xf32>
    %88 = arith.addf %84, %87 : vector<28x28xf32>
    %c1_38 = arith.constant 1 : index
    %c6_39 = arith.constant 6 : index
    %89 = memref.load %arg2[%c1_38, %c6_39] : memref<8x9xf32, #tpu.memory_space<smem>>
    %90 = vector.broadcast %89 : f32 to vector<28x28xf32>
    %91 = arith.mulf %90, %12 : vector<28x28xf32>
    %92 = arith.addf %88, %91 : vector<28x28xf32>
    %c1_40 = arith.constant 1 : index
    %c7_41 = arith.constant 7 : index
    %93 = memref.load %arg2[%c1_40, %c7_41] : memref<8x9xf32, #tpu.memory_space<smem>>
    %94 = vector.broadcast %93 : f32 to vector<28x28xf32>
    %95 = arith.mulf %94, %13 : vector<28x28xf32>
    %96 = arith.addf %92, %95 : vector<28x28xf32>
    %c1_42 = arith.constant 1 : index
    %c8_43 = arith.constant 8 : index
    %97 = memref.load %arg2[%c1_42, %c8_43] : memref<8x9xf32, #tpu.memory_space<smem>>
    %98 = vector.broadcast %97 : f32 to vector<28x28xf32>
    %99 = arith.mulf %98, %14 : vector<28x28xf32>
    %100 = arith.addf %96, %99 : vector<28x28xf32>
    %c1_44 = arith.constant 1 : index
    %101 = memref.load %arg3[%c1_44] : memref<8xf32, #tpu.memory_space<smem>>
    %102 = vector.broadcast %101 : f32 to vector<28x28xf32>
    %103 = arith.addf %100, %102 : vector<28x28xf32>
    %cst_45 = arith.constant 0.000000e+00 : f32
    %104 = vector.broadcast %cst_45 : f32 to vector<28x28xf32>
    %105 = arith.maximumf %103, %104 : vector<28x28xf32>
    %106 = vector.extract_strided_slice %105 {offsets = [0, 0], sizes = [27, 28], strides = [1, 1]} : vector<28x28xf32> to vector<27x28xf32>
    %107 = vector.extract_strided_slice %105 {offsets = [1, 0], sizes = [27, 28], strides = [1, 1]} : vector<28x28xf32> to vector<27x28xf32>
    %108 = arith.maximumf %106, %107 : vector<27x28xf32>
    %109 = vector.extract_strided_slice %108 {offsets = [0, 0], sizes = [27, 27], strides = [1, 1]} : vector<27x28xf32> to vector<27x27xf32>
    %110 = vector.extract_strided_slice %108 {offsets = [0, 1], sizes = [27, 27], strides = [1, 1]} : vector<27x28xf32> to vector<27x27xf32>
    %111 = arith.maximumf %109, %110 : vector<27x27xf32>
    %cst_46 = arith.constant dense<0.000000e+00> : vector<27x16xf32>
    %112 = tpu.matmul %111, %3, %cst_46 {dimension_numbers = #tpu.dot_dimension_numbers<[1], [0], [0], [1], [0, 0, 1, 1], [], []>} : vector<27x27xf32>, vector<27x16xf32>, vector<27x16xf32> -> vector<27x16xf32>
    %cst_47 = arith.constant dense<0.000000e+00> : vector<16x16xf32>
    %113 = tpu.matmul %2, %112, %cst_47 {dimension_numbers = #tpu.dot_dimension_numbers<[1], [0], [0], [1], [0, 0, 1, 1], [], []>} : vector<16x27xf32>, vector<27x16xf32>, vector<16x16xf32> -> vector<16x16xf32>
    %c1_48 = arith.constant 1 : index
    %c0_49 = arith.constant 0 : index
    %c0_50 = arith.constant 0 : index
    %114 = vector.load %arg13[%c1_48, %c0_49, %c0_50] : memref<8x16x16xf32, #tpu.memory_space<vmem>>, vector<1x16x16xf32>
    %115 = vector.shape_cast %114 : vector<1x16x16xf32> to vector<16x16xf32>
    %116 = vector.shape_cast %113 : vector<16x16xf32> to vector<1x16x16xf32>
    tpu.vector_store %arg13[%c1_48, %c0_49, %c0_50], %116 {strides = array<i32>} : memref<8x16x16xf32, #tpu.memory_space<vmem>>, vector<1x16x16xf32>,
    %c2_51 = arith.constant 2 : index
    %c0_52 = arith.constant 0 : index
    %117 = memref.load %arg2[%c2_51, %c0_52] : memref<8x9xf32, #tpu.memory_space<smem>>
    %118 = vector.broadcast %117 : f32 to vector<28x28xf32>
    %119 = arith.mulf %118, %6 : vector<28x28xf32>
    %c2_53 = arith.constant 2 : index
    %c1_54 = arith.constant 1 : index
    %120 = memref.load %arg2[%c2_53, %c1_54] : memref<8x9xf32, #tpu.memory_space<smem>>
    %121 = vector.broadcast %120 : f32 to vector<28x28xf32>
    %122 = arith.mulf %121, %7 : vector<28x28xf32>
    %123 = arith.addf %119, %122 : vector<28x28xf32>
    %c2_55 = arith.constant 2 : index
    %c2_56 = arith.constant 2 : index
    %124 = memref.load %arg2[%c2_55, %c2_56] : memref<8x9xf32, #tpu.memory_space<smem>>
    %125 = vector.broadcast %124 : f32 to vector<28x28xf32>
    %126 = arith.mulf %125, %8 : vector<28x28xf32>
    %127 = arith.addf %123, %126 : vector<28x28xf32>
    %c2_57 = arith.constant 2 : index
    %c3_58 = arith.constant 3 : index
    %128 = memref.load %arg2[%c2_57, %c3_58] : memref<8x9xf32, #tpu.memory_space<smem>>
    %129 = vector.broadcast %128 : f32 to vector<28x28xf32>
    %130 = arith.mulf %129, %9 : vector<28x28xf32>
    %131 = arith.addf %127, %130 : vector<28x28xf32>
    %c2_59 = arith.constant 2 : index
    %c4_60 = arith.constant 4 : index
    %132 = memref.load %arg2[%c2_59, %c4_60] : memref<8x9xf32, #tpu.memory_space<smem>>
    %133 = vector.broadcast %132 : f32 to vector<28x28xf32>
    %134 = arith.mulf %133, %10 : vector<28x28xf32>
    %135 = arith.addf %131, %134 : vector<28x28xf32>
    %c2_61 = arith.constant 2 : index
    %c5_62 = arith.constant 5 : index
    %136 = memref.load %arg2[%c2_61, %c5_62] : memref<8x9xf32, #tpu.memory_space<smem>>
    %137 = vector.broadcast %136 : f32 to vector<28x28xf32>
    %138 = arith.mulf %137, %11 : vector<28x28xf32>
    %139 = arith.addf %135, %138 : vector<28x28xf32>
    %c2_63 = arith.constant 2 : index
    %c6_64 = arith.constant 6 : index
    %140 = memref.load %arg2[%c2_63, %c6_64] : memref<8x9xf32, #tpu.memory_space<smem>>
    %141 = vector.broadcast %140 : f32 to vector<28x28xf32>
    %142 = arith.mulf %141, %12 : vector<28x28xf32>
    %143 = arith.addf %139, %142 : vector<28x28xf32>
    %c2_65 = arith.constant 2 : index
    %c7_66 = arith.constant 7 : index
    %144 = memref.load %arg2[%c2_65, %c7_66] : memref<8x9xf32, #tpu.memory_space<smem>>
    %145 = vector.broadcast %144 : f32 to vector<28x28xf32>
    %146 = arith.mulf %145, %13 : vector<28x28xf32>
    %147 = arith.addf %143, %146 : vector<28x28xf32>
    %c2_67 = arith.constant 2 : index
    %c8_68 = arith.constant 8 : index
    %148 = memref.load %arg2[%c2_67, %c8_68] : memref<8x9xf32, #tpu.memory_space<smem>>
    %149 = vector.broadcast %148 : f32 to vector<28x28xf32>
    %150 = arith.mulf %149, %14 : vector<28x28xf32>
    %151 = arith.addf %147, %150 : vector<28x28xf32>
    %c2_69 = arith.constant 2 : index
    %152 = memref.load %arg3[%c2_69] : memref<8xf32, #tpu.memory_space<smem>>
    %153 = vector.broadcast %152 : f32 to vector<28x28xf32>
    %154 = arith.addf %151, %153 : vector<28x28xf32>
    %cst_70 = arith.constant 0.000000e+00 : f32
    %155 = vector.broadcast %cst_70 : f32 to vector<28x28xf32>
    %156 = arith.maximumf %154, %155 : vector<28x28xf32>
    %157 = vector.extract_strided_slice %156 {offsets = [0, 0], sizes = [27, 28], strides = [1, 1]} : vector<28x28xf32> to vector<27x28xf32>
    %158 = vector.extract_strided_slice %156 {offsets = [1, 0], sizes = [27, 28], strides = [1, 1]} : vector<28x28xf32> to vector<27x28xf32>
    %159 = arith.maximumf %157, %158 : vector<27x28xf32>
    %160 = vector.extract_strided_slice %159 {offsets = [0, 0], sizes = [27, 27], strides = [1, 1]} : vector<27x28xf32> to vector<27x27xf32>
    %161 = vector.extract_strided_slice %159 {offsets = [0, 1], sizes = [27, 27], strides = [1, 1]} : vector<27x28xf32> to vector<27x27xf32>
    %162 = arith.maximumf %160, %161 : vector<27x27xf32>
    %cst_71 = arith.constant dense<0.000000e+00> : vector<27x16xf32>
    %163 = tpu.matmul %162, %3, %cst_71 {dimension_numbers = #tpu.dot_dimension_numbers<[1], [0], [0], [1], [0, 0, 1, 1], [], []>} : vector<27x27xf32>, vector<27x16xf32>, vector<27x16xf32> -> vector<27x16xf32>
    %cst_72 = arith.constant dense<0.000000e+00> : vector<16x16xf32>
    %164 = tpu.matmul %2, %163, %cst_72 {dimension_numbers = #tpu.dot_dimension_numbers<[1], [0], [0], [1], [0, 0, 1, 1], [], []>} : vector<16x27xf32>, vector<27x16xf32>, vector<16x16xf32> -> vector<16x16xf32>
    %c2_73 = arith.constant 2 : index
    %c0_74 = arith.constant 0 : index
    %c0_75 = arith.constant 0 : index
    %165 = vector.load %arg13[%c2_73, %c0_74, %c0_75] : memref<8x16x16xf32, #tpu.memory_space<vmem>>, vector<1x16x16xf32>
    %166 = vector.shape_cast %165 : vector<1x16x16xf32> to vector<16x16xf32>
    %167 = vector.shape_cast %164 : vector<16x16xf32> to vector<1x16x16xf32>
    tpu.vector_store %arg13[%c2_73, %c0_74, %c0_75], %167 {strides = array<i32>} : memref<8x16x16xf32, #tpu.memory_space<vmem>>, vector<1x16x16xf32>,
    %c3_76 = arith.constant 3 : index
    %c0_77 = arith.constant 0 : index
    %168 = memref.load %arg2[%c3_76, %c0_77] : memref<8x9xf32, #tpu.memory_space<smem>>
    %169 = vector.broadcast %168 : f32 to vector<28x28xf32>
    %170 = arith.mulf %169, %6 : vector<28x28xf32>
    %c3_78 = arith.constant 3 : index
    %c1_79 = arith.constant 1 : index
    %171 = memref.load %arg2[%c3_78, %c1_79] : memref<8x9xf32, #tpu.memory_space<smem>>
    %172 = vector.broadcast %171 : f32 to vector<28x28xf32>
    %173 = arith.mulf %172, %7 : vector<28x28xf32>
    %174 = arith.addf %170, %173 : vector<28x28xf32>
    %c3_80 = arith.constant 3 : index
    %c2_81 = arith.constant 2 : index
    %175 = memref.load %arg2[%c3_80, %c2_81] : memref<8x9xf32, #tpu.memory_space<smem>>
    %176 = vector.broadcast %175 : f32 to vector<28x28xf32>
    %177 = arith.mulf %176, %8 : vector<28x28xf32>
    %178 = arith.addf %174, %177 : vector<28x28xf32>
    %c3_82 = arith.constant 3 : index
    %c3_83 = arith.constant 3 : index
    %179 = memref.load %arg2[%c3_82, %c3_83] : memref<8x9xf32, #tpu.memory_space<smem>>
    %180 = vector.broadcast %179 : f32 to vector<28x28xf32>
    %181 = arith.mulf %180, %9 : vector<28x28xf32>
    %182 = arith.addf %178, %181 : vector<28x28xf32>
    %c3_84 = arith.constant 3 : index
    %c4_85 = arith.constant 4 : index
    %183 = memref.load %arg2[%c3_84, %c4_85] : memref<8x9xf32, #tpu.memory_space<smem>>
    %184 = vector.broadcast %183 : f32 to vector<28x28xf32>
    %185 = arith.mulf %184, %10 : vector<28x28xf32>
    %186 = arith.addf %182, %185 : vector<28x28xf32>
    %c3_86 = arith.constant 3 : index
    %c5_87 = arith.constant 5 : index
    %187 = memref.load %arg2[%c3_86, %c5_87] : memref<8x9xf32, #tpu.memory_space<smem>>
    %188 = vector.broadcast %187 : f32 to vector<28x28xf32>
    %189 = arith.mulf %188, %11 : vector<28x28xf32>
    %190 = arith.addf %186, %189 : vector<28x28xf32>
    %c3_88 = arith.constant 3 : index
    %c6_89 = arith.constant 6 : index
    %191 = memref.load %arg2[%c3_88, %c6_89] : memref<8x9xf32, #tpu.memory_space<smem>>
    %192 = vector.broadcast %191 : f32 to vector<28x28xf32>
    %193 = arith.mulf %192, %12 : vector<28x28xf32>
    %194 = arith.addf %190, %193 : vector<28x28xf32>
    %c3_90 = arith.constant 3 : index
    %c7_91 = arith.constant 7 : index
    %195 = memref.load %arg2[%c3_90, %c7_91] : memref<8x9xf32, #tpu.memory_space<smem>>
    %196 = vector.broadcast %195 : f32 to vector<28x28xf32>
    %197 = arith.mulf %196, %13 : vector<28x28xf32>
    %198 = arith.addf %194, %197 : vector<28x28xf32>
    %c3_92 = arith.constant 3 : index
    %c8_93 = arith.constant 8 : index
    %199 = memref.load %arg2[%c3_92, %c8_93] : memref<8x9xf32, #tpu.memory_space<smem>>
    %200 = vector.broadcast %199 : f32 to vector<28x28xf32>
    %201 = arith.mulf %200, %14 : vector<28x28xf32>
    %202 = arith.addf %198, %201 : vector<28x28xf32>
    %c3_94 = arith.constant 3 : index
    %203 = memref.load %arg3[%c3_94] : memref<8xf32, #tpu.memory_space<smem>>
    %204 = vector.broadcast %203 : f32 to vector<28x28xf32>
    %205 = arith.addf %202, %204 : vector<28x28xf32>
    %cst_95 = arith.constant 0.000000e+00 : f32
    %206 = vector.broadcast %cst_95 : f32 to vector<28x28xf32>
    %207 = arith.maximumf %205, %206 : vector<28x28xf32>
    %208 = vector.extract_strided_slice %207 {offsets = [0, 0], sizes = [27, 28], strides = [1, 1]} : vector<28x28xf32> to vector<27x28xf32>
    %209 = vector.extract_strided_slice %207 {offsets = [1, 0], sizes = [27, 28], strides = [1, 1]} : vector<28x28xf32> to vector<27x28xf32>
    %210 = arith.maximumf %208, %209 : vector<27x28xf32>
    %211 = vector.extract_strided_slice %210 {offsets = [0, 0], sizes = [27, 27], strides = [1, 1]} : vector<27x28xf32> to vector<27x27xf32>
    %212 = vector.extract_strided_slice %210 {offsets = [0, 1], sizes = [27, 27], strides = [1, 1]} : vector<27x28xf32> to vector<27x27xf32>
    %213 = arith.maximumf %211, %212 : vector<27x27xf32>
    %cst_96 = arith.constant dense<0.000000e+00> : vector<27x16xf32>
    %214 = tpu.matmul %213, %3, %cst_96 {dimension_numbers = #tpu.dot_dimension_numbers<[1], [0], [0], [1], [0, 0, 1, 1], [], []>} : vector<27x27xf32>, vector<27x16xf32>, vector<27x16xf32> -> vector<27x16xf32>
    %cst_97 = arith.constant dense<0.000000e+00> : vector<16x16xf32>
    %215 = tpu.matmul %2, %214, %cst_97 {dimension_numbers = #tpu.dot_dimension_numbers<[1], [0], [0], [1], [0, 0, 1, 1], [], []>} : vector<16x27xf32>, vector<27x16xf32>, vector<16x16xf32> -> vector<16x16xf32>
    %c3_98 = arith.constant 3 : index
    %c0_99 = arith.constant 0 : index
    %c0_100 = arith.constant 0 : index
    %216 = vector.load %arg13[%c3_98, %c0_99, %c0_100] : memref<8x16x16xf32, #tpu.memory_space<vmem>>, vector<1x16x16xf32>
    %217 = vector.shape_cast %216 : vector<1x16x16xf32> to vector<16x16xf32>
    %218 = vector.shape_cast %215 : vector<16x16xf32> to vector<1x16x16xf32>
    tpu.vector_store %arg13[%c3_98, %c0_99, %c0_100], %218 {strides = array<i32>} : memref<8x16x16xf32, #tpu.memory_space<vmem>>, vector<1x16x16xf32>,
    %c4_101 = arith.constant 4 : index
    %c0_102 = arith.constant 0 : index
    %219 = memref.load %arg2[%c4_101, %c0_102] : memref<8x9xf32, #tpu.memory_space<smem>>
    %220 = vector.broadcast %219 : f32 to vector<28x28xf32>
    %221 = arith.mulf %220, %6 : vector<28x28xf32>
    %c4_103 = arith.constant 4 : index
    %c1_104 = arith.constant 1 : index
    %222 = memref.load %arg2[%c4_103, %c1_104] : memref<8x9xf32, #tpu.memory_space<smem>>
    %223 = vector.broadcast %222 : f32 to vector<28x28xf32>
    %224 = arith.mulf %223, %7 : vector<28x28xf32>
    %225 = arith.addf %221, %224 : vector<28x28xf32>
    %c4_105 = arith.constant 4 : index
    %c2_106 = arith.constant 2 : index
    %226 = memref.load %arg2[%c4_105, %c2_106] : memref<8x9xf32, #tpu.memory_space<smem>>
    %227 = vector.broadcast %226 : f32 to vector<28x28xf32>
    %228 = arith.mulf %227, %8 : vector<28x28xf32>
    %229 = arith.addf %225, %228 : vector<28x28xf32>
    %c4_107 = arith.constant 4 : index
    %c3_108 = arith.constant 3 : index
    %230 = memref.load %arg2[%c4_107, %c3_108] : memref<8x9xf32, #tpu.memory_space<smem>>
    %231 = vector.broadcast %230 : f32 to vector<28x28xf32>
    %232 = arith.mulf %231, %9 : vector<28x28xf32>
    %233 = arith.addf %229, %232 : vector<28x28xf32>
    %c4_109 = arith.constant 4 : index
    %c4_110 = arith.constant 4 : index
    %234 = memref.load %arg2[%c4_109, %c4_110] : memref<8x9xf32, #tpu.memory_space<smem>>
    %235 = vector.broadcast %234 : f32 to vector<28x28xf32>
    %236 = arith.mulf %235, %10 : vector<28x28xf32>
    %237 = arith.addf %233, %236 : vector<28x28xf32>
    %c4_111 = arith.constant 4 : index
    %c5_112 = arith.constant 5 : index
    %238 = memref.load %arg2[%c4_111, %c5_112] : memref<8x9xf32, #tpu.memory_space<smem>>
    %239 = vector.broadcast %238 : f32 to vector<28x28xf32>
    %240 = arith.mulf %239, %11 : vector<28x28xf32>
    %241 = arith.addf %237, %240 : vector<28x28xf32>
    %c4_113 = arith.constant 4 : index
    %c6_114 = arith.constant 6 : index
    %242 = memref.load %arg2[%c4_113, %c6_114] : memref<8x9xf32, #tpu.memory_space<smem>>
    %243 = vector.broadcast %242 : f32 to vector<28x28xf32>
    %244 = arith.mulf %243, %12 : vector<28x28xf32>
    %245 = arith.addf %241, %244 : vector<28x28xf32>
    %c4_115 = arith.constant 4 : index
    %c7_116 = arith.constant 7 : index
    %246 = memref.load %arg2[%c4_115, %c7_116] : memref<8x9xf32, #tpu.memory_space<smem>>
    %247 = vector.broadcast %246 : f32 to vector<28x28xf32>
    %248 = arith.mulf %247, %13 : vector<28x28xf32>
    %249 = arith.addf %245, %248 : vector<28x28xf32>
    %c4_117 = arith.constant 4 : index
    %c8_118 = arith.constant 8 : index
    %250 = memref.load %arg2[%c4_117, %c8_118] : memref<8x9xf32, #tpu.memory_space<smem>>
    %251 = vector.broadcast %250 : f32 to vector<28x28xf32>
    %252 = arith.mulf %251, %14 : vector<28x28xf32>
    %253 = arith.addf %249, %252 : vector<28x28xf32>
    %c4_119 = arith.constant 4 : index
    %254 = memref.load %arg3[%c4_119] : memref<8xf32, #tpu.memory_space<smem>>
    %255 = vector.broadcast %254 : f32 to vector<28x28xf32>
    %256 = arith.addf %253, %255 : vector<28x28xf32>
    %cst_120 = arith.constant 0.000000e+00 : f32
    %257 = vector.broadcast %cst_120 : f32 to vector<28x28xf32>
    %258 = arith.maximumf %256, %257 : vector<28x28xf32>
    %259 = vector.extract_strided_slice %258 {offsets = [0, 0], sizes = [27, 28], strides = [1, 1]} : vector<28x28xf32> to vector<27x28xf32>
    %260 = vector.extract_strided_slice %258 {offsets = [1, 0], sizes = [27, 28], strides = [1, 1]} : vector<28x28xf32> to vector<27x28xf32>
    %261 = arith.maximumf %259, %260 : vector<27x28xf32>
    %262 = vector.extract_strided_slice %261 {offsets = [0, 0], sizes = [27, 27], strides = [1, 1]} : vector<27x28xf32> to vector<27x27xf32>
    %263 = vector.extract_strided_slice %261 {offsets = [0, 1], sizes = [27, 27], strides = [1, 1]} : vector<27x28xf32> to vector<27x27xf32>
    %264 = arith.maximumf %262, %263 : vector<27x27xf32>
    %cst_121 = arith.constant dense<0.000000e+00> : vector<27x16xf32>
    %265 = tpu.matmul %264, %3, %cst_121 {dimension_numbers = #tpu.dot_dimension_numbers<[1], [0], [0], [1], [0, 0, 1, 1], [], []>} : vector<27x27xf32>, vector<27x16xf32>, vector<27x16xf32> -> vector<27x16xf32>
    %cst_122 = arith.constant dense<0.000000e+00> : vector<16x16xf32>
    %266 = tpu.matmul %2, %265, %cst_122 {dimension_numbers = #tpu.dot_dimension_numbers<[1], [0], [0], [1], [0, 0, 1, 1], [], []>} : vector<16x27xf32>, vector<27x16xf32>, vector<16x16xf32> -> vector<16x16xf32>
    %c4_123 = arith.constant 4 : index
    %c0_124 = arith.constant 0 : index
    %c0_125 = arith.constant 0 : index
    %267 = vector.load %arg13[%c4_123, %c0_124, %c0_125] : memref<8x16x16xf32, #tpu.memory_space<vmem>>, vector<1x16x16xf32>
    %268 = vector.shape_cast %267 : vector<1x16x16xf32> to vector<16x16xf32>
    %269 = vector.shape_cast %266 : vector<16x16xf32> to vector<1x16x16xf32>
    tpu.vector_store %arg13[%c4_123, %c0_124, %c0_125], %269 {strides = array<i32>} : memref<8x16x16xf32, #tpu.memory_space<vmem>>, vector<1x16x16xf32>,
    %c5_126 = arith.constant 5 : index
    %c0_127 = arith.constant 0 : index
    %270 = memref.load %arg2[%c5_126, %c0_127] : memref<8x9xf32, #tpu.memory_space<smem>>
    %271 = vector.broadcast %270 : f32 to vector<28x28xf32>
    %272 = arith.mulf %271, %6 : vector<28x28xf32>
    %c5_128 = arith.constant 5 : index
    %c1_129 = arith.constant 1 : index
    %273 = memref.load %arg2[%c5_128, %c1_129] : memref<8x9xf32, #tpu.memory_space<smem>>
    %274 = vector.broadcast %273 : f32 to vector<28x28xf32>
    %275 = arith.mulf %274, %7 : vector<28x28xf32>
    %276 = arith.addf %272, %275 : vector<28x28xf32>
    %c5_130 = arith.constant 5 : index
    %c2_131 = arith.constant 2 : index
    %277 = memref.load %arg2[%c5_130, %c2_131] : memref<8x9xf32, #tpu.memory_space<smem>>
    %278 = vector.broadcast %277 : f32 to vector<28x28xf32>
    %279 = arith.mulf %278, %8 : vector<28x28xf32>
    %280 = arith.addf %276, %279 : vector<28x28xf32>
    %c5_132 = arith.constant 5 : index
    %c3_133 = arith.constant 3 : index
    %281 = memref.load %arg2[%c5_132, %c3_133] : memref<8x9xf32, #tpu.memory_space<smem>>
    %282 = vector.broadcast %281 : f32 to vector<28x28xf32>
    %283 = arith.mulf %282, %9 : vector<28x28xf32>
    %284 = arith.addf %280, %283 : vector<28x28xf32>
    %c5_134 = arith.constant 5 : index
    %c4_135 = arith.constant 4 : index
    %285 = memref.load %arg2[%c5_134, %c4_135] : memref<8x9xf32, #tpu.memory_space<smem>>
    %286 = vector.broadcast %285 : f32 to vector<28x28xf32>
    %287 = arith.mulf %286, %10 : vector<28x28xf32>
    %288 = arith.addf %284, %287 : vector<28x28xf32>
    %c5_136 = arith.constant 5 : index
    %c5_137 = arith.constant 5 : index
    %289 = memref.load %arg2[%c5_136, %c5_137] : memref<8x9xf32, #tpu.memory_space<smem>>
    %290 = vector.broadcast %289 : f32 to vector<28x28xf32>
    %291 = arith.mulf %290, %11 : vector<28x28xf32>
    %292 = arith.addf %288, %291 : vector<28x28xf32>
    %c5_138 = arith.constant 5 : index
    %c6_139 = arith.constant 6 : index
    %293 = memref.load %arg2[%c5_138, %c6_139] : memref<8x9xf32, #tpu.memory_space<smem>>
    %294 = vector.broadcast %293 : f32 to vector<28x28xf32>
    %295 = arith.mulf %294, %12 : vector<28x28xf32>
    %296 = arith.addf %292, %295 : vector<28x28xf32>
    %c5_140 = arith.constant 5 : index
    %c7_141 = arith.constant 7 : index
    %297 = memref.load %arg2[%c5_140, %c7_141] : memref<8x9xf32, #tpu.memory_space<smem>>
    %298 = vector.broadcast %297 : f32 to vector<28x28xf32>
    %299 = arith.mulf %298, %13 : vector<28x28xf32>
    %300 = arith.addf %296, %299 : vector<28x28xf32>
    %c5_142 = arith.constant 5 : index
    %c8_143 = arith.constant 8 : index
    %301 = memref.load %arg2[%c5_142, %c8_143] : memref<8x9xf32, #tpu.memory_space<smem>>
    %302 = vector.broadcast %301 : f32 to vector<28x28xf32>
    %303 = arith.mulf %302, %14 : vector<28x28xf32>
    %304 = arith.addf %300, %303 : vector<28x28xf32>
    %c5_144 = arith.constant 5 : index
    %305 = memref.load %arg3[%c5_144] : memref<8xf32, #tpu.memory_space<smem>>
    %306 = vector.broadcast %305 : f32 to vector<28x28xf32>
    %307 = arith.addf %304, %306 : vector<28x28xf32>
    %cst_145 = arith.constant 0.000000e+00 : f32
    %308 = vector.broadcast %cst_145 : f32 to vector<28x28xf32>
    %309 = arith.maximumf %307, %308 : vector<28x28xf32>
    %310 = vector.extract_strided_slice %309 {offsets = [0, 0], sizes = [27, 28], strides = [1, 1]} : vector<28x28xf32> to vector<27x28xf32>
    %311 = vector.extract_strided_slice %309 {offsets = [1, 0], sizes = [27, 28], strides = [1, 1]} : vector<28x28xf32> to vector<27x28xf32>
    %312 = arith.maximumf %310, %311 : vector<27x28xf32>
    %313 = vector.extract_strided_slice %312 {offsets = [0, 0], sizes = [27, 27], strides = [1, 1]} : vector<27x28xf32> to vector<27x27xf32>
    %314 = vector.extract_strided_slice %312 {offsets = [0, 1], sizes = [27, 27], strides = [1, 1]} : vector<27x28xf32> to vector<27x27xf32>
    %315 = arith.maximumf %313, %314 : vector<27x27xf32>
    %cst_146 = arith.constant dense<0.000000e+00> : vector<27x16xf32>
    %316 = tpu.matmul %315, %3, %cst_146 {dimension_numbers = #tpu.dot_dimension_numbers<[1], [0], [0], [1], [0, 0, 1, 1], [], []>} : vector<27x27xf32>, vector<27x16xf32>, vector<27x16xf32> -> vector<27x16xf32>
    %cst_147 = arith.constant dense<0.000000e+00> : vector<16x16xf32>
    %317 = tpu.matmul %2, %316, %cst_147 {dimension_numbers = #tpu.dot_dimension_numbers<[1], [0], [0], [1], [0, 0, 1, 1], [], []>} : vector<16x27xf32>, vector<27x16xf32>, vector<16x16xf32> -> vector<16x16xf32>
    %c5_148 = arith.constant 5 : index
    %c0_149 = arith.constant 0 : index
    %c0_150 = arith.constant 0 : index
    %318 = vector.load %arg13[%c5_148, %c0_149, %c0_150] : memref<8x16x16xf32, #tpu.memory_space<vmem>>, vector<1x16x16xf32>
    %319 = vector.shape_cast %318 : vector<1x16x16xf32> to vector<16x16xf32>
    %320 = vector.shape_cast %317 : vector<16x16xf32> to vector<1x16x16xf32>
    tpu.vector_store %arg13[%c5_148, %c0_149, %c0_150], %320 {strides = array<i32>} : memref<8x16x16xf32, #tpu.memory_space<vmem>>, vector<1x16x16xf32>,
    %c6_151 = arith.constant 6 : index
    %c0_152 = arith.constant 0 : index
    %321 = memref.load %arg2[%c6_151, %c0_152] : memref<8x9xf32, #tpu.memory_space<smem>>
    %322 = vector.broadcast %321 : f32 to vector<28x28xf32>
    %323 = arith.mulf %322, %6 : vector<28x28xf32>
    %c6_153 = arith.constant 6 : index
    %c1_154 = arith.constant 1 : index
    %324 = memref.load %arg2[%c6_153, %c1_154] : memref<8x9xf32, #tpu.memory_space<smem>>
    %325 = vector.broadcast %324 : f32 to vector<28x28xf32>
    %326 = arith.mulf %325, %7 : vector<28x28xf32>
    %327 = arith.addf %323, %326 : vector<28x28xf32>
    %c6_155 = arith.constant 6 : index
    %c2_156 = arith.constant 2 : index
    %328 = memref.load %arg2[%c6_155, %c2_156] : memref<8x9xf32, #tpu.memory_space<smem>>
    %329 = vector.broadcast %328 : f32 to vector<28x28xf32>
    %330 = arith.mulf %329, %8 : vector<28x28xf32>
    %331 = arith.addf %327, %330 : vector<28x28xf32>
    %c6_157 = arith.constant 6 : index
    %c3_158 = arith.constant 3 : index
    %332 = memref.load %arg2[%c6_157, %c3_158] : memref<8x9xf32, #tpu.memory_space<smem>>
    %333 = vector.broadcast %332 : f32 to vector<28x28xf32>
    %334 = arith.mulf %333, %9 : vector<28x28xf32>
    %335 = arith.addf %331, %334 : vector<28x28xf32>
    %c6_159 = arith.constant 6 : index
    %c4_160 = arith.constant 4 : index
    %336 = memref.load %arg2[%c6_159, %c4_160] : memref<8x9xf32, #tpu.memory_space<smem>>
    %337 = vector.broadcast %336 : f32 to vector<28x28xf32>
    %338 = arith.mulf %337, %10 : vector<28x28xf32>
    %339 = arith.addf %335, %338 : vector<28x28xf32>
    %c6_161 = arith.constant 6 : index
    %c5_162 = arith.constant 5 : index
    %340 = memref.load %arg2[%c6_161, %c5_162] : memref<8x9xf32, #tpu.memory_space<smem>>
    %341 = vector.broadcast %340 : f32 to vector<28x28xf32>
    %342 = arith.mulf %341, %11 : vector<28x28xf32>
    %343 = arith.addf %339, %342 : vector<28x28xf32>
    %c6_163 = arith.constant 6 : index
    %c6_164 = arith.constant 6 : index
    %344 = memref.load %arg2[%c6_163, %c6_164] : memref<8x9xf32, #tpu.memory_space<smem>>
    %345 = vector.broadcast %344 : f32 to vector<28x28xf32>
    %346 = arith.mulf %345, %12 : vector<28x28xf32>
    %347 = arith.addf %343, %346 : vector<28x28xf32>
    %c6_165 = arith.constant 6 : index
    %c7_166 = arith.constant 7 : index
    %348 = memref.load %arg2[%c6_165, %c7_166] : memref<8x9xf32, #tpu.memory_space<smem>>
    %349 = vector.broadcast %348 : f32 to vector<28x28xf32>
    %350 = arith.mulf %349, %13 : vector<28x28xf32>
    %351 = arith.addf %347, %350 : vector<28x28xf32>
    %c6_167 = arith.constant 6 : index
    %c8_168 = arith.constant 8 : index
    %352 = memref.load %arg2[%c6_167, %c8_168] : memref<8x9xf32, #tpu.memory_space<smem>>
    %353 = vector.broadcast %352 : f32 to vector<28x28xf32>
    %354 = arith.mulf %353, %14 : vector<28x28xf32>
    %355 = arith.addf %351, %354 : vector<28x28xf32>
    %c6_169 = arith.constant 6 : index
    %356 = memref.load %arg3[%c6_169] : memref<8xf32, #tpu.memory_space<smem>>
    %357 = vector.broadcast %356 : f32 to vector<28x28xf32>
    %358 = arith.addf %355, %357 : vector<28x28xf32>
    %cst_170 = arith.constant 0.000000e+00 : f32
    %359 = vector.broadcast %cst_170 : f32 to vector<28x28xf32>
    %360 = arith.maximumf %358, %359 : vector<28x28xf32>
    %361 = vector.extract_strided_slice %360 {offsets = [0, 0], sizes = [27, 28], strides = [1, 1]} : vector<28x28xf32> to vector<27x28xf32>
    %362 = vector.extract_strided_slice %360 {offsets = [1, 0], sizes = [27, 28], strides = [1, 1]} : vector<28x28xf32> to vector<27x28xf32>
    %363 = arith.maximumf %361, %362 : vector<27x28xf32>
    %364 = vector.extract_strided_slice %363 {offsets = [0, 0], sizes = [27, 27], strides = [1, 1]} : vector<27x28xf32> to vector<27x27xf32>
    %365 = vector.extract_strided_slice %363 {offsets = [0, 1], sizes = [27, 27], strides = [1, 1]} : vector<27x28xf32> to vector<27x27xf32>
    %366 = arith.maximumf %364, %365 : vector<27x27xf32>
    %cst_171 = arith.constant dense<0.000000e+00> : vector<27x16xf32>
    %367 = tpu.matmul %366, %3, %cst_171 {dimension_numbers = #tpu.dot_dimension_numbers<[1], [0], [0], [1], [0, 0, 1, 1], [], []>} : vector<27x27xf32>, vector<27x16xf32>, vector<27x16xf32> -> vector<27x16xf32>
    %cst_172 = arith.constant dense<0.000000e+00> : vector<16x16xf32>
    %368 = tpu.matmul %2, %367, %cst_172 {dimension_numbers = #tpu.dot_dimension_numbers<[1], [0], [0], [1], [0, 0, 1, 1], [], []>} : vector<16x27xf32>, vector<27x16xf32>, vector<16x16xf32> -> vector<16x16xf32>
    %c6_173 = arith.constant 6 : index
    %c0_174 = arith.constant 0 : index
    %c0_175 = arith.constant 0 : index
    %369 = vector.load %arg13[%c6_173, %c0_174, %c0_175] : memref<8x16x16xf32, #tpu.memory_space<vmem>>, vector<1x16x16xf32>
    %370 = vector.shape_cast %369 : vector<1x16x16xf32> to vector<16x16xf32>
    %371 = vector.shape_cast %368 : vector<16x16xf32> to vector<1x16x16xf32>
    tpu.vector_store %arg13[%c6_173, %c0_174, %c0_175], %371 {strides = array<i32>} : memref<8x16x16xf32, #tpu.memory_space<vmem>>, vector<1x16x16xf32>,
    %c7_176 = arith.constant 7 : index
    %c0_177 = arith.constant 0 : index
    %372 = memref.load %arg2[%c7_176, %c0_177] : memref<8x9xf32, #tpu.memory_space<smem>>
    %373 = vector.broadcast %372 : f32 to vector<28x28xf32>
    %374 = arith.mulf %373, %6 : vector<28x28xf32>
    %c7_178 = arith.constant 7 : index
    %c1_179 = arith.constant 1 : index
    %375 = memref.load %arg2[%c7_178, %c1_179] : memref<8x9xf32, #tpu.memory_space<smem>>
    %376 = vector.broadcast %375 : f32 to vector<28x28xf32>
    %377 = arith.mulf %376, %7 : vector<28x28xf32>
    %378 = arith.addf %374, %377 : vector<28x28xf32>
    %c7_180 = arith.constant 7 : index
    %c2_181 = arith.constant 2 : index
    %379 = memref.load %arg2[%c7_180, %c2_181] : memref<8x9xf32, #tpu.memory_space<smem>>
    %380 = vector.broadcast %379 : f32 to vector<28x28xf32>
    %381 = arith.mulf %380, %8 : vector<28x28xf32>
    %382 = arith.addf %378, %381 : vector<28x28xf32>
    %c7_182 = arith.constant 7 : index
    %c3_183 = arith.constant 3 : index
    %383 = memref.load %arg2[%c7_182, %c3_183] : memref<8x9xf32, #tpu.memory_space<smem>>
    %384 = vector.broadcast %383 : f32 to vector<28x28xf32>
    %385 = arith.mulf %384, %9 : vector<28x28xf32>
    %386 = arith.addf %382, %385 : vector<28x28xf32>
    %c7_184 = arith.constant 7 : index
    %c4_185 = arith.constant 4 : index
    %387 = memref.load %arg2[%c7_184, %c4_185] : memref<8x9xf32, #tpu.memory_space<smem>>
    %388 = vector.broadcast %387 : f32 to vector<28x28xf32>
    %389 = arith.mulf %388, %10 : vector<28x28xf32>
    %390 = arith.addf %386, %389 : vector<28x28xf32>
    %c7_186 = arith.constant 7 : index
    %c5_187 = arith.constant 5 : index
    %391 = memref.load %arg2[%c7_186, %c5_187] : memref<8x9xf32, #tpu.memory_space<smem>>
    %392 = vector.broadcast %391 : f32 to vector<28x28xf32>
    %393 = arith.mulf %392, %11 : vector<28x28xf32>
    %394 = arith.addf %390, %393 : vector<28x28xf32>
    %c7_188 = arith.constant 7 : index
    %c6_189 = arith.constant 6 : index
    %395 = memref.load %arg2[%c7_188, %c6_189] : memref<8x9xf32, #tpu.memory_space<smem>>
    %396 = vector.broadcast %395 : f32 to vector<28x28xf32>
    %397 = arith.mulf %396, %12 : vector<28x28xf32>
    %398 = arith.addf %394, %397 : vector<28x28xf32>
    %c7_190 = arith.constant 7 : index
    %c7_191 = arith.constant 7 : index
    %399 = memref.load %arg2[%c7_190, %c7_191] : memref<8x9xf32, #tpu.memory_space<smem>>
    %400 = vector.broadcast %399 : f32 to vector<28x28xf32>
    %401 = arith.mulf %400, %13 : vector<28x28xf32>
    %402 = arith.addf %398, %401 : vector<28x28xf32>
    %c7_192 = arith.constant 7 : index
    %c8_193 = arith.constant 8 : index
    %403 = memref.load %arg2[%c7_192, %c8_193] : memref<8x9xf32, #tpu.memory_space<smem>>
    %404 = vector.broadcast %403 : f32 to vector<28x28xf32>
    %405 = arith.mulf %404, %14 : vector<28x28xf32>
    %406 = arith.addf %402, %405 : vector<28x28xf32>
    %c7_194 = arith.constant 7 : index
    %407 = memref.load %arg3[%c7_194] : memref<8xf32, #tpu.memory_space<smem>>
    %408 = vector.broadcast %407 : f32 to vector<28x28xf32>
    %409 = arith.addf %406, %408 : vector<28x28xf32>
    %cst_195 = arith.constant 0.000000e+00 : f32
    %410 = vector.broadcast %cst_195 : f32 to vector<28x28xf32>
    %411 = arith.maximumf %409, %410 : vector<28x28xf32>
    %412 = vector.extract_strided_slice %411 {offsets = [0, 0], sizes = [27, 28], strides = [1, 1]} : vector<28x28xf32> to vector<27x28xf32>
    %413 = vector.extract_strided_slice %411 {offsets = [1, 0], sizes = [27, 28], strides = [1, 1]} : vector<28x28xf32> to vector<27x28xf32>
    %414 = arith.maximumf %412, %413 : vector<27x28xf32>
    %415 = vector.extract_strided_slice %414 {offsets = [0, 0], sizes = [27, 27], strides = [1, 1]} : vector<27x28xf32> to vector<27x27xf32>
    %416 = vector.extract_strided_slice %414 {offsets = [0, 1], sizes = [27, 27], strides = [1, 1]} : vector<27x28xf32> to vector<27x27xf32>
    %417 = arith.maximumf %415, %416 : vector<27x27xf32>
    %cst_196 = arith.constant dense<0.000000e+00> : vector<27x16xf32>
    %418 = tpu.matmul %417, %3, %cst_196 {dimension_numbers = #tpu.dot_dimension_numbers<[1], [0], [0], [1], [0, 0, 1, 1], [], []>} : vector<27x27xf32>, vector<27x16xf32>, vector<27x16xf32> -> vector<27x16xf32>
    %cst_197 = arith.constant dense<0.000000e+00> : vector<16x16xf32>
    %419 = tpu.matmul %2, %418, %cst_197 {dimension_numbers = #tpu.dot_dimension_numbers<[1], [0], [0], [1], [0, 0, 1, 1], [], []>} : vector<16x27xf32>, vector<27x16xf32>, vector<16x16xf32> -> vector<16x16xf32>
    %c7_198 = arith.constant 7 : index
    %c0_199 = arith.constant 0 : index
    %c0_200 = arith.constant 0 : index
    %420 = vector.load %arg13[%c7_198, %c0_199, %c0_200] : memref<8x16x16xf32, #tpu.memory_space<vmem>>, vector<1x16x16xf32>
    %421 = vector.shape_cast %420 : vector<1x16x16xf32> to vector<16x16xf32>
    %422 = vector.shape_cast %419 : vector<16x16xf32> to vector<1x16x16xf32>
    tpu.vector_store %arg13[%c7_198, %c0_199, %c0_200], %422 {strides = array<i32>} : memref<8x16x16xf32, #tpu.memory_space<vmem>>, vector<1x16x16xf32>,
    %c0_i32 = arith.constant 0 : i32
    %c16_i32 = arith.constant 16 : i32
    %423 = arith.addi %c0_i32, %c16_i32 : i32
    %c1_i32 = arith.constant 1 : i32
    scf.for %arg15 = %c0_i32 to %423 step %c1_i32  : i32 {
      %cst_312 = arith.constant 0.000000e+00 : f32
      %731 = vector.broadcast %cst_312 : f32 to vector<14x14xf32>
      %c0_313 = arith.constant 0 : index
      %c0_314 = arith.constant 0 : index
      %c0_315 = arith.constant 0 : index
      %732 = vector.load %arg13[%c0_313, %c0_314, %c0_315] : memref<8x16x16xf32, #tpu.memory_space<vmem>>, vector<1x16x16xf32>
      %733 = vector.shape_cast %732 : vector<1x16x16xf32> to vector<16x16xf32>
      %734 = arith.index_cast %arg15 : i32 to index
      %c0_316 = arith.constant 0 : index
      %735 = memref.load %arg4[%734, %c0_316] : memref<16x72xf32, #tpu.memory_space<smem>>
      %736 = vector.extract_strided_slice %733 {offsets = [0, 0], sizes = [14, 14], strides = [1, 1]} : vector<16x16xf32> to vector<14x14xf32>
      %737 = vector.broadcast %735 : f32 to vector<14x14xf32>
      %738 = arith.mulf %737, %736 : vector<14x14xf32>
      %739 = arith.addf %731, %738 : vector<14x14xf32>
      %740 = arith.index_cast %arg15 : i32 to index
      %c1_317 = arith.constant 1 : index
      %741 = memref.load %arg4[%740, %c1_317] : memref<16x72xf32, #tpu.memory_space<smem>>
      %742 = vector.extract_strided_slice %733 {offsets = [0, 1], sizes = [14, 14], strides = [1, 1]} : vector<16x16xf32> to vector<14x14xf32>
      %743 = vector.broadcast %741 : f32 to vector<14x14xf32>
      %744 = arith.mulf %743, %742 : vector<14x14xf32>
      %745 = arith.addf %739, %744 : vector<14x14xf32>
      %746 = arith.index_cast %arg15 : i32 to index
      %c2_318 = arith.constant 2 : index
      %747 = memref.load %arg4[%746, %c2_318] : memref<16x72xf32, #tpu.memory_space<smem>>
      %748 = vector.extract_strided_slice %733 {offsets = [0, 2], sizes = [14, 14], strides = [1, 1]} : vector<16x16xf32> to vector<14x14xf32>
      %749 = vector.broadcast %747 : f32 to vector<14x14xf32>
      %750 = arith.mulf %749, %748 : vector<14x14xf32>
      %751 = arith.addf %745, %750 : vector<14x14xf32>
      %752 = arith.index_cast %arg15 : i32 to index
      %c3_319 = arith.constant 3 : index
      %753 = memref.load %arg4[%752, %c3_319] : memref<16x72xf32, #tpu.memory_space<smem>>
      %754 = vector.extract_strided_slice %733 {offsets = [1, 0], sizes = [14, 14], strides = [1, 1]} : vector<16x16xf32> to vector<14x14xf32>
      %755 = vector.broadcast %753 : f32 to vector<14x14xf32>
      %756 = arith.mulf %755, %754 : vector<14x14xf32>
      %757 = arith.addf %751, %756 : vector<14x14xf32>
      %758 = arith.index_cast %arg15 : i32 to index
      %c4_320 = arith.constant 4 : index
      %759 = memref.load %arg4[%758, %c4_320] : memref<16x72xf32, #tpu.memory_space<smem>>
      %760 = vector.extract_strided_slice %733 {offsets = [1, 1], sizes = [14, 14], strides = [1, 1]} : vector<16x16xf32> to vector<14x14xf32>
      %761 = vector.broadcast %759 : f32 to vector<14x14xf32>
      %762 = arith.mulf %761, %760 : vector<14x14xf32>
      %763 = arith.addf %757, %762 : vector<14x14xf32>
      %764 = arith.index_cast %arg15 : i32 to index
      %c5_321 = arith.constant 5 : index
      %765 = memref.load %arg4[%764, %c5_321] : memref<16x72xf32, #tpu.memory_space<smem>>
      %766 = vector.extract_strided_slice %733 {offsets = [1, 2], sizes = [14, 14], strides = [1, 1]} : vector<16x16xf32> to vector<14x14xf32>
      %767 = vector.broadcast %765 : f32 to vector<14x14xf32>
      %768 = arith.mulf %767, %766 : vector<14x14xf32>
      %769 = arith.addf %763, %768 : vector<14x14xf32>
      %770 = arith.index_cast %arg15 : i32 to index
      %c6_322 = arith.constant 6 : index
      %771 = memref.load %arg4[%770, %c6_322] : memref<16x72xf32, #tpu.memory_space<smem>>
      %772 = vector.extract_strided_slice %733 {offsets = [2, 0], sizes = [14, 14], strides = [1, 1]} : vector<16x16xf32> to vector<14x14xf32>
      %773 = vector.broadcast %771 : f32 to vector<14x14xf32>
      %774 = arith.mulf %773, %772 : vector<14x14xf32>
      %775 = arith.addf %769, %774 : vector<14x14xf32>
      %776 = arith.index_cast %arg15 : i32 to index
      %c7_323 = arith.constant 7 : index
      %777 = memref.load %arg4[%776, %c7_323] : memref<16x72xf32, #tpu.memory_space<smem>>
      %778 = vector.extract_strided_slice %733 {offsets = [2, 1], sizes = [14, 14], strides = [1, 1]} : vector<16x16xf32> to vector<14x14xf32>
      %779 = vector.broadcast %777 : f32 to vector<14x14xf32>
      %780 = arith.mulf %779, %778 : vector<14x14xf32>
      %781 = arith.addf %775, %780 : vector<14x14xf32>
      %782 = arith.index_cast %arg15 : i32 to index
      %c8_324 = arith.constant 8 : index
      %783 = memref.load %arg4[%782, %c8_324] : memref<16x72xf32, #tpu.memory_space<smem>>
      %784 = vector.extract_strided_slice %733 {offsets = [2, 2], sizes = [14, 14], strides = [1, 1]} : vector<16x16xf32> to vector<14x14xf32>
      %785 = vector.broadcast %783 : f32 to vector<14x14xf32>
      %786 = arith.mulf %785, %784 : vector<14x14xf32>
      %787 = arith.addf %781, %786 : vector<14x14xf32>
      %c1_325 = arith.constant 1 : index
      %c0_326 = arith.constant 0 : index
      %c0_327 = arith.constant 0 : index
      %788 = vector.load %arg13[%c1_325, %c0_326, %c0_327] : memref<8x16x16xf32, #tpu.memory_space<vmem>>, vector<1x16x16xf32>
      %789 = vector.shape_cast %788 : vector<1x16x16xf32> to vector<16x16xf32>
      %790 = arith.index_cast %arg15 : i32 to index
      %c9_328 = arith.constant 9 : index
      %791 = memref.load %arg4[%790, %c9_328] : memref<16x72xf32, #tpu.memory_space<smem>>
      %792 = vector.extract_strided_slice %789 {offsets = [0, 0], sizes = [14, 14], strides = [1, 1]} : vector<16x16xf32> to vector<14x14xf32>
      %793 = vector.broadcast %791 : f32 to vector<14x14xf32>
      %794 = arith.mulf %793, %792 : vector<14x14xf32>
      %795 = arith.addf %787, %794 : vector<14x14xf32>
      %796 = arith.index_cast %arg15 : i32 to index
      %c10_329 = arith.constant 10 : index
      %797 = memref.load %arg4[%796, %c10_329] : memref<16x72xf32, #tpu.memory_space<smem>>
      %798 = vector.extract_strided_slice %789 {offsets = [0, 1], sizes = [14, 14], strides = [1, 1]} : vector<16x16xf32> to vector<14x14xf32>
      %799 = vector.broadcast %797 : f32 to vector<14x14xf32>
      %800 = arith.mulf %799, %798 : vector<14x14xf32>
      %801 = arith.addf %795, %800 : vector<14x14xf32>
      %802 = arith.index_cast %arg15 : i32 to index
      %c11_330 = arith.constant 11 : index
      %803 = memref.load %arg4[%802, %c11_330] : memref<16x72xf32, #tpu.memory_space<smem>>
      %804 = vector.extract_strided_slice %789 {offsets = [0, 2], sizes = [14, 14], strides = [1, 1]} : vector<16x16xf32> to vector<14x14xf32>
      %805 = vector.broadcast %803 : f32 to vector<14x14xf32>
      %806 = arith.mulf %805, %804 : vector<14x14xf32>
      %807 = arith.addf %801, %806 : vector<14x14xf32>
      %808 = arith.index_cast %arg15 : i32 to index
      %c12_331 = arith.constant 12 : index
      %809 = memref.load %arg4[%808, %c12_331] : memref<16x72xf32, #tpu.memory_space<smem>>
      %810 = vector.extract_strided_slice %789 {offsets = [1, 0], sizes = [14, 14], strides = [1, 1]} : vector<16x16xf32> to vector<14x14xf32>
      %811 = vector.broadcast %809 : f32 to vector<14x14xf32>
      %812 = arith.mulf %811, %810 : vector<14x14xf32>
      %813 = arith.addf %807, %812 : vector<14x14xf32>
      %814 = arith.index_cast %arg15 : i32 to index
      %c13_332 = arith.constant 13 : index
      %815 = memref.load %arg4[%814, %c13_332] : memref<16x72xf32, #tpu.memory_space<smem>>
      %816 = vector.extract_strided_slice %789 {offsets = [1, 1], sizes = [14, 14], strides = [1, 1]} : vector<16x16xf32> to vector<14x14xf32>
      %817 = vector.broadcast %815 : f32 to vector<14x14xf32>
      %818 = arith.mulf %817, %816 : vector<14x14xf32>
      %819 = arith.addf %813, %818 : vector<14x14xf32>
      %820 = arith.index_cast %arg15 : i32 to index
      %c14_333 = arith.constant 14 : index
      %821 = memref.load %arg4[%820, %c14_333] : memref<16x72xf32, #tpu.memory_space<smem>>
      %822 = vector.extract_strided_slice %789 {offsets = [1, 2], sizes = [14, 14], strides = [1, 1]} : vector<16x16xf32> to vector<14x14xf32>
      %823 = vector.broadcast %821 : f32 to vector<14x14xf32>
      %824 = arith.mulf %823, %822 : vector<14x14xf32>
      %825 = arith.addf %819, %824 : vector<14x14xf32>
      %826 = arith.index_cast %arg15 : i32 to index
      %c15_334 = arith.constant 15 : index
      %827 = memref.load %arg4[%826, %c15_334] : memref<16x72xf32, #tpu.memory_space<smem>>
      %828 = vector.extract_strided_slice %789 {offsets = [2, 0], sizes = [14, 14], strides = [1, 1]} : vector<16x16xf32> to vector<14x14xf32>
      %829 = vector.broadcast %827 : f32 to vector<14x14xf32>
      %830 = arith.mulf %829, %828 : vector<14x14xf32>
      %831 = arith.addf %825, %830 : vector<14x14xf32>
      %832 = arith.index_cast %arg15 : i32 to index
      %c16 = arith.constant 16 : index
      %833 = memref.load %arg4[%832, %c16] : memref<16x72xf32, #tpu.memory_space<smem>>
      %834 = vector.extract_strided_slice %789 {offsets = [2, 1], sizes = [14, 14], strides = [1, 1]} : vector<16x16xf32> to vector<14x14xf32>
      %835 = vector.broadcast %833 : f32 to vector<14x14xf32>
      %836 = arith.mulf %835, %834 : vector<14x14xf32>
      %837 = arith.addf %831, %836 : vector<14x14xf32>
      %838 = arith.index_cast %arg15 : i32 to index
      %c17 = arith.constant 17 : index
      %839 = memref.load %arg4[%838, %c17] : memref<16x72xf32, #tpu.memory_space<smem>>
      %840 = vector.extract_strided_slice %789 {offsets = [2, 2], sizes = [14, 14], strides = [1, 1]} : vector<16x16xf32> to vector<14x14xf32>
      %841 = vector.broadcast %839 : f32 to vector<14x14xf32>
      %842 = arith.mulf %841, %840 : vector<14x14xf32>
      %843 = arith.addf %837, %842 : vector<14x14xf32>
      %c2_335 = arith.constant 2 : index
      %c0_336 = arith.constant 0 : index
      %c0_337 = arith.constant 0 : index
      %844 = vector.load %arg13[%c2_335, %c0_336, %c0_337] : memref<8x16x16xf32, #tpu.memory_space<vmem>>, vector<1x16x16xf32>
      %845 = vector.shape_cast %844 : vector<1x16x16xf32> to vector<16x16xf32>
      %846 = arith.index_cast %arg15 : i32 to index
      %c18 = arith.constant 18 : index
      %847 = memref.load %arg4[%846, %c18] : memref<16x72xf32, #tpu.memory_space<smem>>
      %848 = vector.extract_strided_slice %845 {offsets = [0, 0], sizes = [14, 14], strides = [1, 1]} : vector<16x16xf32> to vector<14x14xf32>
      %849 = vector.broadcast %847 : f32 to vector<14x14xf32>
      %850 = arith.mulf %849, %848 : vector<14x14xf32>
      %851 = arith.addf %843, %850 : vector<14x14xf32>
      %852 = arith.index_cast %arg15 : i32 to index
      %c19 = arith.constant 19 : index
      %853 = memref.load %arg4[%852, %c19] : memref<16x72xf32, #tpu.memory_space<smem>>
      %854 = vector.extract_strided_slice %845 {offsets = [0, 1], sizes = [14, 14], strides = [1, 1]} : vector<16x16xf32> to vector<14x14xf32>
      %855 = vector.broadcast %853 : f32 to vector<14x14xf32>
      %856 = arith.mulf %855, %854 : vector<14x14xf32>
      %857 = arith.addf %851, %856 : vector<14x14xf32>
      %858 = arith.index_cast %arg15 : i32 to index
      %c20 = arith.constant 20 : index
      %859 = memref.load %arg4[%858, %c20] : memref<16x72xf32, #tpu.memory_space<smem>>
      %860 = vector.extract_strided_slice %845 {offsets = [0, 2], sizes = [14, 14], strides = [1, 1]} : vector<16x16xf32> to vector<14x14xf32>
      %861 = vector.broadcast %859 : f32 to vector<14x14xf32>
      %862 = arith.mulf %861, %860 : vector<14x14xf32>
      %863 = arith.addf %857, %862 : vector<14x14xf32>
      %864 = arith.index_cast %arg15 : i32 to index
      %c21 = arith.constant 21 : index
      %865 = memref.load %arg4[%864, %c21] : memref<16x72xf32, #tpu.memory_space<smem>>
      %866 = vector.extract_strided_slice %845 {offsets = [1, 0], sizes = [14, 14], strides = [1, 1]} : vector<16x16xf32> to vector<14x14xf32>
      %867 = vector.broadcast %865 : f32 to vector<14x14xf32>
      %868 = arith.mulf %867, %866 : vector<14x14xf32>
      %869 = arith.addf %863, %868 : vector<14x14xf32>
      %870 = arith.index_cast %arg15 : i32 to index
      %c22 = arith.constant 22 : index
      %871 = memref.load %arg4[%870, %c22] : memref<16x72xf32, #tpu.memory_space<smem>>
      %872 = vector.extract_strided_slice %845 {offsets = [1, 1], sizes = [14, 14], strides = [1, 1]} : vector<16x16xf32> to vector<14x14xf32>
      %873 = vector.broadcast %871 : f32 to vector<14x14xf32>
      %874 = arith.mulf %873, %872 : vector<14x14xf32>
      %875 = arith.addf %869, %874 : vector<14x14xf32>
      %876 = arith.index_cast %arg15 : i32 to index
      %c23 = arith.constant 23 : index
      %877 = memref.load %arg4[%876, %c23] : memref<16x72xf32, #tpu.memory_space<smem>>
      %878 = vector.extract_strided_slice %845 {offsets = [1, 2], sizes = [14, 14], strides = [1, 1]} : vector<16x16xf32> to vector<14x14xf32>
      %879 = vector.broadcast %877 : f32 to vector<14x14xf32>
      %880 = arith.mulf %879, %878 : vector<14x14xf32>
      %881 = arith.addf %875, %880 : vector<14x14xf32>
      %882 = arith.index_cast %arg15 : i32 to index
      %c24 = arith.constant 24 : index
      %883 = memref.load %arg4[%882, %c24] : memref<16x72xf32, #tpu.memory_space<smem>>
      %884 = vector.extract_strided_slice %845 {offsets = [2, 0], sizes = [14, 14], strides = [1, 1]} : vector<16x16xf32> to vector<14x14xf32>
      %885 = vector.broadcast %883 : f32 to vector<14x14xf32>
      %886 = arith.mulf %885, %884 : vector<14x14xf32>
      %887 = arith.addf %881, %886 : vector<14x14xf32>
      %888 = arith.index_cast %arg15 : i32 to index
      %c25 = arith.constant 25 : index
      %889 = memref.load %arg4[%888, %c25] : memref<16x72xf32, #tpu.memory_space<smem>>
      %890 = vector.extract_strided_slice %845 {offsets = [2, 1], sizes = [14, 14], strides = [1, 1]} : vector<16x16xf32> to vector<14x14xf32>
      %891 = vector.broadcast %889 : f32 to vector<14x14xf32>
      %892 = arith.mulf %891, %890 : vector<14x14xf32>
      %893 = arith.addf %887, %892 : vector<14x14xf32>
      %894 = arith.index_cast %arg15 : i32 to index
      %c26 = arith.constant 26 : index
      %895 = memref.load %arg4[%894, %c26] : memref<16x72xf32, #tpu.memory_space<smem>>
      %896 = vector.extract_strided_slice %845 {offsets = [2, 2], sizes = [14, 14], strides = [1, 1]} : vector<16x16xf32> to vector<14x14xf32>
      %897 = vector.broadcast %895 : f32 to vector<14x14xf32>
      %898 = arith.mulf %897, %896 : vector<14x14xf32>
      %899 = arith.addf %893, %898 : vector<14x14xf32>
      %c3_338 = arith.constant 3 : index
      %c0_339 = arith.constant 0 : index
      %c0_340 = arith.constant 0 : index
      %900 = vector.load %arg13[%c3_338, %c0_339, %c0_340] : memref<8x16x16xf32, #tpu.memory_space<vmem>>, vector<1x16x16xf32>
      %901 = vector.shape_cast %900 : vector<1x16x16xf32> to vector<16x16xf32>
      %902 = arith.index_cast %arg15 : i32 to index
      %c27 = arith.constant 27 : index
      %903 = memref.load %arg4[%902, %c27] : memref<16x72xf32, #tpu.memory_space<smem>>
      %904 = vector.extract_strided_slice %901 {offsets = [0, 0], sizes = [14, 14], strides = [1, 1]} : vector<16x16xf32> to vector<14x14xf32>
      %905 = vector.broadcast %903 : f32 to vector<14x14xf32>
      %906 = arith.mulf %905, %904 : vector<14x14xf32>
      %907 = arith.addf %899, %906 : vector<14x14xf32>
      %908 = arith.index_cast %arg15 : i32 to index
      %c28 = arith.constant 28 : index
      %909 = memref.load %arg4[%908, %c28] : memref<16x72xf32, #tpu.memory_space<smem>>
      %910 = vector.extract_strided_slice %901 {offsets = [0, 1], sizes = [14, 14], strides = [1, 1]} : vector<16x16xf32> to vector<14x14xf32>
      %911 = vector.broadcast %909 : f32 to vector<14x14xf32>
      %912 = arith.mulf %911, %910 : vector<14x14xf32>
      %913 = arith.addf %907, %912 : vector<14x14xf32>
      %914 = arith.index_cast %arg15 : i32 to index
      %c29 = arith.constant 29 : index
      %915 = memref.load %arg4[%914, %c29] : memref<16x72xf32, #tpu.memory_space<smem>>
      %916 = vector.extract_strided_slice %901 {offsets = [0, 2], sizes = [14, 14], strides = [1, 1]} : vector<16x16xf32> to vector<14x14xf32>
      %917 = vector.broadcast %915 : f32 to vector<14x14xf32>
      %918 = arith.mulf %917, %916 : vector<14x14xf32>
      %919 = arith.addf %913, %918 : vector<14x14xf32>
      %920 = arith.index_cast %arg15 : i32 to index
      %c30 = arith.constant 30 : index
      %921 = memref.load %arg4[%920, %c30] : memref<16x72xf32, #tpu.memory_space<smem>>
      %922 = vector.extract_strided_slice %901 {offsets = [1, 0], sizes = [14, 14], strides = [1, 1]} : vector<16x16xf32> to vector<14x14xf32>
      %923 = vector.broadcast %921 : f32 to vector<14x14xf32>
      %924 = arith.mulf %923, %922 : vector<14x14xf32>
      %925 = arith.addf %919, %924 : vector<14x14xf32>
      %926 = arith.index_cast %arg15 : i32 to index
      %c31 = arith.constant 31 : index
      %927 = memref.load %arg4[%926, %c31] : memref<16x72xf32, #tpu.memory_space<smem>>
      %928 = vector.extract_strided_slice %901 {offsets = [1, 1], sizes = [14, 14], strides = [1, 1]} : vector<16x16xf32> to vector<14x14xf32>
      %929 = vector.broadcast %927 : f32 to vector<14x14xf32>
      %930 = arith.mulf %929, %928 : vector<14x14xf32>
      %931 = arith.addf %925, %930 : vector<14x14xf32>
      %932 = arith.index_cast %arg15 : i32 to index
      %c32 = arith.constant 32 : index
      %933 = memref.load %arg4[%932, %c32] : memref<16x72xf32, #tpu.memory_space<smem>>
      %934 = vector.extract_strided_slice %901 {offsets = [1, 2], sizes = [14, 14], strides = [1, 1]} : vector<16x16xf32> to vector<14x14xf32>
      %935 = vector.broadcast %933 : f32 to vector<14x14xf32>
      %936 = arith.mulf %935, %934 : vector<14x14xf32>
      %937 = arith.addf %931, %936 : vector<14x14xf32>
      %938 = arith.index_cast %arg15 : i32 to index
      %c33 = arith.constant 33 : index
      %939 = memref.load %arg4[%938, %c33] : memref<16x72xf32, #tpu.memory_space<smem>>
      %940 = vector.extract_strided_slice %901 {offsets = [2, 0], sizes = [14, 14], strides = [1, 1]} : vector<16x16xf32> to vector<14x14xf32>
      %941 = vector.broadcast %939 : f32 to vector<14x14xf32>
      %942 = arith.mulf %941, %940 : vector<14x14xf32>
      %943 = arith.addf %937, %942 : vector<14x14xf32>
      %944 = arith.index_cast %arg15 : i32 to index
      %c34 = arith.constant 34 : index
      %945 = memref.load %arg4[%944, %c34] : memref<16x72xf32, #tpu.memory_space<smem>>
      %946 = vector.extract_strided_slice %901 {offsets = [2, 1], sizes = [14, 14], strides = [1, 1]} : vector<16x16xf32> to vector<14x14xf32>
      %947 = vector.broadcast %945 : f32 to vector<14x14xf32>
      %948 = arith.mulf %947, %946 : vector<14x14xf32>
      %949 = arith.addf %943, %948 : vector<14x14xf32>
      %950 = arith.index_cast %arg15 : i32 to index
      %c35 = arith.constant 35 : index
      %951 = memref.load %arg4[%950, %c35] : memref<16x72xf32, #tpu.memory_space<smem>>
      %952 = vector.extract_strided_slice %901 {offsets = [2, 2], sizes = [14, 14], strides = [1, 1]} : vector<16x16xf32> to vector<14x14xf32>
      %953 = vector.broadcast %951 : f32 to vector<14x14xf32>
      %954 = arith.mulf %953, %952 : vector<14x14xf32>
      %955 = arith.addf %949, %954 : vector<14x14xf32>
      %c4_341 = arith.constant 4 : index
      %c0_342 = arith.constant 0 : index
      %c0_343 = arith.constant 0 : index
      %956 = vector.load %arg13[%c4_341, %c0_342, %c0_343] : memref<8x16x16xf32, #tpu.memory_space<vmem>>, vector<1x16x16xf32>
      %957 = vector.shape_cast %956 : vector<1x16x16xf32> to vector<16x16xf32>
      %958 = arith.index_cast %arg15 : i32 to index
      %c36 = arith.constant 36 : index
      %959 = memref.load %arg4[%958, %c36] : memref<16x72xf32, #tpu.memory_space<smem>>
      %960 = vector.extract_strided_slice %957 {offsets = [0, 0], sizes = [14, 14], strides = [1, 1]} : vector<16x16xf32> to vector<14x14xf32>
      %961 = vector.broadcast %959 : f32 to vector<14x14xf32>
      %962 = arith.mulf %961, %960 : vector<14x14xf32>
      %963 = arith.addf %955, %962 : vector<14x14xf32>
      %964 = arith.index_cast %arg15 : i32 to index
      %c37 = arith.constant 37 : index
      %965 = memref.load %arg4[%964, %c37] : memref<16x72xf32, #tpu.memory_space<smem>>
      %966 = vector.extract_strided_slice %957 {offsets = [0, 1], sizes = [14, 14], strides = [1, 1]} : vector<16x16xf32> to vector<14x14xf32>
      %967 = vector.broadcast %965 : f32 to vector<14x14xf32>
      %968 = arith.mulf %967, %966 : vector<14x14xf32>
      %969 = arith.addf %963, %968 : vector<14x14xf32>
      %970 = arith.index_cast %arg15 : i32 to index
      %c38 = arith.constant 38 : index
      %971 = memref.load %arg4[%970, %c38] : memref<16x72xf32, #tpu.memory_space<smem>>
      %972 = vector.extract_strided_slice %957 {offsets = [0, 2], sizes = [14, 14], strides = [1, 1]} : vector<16x16xf32> to vector<14x14xf32>
      %973 = vector.broadcast %971 : f32 to vector<14x14xf32>
      %974 = arith.mulf %973, %972 : vector<14x14xf32>
      %975 = arith.addf %969, %974 : vector<14x14xf32>
      %976 = arith.index_cast %arg15 : i32 to index
      %c39 = arith.constant 39 : index
      %977 = memref.load %arg4[%976, %c39] : memref<16x72xf32, #tpu.memory_space<smem>>
      %978 = vector.extract_strided_slice %957 {offsets = [1, 0], sizes = [14, 14], strides = [1, 1]} : vector<16x16xf32> to vector<14x14xf32>
      %979 = vector.broadcast %977 : f32 to vector<14x14xf32>
      %980 = arith.mulf %979, %978 : vector<14x14xf32>
      %981 = arith.addf %975, %980 : vector<14x14xf32>
      %982 = arith.index_cast %arg15 : i32 to index
      %c40 = arith.constant 40 : index
      %983 = memref.load %arg4[%982, %c40] : memref<16x72xf32, #tpu.memory_space<smem>>
      %984 = vector.extract_strided_slice %957 {offsets = [1, 1], sizes = [14, 14], strides = [1, 1]} : vector<16x16xf32> to vector<14x14xf32>
      %985 = vector.broadcast %983 : f32 to vector<14x14xf32>
      %986 = arith.mulf %985, %984 : vector<14x14xf32>
      %987 = arith.addf %981, %986 : vector<14x14xf32>
      %988 = arith.index_cast %arg15 : i32 to index
      %c41 = arith.constant 41 : index
      %989 = memref.load %arg4[%988, %c41] : memref<16x72xf32, #tpu.memory_space<smem>>
      %990 = vector.extract_strided_slice %957 {offsets = [1, 2], sizes = [14, 14], strides = [1, 1]} : vector<16x16xf32> to vector<14x14xf32>
      %991 = vector.broadcast %989 : f32 to vector<14x14xf32>
      %992 = arith.mulf %991, %990 : vector<14x14xf32>
      %993 = arith.addf %987, %992 : vector<14x14xf32>
      %994 = arith.index_cast %arg15 : i32 to index
      %c42 = arith.constant 42 : index
      %995 = memref.load %arg4[%994, %c42] : memref<16x72xf32, #tpu.memory_space<smem>>
      %996 = vector.extract_strided_slice %957 {offsets = [2, 0], sizes = [14, 14], strides = [1, 1]} : vector<16x16xf32> to vector<14x14xf32>
      %997 = vector.broadcast %995 : f32 to vector<14x14xf32>
      %998 = arith.mulf %997, %996 : vector<14x14xf32>
      %999 = arith.addf %993, %998 : vector<14x14xf32>
      %1000 = arith.index_cast %arg15 : i32 to index
      %c43 = arith.constant 43 : index
      %1001 = memref.load %arg4[%1000, %c43] : memref<16x72xf32, #tpu.memory_space<smem>>
      %1002 = vector.extract_strided_slice %957 {offsets = [2, 1], sizes = [14, 14], strides = [1, 1]} : vector<16x16xf32> to vector<14x14xf32>
      %1003 = vector.broadcast %1001 : f32 to vector<14x14xf32>
      %1004 = arith.mulf %1003, %1002 : vector<14x14xf32>
      %1005 = arith.addf %999, %1004 : vector<14x14xf32>
      %1006 = arith.index_cast %arg15 : i32 to index
      %c44 = arith.constant 44 : index
      %1007 = memref.load %arg4[%1006, %c44] : memref<16x72xf32, #tpu.memory_space<smem>>
      %1008 = vector.extract_strided_slice %957 {offsets = [2, 2], sizes = [14, 14], strides = [1, 1]} : vector<16x16xf32> to vector<14x14xf32>
      %1009 = vector.broadcast %1007 : f32 to vector<14x14xf32>
      %1010 = arith.mulf %1009, %1008 : vector<14x14xf32>
      %1011 = arith.addf %1005, %1010 : vector<14x14xf32>
      %c5_344 = arith.constant 5 : index
      %c0_345 = arith.constant 0 : index
      %c0_346 = arith.constant 0 : index
      %1012 = vector.load %arg13[%c5_344, %c0_345, %c0_346] : memref<8x16x16xf32, #tpu.memory_space<vmem>>, vector<1x16x16xf32>
      %1013 = vector.shape_cast %1012 : vector<1x16x16xf32> to vector<16x16xf32>
      %1014 = arith.index_cast %arg15 : i32 to index
      %c45 = arith.constant 45 : index
      %1015 = memref.load %arg4[%1014, %c45] : memref<16x72xf32, #tpu.memory_space<smem>>
      %1016 = vector.extract_strided_slice %1013 {offsets = [0, 0], sizes = [14, 14], strides = [1, 1]} : vector<16x16xf32> to vector<14x14xf32>
      %1017 = vector.broadcast %1015 : f32 to vector<14x14xf32>
      %1018 = arith.mulf %1017, %1016 : vector<14x14xf32>
      %1019 = arith.addf %1011, %1018 : vector<14x14xf32>
      %1020 = arith.index_cast %arg15 : i32 to index
      %c46 = arith.constant 46 : index
      %1021 = memref.load %arg4[%1020, %c46] : memref<16x72xf32, #tpu.memory_space<smem>>
      %1022 = vector.extract_strided_slice %1013 {offsets = [0, 1], sizes = [14, 14], strides = [1, 1]} : vector<16x16xf32> to vector<14x14xf32>
      %1023 = vector.broadcast %1021 : f32 to vector<14x14xf32>
      %1024 = arith.mulf %1023, %1022 : vector<14x14xf32>
      %1025 = arith.addf %1019, %1024 : vector<14x14xf32>
      %1026 = arith.index_cast %arg15 : i32 to index
      %c47 = arith.constant 47 : index
      %1027 = memref.load %arg4[%1026, %c47] : memref<16x72xf32, #tpu.memory_space<smem>>
      %1028 = vector.extract_strided_slice %1013 {offsets = [0, 2], sizes = [14, 14], strides = [1, 1]} : vector<16x16xf32> to vector<14x14xf32>
      %1029 = vector.broadcast %1027 : f32 to vector<14x14xf32>
      %1030 = arith.mulf %1029, %1028 : vector<14x14xf32>
      %1031 = arith.addf %1025, %1030 : vector<14x14xf32>
      %1032 = arith.index_cast %arg15 : i32 to index
      %c48 = arith.constant 48 : index
      %1033 = memref.load %arg4[%1032, %c48] : memref<16x72xf32, #tpu.memory_space<smem>>
      %1034 = vector.extract_strided_slice %1013 {offsets = [1, 0], sizes = [14, 14], strides = [1, 1]} : vector<16x16xf32> to vector<14x14xf32>
      %1035 = vector.broadcast %1033 : f32 to vector<14x14xf32>
      %1036 = arith.mulf %1035, %1034 : vector<14x14xf32>
      %1037 = arith.addf %1031, %1036 : vector<14x14xf32>
      %1038 = arith.index_cast %arg15 : i32 to index
      %c49 = arith.constant 49 : index
      %1039 = memref.load %arg4[%1038, %c49] : memref<16x72xf32, #tpu.memory_space<smem>>
      %1040 = vector.extract_strided_slice %1013 {offsets = [1, 1], sizes = [14, 14], strides = [1, 1]} : vector<16x16xf32> to vector<14x14xf32>
      %1041 = vector.broadcast %1039 : f32 to vector<14x14xf32>
      %1042 = arith.mulf %1041, %1040 : vector<14x14xf32>
      %1043 = arith.addf %1037, %1042 : vector<14x14xf32>
      %1044 = arith.index_cast %arg15 : i32 to index
      %c50 = arith.constant 50 : index
      %1045 = memref.load %arg4[%1044, %c50] : memref<16x72xf32, #tpu.memory_space<smem>>
      %1046 = vector.extract_strided_slice %1013 {offsets = [1, 2], sizes = [14, 14], strides = [1, 1]} : vector<16x16xf32> to vector<14x14xf32>
      %1047 = vector.broadcast %1045 : f32 to vector<14x14xf32>
      %1048 = arith.mulf %1047, %1046 : vector<14x14xf32>
      %1049 = arith.addf %1043, %1048 : vector<14x14xf32>
      %1050 = arith.index_cast %arg15 : i32 to index
      %c51 = arith.constant 51 : index
      %1051 = memref.load %arg4[%1050, %c51] : memref<16x72xf32, #tpu.memory_space<smem>>
      %1052 = vector.extract_strided_slice %1013 {offsets = [2, 0], sizes = [14, 14], strides = [1, 1]} : vector<16x16xf32> to vector<14x14xf32>
      %1053 = vector.broadcast %1051 : f32 to vector<14x14xf32>
      %1054 = arith.mulf %1053, %1052 : vector<14x14xf32>
      %1055 = arith.addf %1049, %1054 : vector<14x14xf32>
      %1056 = arith.index_cast %arg15 : i32 to index
      %c52 = arith.constant 52 : index
      %1057 = memref.load %arg4[%1056, %c52] : memref<16x72xf32, #tpu.memory_space<smem>>
      %1058 = vector.extract_strided_slice %1013 {offsets = [2, 1], sizes = [14, 14], strides = [1, 1]} : vector<16x16xf32> to vector<14x14xf32>
      %1059 = vector.broadcast %1057 : f32 to vector<14x14xf32>
      %1060 = arith.mulf %1059, %1058 : vector<14x14xf32>
      %1061 = arith.addf %1055, %1060 : vector<14x14xf32>
      %1062 = arith.index_cast %arg15 : i32 to index
      %c53 = arith.constant 53 : index
      %1063 = memref.load %arg4[%1062, %c53] : memref<16x72xf32, #tpu.memory_space<smem>>
      %1064 = vector.extract_strided_slice %1013 {offsets = [2, 2], sizes = [14, 14], strides = [1, 1]} : vector<16x16xf32> to vector<14x14xf32>
      %1065 = vector.broadcast %1063 : f32 to vector<14x14xf32>
      %1066 = arith.mulf %1065, %1064 : vector<14x14xf32>
      %1067 = arith.addf %1061, %1066 : vector<14x14xf32>
      %c6_347 = arith.constant 6 : index
      %c0_348 = arith.constant 0 : index
      %c0_349 = arith.constant 0 : index
      %1068 = vector.load %arg13[%c6_347, %c0_348, %c0_349] : memref<8x16x16xf32, #tpu.memory_space<vmem>>, vector<1x16x16xf32>
      %1069 = vector.shape_cast %1068 : vector<1x16x16xf32> to vector<16x16xf32>
      %1070 = arith.index_cast %arg15 : i32 to index
      %c54 = arith.constant 54 : index
      %1071 = memref.load %arg4[%1070, %c54] : memref<16x72xf32, #tpu.memory_space<smem>>
      %1072 = vector.extract_strided_slice %1069 {offsets = [0, 0], sizes = [14, 14], strides = [1, 1]} : vector<16x16xf32> to vector<14x14xf32>
      %1073 = vector.broadcast %1071 : f32 to vector<14x14xf32>
      %1074 = arith.mulf %1073, %1072 : vector<14x14xf32>
      %1075 = arith.addf %1067, %1074 : vector<14x14xf32>
      %1076 = arith.index_cast %arg15 : i32 to index
      %c55 = arith.constant 55 : index
      %1077 = memref.load %arg4[%1076, %c55] : memref<16x72xf32, #tpu.memory_space<smem>>
      %1078 = vector.extract_strided_slice %1069 {offsets = [0, 1], sizes = [14, 14], strides = [1, 1]} : vector<16x16xf32> to vector<14x14xf32>
      %1079 = vector.broadcast %1077 : f32 to vector<14x14xf32>
      %1080 = arith.mulf %1079, %1078 : vector<14x14xf32>
      %1081 = arith.addf %1075, %1080 : vector<14x14xf32>
      %1082 = arith.index_cast %arg15 : i32 to index
      %c56 = arith.constant 56 : index
      %1083 = memref.load %arg4[%1082, %c56] : memref<16x72xf32, #tpu.memory_space<smem>>
      %1084 = vector.extract_strided_slice %1069 {offsets = [0, 2], sizes = [14, 14], strides = [1, 1]} : vector<16x16xf32> to vector<14x14xf32>
      %1085 = vector.broadcast %1083 : f32 to vector<14x14xf32>
      %1086 = arith.mulf %1085, %1084 : vector<14x14xf32>
      %1087 = arith.addf %1081, %1086 : vector<14x14xf32>
      %1088 = arith.index_cast %arg15 : i32 to index
      %c57 = arith.constant 57 : index
      %1089 = memref.load %arg4[%1088, %c57] : memref<16x72xf32, #tpu.memory_space<smem>>
      %1090 = vector.extract_strided_slice %1069 {offsets = [1, 0], sizes = [14, 14], strides = [1, 1]} : vector<16x16xf32> to vector<14x14xf32>
      %1091 = vector.broadcast %1089 : f32 to vector<14x14xf32>
      %1092 = arith.mulf %1091, %1090 : vector<14x14xf32>
      %1093 = arith.addf %1087, %1092 : vector<14x14xf32>
      %1094 = arith.index_cast %arg15 : i32 to index
      %c58 = arith.constant 58 : index
      %1095 = memref.load %arg4[%1094, %c58] : memref<16x72xf32, #tpu.memory_space<smem>>
      %1096 = vector.extract_strided_slice %1069 {offsets = [1, 1], sizes = [14, 14], strides = [1, 1]} : vector<16x16xf32> to vector<14x14xf32>
      %1097 = vector.broadcast %1095 : f32 to vector<14x14xf32>
      %1098 = arith.mulf %1097, %1096 : vector<14x14xf32>
      %1099 = arith.addf %1093, %1098 : vector<14x14xf32>
      %1100 = arith.index_cast %arg15 : i32 to index
      %c59 = arith.constant 59 : index
      %1101 = memref.load %arg4[%1100, %c59] : memref<16x72xf32, #tpu.memory_space<smem>>
      %1102 = vector.extract_strided_slice %1069 {offsets = [1, 2], sizes = [14, 14], strides = [1, 1]} : vector<16x16xf32> to vector<14x14xf32>
      %1103 = vector.broadcast %1101 : f32 to vector<14x14xf32>
      %1104 = arith.mulf %1103, %1102 : vector<14x14xf32>
      %1105 = arith.addf %1099, %1104 : vector<14x14xf32>
      %1106 = arith.index_cast %arg15 : i32 to index
      %c60 = arith.constant 60 : index
      %1107 = memref.load %arg4[%1106, %c60] : memref<16x72xf32, #tpu.memory_space<smem>>
      %1108 = vector.extract_strided_slice %1069 {offsets = [2, 0], sizes = [14, 14], strides = [1, 1]} : vector<16x16xf32> to vector<14x14xf32>
      %1109 = vector.broadcast %1107 : f32 to vector<14x14xf32>
      %1110 = arith.mulf %1109, %1108 : vector<14x14xf32>
      %1111 = arith.addf %1105, %1110 : vector<14x14xf32>
      %1112 = arith.index_cast %arg15 : i32 to index
      %c61 = arith.constant 61 : index
      %1113 = memref.load %arg4[%1112, %c61] : memref<16x72xf32, #tpu.memory_space<smem>>
      %1114 = vector.extract_strided_slice %1069 {offsets = [2, 1], sizes = [14, 14], strides = [1, 1]} : vector<16x16xf32> to vector<14x14xf32>
      %1115 = vector.broadcast %1113 : f32 to vector<14x14xf32>
      %1116 = arith.mulf %1115, %1114 : vector<14x14xf32>
      %1117 = arith.addf %1111, %1116 : vector<14x14xf32>
      %1118 = arith.index_cast %arg15 : i32 to index
      %c62 = arith.constant 62 : index
      %1119 = memref.load %arg4[%1118, %c62] : memref<16x72xf32, #tpu.memory_space<smem>>
      %1120 = vector.extract_strided_slice %1069 {offsets = [2, 2], sizes = [14, 14], strides = [1, 1]} : vector<16x16xf32> to vector<14x14xf32>
      %1121 = vector.broadcast %1119 : f32 to vector<14x14xf32>
      %1122 = arith.mulf %1121, %1120 : vector<14x14xf32>
      %1123 = arith.addf %1117, %1122 : vector<14x14xf32>
      %c7_350 = arith.constant 7 : index
      %c0_351 = arith.constant 0 : index
      %c0_352 = arith.constant 0 : index
      %1124 = vector.load %arg13[%c7_350, %c0_351, %c0_352] : memref<8x16x16xf32, #tpu.memory_space<vmem>>, vector<1x16x16xf32>
      %1125 = vector.shape_cast %1124 : vector<1x16x16xf32> to vector<16x16xf32>
      %1126 = arith.index_cast %arg15 : i32 to index
      %c63 = arith.constant 63 : index
      %1127 = memref.load %arg4[%1126, %c63] : memref<16x72xf32, #tpu.memory_space<smem>>
      %1128 = vector.extract_strided_slice %1125 {offsets = [0, 0], sizes = [14, 14], strides = [1, 1]} : vector<16x16xf32> to vector<14x14xf32>
      %1129 = vector.broadcast %1127 : f32 to vector<14x14xf32>
      %1130 = arith.mulf %1129, %1128 : vector<14x14xf32>
      %1131 = arith.addf %1123, %1130 : vector<14x14xf32>
      %1132 = arith.index_cast %arg15 : i32 to index
      %c64 = arith.constant 64 : index
      %1133 = memref.load %arg4[%1132, %c64] : memref<16x72xf32, #tpu.memory_space<smem>>
      %1134 = vector.extract_strided_slice %1125 {offsets = [0, 1], sizes = [14, 14], strides = [1, 1]} : vector<16x16xf32> to vector<14x14xf32>
      %1135 = vector.broadcast %1133 : f32 to vector<14x14xf32>
      %1136 = arith.mulf %1135, %1134 : vector<14x14xf32>
      %1137 = arith.addf %1131, %1136 : vector<14x14xf32>
      %1138 = arith.index_cast %arg15 : i32 to index
      %c65 = arith.constant 65 : index
      %1139 = memref.load %arg4[%1138, %c65] : memref<16x72xf32, #tpu.memory_space<smem>>
      %1140 = vector.extract_strided_slice %1125 {offsets = [0, 2], sizes = [14, 14], strides = [1, 1]} : vector<16x16xf32> to vector<14x14xf32>
      %1141 = vector.broadcast %1139 : f32 to vector<14x14xf32>
      %1142 = arith.mulf %1141, %1140 : vector<14x14xf32>
      %1143 = arith.addf %1137, %1142 : vector<14x14xf32>
      %1144 = arith.index_cast %arg15 : i32 to index
      %c66 = arith.constant 66 : index
      %1145 = memref.load %arg4[%1144, %c66] : memref<16x72xf32, #tpu.memory_space<smem>>
      %1146 = vector.extract_strided_slice %1125 {offsets = [1, 0], sizes = [14, 14], strides = [1, 1]} : vector<16x16xf32> to vector<14x14xf32>
      %1147 = vector.broadcast %1145 : f32 to vector<14x14xf32>
      %1148 = arith.mulf %1147, %1146 : vector<14x14xf32>
      %1149 = arith.addf %1143, %1148 : vector<14x14xf32>
      %1150 = arith.index_cast %arg15 : i32 to index
      %c67 = arith.constant 67 : index
      %1151 = memref.load %arg4[%1150, %c67] : memref<16x72xf32, #tpu.memory_space<smem>>
      %1152 = vector.extract_strided_slice %1125 {offsets = [1, 1], sizes = [14, 14], strides = [1, 1]} : vector<16x16xf32> to vector<14x14xf32>
      %1153 = vector.broadcast %1151 : f32 to vector<14x14xf32>
      %1154 = arith.mulf %1153, %1152 : vector<14x14xf32>
      %1155 = arith.addf %1149, %1154 : vector<14x14xf32>
      %1156 = arith.index_cast %arg15 : i32 to index
      %c68 = arith.constant 68 : index
      %1157 = memref.load %arg4[%1156, %c68] : memref<16x72xf32, #tpu.memory_space<smem>>
      %1158 = vector.extract_strided_slice %1125 {offsets = [1, 2], sizes = [14, 14], strides = [1, 1]} : vector<16x16xf32> to vector<14x14xf32>
      %1159 = vector.broadcast %1157 : f32 to vector<14x14xf32>
      %1160 = arith.mulf %1159, %1158 : vector<14x14xf32>
      %1161 = arith.addf %1155, %1160 : vector<14x14xf32>
      %1162 = arith.index_cast %arg15 : i32 to index
      %c69 = arith.constant 69 : index
      %1163 = memref.load %arg4[%1162, %c69] : memref<16x72xf32, #tpu.memory_space<smem>>
      %1164 = vector.extract_strided_slice %1125 {offsets = [2, 0], sizes = [14, 14], strides = [1, 1]} : vector<16x16xf32> to vector<14x14xf32>
      %1165 = vector.broadcast %1163 : f32 to vector<14x14xf32>
      %1166 = arith.mulf %1165, %1164 : vector<14x14xf32>
      %1167 = arith.addf %1161, %1166 : vector<14x14xf32>
      %1168 = arith.index_cast %arg15 : i32 to index
      %c70 = arith.constant 70 : index
      %1169 = memref.load %arg4[%1168, %c70] : memref<16x72xf32, #tpu.memory_space<smem>>
      %1170 = vector.extract_strided_slice %1125 {offsets = [2, 1], sizes = [14, 14], strides = [1, 1]} : vector<16x16xf32> to vector<14x14xf32>
      %1171 = vector.broadcast %1169 : f32 to vector<14x14xf32>
      %1172 = arith.mulf %1171, %1170 : vector<14x14xf32>
      %1173 = arith.addf %1167, %1172 : vector<14x14xf32>
      %1174 = arith.index_cast %arg15 : i32 to index
      %c71 = arith.constant 71 : index
      %1175 = memref.load %arg4[%1174, %c71] : memref<16x72xf32, #tpu.memory_space<smem>>
      %1176 = vector.extract_strided_slice %1125 {offsets = [2, 2], sizes = [14, 14], strides = [1, 1]} : vector<16x16xf32> to vector<14x14xf32>
      %1177 = vector.broadcast %1175 : f32 to vector<14x14xf32>
      %1178 = arith.mulf %1177, %1176 : vector<14x14xf32>
      %1179 = arith.addf %1173, %1178 : vector<14x14xf32>
      %1180 = arith.index_cast %arg15 : i32 to index
      %1181 = memref.load %arg5[%1180] : memref<16xf32, #tpu.memory_space<smem>>
      %1182 = vector.broadcast %1181 : f32 to vector<14x14xf32>
      %1183 = arith.addf %1179, %1182 : vector<14x14xf32>
      %cst_353 = arith.constant 0.000000e+00 : f32
      %1184 = vector.broadcast %cst_353 : f32 to vector<14x14xf32>
      %1185 = arith.maximumf %1183, %1184 : vector<14x14xf32>
      %1186 = vector.extract_strided_slice %1185 {offsets = [0, 0], sizes = [13, 14], strides = [1, 1]} : vector<14x14xf32> to vector<13x14xf32>
      %1187 = vector.extract_strided_slice %1185 {offsets = [1, 0], sizes = [13, 14], strides = [1, 1]} : vector<14x14xf32> to vector<13x14xf32>
      %1188 = arith.maximumf %1186, %1187 : vector<13x14xf32>
      %1189 = vector.extract_strided_slice %1188 {offsets = [0, 0], sizes = [13, 13], strides = [1, 1]} : vector<13x14xf32> to vector<13x13xf32>
      %1190 = vector.extract_strided_slice %1188 {offsets = [0, 1], sizes = [13, 13], strides = [1, 1]} : vector<13x14xf32> to vector<13x13xf32>
      %1191 = arith.maximumf %1189, %1190 : vector<13x13xf32>
      %cst_354 = arith.constant dense<0.000000e+00> : vector<13x7xf32>
      %1192 = tpu.matmul %1191, %5, %cst_354 {dimension_numbers = #tpu.dot_dimension_numbers<[1], [0], [0], [1], [0, 0, 1, 1], [], []>} : vector<13x13xf32>, vector<13x7xf32>, vector<13x7xf32> -> vector<13x7xf32>
      %cst_355 = arith.constant dense<0.000000e+00> : vector<7x7xf32>
      %1193 = tpu.matmul %4, %1192, %cst_355 {dimension_numbers = #tpu.dot_dimension_numbers<[1], [0], [0], [1], [0, 0, 1, 1], [], []>} : vector<7x13xf32>, vector<13x7xf32>, vector<7x7xf32> -> vector<7x7xf32>
      %1194 = arith.index_cast %arg15 : i32 to index
      %c0_356 = arith.constant 0 : index
      %c0_357 = arith.constant 0 : index
      %1195 = vector.load %arg14[%1194, %c0_356, %c0_357] : memref<16x7x7xf32, #tpu.memory_space<vmem>>, vector<1x7x7xf32>
      %1196 = vector.shape_cast %1195 : vector<1x7x7xf32> to vector<7x7xf32>
      %1197 = vector.shape_cast %1193 : vector<7x7xf32> to vector<1x7x7xf32>
      tpu.vector_store %arg14[%1194, %c0_356, %c0_357], %1197 {strides = array<i32>} : memref<16x7x7xf32, #tpu.memory_space<vmem>>, vector<1x7x7xf32>,
    }
    %c16_i32_201 = arith.constant 16 : i32
    %c0_202 = arith.constant 0 : index
    %c0_203 = arith.constant 0 : index
    %424 = vector.load %arg11[%c0_202, %c0_203] : memref<1x10xf32, #tpu.memory_space<vmem>>, vector<1x10xf32>
    %c0_204 = arith.constant 0 : index
    %c0_205 = arith.constant 0 : index
    %c0_206 = arith.constant 0 : index
    %425 = vector.load %arg14[%c0_204, %c0_205, %c0_206] : memref<16x7x7xf32, #tpu.memory_space<vmem>>, vector<1x7x7xf32>
    %426 = vector.shape_cast %425 : vector<1x7x7xf32> to vector<7x7xf32>
    %c0_207 = arith.constant 0 : index
    %c0_208 = arith.constant 0 : index
    %c0_209 = arith.constant 0 : index
    %427 = vector.load %arg10[%c0_207, %c0_208, %c0_209] : memref<16x7x70xf32, #tpu.memory_space<vmem>>, vector<1x7x70xf32>
    %428 = vector.shape_cast %427 : vector<1x7x70xf32> to vector<7x70xf32>
    %cst_210 = arith.constant dense<0.000000e+00> : vector<7x70xf32>
    %429 = tpu.matmul %426, %428, %cst_210 {dimension_numbers = #tpu.dot_dimension_numbers<[1], [0], [0], [1], [0, 0, 1, 1], [], []>} : vector<7x7xf32>, vector<7x70xf32>, vector<7x70xf32> -> vector<7x70xf32>
    %430 = vector.extract_strided_slice %429 {offsets = [0, 0], sizes = [1, 10], strides = [1, 1]} : vector<7x70xf32> to vector<1x10xf32>
    %431 = arith.addf %424, %430 : vector<1x10xf32>
    %432 = vector.extract_strided_slice %429 {offsets = [1, 10], sizes = [1, 10], strides = [1, 1]} : vector<7x70xf32> to vector<1x10xf32>
    %433 = arith.addf %431, %432 : vector<1x10xf32>
    %434 = vector.extract_strided_slice %429 {offsets = [2, 20], sizes = [1, 10], strides = [1, 1]} : vector<7x70xf32> to vector<1x10xf32>
    %435 = arith.addf %433, %434 : vector<1x10xf32>
    %436 = vector.extract_strided_slice %429 {offsets = [3, 30], sizes = [1, 10], strides = [1, 1]} : vector<7x70xf32> to vector<1x10xf32>
    %437 = arith.addf %435, %436 : vector<1x10xf32>
    %438 = vector.extract_strided_slice %429 {offsets = [4, 40], sizes = [1, 10], strides = [1, 1]} : vector<7x70xf32> to vector<1x10xf32>
    %439 = arith.addf %437, %438 : vector<1x10xf32>
    %440 = vector.extract_strided_slice %429 {offsets = [5, 50], sizes = [1, 10], strides = [1, 1]} : vector<7x70xf32> to vector<1x10xf32>
    %441 = arith.addf %439, %440 : vector<1x10xf32>
    %442 = vector.extract_strided_slice %429 {offsets = [6, 60], sizes = [1, 10], strides = [1, 1]} : vector<7x70xf32> to vector<1x10xf32>
    %443 = arith.addf %441, %442 : vector<1x10xf32>
    %c1_211 = arith.constant 1 : index
    %c0_212 = arith.constant 0 : index
    %c0_213 = arith.constant 0 : index
    %444 = vector.load %arg14[%c1_211, %c0_212, %c0_213] : memref<16x7x7xf32, #tpu.memory_space<vmem>>, vector<1x7x7xf32>
    %445 = vector.shape_cast %444 : vector<1x7x7xf32> to vector<7x7xf32>
    %c1_214 = arith.constant 1 : index
    %c0_215 = arith.constant 0 : index
    %c0_216 = arith.constant 0 : index
    %446 = vector.load %arg10[%c1_214, %c0_215, %c0_216] : memref<16x7x70xf32, #tpu.memory_space<vmem>>, vector<1x7x70xf32>
    %447 = vector.shape_cast %446 : vector<1x7x70xf32> to vector<7x70xf32>
    %cst_217 = arith.constant dense<0.000000e+00> : vector<7x70xf32>
    %448 = tpu.matmul %445, %447, %cst_217 {dimension_numbers = #tpu.dot_dimension_numbers<[1], [0], [0], [1], [0, 0, 1, 1], [], []>} : vector<7x7xf32>, vector<7x70xf32>, vector<7x70xf32> -> vector<7x70xf32>
    %449 = vector.extract_strided_slice %448 {offsets = [0, 0], sizes = [1, 10], strides = [1, 1]} : vector<7x70xf32> to vector<1x10xf32>
    %450 = arith.addf %443, %449 : vector<1x10xf32>
    %451 = vector.extract_strided_slice %448 {offsets = [1, 10], sizes = [1, 10], strides = [1, 1]} : vector<7x70xf32> to vector<1x10xf32>
    %452 = arith.addf %450, %451 : vector<1x10xf32>
    %453 = vector.extract_strided_slice %448 {offsets = [2, 20], sizes = [1, 10], strides = [1, 1]} : vector<7x70xf32> to vector<1x10xf32>
    %454 = arith.addf %452, %453 : vector<1x10xf32>
    %455 = vector.extract_strided_slice %448 {offsets = [3, 30], sizes = [1, 10], strides = [1, 1]} : vector<7x70xf32> to vector<1x10xf32>
    %456 = arith.addf %454, %455 : vector<1x10xf32>
    %457 = vector.extract_strided_slice %448 {offsets = [4, 40], sizes = [1, 10], strides = [1, 1]} : vector<7x70xf32> to vector<1x10xf32>
    %458 = arith.addf %456, %457 : vector<1x10xf32>
    %459 = vector.extract_strided_slice %448 {offsets = [5, 50], sizes = [1, 10], strides = [1, 1]} : vector<7x70xf32> to vector<1x10xf32>
    %460 = arith.addf %458, %459 : vector<1x10xf32>
    %461 = vector.extract_strided_slice %448 {offsets = [6, 60], sizes = [1, 10], strides = [1, 1]} : vector<7x70xf32> to vector<1x10xf32>
    %462 = arith.addf %460, %461 : vector<1x10xf32>
    %c2_218 = arith.constant 2 : index
    %c0_219 = arith.constant 0 : index
    %c0_220 = arith.constant 0 : index
    %463 = vector.load %arg14[%c2_218, %c0_219, %c0_220] : memref<16x7x7xf32, #tpu.memory_space<vmem>>, vector<1x7x7xf32>
    %464 = vector.shape_cast %463 : vector<1x7x7xf32> to vector<7x7xf32>
    %c2_221 = arith.constant 2 : index
    %c0_222 = arith.constant 0 : index
    %c0_223 = arith.constant 0 : index
    %465 = vector.load %arg10[%c2_221, %c0_222, %c0_223] : memref<16x7x70xf32, #tpu.memory_space<vmem>>, vector<1x7x70xf32>
    %466 = vector.shape_cast %465 : vector<1x7x70xf32> to vector<7x70xf32>
    %cst_224 = arith.constant dense<0.000000e+00> : vector<7x70xf32>
    %467 = tpu.matmul %464, %466, %cst_224 {dimension_numbers = #tpu.dot_dimension_numbers<[1], [0], [0], [1], [0, 0, 1, 1], [], []>} : vector<7x7xf32>, vector<7x70xf32>, vector<7x70xf32> -> vector<7x70xf32>
    %468 = vector.extract_strided_slice %467 {offsets = [0, 0], sizes = [1, 10], strides = [1, 1]} : vector<7x70xf32> to vector<1x10xf32>
    %469 = arith.addf %462, %468 : vector<1x10xf32>
    %470 = vector.extract_strided_slice %467 {offsets = [1, 10], sizes = [1, 10], strides = [1, 1]} : vector<7x70xf32> to vector<1x10xf32>
    %471 = arith.addf %469, %470 : vector<1x10xf32>
    %472 = vector.extract_strided_slice %467 {offsets = [2, 20], sizes = [1, 10], strides = [1, 1]} : vector<7x70xf32> to vector<1x10xf32>
    %473 = arith.addf %471, %472 : vector<1x10xf32>
    %474 = vector.extract_strided_slice %467 {offsets = [3, 30], sizes = [1, 10], strides = [1, 1]} : vector<7x70xf32> to vector<1x10xf32>
    %475 = arith.addf %473, %474 : vector<1x10xf32>
    %476 = vector.extract_strided_slice %467 {offsets = [4, 40], sizes = [1, 10], strides = [1, 1]} : vector<7x70xf32> to vector<1x10xf32>
    %477 = arith.addf %475, %476 : vector<1x10xf32>
    %478 = vector.extract_strided_slice %467 {offsets = [5, 50], sizes = [1, 10], strides = [1, 1]} : vector<7x70xf32> to vector<1x10xf32>
    %479 = arith.addf %477, %478 : vector<1x10xf32>
    %480 = vector.extract_strided_slice %467 {offsets = [6, 60], sizes = [1, 10], strides = [1, 1]} : vector<7x70xf32> to vector<1x10xf32>
    %481 = arith.addf %479, %480 : vector<1x10xf32>
    %c3_225 = arith.constant 3 : index
    %c0_226 = arith.constant 0 : index
    %c0_227 = arith.constant 0 : index
    %482 = vector.load %arg14[%c3_225, %c0_226, %c0_227] : memref<16x7x7xf32, #tpu.memory_space<vmem>>, vector<1x7x7xf32>
    %483 = vector.shape_cast %482 : vector<1x7x7xf32> to vector<7x7xf32>
    %c3_228 = arith.constant 3 : index
    %c0_229 = arith.constant 0 : index
    %c0_230 = arith.constant 0 : index
    %484 = vector.load %arg10[%c3_228, %c0_229, %c0_230] : memref<16x7x70xf32, #tpu.memory_space<vmem>>, vector<1x7x70xf32>
    %485 = vector.shape_cast %484 : vector<1x7x70xf32> to vector<7x70xf32>
    %cst_231 = arith.constant dense<0.000000e+00> : vector<7x70xf32>
    %486 = tpu.matmul %483, %485, %cst_231 {dimension_numbers = #tpu.dot_dimension_numbers<[1], [0], [0], [1], [0, 0, 1, 1], [], []>} : vector<7x7xf32>, vector<7x70xf32>, vector<7x70xf32> -> vector<7x70xf32>
    %487 = vector.extract_strided_slice %486 {offsets = [0, 0], sizes = [1, 10], strides = [1, 1]} : vector<7x70xf32> to vector<1x10xf32>
    %488 = arith.addf %481, %487 : vector<1x10xf32>
    %489 = vector.extract_strided_slice %486 {offsets = [1, 10], sizes = [1, 10], strides = [1, 1]} : vector<7x70xf32> to vector<1x10xf32>
    %490 = arith.addf %488, %489 : vector<1x10xf32>
    %491 = vector.extract_strided_slice %486 {offsets = [2, 20], sizes = [1, 10], strides = [1, 1]} : vector<7x70xf32> to vector<1x10xf32>
    %492 = arith.addf %490, %491 : vector<1x10xf32>
    %493 = vector.extract_strided_slice %486 {offsets = [3, 30], sizes = [1, 10], strides = [1, 1]} : vector<7x70xf32> to vector<1x10xf32>
    %494 = arith.addf %492, %493 : vector<1x10xf32>
    %495 = vector.extract_strided_slice %486 {offsets = [4, 40], sizes = [1, 10], strides = [1, 1]} : vector<7x70xf32> to vector<1x10xf32>
    %496 = arith.addf %494, %495 : vector<1x10xf32>
    %497 = vector.extract_strided_slice %486 {offsets = [5, 50], sizes = [1, 10], strides = [1, 1]} : vector<7x70xf32> to vector<1x10xf32>
    %498 = arith.addf %496, %497 : vector<1x10xf32>
    %499 = vector.extract_strided_slice %486 {offsets = [6, 60], sizes = [1, 10], strides = [1, 1]} : vector<7x70xf32> to vector<1x10xf32>
    %500 = arith.addf %498, %499 : vector<1x10xf32>
    %c4_232 = arith.constant 4 : index
    %c0_233 = arith.constant 0 : index
    %c0_234 = arith.constant 0 : index
    %501 = vector.load %arg14[%c4_232, %c0_233, %c0_234] : memref<16x7x7xf32, #tpu.memory_space<vmem>>, vector<1x7x7xf32>
    %502 = vector.shape_cast %501 : vector<1x7x7xf32> to vector<7x7xf32>
    %c4_235 = arith.constant 4 : index
    %c0_236 = arith.constant 0 : index
    %c0_237 = arith.constant 0 : index
    %503 = vector.load %arg10[%c4_235, %c0_236, %c0_237] : memref<16x7x70xf32, #tpu.memory_space<vmem>>, vector<1x7x70xf32>
    %504 = vector.shape_cast %503 : vector<1x7x70xf32> to vector<7x70xf32>
    %cst_238 = arith.constant dense<0.000000e+00> : vector<7x70xf32>
    %505 = tpu.matmul %502, %504, %cst_238 {dimension_numbers = #tpu.dot_dimension_numbers<[1], [0], [0], [1], [0, 0, 1, 1], [], []>} : vector<7x7xf32>, vector<7x70xf32>, vector<7x70xf32> -> vector<7x70xf32>
    %506 = vector.extract_strided_slice %505 {offsets = [0, 0], sizes = [1, 10], strides = [1, 1]} : vector<7x70xf32> to vector<1x10xf32>
    %507 = arith.addf %500, %506 : vector<1x10xf32>
    %508 = vector.extract_strided_slice %505 {offsets = [1, 10], sizes = [1, 10], strides = [1, 1]} : vector<7x70xf32> to vector<1x10xf32>
    %509 = arith.addf %507, %508 : vector<1x10xf32>
    %510 = vector.extract_strided_slice %505 {offsets = [2, 20], sizes = [1, 10], strides = [1, 1]} : vector<7x70xf32> to vector<1x10xf32>
    %511 = arith.addf %509, %510 : vector<1x10xf32>
    %512 = vector.extract_strided_slice %505 {offsets = [3, 30], sizes = [1, 10], strides = [1, 1]} : vector<7x70xf32> to vector<1x10xf32>
    %513 = arith.addf %511, %512 : vector<1x10xf32>
    %514 = vector.extract_strided_slice %505 {offsets = [4, 40], sizes = [1, 10], strides = [1, 1]} : vector<7x70xf32> to vector<1x10xf32>
    %515 = arith.addf %513, %514 : vector<1x10xf32>
    %516 = vector.extract_strided_slice %505 {offsets = [5, 50], sizes = [1, 10], strides = [1, 1]} : vector<7x70xf32> to vector<1x10xf32>
    %517 = arith.addf %515, %516 : vector<1x10xf32>
    %518 = vector.extract_strided_slice %505 {offsets = [6, 60], sizes = [1, 10], strides = [1, 1]} : vector<7x70xf32> to vector<1x10xf32>
    %519 = arith.addf %517, %518 : vector<1x10xf32>
    %c5_239 = arith.constant 5 : index
    %c0_240 = arith.constant 0 : index
    %c0_241 = arith.constant 0 : index
    %520 = vector.load %arg14[%c5_239, %c0_240, %c0_241] : memref<16x7x7xf32, #tpu.memory_space<vmem>>, vector<1x7x7xf32>
    %521 = vector.shape_cast %520 : vector<1x7x7xf32> to vector<7x7xf32>
    %c5_242 = arith.constant 5 : index
    %c0_243 = arith.constant 0 : index
    %c0_244 = arith.constant 0 : index
    %522 = vector.load %arg10[%c5_242, %c0_243, %c0_244] : memref<16x7x70xf32, #tpu.memory_space<vmem>>, vector<1x7x70xf32>
    %523 = vector.shape_cast %522 : vector<1x7x70xf32> to vector<7x70xf32>
    %cst_245 = arith.constant dense<0.000000e+00> : vector<7x70xf32>
    %524 = tpu.matmul %521, %523, %cst_245 {dimension_numbers = #tpu.dot_dimension_numbers<[1], [0], [0], [1], [0, 0, 1, 1], [], []>} : vector<7x7xf32>, vector<7x70xf32>, vector<7x70xf32> -> vector<7x70xf32>
    %525 = vector.extract_strided_slice %524 {offsets = [0, 0], sizes = [1, 10], strides = [1, 1]} : vector<7x70xf32> to vector<1x10xf32>
    %526 = arith.addf %519, %525 : vector<1x10xf32>
    %527 = vector.extract_strided_slice %524 {offsets = [1, 10], sizes = [1, 10], strides = [1, 1]} : vector<7x70xf32> to vector<1x10xf32>
    %528 = arith.addf %526, %527 : vector<1x10xf32>
    %529 = vector.extract_strided_slice %524 {offsets = [2, 20], sizes = [1, 10], strides = [1, 1]} : vector<7x70xf32> to vector<1x10xf32>
    %530 = arith.addf %528, %529 : vector<1x10xf32>
    %531 = vector.extract_strided_slice %524 {offsets = [3, 30], sizes = [1, 10], strides = [1, 1]} : vector<7x70xf32> to vector<1x10xf32>
    %532 = arith.addf %530, %531 : vector<1x10xf32>
    %533 = vector.extract_strided_slice %524 {offsets = [4, 40], sizes = [1, 10], strides = [1, 1]} : vector<7x70xf32> to vector<1x10xf32>
    %534 = arith.addf %532, %533 : vector<1x10xf32>
    %535 = vector.extract_strided_slice %524 {offsets = [5, 50], sizes = [1, 10], strides = [1, 1]} : vector<7x70xf32> to vector<1x10xf32>
    %536 = arith.addf %534, %535 : vector<1x10xf32>
    %537 = vector.extract_strided_slice %524 {offsets = [6, 60], sizes = [1, 10], strides = [1, 1]} : vector<7x70xf32> to vector<1x10xf32>
    %538 = arith.addf %536, %537 : vector<1x10xf32>
    %c6_246 = arith.constant 6 : index
    %c0_247 = arith.constant 0 : index
    %c0_248 = arith.constant 0 : index
    %539 = vector.load %arg14[%c6_246, %c0_247, %c0_248] : memref<16x7x7xf32, #tpu.memory_space<vmem>>, vector<1x7x7xf32>
    %540 = vector.shape_cast %539 : vector<1x7x7xf32> to vector<7x7xf32>
    %c6_249 = arith.constant 6 : index
    %c0_250 = arith.constant 0 : index
    %c0_251 = arith.constant 0 : index
    %541 = vector.load %arg10[%c6_249, %c0_250, %c0_251] : memref<16x7x70xf32, #tpu.memory_space<vmem>>, vector<1x7x70xf32>
    %542 = vector.shape_cast %541 : vector<1x7x70xf32> to vector<7x70xf32>
    %cst_252 = arith.constant dense<0.000000e+00> : vector<7x70xf32>
    %543 = tpu.matmul %540, %542, %cst_252 {dimension_numbers = #tpu.dot_dimension_numbers<[1], [0], [0], [1], [0, 0, 1, 1], [], []>} : vector<7x7xf32>, vector<7x70xf32>, vector<7x70xf32> -> vector<7x70xf32>
    %544 = vector.extract_strided_slice %543 {offsets = [0, 0], sizes = [1, 10], strides = [1, 1]} : vector<7x70xf32> to vector<1x10xf32>
    %545 = arith.addf %538, %544 : vector<1x10xf32>
    %546 = vector.extract_strided_slice %543 {offsets = [1, 10], sizes = [1, 10], strides = [1, 1]} : vector<7x70xf32> to vector<1x10xf32>
    %547 = arith.addf %545, %546 : vector<1x10xf32>
    %548 = vector.extract_strided_slice %543 {offsets = [2, 20], sizes = [1, 10], strides = [1, 1]} : vector<7x70xf32> to vector<1x10xf32>
    %549 = arith.addf %547, %548 : vector<1x10xf32>
    %550 = vector.extract_strided_slice %543 {offsets = [3, 30], sizes = [1, 10], strides = [1, 1]} : vector<7x70xf32> to vector<1x10xf32>
    %551 = arith.addf %549, %550 : vector<1x10xf32>
    %552 = vector.extract_strided_slice %543 {offsets = [4, 40], sizes = [1, 10], strides = [1, 1]} : vector<7x70xf32> to vector<1x10xf32>
    %553 = arith.addf %551, %552 : vector<1x10xf32>
    %554 = vector.extract_strided_slice %543 {offsets = [5, 50], sizes = [1, 10], strides = [1, 1]} : vector<7x70xf32> to vector<1x10xf32>
    %555 = arith.addf %553, %554 : vector<1x10xf32>
    %556 = vector.extract_strided_slice %543 {offsets = [6, 60], sizes = [1, 10], strides = [1, 1]} : vector<7x70xf32> to vector<1x10xf32>
    %557 = arith.addf %555, %556 : vector<1x10xf32>
    %c7_253 = arith.constant 7 : index
    %c0_254 = arith.constant 0 : index
    %c0_255 = arith.constant 0 : index
    %558 = vector.load %arg14[%c7_253, %c0_254, %c0_255] : memref<16x7x7xf32, #tpu.memory_space<vmem>>, vector<1x7x7xf32>
    %559 = vector.shape_cast %558 : vector<1x7x7xf32> to vector<7x7xf32>
    %c7_256 = arith.constant 7 : index
    %c0_257 = arith.constant 0 : index
    %c0_258 = arith.constant 0 : index
    %560 = vector.load %arg10[%c7_256, %c0_257, %c0_258] : memref<16x7x70xf32, #tpu.memory_space<vmem>>, vector<1x7x70xf32>
    %561 = vector.shape_cast %560 : vector<1x7x70xf32> to vector<7x70xf32>
    %cst_259 = arith.constant dense<0.000000e+00> : vector<7x70xf32>
    %562 = tpu.matmul %559, %561, %cst_259 {dimension_numbers = #tpu.dot_dimension_numbers<[1], [0], [0], [1], [0, 0, 1, 1], [], []>} : vector<7x7xf32>, vector<7x70xf32>, vector<7x70xf32> -> vector<7x70xf32>
    %563 = vector.extract_strided_slice %562 {offsets = [0, 0], sizes = [1, 10], strides = [1, 1]} : vector<7x70xf32> to vector<1x10xf32>
    %564 = arith.addf %557, %563 : vector<1x10xf32>
    %565 = vector.extract_strided_slice %562 {offsets = [1, 10], sizes = [1, 10], strides = [1, 1]} : vector<7x70xf32> to vector<1x10xf32>
    %566 = arith.addf %564, %565 : vector<1x10xf32>
    %567 = vector.extract_strided_slice %562 {offsets = [2, 20], sizes = [1, 10], strides = [1, 1]} : vector<7x70xf32> to vector<1x10xf32>
    %568 = arith.addf %566, %567 : vector<1x10xf32>
    %569 = vector.extract_strided_slice %562 {offsets = [3, 30], sizes = [1, 10], strides = [1, 1]} : vector<7x70xf32> to vector<1x10xf32>
    %570 = arith.addf %568, %569 : vector<1x10xf32>
    %571 = vector.extract_strided_slice %562 {offsets = [4, 40], sizes = [1, 10], strides = [1, 1]} : vector<7x70xf32> to vector<1x10xf32>
    %572 = arith.addf %570, %571 : vector<1x10xf32>
    %573 = vector.extract_strided_slice %562 {offsets = [5, 50], sizes = [1, 10], strides = [1, 1]} : vector<7x70xf32> to vector<1x10xf32>
    %574 = arith.addf %572, %573 : vector<1x10xf32>
    %575 = vector.extract_strided_slice %562 {offsets = [6, 60], sizes = [1, 10], strides = [1, 1]} : vector<7x70xf32> to vector<1x10xf32>
    %576 = arith.addf %574, %575 : vector<1x10xf32>
    %c8_260 = arith.constant 8 : index
    %c0_261 = arith.constant 0 : index
    %c0_262 = arith.constant 0 : index
    %577 = vector.load %arg14[%c8_260, %c0_261, %c0_262] : memref<16x7x7xf32, #tpu.memory_space<vmem>>, vector<1x7x7xf32>
    %578 = vector.shape_cast %577 : vector<1x7x7xf32> to vector<7x7xf32>
    %c8_263 = arith.constant 8 : index
    %c0_264 = arith.constant 0 : index
    %c0_265 = arith.constant 0 : index
    %579 = vector.load %arg10[%c8_263, %c0_264, %c0_265] : memref<16x7x70xf32, #tpu.memory_space<vmem>>, vector<1x7x70xf32>
    %580 = vector.shape_cast %579 : vector<1x7x70xf32> to vector<7x70xf32>
    %cst_266 = arith.constant dense<0.000000e+00> : vector<7x70xf32>
    %581 = tpu.matmul %578, %580, %cst_266 {dimension_numbers = #tpu.dot_dimension_numbers<[1], [0], [0], [1], [0, 0, 1, 1], [], []>} : vector<7x7xf32>, vector<7x70xf32>, vector<7x70xf32> -> vector<7x70xf32>
    %582 = vector.extract_strided_slice %581 {offsets = [0, 0], sizes = [1, 10], strides = [1, 1]} : vector<7x70xf32> to vector<1x10xf32>
    %583 = arith.addf %576, %582 : vector<1x10xf32>
    %584 = vector.extract_strided_slice %581 {offsets = [1, 10], sizes = [1, 10], strides = [1, 1]} : vector<7x70xf32> to vector<1x10xf32>
    %585 = arith.addf %583, %584 : vector<1x10xf32>
    %586 = vector.extract_strided_slice %581 {offsets = [2, 20], sizes = [1, 10], strides = [1, 1]} : vector<7x70xf32> to vector<1x10xf32>
    %587 = arith.addf %585, %586 : vector<1x10xf32>
    %588 = vector.extract_strided_slice %581 {offsets = [3, 30], sizes = [1, 10], strides = [1, 1]} : vector<7x70xf32> to vector<1x10xf32>
    %589 = arith.addf %587, %588 : vector<1x10xf32>
    %590 = vector.extract_strided_slice %581 {offsets = [4, 40], sizes = [1, 10], strides = [1, 1]} : vector<7x70xf32> to vector<1x10xf32>
    %591 = arith.addf %589, %590 : vector<1x10xf32>
    %592 = vector.extract_strided_slice %581 {offsets = [5, 50], sizes = [1, 10], strides = [1, 1]} : vector<7x70xf32> to vector<1x10xf32>
    %593 = arith.addf %591, %592 : vector<1x10xf32>
    %594 = vector.extract_strided_slice %581 {offsets = [6, 60], sizes = [1, 10], strides = [1, 1]} : vector<7x70xf32> to vector<1x10xf32>
    %595 = arith.addf %593, %594 : vector<1x10xf32>
    %c9 = arith.constant 9 : index
    %c0_267 = arith.constant 0 : index
    %c0_268 = arith.constant 0 : index
    %596 = vector.load %arg14[%c9, %c0_267, %c0_268] : memref<16x7x7xf32, #tpu.memory_space<vmem>>, vector<1x7x7xf32>
    %597 = vector.shape_cast %596 : vector<1x7x7xf32> to vector<7x7xf32>
    %c9_269 = arith.constant 9 : index
    %c0_270 = arith.constant 0 : index
    %c0_271 = arith.constant 0 : index
    %598 = vector.load %arg10[%c9_269, %c0_270, %c0_271] : memref<16x7x70xf32, #tpu.memory_space<vmem>>, vector<1x7x70xf32>
    %599 = vector.shape_cast %598 : vector<1x7x70xf32> to vector<7x70xf32>
    %cst_272 = arith.constant dense<0.000000e+00> : vector<7x70xf32>
    %600 = tpu.matmul %597, %599, %cst_272 {dimension_numbers = #tpu.dot_dimension_numbers<[1], [0], [0], [1], [0, 0, 1, 1], [], []>} : vector<7x7xf32>, vector<7x70xf32>, vector<7x70xf32> -> vector<7x70xf32>
    %601 = vector.extract_strided_slice %600 {offsets = [0, 0], sizes = [1, 10], strides = [1, 1]} : vector<7x70xf32> to vector<1x10xf32>
    %602 = arith.addf %595, %601 : vector<1x10xf32>
    %603 = vector.extract_strided_slice %600 {offsets = [1, 10], sizes = [1, 10], strides = [1, 1]} : vector<7x70xf32> to vector<1x10xf32>
    %604 = arith.addf %602, %603 : vector<1x10xf32>
    %605 = vector.extract_strided_slice %600 {offsets = [2, 20], sizes = [1, 10], strides = [1, 1]} : vector<7x70xf32> to vector<1x10xf32>
    %606 = arith.addf %604, %605 : vector<1x10xf32>
    %607 = vector.extract_strided_slice %600 {offsets = [3, 30], sizes = [1, 10], strides = [1, 1]} : vector<7x70xf32> to vector<1x10xf32>
    %608 = arith.addf %606, %607 : vector<1x10xf32>
    %609 = vector.extract_strided_slice %600 {offsets = [4, 40], sizes = [1, 10], strides = [1, 1]} : vector<7x70xf32> to vector<1x10xf32>
    %610 = arith.addf %608, %609 : vector<1x10xf32>
    %611 = vector.extract_strided_slice %600 {offsets = [5, 50], sizes = [1, 10], strides = [1, 1]} : vector<7x70xf32> to vector<1x10xf32>
    %612 = arith.addf %610, %611 : vector<1x10xf32>
    %613 = vector.extract_strided_slice %600 {offsets = [6, 60], sizes = [1, 10], strides = [1, 1]} : vector<7x70xf32> to vector<1x10xf32>
    %614 = arith.addf %612, %613 : vector<1x10xf32>
    %c10 = arith.constant 10 : index
    %c0_273 = arith.constant 0 : index
    %c0_274 = arith.constant 0 : index
    %615 = vector.load %arg14[%c10, %c0_273, %c0_274] : memref<16x7x7xf32, #tpu.memory_space<vmem>>, vector<1x7x7xf32>
    %616 = vector.shape_cast %615 : vector<1x7x7xf32> to vector<7x7xf32>
    %c10_275 = arith.constant 10 : index
    %c0_276 = arith.constant 0 : index
    %c0_277 = arith.constant 0 : index
    %617 = vector.load %arg10[%c10_275, %c0_276, %c0_277] : memref<16x7x70xf32, #tpu.memory_space<vmem>>, vector<1x7x70xf32>
    %618 = vector.shape_cast %617 : vector<1x7x70xf32> to vector<7x70xf32>
    %cst_278 = arith.constant dense<0.000000e+00> : vector<7x70xf32>
    %619 = tpu.matmul %616, %618, %cst_278 {dimension_numbers = #tpu.dot_dimension_numbers<[1], [0], [0], [1], [0, 0, 1, 1], [], []>} : vector<7x7xf32>, vector<7x70xf32>, vector<7x70xf32> -> vector<7x70xf32>
    %620 = vector.extract_strided_slice %619 {offsets = [0, 0], sizes = [1, 10], strides = [1, 1]} : vector<7x70xf32> to vector<1x10xf32>
    %621 = arith.addf %614, %620 : vector<1x10xf32>
    %622 = vector.extract_strided_slice %619 {offsets = [1, 10], sizes = [1, 10], strides = [1, 1]} : vector<7x70xf32> to vector<1x10xf32>
    %623 = arith.addf %621, %622 : vector<1x10xf32>
    %624 = vector.extract_strided_slice %619 {offsets = [2, 20], sizes = [1, 10], strides = [1, 1]} : vector<7x70xf32> to vector<1x10xf32>
    %625 = arith.addf %623, %624 : vector<1x10xf32>
    %626 = vector.extract_strided_slice %619 {offsets = [3, 30], sizes = [1, 10], strides = [1, 1]} : vector<7x70xf32> to vector<1x10xf32>
    %627 = arith.addf %625, %626 : vector<1x10xf32>
    %628 = vector.extract_strided_slice %619 {offsets = [4, 40], sizes = [1, 10], strides = [1, 1]} : vector<7x70xf32> to vector<1x10xf32>
    %629 = arith.addf %627, %628 : vector<1x10xf32>
    %630 = vector.extract_strided_slice %619 {offsets = [5, 50], sizes = [1, 10], strides = [1, 1]} : vector<7x70xf32> to vector<1x10xf32>
    %631 = arith.addf %629, %630 : vector<1x10xf32>
    %632 = vector.extract_strided_slice %619 {offsets = [6, 60], sizes = [1, 10], strides = [1, 1]} : vector<7x70xf32> to vector<1x10xf32>
    %633 = arith.addf %631, %632 : vector<1x10xf32>
    %c11 = arith.constant 11 : index
    %c0_279 = arith.constant 0 : index
    %c0_280 = arith.constant 0 : index
    %634 = vector.load %arg14[%c11, %c0_279, %c0_280] : memref<16x7x7xf32, #tpu.memory_space<vmem>>, vector<1x7x7xf32>
    %635 = vector.shape_cast %634 : vector<1x7x7xf32> to vector<7x7xf32>
    %c11_281 = arith.constant 11 : index
    %c0_282 = arith.constant 0 : index
    %c0_283 = arith.constant 0 : index
    %636 = vector.load %arg10[%c11_281, %c0_282, %c0_283] : memref<16x7x70xf32, #tpu.memory_space<vmem>>, vector<1x7x70xf32>
    %637 = vector.shape_cast %636 : vector<1x7x70xf32> to vector<7x70xf32>
    %cst_284 = arith.constant dense<0.000000e+00> : vector<7x70xf32>
    %638 = tpu.matmul %635, %637, %cst_284 {dimension_numbers = #tpu.dot_dimension_numbers<[1], [0], [0], [1], [0, 0, 1, 1], [], []>} : vector<7x7xf32>, vector<7x70xf32>, vector<7x70xf32> -> vector<7x70xf32>
    %639 = vector.extract_strided_slice %638 {offsets = [0, 0], sizes = [1, 10], strides = [1, 1]} : vector<7x70xf32> to vector<1x10xf32>
    %640 = arith.addf %633, %639 : vector<1x10xf32>
    %641 = vector.extract_strided_slice %638 {offsets = [1, 10], sizes = [1, 10], strides = [1, 1]} : vector<7x70xf32> to vector<1x10xf32>
    %642 = arith.addf %640, %641 : vector<1x10xf32>
    %643 = vector.extract_strided_slice %638 {offsets = [2, 20], sizes = [1, 10], strides = [1, 1]} : vector<7x70xf32> to vector<1x10xf32>
    %644 = arith.addf %642, %643 : vector<1x10xf32>
    %645 = vector.extract_strided_slice %638 {offsets = [3, 30], sizes = [1, 10], strides = [1, 1]} : vector<7x70xf32> to vector<1x10xf32>
    %646 = arith.addf %644, %645 : vector<1x10xf32>
    %647 = vector.extract_strided_slice %638 {offsets = [4, 40], sizes = [1, 10], strides = [1, 1]} : vector<7x70xf32> to vector<1x10xf32>
    %648 = arith.addf %646, %647 : vector<1x10xf32>
    %649 = vector.extract_strided_slice %638 {offsets = [5, 50], sizes = [1, 10], strides = [1, 1]} : vector<7x70xf32> to vector<1x10xf32>
    %650 = arith.addf %648, %649 : vector<1x10xf32>
    %651 = vector.extract_strided_slice %638 {offsets = [6, 60], sizes = [1, 10], strides = [1, 1]} : vector<7x70xf32> to vector<1x10xf32>
    %652 = arith.addf %650, %651 : vector<1x10xf32>
    %c12 = arith.constant 12 : index
    %c0_285 = arith.constant 0 : index
    %c0_286 = arith.constant 0 : index
    %653 = vector.load %arg14[%c12, %c0_285, %c0_286] : memref<16x7x7xf32, #tpu.memory_space<vmem>>, vector<1x7x7xf32>
    %654 = vector.shape_cast %653 : vector<1x7x7xf32> to vector<7x7xf32>
    %c12_287 = arith.constant 12 : index
    %c0_288 = arith.constant 0 : index
    %c0_289 = arith.constant 0 : index
    %655 = vector.load %arg10[%c12_287, %c0_288, %c0_289] : memref<16x7x70xf32, #tpu.memory_space<vmem>>, vector<1x7x70xf32>
    %656 = vector.shape_cast %655 : vector<1x7x70xf32> to vector<7x70xf32>
    %cst_290 = arith.constant dense<0.000000e+00> : vector<7x70xf32>
    %657 = tpu.matmul %654, %656, %cst_290 {dimension_numbers = #tpu.dot_dimension_numbers<[1], [0], [0], [1], [0, 0, 1, 1], [], []>} : vector<7x7xf32>, vector<7x70xf32>, vector<7x70xf32> -> vector<7x70xf32>
    %658 = vector.extract_strided_slice %657 {offsets = [0, 0], sizes = [1, 10], strides = [1, 1]} : vector<7x70xf32> to vector<1x10xf32>
    %659 = arith.addf %652, %658 : vector<1x10xf32>
    %660 = vector.extract_strided_slice %657 {offsets = [1, 10], sizes = [1, 10], strides = [1, 1]} : vector<7x70xf32> to vector<1x10xf32>
    %661 = arith.addf %659, %660 : vector<1x10xf32>
    %662 = vector.extract_strided_slice %657 {offsets = [2, 20], sizes = [1, 10], strides = [1, 1]} : vector<7x70xf32> to vector<1x10xf32>
    %663 = arith.addf %661, %662 : vector<1x10xf32>
    %664 = vector.extract_strided_slice %657 {offsets = [3, 30], sizes = [1, 10], strides = [1, 1]} : vector<7x70xf32> to vector<1x10xf32>
    %665 = arith.addf %663, %664 : vector<1x10xf32>
    %666 = vector.extract_strided_slice %657 {offsets = [4, 40], sizes = [1, 10], strides = [1, 1]} : vector<7x70xf32> to vector<1x10xf32>
    %667 = arith.addf %665, %666 : vector<1x10xf32>
    %668 = vector.extract_strided_slice %657 {offsets = [5, 50], sizes = [1, 10], strides = [1, 1]} : vector<7x70xf32> to vector<1x10xf32>
    %669 = arith.addf %667, %668 : vector<1x10xf32>
    %670 = vector.extract_strided_slice %657 {offsets = [6, 60], sizes = [1, 10], strides = [1, 1]} : vector<7x70xf32> to vector<1x10xf32>
    %671 = arith.addf %669, %670 : vector<1x10xf32>
    %c13 = arith.constant 13 : index
    %c0_291 = arith.constant 0 : index
    %c0_292 = arith.constant 0 : index
    %672 = vector.load %arg14[%c13, %c0_291, %c0_292] : memref<16x7x7xf32, #tpu.memory_space<vmem>>, vector<1x7x7xf32>
    %673 = vector.shape_cast %672 : vector<1x7x7xf32> to vector<7x7xf32>
    %c13_293 = arith.constant 13 : index
    %c0_294 = arith.constant 0 : index
    %c0_295 = arith.constant 0 : index
    %674 = vector.load %arg10[%c13_293, %c0_294, %c0_295] : memref<16x7x70xf32, #tpu.memory_space<vmem>>, vector<1x7x70xf32>
    %675 = vector.shape_cast %674 : vector<1x7x70xf32> to vector<7x70xf32>
    %cst_296 = arith.constant dense<0.000000e+00> : vector<7x70xf32>
    %676 = tpu.matmul %673, %675, %cst_296 {dimension_numbers = #tpu.dot_dimension_numbers<[1], [0], [0], [1], [0, 0, 1, 1], [], []>} : vector<7x7xf32>, vector<7x70xf32>, vector<7x70xf32> -> vector<7x70xf32>
    %677 = vector.extract_strided_slice %676 {offsets = [0, 0], sizes = [1, 10], strides = [1, 1]} : vector<7x70xf32> to vector<1x10xf32>
    %678 = arith.addf %671, %677 : vector<1x10xf32>
    %679 = vector.extract_strided_slice %676 {offsets = [1, 10], sizes = [1, 10], strides = [1, 1]} : vector<7x70xf32> to vector<1x10xf32>
    %680 = arith.addf %678, %679 : vector<1x10xf32>
    %681 = vector.extract_strided_slice %676 {offsets = [2, 20], sizes = [1, 10], strides = [1, 1]} : vector<7x70xf32> to vector<1x10xf32>
    %682 = arith.addf %680, %681 : vector<1x10xf32>
    %683 = vector.extract_strided_slice %676 {offsets = [3, 30], sizes = [1, 10], strides = [1, 1]} : vector<7x70xf32> to vector<1x10xf32>
    %684 = arith.addf %682, %683 : vector<1x10xf32>
    %685 = vector.extract_strided_slice %676 {offsets = [4, 40], sizes = [1, 10], strides = [1, 1]} : vector<7x70xf32> to vector<1x10xf32>
    %686 = arith.addf %684, %685 : vector<1x10xf32>
    %687 = vector.extract_strided_slice %676 {offsets = [5, 50], sizes = [1, 10], strides = [1, 1]} : vector<7x70xf32> to vector<1x10xf32>
    %688 = arith.addf %686, %687 : vector<1x10xf32>
    %689 = vector.extract_strided_slice %676 {offsets = [6, 60], sizes = [1, 10], strides = [1, 1]} : vector<7x70xf32> to vector<1x10xf32>
    %690 = arith.addf %688, %689 : vector<1x10xf32>
    %c14 = arith.constant 14 : index
    %c0_297 = arith.constant 0 : index
    %c0_298 = arith.constant 0 : index
    %691 = vector.load %arg14[%c14, %c0_297, %c0_298] : memref<16x7x7xf32, #tpu.memory_space<vmem>>, vector<1x7x7xf32>
    %692 = vector.shape_cast %691 : vector<1x7x7xf32> to vector<7x7xf32>
    %c14_299 = arith.constant 14 : index
    %c0_300 = arith.constant 0 : index
    %c0_301 = arith.constant 0 : index
    %693 = vector.load %arg10[%c14_299, %c0_300, %c0_301] : memref<16x7x70xf32, #tpu.memory_space<vmem>>, vector<1x7x70xf32>
    %694 = vector.shape_cast %693 : vector<1x7x70xf32> to vector<7x70xf32>
    %cst_302 = arith.constant dense<0.000000e+00> : vector<7x70xf32>
    %695 = tpu.matmul %692, %694, %cst_302 {dimension_numbers = #tpu.dot_dimension_numbers<[1], [0], [0], [1], [0, 0, 1, 1], [], []>} : vector<7x7xf32>, vector<7x70xf32>, vector<7x70xf32> -> vector<7x70xf32>
    %696 = vector.extract_strided_slice %695 {offsets = [0, 0], sizes = [1, 10], strides = [1, 1]} : vector<7x70xf32> to vector<1x10xf32>
    %697 = arith.addf %690, %696 : vector<1x10xf32>
    %698 = vector.extract_strided_slice %695 {offsets = [1, 10], sizes = [1, 10], strides = [1, 1]} : vector<7x70xf32> to vector<1x10xf32>
    %699 = arith.addf %697, %698 : vector<1x10xf32>
    %700 = vector.extract_strided_slice %695 {offsets = [2, 20], sizes = [1, 10], strides = [1, 1]} : vector<7x70xf32> to vector<1x10xf32>
    %701 = arith.addf %699, %700 : vector<1x10xf32>
    %702 = vector.extract_strided_slice %695 {offsets = [3, 30], sizes = [1, 10], strides = [1, 1]} : vector<7x70xf32> to vector<1x10xf32>
    %703 = arith.addf %701, %702 : vector<1x10xf32>
    %704 = vector.extract_strided_slice %695 {offsets = [4, 40], sizes = [1, 10], strides = [1, 1]} : vector<7x70xf32> to vector<1x10xf32>
    %705 = arith.addf %703, %704 : vector<1x10xf32>
    %706 = vector.extract_strided_slice %695 {offsets = [5, 50], sizes = [1, 10], strides = [1, 1]} : vector<7x70xf32> to vector<1x10xf32>
    %707 = arith.addf %705, %706 : vector<1x10xf32>
    %708 = vector.extract_strided_slice %695 {offsets = [6, 60], sizes = [1, 10], strides = [1, 1]} : vector<7x70xf32> to vector<1x10xf32>
    %709 = arith.addf %707, %708 : vector<1x10xf32>
    %c15 = arith.constant 15 : index
    %c0_303 = arith.constant 0 : index
    %c0_304 = arith.constant 0 : index
    %710 = vector.load %arg14[%c15, %c0_303, %c0_304] : memref<16x7x7xf32, #tpu.memory_space<vmem>>, vector<1x7x7xf32>
    %711 = vector.shape_cast %710 : vector<1x7x7xf32> to vector<7x7xf32>
    %c15_305 = arith.constant 15 : index
    %c0_306 = arith.constant 0 : index
    %c0_307 = arith.constant 0 : index
    %712 = vector.load %arg10[%c15_305, %c0_306, %c0_307] : memref<16x7x70xf32, #tpu.memory_space<vmem>>, vector<1x7x70xf32>
    %713 = vector.shape_cast %712 : vector<1x7x70xf32> to vector<7x70xf32>
    %cst_308 = arith.constant dense<0.000000e+00> : vector<7x70xf32>
    %714 = tpu.matmul %711, %713, %cst_308 {dimension_numbers = #tpu.dot_dimension_numbers<[1], [0], [0], [1], [0, 0, 1, 1], [], []>} : vector<7x7xf32>, vector<7x70xf32>, vector<7x70xf32> -> vector<7x70xf32>
    %715 = vector.extract_strided_slice %714 {offsets = [0, 0], sizes = [1, 10], strides = [1, 1]} : vector<7x70xf32> to vector<1x10xf32>
    %716 = arith.addf %709, %715 : vector<1x10xf32>
    %717 = vector.extract_strided_slice %714 {offsets = [1, 10], sizes = [1, 10], strides = [1, 1]} : vector<7x70xf32> to vector<1x10xf32>
    %718 = arith.addf %716, %717 : vector<1x10xf32>
    %719 = vector.extract_strided_slice %714 {offsets = [2, 20], sizes = [1, 10], strides = [1, 1]} : vector<7x70xf32> to vector<1x10xf32>
    %720 = arith.addf %718, %719 : vector<1x10xf32>
    %721 = vector.extract_strided_slice %714 {offsets = [3, 30], sizes = [1, 10], strides = [1, 1]} : vector<7x70xf32> to vector<1x10xf32>
    %722 = arith.addf %720, %721 : vector<1x10xf32>
    %723 = vector.extract_strided_slice %714 {offsets = [4, 40], sizes = [1, 10], strides = [1, 1]} : vector<7x70xf32> to vector<1x10xf32>
    %724 = arith.addf %722, %723 : vector<1x10xf32>
    %725 = vector.extract_strided_slice %714 {offsets = [5, 50], sizes = [1, 10], strides = [1, 1]} : vector<7x70xf32> to vector<1x10xf32>
    %726 = arith.addf %724, %725 : vector<1x10xf32>
    %727 = vector.extract_strided_slice %714 {offsets = [6, 60], sizes = [1, 10], strides = [1, 1]} : vector<7x70xf32> to vector<1x10xf32>
    %728 = arith.addf %726, %727 : vector<1x10xf32>
    %729 = vector.shape_cast %728 : vector<1x10xf32> to vector<1x1x10xf32>
    %c0_309 = arith.constant 0 : index
    %c0_310 = arith.constant 0 : index
    %c0_311 = arith.constant 0 : index
    %730 = vector.load %arg12[%c0_309, %c0_310, %c0_311] : memref<1x1x10xf32, #tpu.memory_space<vmem>>, vector<1x1x10xf32>
    tpu.vector_store %arg12[%c0_309, %c0_310, %c0_311], %729 {strides = array<i32>} : memref<1x1x10xf32, #tpu.memory_space<vmem>>, vector<1x1x10xf32>,
    return
  }
  func.func @transform_0(%arg0: i32) -> (i32, i32, i32) {
    %c0_i32 = arith.constant 0 : i32
    %c0_i32_0 = arith.constant 0 : i32
    %c0_i32_1 = arith.constant 0 : i32
    return %arg0, %c0_i32, %c0_i32_0 : i32, i32, i32
  }
  func.func @transform_1(%arg0: i32) -> (i32, i32) {
    %c0_i32 = arith.constant 0 : i32
    %c0_i32_0 = arith.constant 0 : i32
    %c0_i32_1 = arith.constant 0 : i32
    return %c0_i32, %c0_i32_0 : i32, i32
  }
  func.func @transform_2(%arg0: i32) -> i32 {
    %c0_i32 = arith.constant 0 : i32
    %c0_i32_0 = arith.constant 0 : i32
    return %c0_i32 : i32
  }
  func.func @transform_3(%arg0: i32) -> (i32, i32) {
    %c0_i32 = arith.constant 0 : i32
    %c0_i32_0 = arith.constant 0 : i32
    %c0_i32_1 = arith.constant 0 : i32
    return %c0_i32, %c0_i32_0 : i32, i32
  }
  func.func @transform_4(%arg0: i32) -> i32 {
    %c0_i32 = arith.constant 0 : i32
    %c0_i32_0 = arith.constant 0 : i32
    return %c0_i32 : i32
  }
  func.func @transform_5(%arg0: i32) -> (i32, i32) {
    %c0_i32 = arith.constant 0 : i32
    %c0_i32_0 = arith.constant 0 : i32
    %c0_i32_1 = arith.constant 0 : i32
    return %c0_i32, %c0_i32_0 : i32, i32
  }
  func.func @transform_6(%arg0: i32) -> (i32, i32) {
    %c0_i32 = arith.constant 0 : i32
    %c0_i32_0 = arith.constant 0 : i32
    %c0_i32_1 = arith.constant 0 : i32
    return %c0_i32, %c0_i32_0 : i32, i32
  }
  func.func @transform_7(%arg0: i32) -> (i32, i32) {
    %c0_i32 = arith.constant 0 : i32
    %c0_i32_0 = arith.constant 0 : i32
    %c0_i32_1 = arith.constant 0 : i32
    return %c0_i32, %c0_i32_0 : i32, i32
  }
  func.func @transform_8(%arg0: i32) -> (i32, i32) {
    %c0_i32 = arith.constant 0 : i32
    %c0_i32_0 = arith.constant 0 : i32
    %c0_i32_1 = arith.constant 0 : i32
    return %c0_i32, %c0_i32_0 : i32, i32
  }
  func.func @transform_9(%arg0: i32) -> (i32, i32, i32) {
    %c0_i32 = arith.constant 0 : i32
    %c0_i32_0 = arith.constant 0 : i32
    %c0_i32_1 = arith.constant 0 : i32
    %c0_i32_2 = arith.constant 0 : i32
    return %c0_i32, %c0_i32_0, %c0_i32_1 : i32, i32, i32
  }
  func.func @transform_10(%arg0: i32) -> (i32, i32) {
    %c0_i32 = arith.constant 0 : i32
    %c0_i32_0 = arith.constant 0 : i32
    %c0_i32_1 = arith.constant 0 : i32
    return %c0_i32, %c0_i32_0 : i32, i32
  }
  func.func @transform_11(%arg0: i32) -> (i32, i32, i32) {
    %c0_i32 = arith.constant 0 : i32
    %c0_i32_0 = arith.constant 0 : i32
    %c0_i32_1 = arith.constant 0 : i32
    return %arg0, %c0_i32, %c0_i32_0 : i32, i32, i32
  }
}

</mosaic_0001>

<llo_original>
// kernel: cnn_forward.1
$region0: #{cnn_forward.1}
  #allocation0 [shape = 'u32[]', space=smem, size = 0x4, offset = 0x4, fixed_abs, tag = 'smem constant byte address 0x4 - core index']
  #allocation1 [shape = 'u32[72,128]{1,0:T(1,128)}', space=vmem, size = 0x9000, scoped, tag = 'internal scratch']
  #allocation2 [shape = 'f32[8,16,16]{2,1,0:T(8,128)}', space=vmem, size = 0x10000, scoped, tag = 'scratch operand']
  #allocation3 [shape = 'f32[16,7,7]{2,1,0:T(8,128)}', space=vmem, size = 0x10000, scoped, tag = 'scratch operand']
  %s0 = inlined_call_operand.vmem [shape: f32[2,30,30], index: 0, kind: input, shape index: {}]
  %s1 = inlined_call_operand.vmem [shape: f32[8,9], index: 1, kind: input, shape index: {}]
  %s2 = inlined_call_operand.vmem [shape: f32[8], index: 2, kind: input, shape index: {}]
  %s3 = inlined_call_operand.vmem [shape: f32[16,72], index: 3, kind: input, shape index: {}]
  %s4 = inlined_call_operand.vmem [shape: f32[16], index: 4, kind: input, shape index: {}]
  %s5 = inlined_call_operand.vmem [shape: f32[16,27], index: 5, kind: input, shape index: {}]
  %s6 = inlined_call_operand.vmem [shape: f32[27,16], index: 6, kind: input, shape index: {}]
  %s7 = inlined_call_operand.vmem [shape: f32[7,13], index: 7, kind: input, shape index: {}]
  %s8 = inlined_call_operand.vmem [shape: f32[13,7], index: 8, kind: input, shape index: {}]
  %s9 = inlined_call_operand.vmem [shape: f32[16,7,70], index: 9, kind: input, shape index: {}]
  %s10 = inlined_call_operand.vmem [shape: f32[1,10], index: 10, kind: input, shape index: {}]
  %s11 = inlined_call_operand.hbm [shape: f32[2,1,10], index: 11, kind: output, shape index: {}]
  %s12 = sld [smem:[#allocation0]]
  $region100: #{cnn_forward.1} parent=0
    _
  %s14 = ssub.s32 1, %s12
  %s15 = scalar_select 0, %s14, %s12
  $region1: #{cnn_forward.1} parent=0
    #allocation4 [shape = 'u8[4096]{0}', space=smem, size = 0x1000, scoped, tag = 'input window, operand 1, single buffered']
    #allocation5 [shape = 's32[2]{0}', space=sflag, size = 0x8, scoped, tag = 'scoped memory for cnn_forward.1']
    #allocation6 [shape = 's32[2]{0}', space=sflag, size = 0x8, scoped, tag = 'scoped memory for cnn_forward.1']
    #allocation7 [shape = 'u8[512]{0}', space=smem, size = 0x200, scoped, tag = 'input window, operand 2, single buffered']
    #allocation8 [shape = 's32[1]{0}', space=sflag, size = 0x4, scoped, tag = 'scoped memory for cnn_forward.1']
    #allocation9 [shape = 'u8[8192]{0}', space=smem, size = 0x2000, scoped, tag = 'input window, operand 3, single buffered']
    #allocation10 [shape = 'u8[512]{0}', space=smem, size = 0x200, scoped, tag = 'input window, operand 4, single buffered']
    #allocation11 [shape = 's32[1]{0}', space=sflag, size = 0x4, scoped, tag = 'scoped memory for cnn_forward.1']
    #allocation12 [shape = 'u8[1024]{0}', space=vmem, size = 0x400, scoped, tag = 'output window, operand 0']
    %16 = vsyncpa [#allocation6], 0
    %17 = vsyncpa [#allocation8], 0
    %18 = vsyncpa [#allocation11], 0
    %19 = vsyncpa [#allocation5], 0
    %s20 = scalar_lea.sflag [#allocation5], 1
    %21 = vsyncpa %s20, 0
    loop: start=0, step=1, limit=4
    $region2: #{cnn_forward.1} parent=1 // loop_pre_header
      _
    $region3: #{cnn_forward.1} parent=1 // loop_header
      %s23 = sphi 0, %s27
      %p24 = scmp.ge.s32.totalorder %s23, 4
      %s33 = sphi 0, %s35
      %s36 = sphi 0, %s33
      %s37 = sphi 0, %s36
      %s53 = sphi 0, %s37
      %s57 = sphi 0, %s57
      %s59 = sphi 0, %s57
      %s60 = sphi 0, %s59
      %s74 = sphi 0, %s60
      %s78 = sphi 0, %s78
      %s80 = sphi 0, %s78
      %s81 = sphi 0, %s80
      %s95 = sphi 0, %s81
      %s99 = sphi 0, %s99
      %s101 = sphi 0, %s99
      %s102 = sphi 0, %s101
      %s116 = sphi 0, %s102
      %s120 = sphi 0, %s120
      %s122 = sphi 0, %s120
      %s123 = sphi 0, %s122
      %s137 = sphi 0, %s123
      %s141 = sphi 0, %s141
      %s143 = sphi 0, %s141
      %s144 = sphi 0, %s143
      %s158 = sphi 0, %s144
      %s162 = sphi 0, %s162
      %s164 = sphi 0, %s162
      %s165 = sphi 0, %s164
      %s179 = sphi 0, %s165
      %s183 = sphi 0, %s183
      %s185 = sphi 0, %s183
      %s186 = sphi 0, %s185
      %s200 = sphi 0, %s186
      %s204 = sphi 0, %s204
      %s206 = sphi 0, %s204
      %s207 = sphi 0, %s206
      %s221 = sphi 0, %s207
      %s225 = sphi 0, %s225
      %s227 = sphi 0, %s225
      %s228 = sphi 0, %s227
      %s242 = sphi 0, %s228
      %s246 = sphi 0, %s246
      %s248 = sphi 0, %s246
      %s249 = sphi 0, %s248
      %s263 = sphi 0, %s249
      %s269 = sphi 0, %s271
      %s272 = sphi 0, %s269
      %s273 = sphi 0, %s272
      %s289 = sphi 0, %s273
    $region4: #{cnn_forward.1} parent=1 // loop_header_branch
      %26 = sbr.rel (%p24) target = $region8
    $region5: #{cnn_forward.1} parent=1 // loop_body
      %s28 = ssub.s32 %s23, 1
      %s29 = ssub.s32 %s23, 2
      %s30 = sadd.s32 %s23, 1
      %s31 = ssub.s32 %s23, %s30
      %p32 = scmp.eq.s32.totalorder %s31, 0
      %s34 = sadd.s32 %s33, 1
      %s35 = scalar_select %p32, %s33, %s34
      %p38 = pneg %p32
      %p39 = scmp.eq.s32.totalorder %s23, 1
      %p40 = por %p38, %p39
      %p41 = scmp.ne.s32.totalorder %s33, %s36
      %p42 = scmp.eq.s32.totalorder %s23, 0
      %p43 = por %p41, %p42
      %p44 = scmp.ne.s32.totalorder %s33, %s36
      %p45 = scmp.eq.s32.totalorder %s28, 1
      %p46 = por %p44, %p45
      %p47 = scmp.ne.s32.totalorder %s36, %s37
      %p48 = scmp.eq.s32.totalorder %s28, 0
      %p49 = por %p47, %p48
      %p50 = scmp.ne.s32.totalorder %s36, %s37
      %p51 = scmp.eq.s32.totalorder %s29, 1
      %p52 = por %p50, %p51
      %p54 = scmp.ne.s32.totalorder %s37, %s53
      %p55 = scmp.eq.s32.totalorder %s29, 0
      %p56 = por %p54, %p55
      %s58 = sadd.s32 %s57, 1
      %p61 = scmp.eq.s32.totalorder %s23, 1
      %p62 = scmp.ne.s32.totalorder %s57, %s59
      %p63 = scmp.eq.s32.totalorder %s23, 0
      %p64 = por %p62, %p63
      %p65 = scmp.ne.s32.totalorder %s57, %s59
      %p66 = scmp.eq.s32.totalorder %s28, 1
      %p67 = por %p65, %p66
      %p68 = scmp.ne.s32.totalorder %s59, %s60
      %p69 = scmp.eq.s32.totalorder %s28, 0
      %p70 = por %p68, %p69
      %p71 = scmp.ne.s32.totalorder %s59, %s60
      %p72 = scmp.eq.s32.totalorder %s29, 1
      %p73 = por %p71, %p72
      %p75 = scmp.ne.s32.totalorder %s60, %s74
      %p76 = scmp.eq.s32.totalorder %s29, 0
      %p77 = por %p75, %p76
      %s79 = sadd.s32 %s78, 1
      %p82 = scmp.eq.s32.totalorder %s23, 1
      %p83 = scmp.ne.s32.totalorder %s78, %s80
      %p84 = scmp.eq.s32.totalorder %s23, 0
      %p85 = por %p83, %p84
      %p86 = scmp.ne.s32.totalorder %s78, %s80
      %p87 = scmp.eq.s32.totalorder %s28, 1
      %p88 = por %p86, %p87
      %p89 = scmp.ne.s32.totalorder %s80, %s81
      %p90 = scmp.eq.s32.totalorder %s28, 0
      %p91 = por %p89, %p90
      %p92 = scmp.ne.s32.totalorder %s80, %s81
      %p93 = scmp.eq.s32.totalorder %s29, 1
      %p94 = por %p92, %p93
      %p96 = scmp.ne.s32.totalorder %s81, %s95
      %p97 = scmp.eq.s32.totalorder %s29, 0
      %p98 = por %p96, %p97
      %s100 = sadd.s32 %s99, 1
      %p103 = scmp.eq.s32.totalorder %s23, 1
      %p104 = scmp.ne.s32.totalorder %s99, %s101
      %p105 = scmp.eq.s32.totalorder %s23, 0
      %p106 = por %p104, %p105
      %p107 = scmp.ne.s32.totalorder %s99, %s101
      %p108 = scmp.eq.s32.totalorder %s28, 1
      %p109 = por %p107, %p108
      %p110 = scmp.ne.s32.totalorder %s101, %s102
      %p111 = scmp.eq.s32.totalorder %s28, 0
      %p112 = por %p110, %p111
      %p113 = scmp.ne.s32.totalorder %s101, %s102
      %p114 = scmp.eq.s32.totalorder %s29, 1
      %p115 = por %p113, %p114
      %p117 = scmp.ne.s32.totalorder %s102, %s116
      %p118 = scmp.eq.s32.totalorder %s29, 0
      %p119 = por %p117, %p118
      %s121 = sadd.s32 %s120, 1
      %p124 = scmp.eq.s32.totalorder %s23, 1
      %p125 = scmp.ne.s32.totalorder %s120, %s122
      %p126 = scmp.eq.s32.totalorder %s23, 0
      %p127 = por %p125, %p126
      %p128 = scmp.ne.s32.totalorder %s120, %s122
      %p129 = scmp.eq.s32.totalorder %s28, 1
      %p130 = por %p128, %p129
      %p131 = scmp.ne.s32.totalorder %s122, %s123
      %p132 = scmp.eq.s32.totalorder %s28, 0
      %p133 = por %p131, %p132
      %p134 = scmp.ne.s32.totalorder %s122, %s123
      %p135 = scmp.eq.s32.totalorder %s29, 1
      %p136 = por %p134, %p135
      %p138 = scmp.ne.s32.totalorder %s123, %s137
      %p139 = scmp.eq.s32.totalorder %s29, 0
      %p140 = por %p138, %p139
      %s142 = sadd.s32 %s141, 1
      %p145 = scmp.eq.s32.totalorder %s23, 1
      %p146 = scmp.ne.s32.totalorder %s141, %s143
      %p147 = scmp.eq.s32.totalorder %s23, 0
      %p148 = por %p146, %p147
      %p149 = scmp.ne.s32.totalorder %s141, %s143
      %p150 = scmp.eq.s32.totalorder %s28, 1
      %p151 = por %p149, %p150
      %p152 = scmp.ne.s32.totalorder %s143, %s144
      %p153 = scmp.eq.s32.totalorder %s28, 0
      %p154 = por %p152, %p153
      %p155 = scmp.ne.s32.totalorder %s143, %s144
      %p156 = scmp.eq.s32.totalorder %s29, 1
      %p157 = por %p155, %p156
      %p159 = scmp.ne.s32.totalorder %s144, %s158
      %p160 = scmp.eq.s32.totalorder %s29, 0
      %p161 = por %p159, %p160
      %s163 = sadd.s32 %s162, 1
      %p166 = scmp.eq.s32.totalorder %s23, 1
      %p167 = scmp.ne.s32.totalorder %s162, %s164
      %p168 = scmp.eq.s32.totalorder %s23, 0
      %p169 = por %p167, %p168
      %p170 = scmp.ne.s32.totalorder %s162, %s164
      %p171 = scmp.eq.s32.totalorder %s28, 1
      %p172 = por %p170, %p171
      %p173 = scmp.ne.s32.totalorder %s164, %s165
      %p174 = scmp.eq.s32.totalorder %s28, 0
      %p175 = por %p173, %p174
      %p176 = scmp.ne.s32.totalorder %s164, %s165
      %p177 = scmp.eq.s32.totalorder %s29, 1
      %p178 = por %p176, %p177
      %p180 = scmp.ne.s32.totalorder %s165, %s179
      %p181 = scmp.eq.s32.totalorder %s29, 0
      %p182 = por %p180, %p181
      %s184 = sadd.s32 %s183, 1
      %p187 = scmp.eq.s32.totalorder %s23, 1
      %p188 = scmp.ne.s32.totalorder %s183, %s185
      %p189 = scmp.eq.s32.totalorder %s23, 0
      %p190 = por %p188, %p189
      %p191 = scmp.ne.s32.totalorder %s183, %s185
      %p192 = scmp.eq.s32.totalorder %s28, 1
      %p193 = por %p191, %p192
      %p194 = scmp.ne.s32.totalorder %s185, %s186
      %p195 = scmp.eq.s32.totalorder %s28, 0
      %p196 = por %p194, %p195
      %p197 = scmp.ne.s32.totalorder %s185, %s186
      %p198 = scmp.eq.s32.totalorder %s29, 1
      %p199 = por %p197, %p198
      %p201 = scmp.ne.s32.totalorder %s186, %s200
      %p202 = scmp.eq.s32.totalorder %s29, 0
      %p203 = por %p201, %p202
      %s205 = sadd.s32 %s204, 1
      %p208 = scmp.eq.s32.totalorder %s23, 1
      %p209 = scmp.ne.s32.totalorder %s204, %s206
      %p210 = scmp.eq.s32.totalorder %s23, 0
      %p211 = por %p209, %p210
      %p212 = scmp.ne.s32.totalorder %s204, %s206
      %p213 = scmp.eq.s32.totalorder %s28, 1
      %p214 = por %p212, %p213
      %p215 = scmp.ne.s32.totalorder %s206, %s207
      %p216 = scmp.eq.s32.totalorder %s28, 0
      %p217 = por %p215, %p216
      %p218 = scmp.ne.s32.totalorder %s206, %s207
      %p219 = scmp.eq.s32.totalorder %s29, 1
      %p220 = por %p218, %p219
      %p222 = scmp.ne.s32.totalorder %s207, %s221
      %p223 = scmp.eq.s32.totalorder %s29, 0
      %p224 = por %p222, %p223
      %s226 = sadd.s32 %s225, 1
      %p229 = scmp.eq.s32.totalorder %s23, 1
      %p230 = scmp.ne.s32.totalorder %s225, %s227
      %p231 = scmp.eq.s32.totalorder %s23, 0
      %p232 = por %p230, %p231
      %p233 = scmp.ne.s32.totalorder %s225, %s227
      %p234 = scmp.eq.s32.totalorder %s28, 1
      %p235 = por %p233, %p234
      %p236 = scmp.ne.s32.totalorder %s227, %s228
      %p237 = scmp.eq.s32.totalorder %s28, 0
      %p238 = por %p236, %p237
      %p239 = scmp.ne.s32.totalorder %s227, %s228
      %p240 = scmp.eq.s32.totalorder %s29, 1
      %p241 = por %p239, %p240
      %p243 = scmp.ne.s32.totalorder %s228, %s242
      %p244 = scmp.eq.s32.totalorder %s29, 0
      %p245 = por %p243, %p244
      %s247 = sadd.s32 %s246, 1
      %p250 = scmp.eq.s32.totalorder %s23, 1
      %p251 = scmp.ne.s32.totalorder %s246, %s248
      %p252 = scmp.eq.s32.totalorder %s23, 0
      %p253 = por %p251, %p252
      %p254 = scmp.ne.s32.totalorder %s246, %s248
      %p255 = scmp.eq.s32.totalorder %s28, 1
      %p256 = por %p254, %p255
      %p257 = scmp.ne.s32.totalorder %s248, %s249
      %p258 = scmp.eq.s32.totalorder %s28, 0
      %p259 = por %p257, %p258
      %p260 = scmp.ne.s32.totalorder %s248, %s249
      %p261 = scmp.eq.s32.totalorder %s29, 1
      %p262 = por %p260, %p261
      %p264 = scmp.ne.s32.totalorder %s249, %s263
      %p265 = scmp.eq.s32.totalorder %s29, 0
      %p266 = por %p264, %p265
      %s267 = ssub.s32 %s23, %s30
      %p268 = scmp.eq.s32.totalorder %s267, 0
      %s270 = sadd.s32 %s269, 1
      %s271 = scalar_select %p268, %s269, %s270
      %p274 = pneg %p268
      %p275 = scmp.eq.s32.totalorder %s23, 1
      %p276 = por %p274, %p275
      %p277 = scmp.ne.s32.totalorder %s269, %s272
      %p278 = scmp.eq.s32.totalorder %s23, 0
      %p279 = por %p277, %p278
      %p280 = scmp.ne.s32.totalorder %s269, %s272
      %p281 = scmp.eq.s32.totalorder %s28, 1
      %p282 = por %p280, %p281
      %p283 = scmp.ne.s32.totalorder %s272, %s273
      %p284 = scmp.eq.s32.totalorder %s28, 0
      %p285 = por %p283, %p284
      %p286 = scmp.ne.s32.totalorder %s272, %s273
      %p287 = scmp.eq.s32.totalorder %s29, 1
      %p288 = por %p286, %p287
      %p290 = scmp.ne.s32.totalorder %s273, %s289
      %p291 = scmp.eq.s32.totalorder %s29, 0
      %p292 = por %p290, %p291
      %p293 = scmp.le.s32.totalorder 1, %s23
      %p294 = scmp.lt.s32.totalorder %s23, 3
      %p295 = pnand %p293, %p294
      %p296 = pneg %p295
      // Predicated region
      $region9: #{cnn_forward.1} parent=5 // pred_check
        _
      $region10: #{cnn_forward.1} parent=5 // pred_check_branch
        %298 = sbr.rel (%p295) target = $region12
      $region11: #{cnn_forward.1} parent=5 // pred_region
        %s299 = ssub.s32 %s23, 1
        // Predicated region
        $region13: #{cnn_forward.1} parent=11 // pred_check
          %p300 = pneg %p70
        $region14: #{cnn_forward.1} parent=11 // pred_check_branch
          %302 = sbr.rel (%p300) target = $region16
        $region15: #{cnn_forward.1} parent=11 // pred_region
          %304 = vsyncadd [#allocation6], 0
          %s306 = sshll.u32 %s1, 4
          %s307 = int_to_ptr.vmem [resolvable:$true] %s306
          %309 = dma.vmem_to_smem %s307, 128, [#allocation4], [#allocation6]
        $region16: #{cnn_forward.1} parent=11 // pred_fallthru
          _
        // Predicated region
        $region17: #{cnn_forward.1} parent=11 // pred_check
          %p310 = pneg %p91
        $region18: #{cnn_forward.1} parent=11 // pred_check_branch
          %312 = sbr.rel (%p310) target = $region20
        $region19: #{cnn_forward.1} parent=11 // pred_region
          %314 = vsyncadd [#allocation8], 0
          %s316 = sshll.u32 %s2, 4
          %s317 = int_to_ptr.vmem [resolvable:$true] %s316
          %319 = dma.vmem_to_smem %s317, 16, [#allocation7], [#allocation8]
        $region20: #{cnn_forward.1} parent=11 // pred_fallthru
          _
        // Predicated region
        $region21: #{cnn_forward.1} parent=11 // pred_check
          %p320 = pneg %p112
        $region22: #{cnn_forward.1} parent=11 // pred_check_branch
          %322 = sbr.rel (%p320) target = $region24
        $region23: #{cnn_forward.1} parent=11 // pred_region
          %324 = vsyncadd [#allocation8], 0
          %s325 = sshll.u32 %s3, 4
          %s326 = int_to_ptr.vmem [resolvable:$true] %s325
          %331 = dma.vmem_to_smem %s326, 256, [#allocation9], [#allocation8], 128, 128, 8
        $region24: #{cnn_forward.1} parent=11 // pred_fallthru
          _
        // Predicated region
        $region25: #{cnn_forward.1} parent=11 // pred_check
          %p332 = pneg %p133
        $region26: #{cnn_forward.1} parent=11 // pred_check_branch
          %334 = sbr.rel (%p332) target = $region28
        $region27: #{cnn_forward.1} parent=11 // pred_region
          %336 = vsyncadd [#allocation11], 0
          %s338 = sshll.u32 %s4, 4
          %s339 = int_to_ptr.vmem [resolvable:$true] %s338
          %341 = dma.vmem_to_smem %s339, 16, [#allocation10], [#allocation11]
        $region28: #{cnn_forward.1} parent=11 // pred_fallthru
          _
        // Predicated region
        $region29: #{cnn_forward.1} parent=11 // pred_check
          %p342 = pneg %p154
        $region30: #{cnn_forward.1} parent=11 // pred_check_branch
          %344 = sbr.rel (%p342) target = $region32
        $region31: #{cnn_forward.1} parent=11 // pred_region
          _
        $region32: #{cnn_forward.1} parent=11 // pred_fallthru
          _
        // Predicated region
        $region33: #{cnn_forward.1} parent=11 // pred_check
          %p345 = pneg %p175
        $region34: #{cnn_forward.1} parent=11 // pred_check_branch
          %347 = sbr.rel (%p345) target = $region36
        $region35: #{cnn_forward.1} parent=11 // pred_region
          _
        $region36: #{cnn_forward.1} parent=11 // pred_fallthru
          _
        // Predicated region
        $region37: #{cnn_forward.1} parent=11 // pred_check
          %p348 = pneg %p196
        $region38: #{cnn_forward.1} parent=11 // pred_check_branch
          %350 = sbr.rel (%p348) target = $region40
        $region39: #{cnn_forward.1} parent=11 // pred_region
          _
        $region40: #{cnn_forward.1} parent=11 // pred_fallthru
          _
        // Predicated region
        $region41: #{cnn_forward.1} parent=11 // pred_check
          %p351 = pneg %p217
        $region42: #{cnn_forward.1} parent=11 // pred_check_branch
          %353 = sbr.rel (%p351) target = $region44
        $region43: #{cnn_forward.1} parent=11 // pred_region
          _
        $region44: #{cnn_forward.1} parent=11 // pred_fallthru
          _
        // Predicated region
        $region45: #{cnn_forward.1} parent=11 // pred_check
          %p354 = pneg %p238
        $region46: #{cnn_forward.1} parent=11 // pred_check_branch
          %356 = sbr.rel (%p354) target = $region48
        $region47: #{cnn_forward.1} parent=11 // pred_region
          _
        $region48: #{cnn_forward.1} parent=11 // pred_fallthru
          _
        // Predicated region
        $region49: #{cnn_forward.1} parent=11 // pred_check
          %p357 = pneg %p259
        $region50: #{cnn_forward.1} parent=11 // pred_check_branch
          %359 = sbr.rel (%p357) target = $region52
        $region51: #{cnn_forward.1} parent=11 // pred_region
          _
        $region52: #{cnn_forward.1} parent=11 // pred_fallthru
          _
      $region12: #{cnn_forward.1} parent=5 // pred_fallthru
        _
      %p360 = scmp.lt.s32.totalorder %s23, 2
      // Predicated region
      $region53: #{cnn_forward.1} parent=5 // pred_check
        %p361 = pneg %p360
      $region54: #{cnn_forward.1} parent=5 // pred_check_branch
        %363 = sbr.rel (%p361) target = $region56
      $region55: #{cnn_forward.1} parent=5 // pred_region
        // Predicated region
        $region57: #{cnn_forward.1} parent=55 // pred_check
          %p364 = pneg %p43
        $region58: #{cnn_forward.1} parent=55 // pred_check_branch
          %366 = sbr.rel (%p364) target = $region60
        $region59: #{cnn_forward.1} parent=55 // pred_region
          %p367 = scmp.lt.s32.totalorder %s23, 1
          %s368 = scalar_select %p367, %s23, 1
          %s369 = smul.addr %s368, 4
          %s370 = smul.addr %s369, 8
          %s371 = scalar_lea.vmem %s0, %s370
        $region60: #{cnn_forward.1} parent=55 // pred_fallthru
          _
      $region56: #{cnn_forward.1} parent=5 // pred_fallthru
        _
      %p372 = scmp.le.s32.totalorder 1, %s23
      %p373 = scmp.lt.s32.totalorder %s23, 3
      %p374 = pnand %p372, %p373
      %p375 = pneg %p374
      // Predicated region
      $region61: #{cnn_forward.1} parent=5 // pred_check
        _
      $region62: #{cnn_forward.1} parent=5 // pred_check_branch
        %377 = sbr.rel (%p374) target = $region64
      $region63: #{cnn_forward.1} parent=5 // pred_region
        %s378 = ssub.s32 %s23, 1
        // Predicated region
        $region65: #{cnn_forward.1} parent=63 // pred_check
          %p379 = pneg %p70
        $region66: #{cnn_forward.1} parent=63 // pred_check_branch
          %381 = sbr.rel (%p379) target = $region68
        $region67: #{cnn_forward.1} parent=63 // pred_region
          %383 = dma.done [#allocation6], 128
        $region68: #{cnn_forward.1} parent=63 // pred_fallthru
          _
        // Predicated region
        $region69: #{cnn_forward.1} parent=63 // pred_check
          %p384 = pneg %p91
        $region70: #{cnn_forward.1} parent=63 // pred_check_branch
          %386 = sbr.rel (%p384) target = $region72
        $region71: #{cnn_forward.1} parent=63 // pred_region
          %388 = dma.done [#allocation8], 16
        $region72: #{cnn_forward.1} parent=63 // pred_fallthru
          _
        // Predicated region
        $region73: #{cnn_forward.1} parent=63 // pred_check
          %p389 = pneg %p112
        $region74: #{cnn_forward.1} parent=63 // pred_check_branch
          %391 = sbr.rel (%p389) target = $region76
        $region75: #{cnn_forward.1} parent=63 // pred_region
          %393 = dma.done [#allocation8], 256
        $region76: #{cnn_forward.1} parent=63 // pred_fallthru
          _
        // Predicated region
        $region77: #{cnn_forward.1} parent=63 // pred_check
          %p394 = pneg %p133
        $region78: #{cnn_forward.1} parent=63 // pred_check_branch
          %396 = sbr.rel (%p394) target = $region80
        $region79: #{cnn_forward.1} parent=63 // pred_region
          %398 = dma.done [#allocation11], 16
        $region80: #{cnn_forward.1} parent=63 // pred_fallthru
          _
        %399 = sfence
        %p400 = scmp.lt.s32.totalorder %s28, 1
        %s401 = scalar_select %p400, %s28, 1
        %s402 = smul.addr %s401, 4
        %s403 = smul.addr %s402, 8
        %s404 = scalar_lea.vmem %s0, %s403
        %p405 = pneg %p49
        %p406 = pneg %p46
        %p407 = pneg %p70
        %p408 = pneg %p67
        %p409 = pneg %p91
        %p410 = pneg %p88
        %p411 = pneg %p112
        %p412 = pneg %p109
        %p413 = pneg %p133
        %p414 = pneg %p130
        %p415 = pneg %p154
        %p416 = pneg %p151
        %p417 = pneg %p175
        %p418 = pneg %p172
        %p419 = pneg %p196
        %p420 = pneg %p193
        %p421 = pneg %p217
        %p422 = pneg %p214
        %p423 = pneg %p238
        %p424 = pneg %p235
        %p425 = pneg %p259
        %p426 = pneg %p256
        %p427 = pneg %p285
        %p428 = pneg %p282
        %s429 = sand.u32 %s272, 1
        %s430 = scalar_lea.sflag [#allocation5], %s429
        %s431 = sand.u32 %s272, 1
        %s432 = scalar_lea.vmem [#allocation12], %s431
        %p433 = scmp.lt.s32.totalorder %s28, 1
        %s434 = scalar_select %p433, %s28, 1
        %s435 = smul.addr %s434, 4
        %s436 = smul.addr %s435, 8
        %s437 = scalar_lea.vmem %s0, %s436
        %v438 = vld [vmem:[%s437] sm:$0xff]
        %v439 = vld [vmem:[%s437 + $0x8] sm:$0xff]
        %v440 = vld [vmem:[%s437 + $0x10] sm:$0xff]
        %v441 = vld [vmem:[%s437 + $0x18] sm:$0x3f]
        %v442 = vld [vmem:[%s5] sm:$0xff]
        %v443 = vld [vmem:[%s5 + $0x8] sm:$0xff]
        %v444 = vld [vmem:[%s6] sm:$0xff]
        %v445 = vld [vmem:[%s6 + $0x8] sm:$0xff]
        %v446 = vld [vmem:[%s6 + $0x10] sm:$0xff]
        %v447 = vld [vmem:[%s6 + $0x18] sm:$0x7]
        %v448 = vld [vmem:[%s7] sm:$0x7f]
        %v449 = vld [vmem:[%s8] sm:$0xff]
        %v450 = vld [vmem:[%s8 + $0x8] sm:$0x1f]
        %s451 = sld [smem:[#allocation4]]
        %v452 = vstv %s451
        %v453 = vmul.f32 %v452, %v438
        %v454 = vmul.f32 %v452, %v439
        %v455 = vmul.f32 %v452, %v440
        %v456 = vmul.f32 %v452, %v441
        %s457 = sld [smem:[#allocation4 + $0x1]]
        %v458 = vstv %s457
        %v459 = vmul.f32 %v458, %v438
        %v460 = vmul.f32 %v458, %v439
        %v461 = vmul.f32 %v458, %v440
        %v462 = vmul.f32 %v458, %v441
        %467 = vrot.lane.b32.xlu0 %v459, 127
        %v468 = vpop.permute.xlu0 %467
        %469 = vrot.lane.b32.xlu0 %v460, 127
        %v470 = vpop.permute.xlu0 %469
        %471 = vrot.lane.b32.xlu0 %v461, 127
        %v472 = vpop.permute.xlu0 %471
        %473 = vrot.lane.b32.xlu0 %v462, 127
        %v474 = vpop.permute.xlu0 %473
        %v479 = vadd.f32 %v453, %v468
        %v480 = vadd.f32 %v454, %v470
        %v481 = vadd.f32 %v455, %v472
        %v482 = vadd.f32 %v456, %v474
        %s483 = sld [smem:[#allocation4 + $0x2]]
        %v484 = vstv %s483
        %v485 = vmul.f32 %v484, %v438
        %v486 = vmul.f32 %v484, %v439
        %v487 = vmul.f32 %v484, %v440
        %v488 = vmul.f32 %v484, %v441
        %493 = vrot.lane.b32.xlu0 %v485, 126
        %v494 = vpop.permute.xlu0 %493
        %495 = vrot.lane.b32.xlu0 %v486, 126
        %v496 = vpop.permute.xlu0 %495
        %497 = vrot.lane.b32.xlu0 %v487, 126
        %v498 = vpop.permute.xlu0 %497
        %499 = vrot.lane.b32.xlu0 %v488, 126
        %v500 = vpop.permute.xlu0 %499
        %v505 = vadd.f32 %v479, %v494
        %v506 = vadd.f32 %v480, %v496
        %v507 = vadd.f32 %v481, %v498
        %v508 = vadd.f32 %v482, %v500
        %s509 = sld [smem:[#allocation4 + $0x3]]
        %v510 = vstv %s509
        %v511 = vmul.f32 %v510, %v438
        %v512 = vmul.f32 %v510, %v439
        %v513 = vmul.f32 %v510, %v440
        %v514 = vmul.f32 %v510, %v441
        %vm519 = vcmask 1046528
        %v520 = vrot.slane %v511, 1
        %v521 = vrot.slane %v512, 1
        %v522 = vsel %vm519, %v520, %v521
        %v523 = vrot.slane %v513, 1
        %v524 = vsel %vm519, %v521, %v523
        %v525 = vrot.slane %v514, 1
        %v526 = vsel %vm519, %v523, %v525
        %v531 = vadd.f32 %v505, %v522
        %v532 = vadd.f32 %v506, %v524
        %v533 = vadd.f32 %v507, %v526
        %v534 = vadd.f32 %v508, %v525
        %s535 = sld [smem:[#allocation4 + $0x4]]
        %v536 = vstv %s535
        %v537 = vmul.f32 %v536, %v438
        %v538 = vmul.f32 %v536, %v439
        %v539 = vmul.f32 %v536, %v440
        %v540 = vmul.f32 %v536, %v441
        %v545 = vrot.slane %v537, 1
        %v546 = vrot.slane %v538, 1
        %v547 = vsel %vm519, %v545, %v546
        %v548 = vrot.slane %v539, 1
        %v549 = vsel %vm519, %v546, %v548
        %v550 = vrot.slane %v540, 1
        %v551 = vsel %vm519, %v548, %v550
        %552 = vrot.lane.b32.xlu0 %v547, 127
        %v553 = vpop.permute.xlu0 %552
        %554 = vrot.lane.b32.xlu0 %v549, 127
        %v555 = vpop.permute.xlu0 %554
        %556 = vrot.lane.b32.xlu0 %v551, 127
        %v557 = vpop.permute.xlu0 %556
        %558 = vrot.lane.b32.xlu0 %v550, 127
        %v559 = vpop.permute.xlu0 %558
        %v564 = vadd.f32 %v531, %v553
        %v565 = vadd.f32 %v532, %v555
        %v566 = vadd.f32 %v533, %v557
        %v567 = vadd.f32 %v534, %v559
        %s568 = sld [smem:[#allocation4 + $0x5]]
        %v569 = vstv %s568
        %v570 = vmul.f32 %v569, %v438
        %v571 = vmul.f32 %v569, %v439
        %v572 = vmul.f32 %v569, %v440
        %v573 = vmul.f32 %v569, %v441
        %v578 = vrot.slane %v570, 1
        %v579 = vrot.slane %v571, 1
        %v580 = vsel %vm519, %v578, %v579
        %v581 = vrot.slane %v572, 1
        %v582 = vsel %vm519, %v579, %v581
        %v583 = vrot.slane %v573, 1
        %v584 = vsel %vm519, %v581, %v583
        %585 = vrot.lane.b32.xlu0 %v580, 126
        %v586 = vpop.permute.xlu0 %585
        %587 = vrot.lane.b32.xlu0 %v582, 126
        %v588 = vpop.permute.xlu0 %587
        %589 = vrot.lane.b32.xlu0 %v584, 126
        %v590 = vpop.permute.xlu0 %589
        %591 = vrot.lane.b32.xlu0 %v583, 126
        %v592 = vpop.permute.xlu0 %591
        %v597 = vadd.f32 %v564, %v586
        %v598 = vadd.f32 %v565, %v588
        %v599 = vadd.f32 %v566, %v590
        %v600 = vadd.f32 %v567, %v592
        %s601 = sld [smem:[#allocation4 + $0x6]]
        %v602 = vstv %s601
        %v603 = vmul.f32 %v602, %v438
        %v604 = vmul.f32 %v602, %v439
        %v605 = vmul.f32 %v602, %v440
        %v606 = vmul.f32 %v602, %v441
        %vm611 = vcmask 1045504
        %v612 = vrot.slane %v603, 2
        %v613 = vrot.slane %v604, 2
        %v614 = vsel %vm611, %v612, %v613
        %v615 = vrot.slane %v605, 2
        %v616 = vsel %vm611, %v613, %v615
        %v617 = vrot.slane %v606, 2
        %v618 = vsel %vm611, %v615, %v617
        %v623 = vadd.f32 %v597, %v614
        %v624 = vadd.f32 %v598, %v616
        %v625 = vadd.f32 %v599, %v618
        %v626 = vadd.f32 %v600, %v617
        %s627 = sld [smem:[#allocation4 + $0x7]]
        %v628 = vstv %s627
        %v629 = vmul.f32 %v628, %v438
        %v630 = vmul.f32 %v628, %v439
        %v631 = vmul.f32 %v628, %v440
        %v632 = vmul.f32 %v628, %v441
        %v637 = vrot.slane %v629, 2
        %v638 = vrot.slane %v630, 2
        %v639 = vsel %vm611, %v637, %v638
        %v640 = vrot.slane %v631, 2
        %v641 = vsel %vm611, %v638, %v640
        %v642 = vrot.slane %v632, 2
        %v643 = vsel %vm611, %v640, %v642
        %644 = vrot.lane.b32.xlu0 %v639, 127
        %v645 = vpop.permute.xlu0 %644
        %646 = vrot.lane.b32.xlu0 %v641, 127
        %v647 = vpop.permute.xlu0 %646
        %648 = vrot.lane.b32.xlu0 %v643, 127
        %v649 = vpop.permute.xlu0 %648
        %650 = vrot.lane.b32.xlu0 %v642, 127
        %v651 = vpop.permute.xlu0 %650
        %v656 = vadd.f32 %v623, %v645
        %v657 = vadd.f32 %v624, %v647
        %v658 = vadd.f32 %v625, %v649
        %v659 = vadd.f32 %v626, %v651
        %s660 = sld [smem:[#allocation4 + $0x8]]
        %v661 = vstv %s660
        %v662 = vmul.f32 %v661, %v438
        %v663 = vmul.f32 %v661, %v439
        %v664 = vmul.f32 %v661, %v440
        %v665 = vmul.f32 %v661, %v441
        %v670 = vrot.slane %v662, 2
        %v671 = vrot.slane %v663, 2
        %v672 = vsel %vm611, %v670, %v671
        %v673 = vrot.slane %v664, 2
        %v674 = vsel %vm611, %v671, %v673
        %v675 = vrot.slane %v665, 2
        %v676 = vsel %vm611, %v673, %v675
        %677 = vrot.lane.b32.xlu0 %v672, 126
        %v678 = vpop.permute.xlu0 %677
        %679 = vrot.lane.b32.xlu0 %v674, 126
        %v680 = vpop.permute.xlu0 %679
        %681 = vrot.lane.b32.xlu0 %v676, 126
        %v682 = vpop.permute.xlu0 %681
        %683 = vrot.lane.b32.xlu0 %v675, 126
        %v684 = vpop.permute.xlu0 %683
        %v689 = vadd.f32 %v656, %v678
        %v690 = vadd.f32 %v657, %v680
        %v691 = vadd.f32 %v658, %v682
        %v692 = vadd.f32 %v659, %v684
        %s693 = sld [smem:[#allocation7]]
        %v694 = vstv %s693
        %v695 = vadd.f32 %v689, %v694
        %v696 = vadd.f32 %v690, %v694
        %v697 = vadd.f32 %v691, %v694
        %v698 = vadd.f32 %v692, %v694
        %v699 = vmax.f32 %v695, 0.0
        %v700 = vmax.f32 %v696, 0.0
        %v701 = vmax.f32 %v697, 0.0
        %v702 = vmax.f32 %v698, 0.0
        %v707 = vrot.slane %v699, 1
        %v708 = vrot.slane %v700, 1
        %v709 = vsel %vm519, %v707, %v708
        %v710 = vrot.slane %v701, 1
        %v711 = vsel %vm519, %v708, %v710
        %v712 = vrot.slane %v702, 1
        %v713 = vsel %vm519, %v710, %v712
        %v718 = vmax.f32 %v699, %v709
        %v719 = vmax.f32 %v700, %v711
        %v720 = vmax.f32 %v701, %v713
        %v721 = vmax.f32 %v702, %v712
        %726 = vrot.lane.b32.xlu0 %v718, 127
        %v727 = vpop.permute.xlu0 %726
        %728 = vrot.lane.b32.xlu0 %v719, 127
        %v729 = vpop.permute.xlu0 %728
        %730 = vrot.lane.b32.xlu0 %v720, 127
        %v731 = vpop.permute.xlu0 %730
        %732 = vrot.lane.b32.xlu0 %v721, 127
        %v733 = vpop.permute.xlu0 %732
        %v738 = vmax.f32 %v718, %v727
        %v739 = vmax.f32 %v719, %v729
        %v740 = vmax.f32 %v720, %v731
        %v741 = vmax.f32 %v721, %v733
        %vm742 = vcmask 220160
        %v744 = vsel %vm742, %v738, 0
        %v747 = vsel %vm742, %v739, 0
        %v750 = vsel %vm742, %v740, 0
        %v753 = vsel %vm742, %v741, 0
        %vm755 = vcmask 1042432
        %v757 = vsel %vm755, %v447, 0
        %759 = vmatpush.msra.mxu0 0.0
        %760 = vmatpush.msra.mxu0 0.0
        %761 = vmatpush.msra.mxu0 0.0
        %762 = vmatpush.msra.mxu0 0.0
        %763 = vmatpush.msra.mxu0 0.0
        %764 = vmatpush.msra.mxu0 0.0
        %765 = vmatpush.msra.mxu0 0.0
        %766 = vmatpush.msra.mxu0 0.0
        %767 = vmatpush.msra.mxu0 0.0
        %768 = vmatpush.msra.mxu0 0.0
        %769 = vmatpush.msra.mxu0 0.0
        %770 = vmatpush.msra.mxu0 0.0
        %771 = vmatpush.msra.mxu0 %v757
        %772 = vmatpush.msra.mxu0 %v446
        %773 = vmatpush.msra.mxu0 %v445
        %774 = vmatpush.msra.mxu0 %v444
        %775 = vmatmul.f32.gmra.mxu0 %v744
        %v776 = vpop.f32.mrf.mxu0
        %v777 = vadd.f32 0.0, %v776
        %778 = vmatmul.f32.gmra.mxu0 %v747
        %v779 = vpop.f32.mrf.mxu0
        %v780 = vadd.f32 0.0, %v779
        %781 = vmatmul.f32.gmra.mxu0 %v750
        %v782 = vpop.f32.mrf.mxu0
        %v783 = vadd.f32 0.0, %v782
        %784 = vmatmul.f32.gmra.mxu0 %v753
        %v785 = vpop.f32.mrf.mxu0
        %v786 = vadd.f32 0.0, %v785
        %787 = vdwg.mxu0
        %v789 = vsel %vm742, %v442, 0
        %v792 = vsel %vm742, %v443, 0
        %v795 = vsel %vm755, %v786, 0
        %797 = vmatpush.msra.mxu0 0.0
        %798 = vmatpush.msra.mxu0 0.0
        %799 = vmatpush.msra.mxu0 0.0
        %800 = vmatpush.msra.mxu0 0.0
        %801 = vmatpush.msra.mxu0 0.0
        %802 = vmatpush.msra.mxu0 0.0
        %803 = vmatpush.msra.mxu0 0.0
        %804 = vmatpush.msra.mxu0 0.0
        %805 = vmatpush.msra.mxu0 0.0
        %806 = vmatpush.msra.mxu0 0.0
        %807 = vmatpush.msra.mxu0 0.0
        %808 = vmatpush.msra.mxu0 0.0
        %809 = vmatpush.msra.mxu0 %v795
        %810 = vmatpush.msra.mxu0 %v783
        %811 = vmatpush.msra.mxu0 %v780
        %812 = vmatpush.msra.mxu0 %v777
        %813 = vmatmul.f32.gmra.mxu0 %v789
        %v814 = vpop.f32.mrf.mxu0
        %v815 = vadd.f32 0.0, %v814
        %816 = vmatmul.f32.gmra.mxu0 %v792
        %v817 = vpop.f32.mrf.mxu0
        %v818 = vadd.f32 0.0, %v817
        %819 = vdwg.mxu0
        %vm820 = vcmask 130048
        %821 = vst.msk [vmem:[#allocation2] sm:$0xff] %vm820, %v815
        %822 = vst.msk [vmem:[#allocation2 + $0x8] sm:$0xff] %vm820, %v818
        %s823 = sld [smem:[#allocation4 + $0x80]]
        %v824 = vstv %s823
        %v825 = vmul.f32 %v824, %v438
        %v826 = vmul.f32 %v824, %v439
        %v827 = vmul.f32 %v824, %v440
        %v828 = vmul.f32 %v824, %v441
        %s829 = sld [smem:[#allocation4 + $0x81]]
        %v830 = vstv %s829
        %v831 = vmul.f32 %v830, %v438
        %v832 = vmul.f32 %v830, %v439
        %v833 = vmul.f32 %v830, %v440
        %v834 = vmul.f32 %v830, %v441
        %839 = vrot.lane.b32.xlu0 %v831, 127
        %v840 = vpop.permute.xlu0 %839
        %841 = vrot.lane.b32.xlu0 %v832, 127
        %v842 = vpop.permute.xlu0 %841
        %843 = vrot.lane.b32.xlu0 %v833, 127
        %v844 = vpop.permute.xlu0 %843
        %845 = vrot.lane.b32.xlu0 %v834, 127
        %v846 = vpop.permute.xlu0 %845
        %v851 = vadd.f32 %v825, %v840
        %v852 = vadd.f32 %v826, %v842
        %v853 = vadd.f32 %v827, %v844
        %v854 = vadd.f32 %v828, %v846
        %s855 = sld [smem:[#allocation4 + $0x82]]
        %v856 = vstv %s855
        %v857 = vmul.f32 %v856, %v438
        %v858 = vmul.f32 %v856, %v439
        %v859 = vmul.f32 %v856, %v440
        %v860 = vmul.f32 %v856, %v441
        %865 = vrot.lane.b32.xlu0 %v857, 126
        %v866 = vpop.permute.xlu0 %865
        %867 = vrot.lane.b32.xlu0 %v858, 126
        %v868 = vpop.permute.xlu0 %867
        %869 = vrot.lane.b32.xlu0 %v859, 126
        %v870 = vpop.permute.xlu0 %869
        %871 = vrot.lane.b32.xlu0 %v860, 126
        %v872 = vpop.permute.xlu0 %871
        %v877 = vadd.f32 %v851, %v866
        %v878 = vadd.f32 %v852, %v868
        %v879 = vadd.f32 %v853, %v870
        %v880 = vadd.f32 %v854, %v872
        %s881 = sld [smem:[#allocation4 + $0x83]]
        %v882 = vstv %s881
        %v883 = vmul.f32 %v882, %v438
        %v884 = vmul.f32 %v882, %v439
        %v885 = vmul.f32 %v882, %v440
        %v886 = vmul.f32 %v882, %v441
        %v891 = vrot.slane %v883, 1
        %v892 = vrot.slane %v884, 1
        %v893 = vsel %vm519, %v891, %v892
        %v894 = vrot.slane %v885, 1
        %v895 = vsel %vm519, %v892, %v894
        %v896 = vrot.slane %v886, 1
        %v897 = vsel %vm519, %v894, %v896
        %v902 = vadd.f32 %v877, %v893
        %v903 = vadd.f32 %v878, %v895
        %v904 = vadd.f32 %v879, %v897
        %v905 = vadd.f32 %v880, %v896
        %s906 = sld [smem:[#allocation4 + $0x84]]
        %v907 = vstv %s906
        %v908 = vmul.f32 %v907, %v438
        %v909 = vmul.f32 %v907, %v439
        %v910 = vmul.f32 %v907, %v440
        %v911 = vmul.f32 %v907, %v441
        %v916 = vrot.slane %v908, 1
        %v917 = vrot.slane %v909, 1
        %v918 = vsel %vm519, %v916, %v917
        %v919 = vrot.slane %v910, 1
        %v920 = vsel %vm519, %v917, %v919
        %v921 = vrot.slane %v911, 1
        %v922 = vsel %vm519, %v919, %v921
        %923 = vrot.lane.b32.xlu0 %v918, 127
        %v924 = vpop.permute.xlu0 %923
        %925 = vrot.lane.b32.xlu0 %v920, 127
        %v926 = vpop.permute.xlu0 %925
        %927 = vrot.lane.b32.xlu0 %v922, 127
        %v928 = vpop.permute.xlu0 %927
        %929 = vrot.lane.b32.xlu0 %v921, 127
        %v930 = vpop.permute.xlu0 %929
        %v935 = vadd.f32 %v902, %v924
        %v936 = vadd.f32 %v903, %v926
        %v937 = vadd.f32 %v904, %v928
        %v938 = vadd.f32 %v905, %v930
        %s939 = sld [smem:[#allocation4 + $0x85]]
        %v940 = vstv %s939
        %v941 = vmul.f32 %v940, %v438
        %v942 = vmul.f32 %v940, %v439
        %v943 = vmul.f32 %v940, %v440
        %v944 = vmul.f32 %v940, %v441
        %v949 = vrot.slane %v941, 1
        %v950 = vrot.slane %v942, 1
        %v951 = vsel %vm519, %v949, %v950
        %v952 = vrot.slane %v943, 1
        %v953 = vsel %vm519, %v950, %v952
        %v954 = vrot.slane %v944, 1
        %v955 = vsel %vm519, %v952, %v954
        %956 = vrot.lane.b32.xlu0 %v951, 126
        %v957 = vpop.permute.xlu0 %956
        %958 = vrot.lane.b32.xlu0 %v953, 126
        %v959 = vpop.permute.xlu0 %958
        %960 = vrot.lane.b32.xlu0 %v955, 126
        %v961 = vpop.permute.xlu0 %960
        %962 = vrot.lane.b32.xlu0 %v954, 126
        %v963 = vpop.permute.xlu0 %962
        %v968 = vadd.f32 %v935, %v957
        %v969 = vadd.f32 %v936, %v959
        %v970 = vadd.f32 %v937, %v961
        %v971 = vadd.f32 %v938, %v963
        %s972 = sld [smem:[#allocation4 + $0x86]]
        %v973 = vstv %s972
        %v974 = vmul.f32 %v973, %v438
        %v975 = vmul.f32 %v973, %v439
        %v976 = vmul.f32 %v973, %v440
        %v977 = vmul.f32 %v973, %v441
        %v982 = vrot.slane %v974, 2
        %v983 = vrot.slane %v975, 2
        %v984 = vsel %vm611, %v982, %v983
        %v985 = vrot.slane %v976, 2
        %v986 = vsel %vm611, %v983, %v985
        %v987 = vrot.slane %v977, 2
        %v988 = vsel %vm611, %v985, %v987
        %v993 = vadd.f32 %v968, %v984
        %v994 = vadd.f32 %v969, %v986
        %v995 = vadd.f32 %v970, %v988
        %v996 = vadd.f32 %v971, %v987
        %s997 = sld [smem:[#allocation4 + $0x87]]
        %v998 = vstv %s997
        %v999 = vmul.f32 %v998, %v438
        %v1000 = vmul.f32 %v998, %v439
        %v1001 = vmul.f32 %v998, %v440
        %v1002 = vmul.f32 %v998, %v441
        %v1007 = vrot.slane %v999, 2
        %v1008 = vrot.slane %v1000, 2
        %v1009 = vsel %vm611, %v1007, %v1008
        %v1010 = vrot.slane %v1001, 2
        %v1011 = vsel %vm611, %v1008, %v1010
        %v1012 = vrot.slane %v1002, 2
        %v1013 = vsel %vm611, %v1010, %v1012
        %1014 = vrot.lane.b32.xlu0 %v1009, 127
        %v1015 = vpop.permute.xlu0 %1014
        %1016 = vrot.lane.b32.xlu0 %v1011, 127
        %v1017 = vpop.permute.xlu0 %1016
        %1018 = vrot.lane.b32.xlu0 %v1013, 127
        %v1019 = vpop.permute.xlu0 %1018
        %1020 = vrot.lane.b32.xlu0 %v1012, 127
        %v1021 = vpop.permute.xlu0 %1020
        %v1026 = vadd.f32 %v993, %v1015
        %v1027 = vadd.f32 %v994, %v1017
        %v1028 = vadd.f32 %v995, %v1019
        %v1029 = vadd.f32 %v996, %v1021
        %s1030 = sld [smem:[#allocation4 + $0x88]]
        %v1031 = vstv %s1030
        %v1032 = vmul.f32 %v1031, %v438
        %v1033 = vmul.f32 %v1031, %v439
        %v1034 = vmul.f32 %v1031, %v440
        %v1035 = vmul.f32 %v1031, %v441
        %v1040 = vrot.slane %v1032, 2
        %v1041 = vrot.slane %v1033, 2
        %v1042 = vsel %vm611, %v1040, %v1041
        %v1043 = vrot.slane %v1034, 2
        %v1044 = vsel %vm611, %v1041, %v1043
        %v1045 = vrot.slane %v1035, 2
        %v1046 = vsel %vm611, %v1043, %v1045
        %1047 = vrot.lane.b32.xlu0 %v1042, 126
        %v1048 = vpop.permute.xlu0 %1047
        %1049 = vrot.lane.b32.xlu0 %v1044, 126
        %v1050 = vpop.permute.xlu0 %1049
        %1051 = vrot.lane.b32.xlu0 %v1046, 126
        %v1052 = vpop.permute.xlu0 %1051
        %1053 = vrot.lane.b32.xlu0 %v1045, 126
        %v1054 = vpop.permute.xlu0 %1053
        %v1059 = vadd.f32 %v1026, %v1048
        %v1060 = vadd.f32 %v1027, %v1050
        %v1061 = vadd.f32 %v1028, %v1052
        %v1062 = vadd.f32 %v1029, %v1054
        %s1063 = sld [smem:[#allocation7 + $0x1]]
        %v1064 = vstv %s1063
        %v1065 = vadd.f32 %v1059, %v1064
        %v1066 = vadd.f32 %v1060, %v1064
        %v1067 = vadd.f32 %v1061, %v1064
        %v1068 = vadd.f32 %v1062, %v1064
        %v1069 = vmax.f32 %v1065, 0.0
        %v1070 = vmax.f32 %v1066, 0.0
        %v1071 = vmax.f32 %v1067, 0.0
        %v1072 = vmax.f32 %v1068, 0.0
        %v1077 = vrot.slane %v1069, 1
        %v1078 = vrot.slane %v1070, 1
        %v1079 = vsel %vm519, %v1077, %v1078
        %v1080 = vrot.slane %v1071, 1
        %v1081 = vsel %vm519, %v1078, %v1080
        %v1082 = vrot.slane %v1072, 1
        %v1083 = vsel %vm519, %v1080, %v1082
        %v1088 = vmax.f32 %v1069, %v1079
        %v1089 = vmax.f32 %v1070, %v1081
        %v1090 = vmax.f32 %v1071, %v1083
        %v1091 = vmax.f32 %v1072, %v1082
        %1096 = vrot.lane.b32.xlu0 %v1088, 127
        %v1097 = vpop.permute.xlu0 %1096
        %1098 = vrot.lane.b32.xlu0 %v1089, 127
        %v1099 = vpop.permute.xlu0 %1098
        %1100 = vrot.lane.b32.xlu0 %v1090, 127
        %v1101 = vpop.permute.xlu0 %1100
        %1102 = vrot.lane.b32.xlu0 %v1091, 127
        %v1103 = vpop.permute.xlu0 %1102
        %v1108 = vmax.f32 %v1088, %v1097
        %v1109 = vmax.f32 %v1089, %v1099
        %v1110 = vmax.f32 %v1090, %v1101
        %v1111 = vmax.f32 %v1091, %v1103
        %v1113 = vsel %vm742, %v1108, 0
        %v1116 = vsel %vm742, %v1109, 0
        %v1119 = vsel %vm742, %v1110, 0
        %v1122 = vsel %vm742, %v1111, 0
        %1124 = vmatpush.msra.mxu0 0.0
        %1125 = vmatpush.msra.mxu0 0.0
        %1126 = vmatpush.msra.mxu0 0.0
        %1127 = vmatpush.msra.mxu0 0.0
        %1128 = vmatpush.msra.mxu0 0.0
        %1129 = vmatpush.msra.mxu0 0.0
        %1130 = vmatpush.msra.mxu0 0.0
        %1131 = vmatpush.msra.mxu0 0.0
        %1132 = vmatpush.msra.mxu0 0.0
        %1133 = vmatpush.msra.mxu0 0.0
        %1134 = vmatpush.msra.mxu0 0.0
        %1135 = vmatpush.msra.mxu0 0.0
        %1136 = vmatpush.msra.mxu0 %v757
        %1137 = vmatpush.msra.mxu0 %v446
        %1138 = vmatpush.msra.mxu0 %v445
        %1139 = vmatpush.msra.mxu0 %v444
        %1140 = vmatmul.f32.gmra.mxu0 %v1113
        %v1141 = vpop.f32.mrf.mxu0
        %v1142 = vadd.f32 0.0, %v1141
        %1143 = vmatmul.f32.gmra.mxu0 %v1116
        %v1144 = vpop.f32.mrf.mxu0
        %v1145 = vadd.f32 0.0, %v1144
        %1146 = vmatmul.f32.gmra.mxu0 %v1119
        %v1147 = vpop.f32.mrf.mxu0
        %v1148 = vadd.f32 0.0, %v1147
        %1149 = vmatmul.f32.gmra.mxu0 %v1122
        %v1150 = vpop.f32.mrf.mxu0
        %v1151 = vadd.f32 0.0, %v1150
        %1152 = vdwg.mxu0
        %v1154 = vsel %vm755, %v1151, 0
        %1156 = vmatpush.msra.mxu0 0.0
        %1157 = vmatpush.msra.mxu0 0.0
        %1158 = vmatpush.msra.mxu0 0.0
        %1159 = vmatpush.msra.mxu0 0.0
        %1160 = vmatpush.msra.mxu0 0.0
        %1161 = vmatpush.msra.mxu0 0.0
        %1162 = vmatpush.msra.mxu0 0.0
        %1163 = vmatpush.msra.mxu0 0.0
        %1164 = vmatpush.msra.mxu0 0.0
        %1165 = vmatpush.msra.mxu0 0.0
        %1166 = vmatpush.msra.mxu0 0.0
        %1167 = vmatpush.msra.mxu0 0.0
        %1168 = vmatpush.msra.mxu0 %v1154
        %1169 = vmatpush.msra.mxu0 %v1148
        %1170 = vmatpush.msra.mxu0 %v1145
        %1171 = vmatpush.msra.mxu0 %v1142
        %1172 = vmatmul.f32.gmra.mxu0 %v789
        %v1173 = vpop.f32.mrf.mxu0
        %v1174 = vadd.f32 0.0, %v1173
        %1175 = vmatmul.f32.gmra.mxu0 %v792
        %v1176 = vpop.f32.mrf.mxu0
        %v1177 = vadd.f32 0.0, %v1176
        %1178 = vdwg.mxu0
        %s1179 = scalar_lea.vmem [#allocation2], 16
        %1180 = vst.msk [vmem:[%s1179] sm:$0xff] %vm820, %v1174
        %1181 = vst.msk [vmem:[%s1179 + $0x8] sm:$0xff] %vm820, %v1177
        %s1182 = sld [smem:[#allocation4 + $0x100]]
        %v1183 = vstv %s1182
        %v1184 = vmul.f32 %v1183, %v438
        %v1185 = vmul.f32 %v1183, %v439
        %v1186 = vmul.f32 %v1183, %v440
        %v1187 = vmul.f32 %v1183, %v441
        %s1188 = sld [smem:[#allocation4 + $0x101]]
        %v1189 = vstv %s1188
        %v1190 = vmul.f32 %v1189, %v438
        %v1191 = vmul.f32 %v1189, %v439
        %v1192 = vmul.f32 %v1189, %v440
        %v1193 = vmul.f32 %v1189, %v441
        %1198 = vrot.lane.b32.xlu0 %v1190, 127
        %v1199 = vpop.permute.xlu0 %1198
        %1200 = vrot.lane.b32.xlu0 %v1191, 127
        %v1201 = vpop.permute.xlu0 %1200
        %1202 = vrot.lane.b32.xlu0 %v1192, 127
        %v1203 = vpop.permute.xlu0 %1202
        %1204 = vrot.lane.b32.xlu0 %v1193, 127
        %v1205 = vpop.permute.xlu0 %1204
        %v1210 = vadd.f32 %v1184, %v1199
        %v1211 = vadd.f32 %v1185, %v1201
        %v1212 = vadd.f32 %v1186, %v1203
        %v1213 = vadd.f32 %v1187, %v1205
        %s1214 = sld [smem:[#allocation4 + $0x102]]
        %v1215 = vstv %s1214
        %v1216 = vmul.f32 %v1215, %v438
        %v1217 = vmul.f32 %v1215, %v439
        %v1218 = vmul.f32 %v1215, %v440
        %v1219 = vmul.f32 %v1215, %v441
        %1224 = vrot.lane.b32.xlu0 %v1216, 126
        %v1225 = vpop.permute.xlu0 %1224
        %1226 = vrot.lane.b32.xlu0 %v1217, 126
        %v1227 = vpop.permute.xlu0 %1226
        %1228 = vrot.lane.b32.xlu0 %v1218, 126
        %v1229 = vpop.permute.xlu0 %1228
        %1230 = vrot.lane.b32.xlu0 %v1219, 126
        %v1231 = vpop.permute.xlu0 %1230
        %v1236 = vadd.f32 %v1210, %v1225
        %v1237 = vadd.f32 %v1211, %v1227
        %v1238 = vadd.f32 %v1212, %v1229
        %v1239 = vadd.f32 %v1213, %v1231
        %s1240 = sld [smem:[#allocation4 + $0x103]]
        %v1241 = vstv %s1240
        %v1242 = vmul.f32 %v1241, %v438
        %v1243 = vmul.f32 %v1241, %v439
        %v1244 = vmul.f32 %v1241, %v440
        %v1245 = vmul.f32 %v1241, %v441
        %v1250 = vrot.slane %v1242, 1
        %v1251 = vrot.slane %v1243, 1
        %v1252 = vsel %vm519, %v1250, %v1251
        %v1253 = vrot.slane %v1244, 1
        %v1254 = vsel %vm519, %v1251, %v1253
        %v1255 = vrot.slane %v1245, 1
        %v1256 = vsel %vm519, %v1253, %v1255
        %v1261 = vadd.f32 %v1236, %v1252
        %v1262 = vadd.f32 %v1237, %v1254
        %v1263 = vadd.f32 %v1238, %v1256
        %v1264 = vadd.f32 %v1239, %v1255
        %s1265 = sld [smem:[#allocation4 + $0x104]]
        %v1266 = vstv %s1265
        %v1267 = vmul.f32 %v1266, %v438
        %v1268 = vmul.f32 %v1266, %v439
        %v1269 = vmul.f32 %v1266, %v440
        %v1270 = vmul.f32 %v1266, %v441
        %v1275 = vrot.slane %v1267, 1
        %v1276 = vrot.slane %v1268, 1
        %v1277 = vsel %vm519, %v1275, %v1276
        %v1278 = vrot.slane %v1269, 1
        %v1279 = vsel %vm519, %v1276, %v1278
        %v1280 = vrot.slane %v1270, 1
        %v1281 = vsel %vm519, %v1278, %v1280
        %1282 = vrot.lane.b32.xlu0 %v1277, 127
        %v1283 = vpop.permute.xlu0 %1282
        %1284 = vrot.lane.b32.xlu0 %v1279, 127
        %v1285 = vpop.permute.xlu0 %1284
        %1286 = vrot.lane.b32.xlu0 %v1281, 127
        %v1287 = vpop.permute.xlu0 %1286
        %1288 = vrot.lane.b32.xlu0 %v1280, 127
        %v1289 = vpop.permute.xlu0 %1288
        %v1294 = vadd.f32 %v1261, %v1283
        %v1295 = vadd.f32 %v1262, %v1285
        %v1296 = vadd.f32 %v1263, %v1287
        %v1297 = vadd.f32 %v1264, %v1289
        %s1298 = sld [smem:[#allocation4 + $0x105]]
        %v1299 = vstv %s1298
        %v1300 = vmul.f32 %v1299, %v438
        %v1301 = vmul.f32 %v1299, %v439
        %v1302 = vmul.f32 %v1299, %v440
        %v1303 = vmul.f32 %v1299, %v441
        %v1308 = vrot.slane %v1300, 1
        %v1309 = vrot.slane %v1301, 1
        %v1310 = vsel %vm519, %v1308, %v1309
        %v1311 = vrot.slane %v1302, 1
        %v1312 = vsel %vm519, %v1309, %v1311
        %v1313 = vrot.slane %v1303, 1
        %v1314 = vsel %vm519, %v1311, %v1313
        %1315 = vrot.lane.b32.xlu0 %v1310, 126
        %v1316 = vpop.permute.xlu0 %1315
        %1317 = vrot.lane.b32.xlu0 %v1312, 126
        %v1318 = vpop.permute.xlu0 %1317
        %1319 = vrot.lane.b32.xlu0 %v1314, 126
        %v1320 = vpop.permute.xlu0 %1319
        %1321 = vrot.lane.b32.xlu0 %v1313, 126
        %v1322 = vpop.permute.xlu0 %1321
        %v1327 = vadd.f32 %v1294, %v1316
        %v1328 = vadd.f32 %v1295, %v1318
        %v1329 = vadd.f32 %v1296, %v1320
        %v1330 = vadd.f32 %v1297, %v1322
        %s1331 = sld [smem:[#allocation4 + $0x106]]
        %v1332 = vstv %s1331
        %v1333 = vmul.f32 %v1332, %v438
        %v1334 = vmul.f32 %v1332, %v439
        %v1335 = vmul.f32 %v1332, %v440
        %v1336 = vmul.f32 %v1332, %v441
        %v1341 = vrot.slane %v1333, 2
        %v1342 = vrot.slane %v1334, 2
        %v1343 = vsel %vm611, %v1341, %v1342
        %v1344 = vrot.slane %v1335, 2
        %v1345 = vsel %vm611, %v1342, %v1344
        %v1346 = vrot.slane %v1336, 2
        %v1347 = vsel %vm611, %v1344, %v1346
        %v1352 = vadd.f32 %v1327, %v1343
        %v1353 = vadd.f32 %v1328, %v1345
        %v1354 = vadd.f32 %v1329, %v1347
        %v1355 = vadd.f32 %v1330, %v1346
        %s1356 = sld [smem:[#allocation4 + $0x107]]
        %v1357 = vstv %s1356
        %v1358 = vmul.f32 %v1357, %v438
        %v1359 = vmul.f32 %v1357, %v439
        %v1360 = vmul.f32 %v1357, %v440
        %v1361 = vmul.f32 %v1357, %v441
        %v1366 = vrot.slane %v1358, 2
        %v1367 = vrot.slane %v1359, 2
        %v1368 = vsel %vm611, %v1366, %v1367
        %v1369 = vrot.slane %v1360, 2
        %v1370 = vsel %vm611, %v1367, %v1369
        %v1371 = vrot.slane %v1361, 2
        %v1372 = vsel %vm611, %v1369, %v1371
        %1373 = vrot.lane.b32.xlu0 %v1368, 127
        %v1374 = vpop.permute.xlu0 %1373
        %1375 = vrot.lane.b32.xlu0 %v1370, 127
        %v1376 = vpop.permute.xlu0 %1375
        %1377 = vrot.lane.b32.xlu0 %v1372, 127
        %v1378 = vpop.permute.xlu0 %1377
        %1379 = vrot.lane.b32.xlu0 %v1371, 127
        %v1380 = vpop.permute.xlu0 %1379
        %v1385 = vadd.f32 %v1352, %v1374
        %v1386 = vadd.f32 %v1353, %v1376
        %v1387 = vadd.f32 %v1354, %v1378
        %v1388 = vadd.f32 %v1355, %v1380
        %s1389 = sld [smem:[#allocation4 + $0x108]]
        %v1390 = vstv %s1389
        %v1391 = vmul.f32 %v1390, %v438
        %v1392 = vmul.f32 %v1390, %v439
        %v1393 = vmul.f32 %v1390, %v440
        %v1394 = vmul.f32 %v1390, %v441
        %v1399 = vrot.slane %v1391, 2
        %v1400 = vrot.slane %v1392, 2
        %v1401 = vsel %vm611, %v1399, %v1400
        %v1402 = vrot.slane %v1393, 2
        %v1403 = vsel %vm611, %v1400, %v1402
        %v1404 = vrot.slane %v1394, 2
        %v1405 = vsel %vm611, %v1402, %v1404
        %1406 = vrot.lane.b32.xlu0 %v1401, 126
        %v1407 = vpop.permute.xlu0 %1406
        %1408 = vrot.lane.b32.xlu0 %v1403, 126
        %v1409 = vpop.permute.xlu0 %1408
        %1410 = vrot.lane.b32.xlu0 %v1405, 126
        %v1411 = vpop.permute.xlu0 %1410
        %1412 = vrot.lane.b32.xlu0 %v1404, 126
        %v1413 = vpop.permute.xlu0 %1412
        %v1418 = vadd.f32 %v1385, %v1407
        %v1419 = vadd.f32 %v1386, %v1409
        %v1420 = vadd.f32 %v1387, %v1411
        %v1421 = vadd.f32 %v1388, %v1413
        %s1422 = sld [smem:[#allocation7 + $0x2]]
        %v1423 = vstv %s1422
        %v1424 = vadd.f32 %v1418, %v1423
        %v1425 = vadd.f32 %v1419, %v1423
        %v1426 = vadd.f32 %v1420, %v1423
        %v1427 = vadd.f32 %v1421, %v1423
        %v1428 = vmax.f32 %v1424, 0.0
        %v1429 = vmax.f32 %v1425, 0.0
        %v1430 = vmax.f32 %v1426, 0.0
        %v1431 = vmax.f32 %v1427, 0.0
        %v1436 = vrot.slane %v1428, 1
        %v1437 = vrot.slane %v1429, 1
        %v1438 = vsel %vm519, %v1436, %v1437
        %v1439 = vrot.slane %v1430, 1
        %v1440 = vsel %vm519, %v1437, %v1439
        %v1441 = vrot.slane %v1431, 1
        %v1442 = vsel %vm519, %v1439, %v1441
        %v1447 = vmax.f32 %v1428, %v1438
        %v1448 = vmax.f32 %v1429, %v1440
        %v1449 = vmax.f32 %v1430, %v1442
        %v1450 = vmax.f32 %v1431, %v1441
        %1455 = vrot.lane.b32.xlu0 %v1447, 127
        %v1456 = vpop.permute.xlu0 %1455
        %1457 = vrot.lane.b32.xlu0 %v1448, 127
        %v1458 = vpop.permute.xlu0 %1457
        %1459 = vrot.lane.b32.xlu0 %v1449, 127
        %v1460 = vpop.permute.xlu0 %1459
        %1461 = vrot.lane.b32.xlu0 %v1450, 127
        %v1462 = vpop.permute.xlu0 %1461
        %v1467 = vmax.f32 %v1447, %v1456
        %v1468 = vmax.f32 %v1448, %v1458
        %v1469 = vmax.f32 %v1449, %v1460
        %v1470 = vmax.f32 %v1450, %v1462
        %v1472 = vsel %vm742, %v1467, 0
        %v1475 = vsel %vm742, %v1468, 0
        %v1478 = vsel %vm742, %v1469, 0
        %v1481 = vsel %vm742, %v1470, 0
        %1483 = vmatpush.msra.mxu0 0.0
        %1484 = vmatpush.msra.mxu0 0.0
        %1485 = vmatpush.msra.mxu0 0.0
        %1486 = vmatpush.msra.mxu0 0.0
        %1487 = vmatpush.msra.mxu0 0.0
        %1488 = vmatpush.msra.mxu0 0.0
        %1489 = vmatpush.msra.mxu0 0.0
        %1490 = vmatpush.msra.mxu0 0.0
        %1491 = vmatpush.msra.mxu0 0.0
        %1492 = vmatpush.msra.mxu0 0.0
        %1493 = vmatpush.msra.mxu0 0.0
        %1494 = vmatpush.msra.mxu0 0.0
        %1495 = vmatpush.msra.mxu0 %v757
        %1496 = vmatpush.msra.mxu0 %v446
        %1497 = vmatpush.msra.mxu0 %v445
        %1498 = vmatpush.msra.mxu0 %v444
        %1499 = vmatmul.f32.gmra.mxu0 %v1472
        %v1500 = vpop.f32.mrf.mxu0
        %v1501 = vadd.f32 0.0, %v1500
        %1502 = vmatmul.f32.gmra.mxu0 %v1475
        %v1503 = vpop.f32.mrf.mxu0
        %v1504 = vadd.f32 0.0, %v1503
        %1505 = vmatmul.f32.gmra.mxu0 %v1478
        %v1506 = vpop.f32.mrf.mxu0
        %v1507 = vadd.f32 0.0, %v1506
        %1508 = vmatmul.f32.gmra.mxu0 %v1481
        %v1509 = vpop.f32.mrf.mxu0
        %v1510 = vadd.f32 0.0, %v1509
        %1511 = vdwg.mxu0
        %v1513 = vsel %vm755, %v1510, 0
        %1515 = vmatpush.msra.mxu0 0.0
        %1516 = vmatpush.msra.mxu0 0.0
        %1517 = vmatpush.msra.mxu0 0.0
        %1518 = vmatpush.msra.mxu0 0.0
        %1519 = vmatpush.msra.mxu0 0.0
        %1520 = vmatpush.msra.mxu0 0.0
        %1521 = vmatpush.msra.mxu0 0.0
        %1522 = vmatpush.msra.mxu0 0.0
        %1523 = vmatpush.msra.mxu0 0.0
        %1524 = vmatpush.msra.mxu0 0.0
        %1525 = vmatpush.msra.mxu0 0.0
        %1526 = vmatpush.msra.mxu0 0.0
        %1527 = vmatpush.msra.mxu0 %v1513
        %1528 = vmatpush.msra.mxu0 %v1507
        %1529 = vmatpush.msra.mxu0 %v1504
        %1530 = vmatpush.msra.mxu0 %v1501
        %1531 = vmatmul.f32.gmra.mxu0 %v789
        %v1532 = vpop.f32.mrf.mxu0
        %v1533 = vadd.f32 0.0, %v1532
        %1534 = vmatmul.f32.gmra.mxu0 %v792
        %v1535 = vpop.f32.mrf.mxu0
        %v1536 = vadd.f32 0.0, %v1535
        %1537 = vdwg.mxu0
        %s1538 = scalar_lea.vmem [#allocation2], 32
        %1539 = vst.msk [vmem:[%s1538] sm:$0xff] %vm820, %v1533
        %1540 = vst.msk [vmem:[%s1538 + $0x8] sm:$0xff] %vm820, %v1536
        %s1541 = sld [smem:[#allocation4 + $0x180]]
        %v1542 = vstv %s1541
        %v1543 = vmul.f32 %v1542, %v438
        %v1544 = vmul.f32 %v1542, %v439
        %v1545 = vmul.f32 %v1542, %v440
        %v1546 = vmul.f32 %v1542, %v441
        %s1547 = sld [smem:[#allocation4 + $0x181]]
        %v1548 = vstv %s1547
        %v1549 = vmul.f32 %v1548, %v438
        %v1550 = vmul.f32 %v1548, %v439
        %v1551 = vmul.f32 %v1548, %v440
        %v1552 = vmul.f32 %v1548, %v441
        %1557 = vrot.lane.b32.xlu0 %v1549, 127
        %v1558 = vpop.permute.xlu0 %1557
        %1559 = vrot.lane.b32.xlu0 %v1550, 127
        %v1560 = vpop.permute.xlu0 %1559
        %1561 = vrot.lane.b32.xlu0 %v1551, 127
        %v1562 = vpop.permute.xlu0 %1561
        %1563 = vrot.lane.b32.xlu0 %v1552, 127
        %v1564 = vpop.permute.xlu0 %1563
        %v1569 = vadd.f32 %v1543, %v1558
        %v1570 = vadd.f32 %v1544, %v1560
        %v1571 = vadd.f32 %v1545, %v1562
        %v1572 = vadd.f32 %v1546, %v1564
        %s1573 = sld [smem:[#allocation4 + $0x182]]
        %v1574 = vstv %s1573
        %v1575 = vmul.f32 %v1574, %v438
        %v1576 = vmul.f32 %v1574, %v439
        %v1577 = vmul.f32 %v1574, %v440
        %v1578 = vmul.f32 %v1574, %v441
        %1583 = vrot.lane.b32.xlu0 %v1575, 126
        %v1584 = vpop.permute.xlu0 %1583
        %1585 = vrot.lane.b32.xlu0 %v1576, 126
        %v1586 = vpop.permute.xlu0 %1585
        %1587 = vrot.lane.b32.xlu0 %v1577, 126
        %v1588 = vpop.permute.xlu0 %1587
        %1589 = vrot.lane.b32.xlu0 %v1578, 126
        %v1590 = vpop.permute.xlu0 %1589
        %v1595 = vadd.f32 %v1569, %v1584
        %v1596 = vadd.f32 %v1570, %v1586
        %v1597 = vadd.f32 %v1571, %v1588
        %v1598 = vadd.f32 %v1572, %v1590
        %s1599 = sld [smem:[#allocation4 + $0x183]]
        %v1600 = vstv %s1599
        %v1601 = vmul.f32 %v1600, %v438
        %v1602 = vmul.f32 %v1600, %v439
        %v1603 = vmul.f32 %v1600, %v440
        %v1604 = vmul.f32 %v1600, %v441
        %v1609 = vrot.slane %v1601, 1
        %v1610 = vrot.slane %v1602, 1
        %v1611 = vsel %vm519, %v1609, %v1610
        %v1612 = vrot.slane %v1603, 1
        %v1613 = vsel %vm519, %v1610, %v1612
        %v1614 = vrot.slane %v1604, 1
        %v1615 = vsel %vm519, %v1612, %v1614
        %v1620 = vadd.f32 %v1595, %v1611
        %v1621 = vadd.f32 %v1596, %v1613
        %v1622 = vadd.f32 %v1597, %v1615
        %v1623 = vadd.f32 %v1598, %v1614
        %s1624 = sld [smem:[#allocation4 + $0x184]]
        %v1625 = vstv %s1624
        %v1626 = vmul.f32 %v1625, %v438
        %v1627 = vmul.f32 %v1625, %v439
        %v1628 = vmul.f32 %v1625, %v440
        %v1629 = vmul.f32 %v1625, %v441
        %v1634 = vrot.slane %v1626, 1
        %v1635 = vrot.slane %v1627, 1
        %v1636 = vsel %vm519, %v1634, %v1635
        %v1637 = vrot.slane %v1628, 1
        %v1638 = vsel %vm519, %v1635, %v1637
        %v1639 = vrot.slane %v1629, 1
        %v1640 = vsel %vm519, %v1637, %v1639
        %1641 = vrot.lane.b32.xlu0 %v1636, 127
        %v1642 = vpop.permute.xlu0 %1641
        %1643 = vrot.lane.b32.xlu0 %v1638, 127
        %v1644 = vpop.permute.xlu0 %1643
        %1645 = vrot.lane.b32.xlu0 %v1640, 127
        %v1646 = vpop.permute.xlu0 %1645
        %1647 = vrot.lane.b32.xlu0 %v1639, 127
        %v1648 = vpop.permute.xlu0 %1647
        %v1653 = vadd.f32 %v1620, %v1642
        %v1654 = vadd.f32 %v1621, %v1644
        %v1655 = vadd.f32 %v1622, %v1646
        %v1656 = vadd.f32 %v1623, %v1648
        %s1657 = sld [smem:[#allocation4 + $0x185]]
        %v1658 = vstv %s1657
        %v1659 = vmul.f32 %v1658, %v438
        %v1660 = vmul.f32 %v1658, %v439
        %v1661 = vmul.f32 %v1658, %v440
        %v1662 = vmul.f32 %v1658, %v441
        %v1667 = vrot.slane %v1659, 1
        %v1668 = vrot.slane %v1660, 1
        %v1669 = vsel %vm519, %v1667, %v1668
        %v1670 = vrot.slane %v1661, 1
        %v1671 = vsel %vm519, %v1668, %v1670
        %v1672 = vrot.slane %v1662, 1
        %v1673 = vsel %vm519, %v1670, %v1672
        %1674 = vrot.lane.b32.xlu0 %v1669, 126
        %v1675 = vpop.permute.xlu0 %1674
        %1676 = vrot.lane.b32.xlu0 %v1671, 126
        %v1677 = vpop.permute.xlu0 %1676
        %1678 = vrot.lane.b32.xlu0 %v1673, 126
        %v1679 = vpop.permute.xlu0 %1678
        %1680 = vrot.lane.b32.xlu0 %v1672, 126
        %v1681 = vpop.permute.xlu0 %1680
        %v1686 = vadd.f32 %v1653, %v1675
        %v1687 = vadd.f32 %v1654, %v1677
        %v1688 = vadd.f32 %v1655, %v1679
        %v1689 = vadd.f32 %v1656, %v1681
        %s1690 = sld [smem:[#allocation4 + $0x186]]
        %v1691 = vstv %s1690
        %v1692 = vmul.f32 %v1691, %v438
        %v1693 = vmul.f32 %v1691, %v439
        %v1694 = vmul.f32 %v1691, %v440
        %v1695 = vmul.f32 %v1691, %v441
        %v1700 = vrot.slane %v1692, 2
        %v1701 = vrot.slane %v1693, 2
        %v1702 = vsel %vm611, %v1700, %v1701
        %v1703 = vrot.slane %v1694, 2
        %v1704 = vsel %vm611, %v1701, %v1703
        %v1705 = vrot.slane %v1695, 2
        %v1706 = vsel %vm611, %v1703, %v1705
        %v1711 = vadd.f32 %v1686, %v1702
        %v1712 = vadd.f32 %v1687, %v1704
        %v1713 = vadd.f32 %v1688, %v1706
        %v1714 = vadd.f32 %v1689, %v1705
        %s1715 = sld [smem:[#allocation4 + $0x187]]
        %v1716 = vstv %s1715
        %v1717 = vmul.f32 %v1716, %v438
        %v1718 = vmul.f32 %v1716, %v439
        %v1719 = vmul.f32 %v1716, %v440
        %v1720 = vmul.f32 %v1716, %v441
        %v1725 = vrot.slane %v1717, 2
        %v1726 = vrot.slane %v1718, 2
        %v1727 = vsel %vm611, %v1725, %v1726
        %v1728 = vrot.slane %v1719, 2
        %v1729 = vsel %vm611, %v1726, %v1728
        %v1730 = vrot.slane %v1720, 2
        %v1731 = vsel %vm611, %v1728, %v1730
        %1732 = vrot.lane.b32.xlu0 %v1727, 127
        %v1733 = vpop.permute.xlu0 %1732
        %1734 = vrot.lane.b32.xlu0 %v1729, 127
        %v1735 = vpop.permute.xlu0 %1734
        %1736 = vrot.lane.b32.xlu0 %v1731, 127
        %v1737 = vpop.permute.xlu0 %1736
        %1738 = vrot.lane.b32.xlu0 %v1730, 127
        %v1739 = vpop.permute.xlu0 %1738
        %v1744 = vadd.f32 %v1711, %v1733
        %v1745 = vadd.f32 %v1712, %v1735
        %v1746 = vadd.f32 %v1713, %v1737
        %v1747 = vadd.f32 %v1714, %v1739
        %s1748 = sld [smem:[#allocation4 + $0x188]]
        %v1749 = vstv %s1748
        %v1750 = vmul.f32 %v1749, %v438
        %v1751 = vmul.f32 %v1749, %v439
        %v1752 = vmul.f32 %v1749, %v440
        %v1753 = vmul.f32 %v1749, %v441
        %v1758 = vrot.slane %v1750, 2
        %v1759 = vrot.slane %v1751, 2
        %v1760 = vsel %vm611, %v1758, %v1759
        %v1761 = vrot.slane %v1752, 2
        %v1762 = vsel %vm611, %v1759, %v1761
        %v1763 = vrot.slane %v1753, 2
        %v1764 = vsel %vm611, %v1761, %v1763
        %1765 = vrot.lane.b32.xlu0 %v1760, 126
        %v1766 = vpop.permute.xlu0 %1765
        %1767 = vrot.lane.b32.xlu0 %v1762, 126
        %v1768 = vpop.permute.xlu0 %1767
        %1769 = vrot.lane.b32.xlu0 %v1764, 126
        %v1770 = vpop.permute.xlu0 %1769
        %1771 = vrot.lane.b32.xlu0 %v1763, 126
        %v1772 = vpop.permute.xlu0 %1771
        %v1777 = vadd.f32 %v1744, %v1766
        %v1778 = vadd.f32 %v1745, %v1768
        %v1779 = vadd.f32 %v1746, %v1770
        %v1780 = vadd.f32 %v1747, %v1772
        %s1781 = sld [smem:[#allocation7 + $0x3]]
        %v1782 = vstv %s1781
        %v1783 = vadd.f32 %v1777, %v1782
        %v1784 = vadd.f32 %v1778, %v1782
        %v1785 = vadd.f32 %v1779, %v1782
        %v1786 = vadd.f32 %v1780, %v1782
        %v1787 = vmax.f32 %v1783, 0.0
        %v1788 = vmax.f32 %v1784, 0.0
        %v1789 = vmax.f32 %v1785, 0.0
        %v1790 = vmax.f32 %v1786, 0.0
        %v1795 = vrot.slane %v1787, 1
        %v1796 = vrot.slane %v1788, 1
        %v1797 = vsel %vm519, %v1795, %v1796
        %v1798 = vrot.slane %v1789, 1
        %v1799 = vsel %vm519, %v1796, %v1798
        %v1800 = vrot.slane %v1790, 1
        %v1801 = vsel %vm519, %v1798, %v1800
        %v1806 = vmax.f32 %v1787, %v1797
        %v1807 = vmax.f32 %v1788, %v1799
        %v1808 = vmax.f32 %v1789, %v1801
        %v1809 = vmax.f32 %v1790, %v1800
        %1814 = vrot.lane.b32.xlu0 %v1806, 127
        %v1815 = vpop.permute.xlu0 %1814
        %1816 = vrot.lane.b32.xlu0 %v1807, 127
        %v1817 = vpop.permute.xlu0 %1816
        %1818 = vrot.lane.b32.xlu0 %v1808, 127
        %v1819 = vpop.permute.xlu0 %1818
        %1820 = vrot.lane.b32.xlu0 %v1809, 127
        %v1821 = vpop.permute.xlu0 %1820
        %v1826 = vmax.f32 %v1806, %v1815
        %v1827 = vmax.f32 %v1807, %v1817
        %v1828 = vmax.f32 %v1808, %v1819
        %v1829 = vmax.f32 %v1809, %v1821
        %v1831 = vsel %vm742, %v1826, 0
        %v1834 = vsel %vm742, %v1827, 0
        %v1837 = vsel %vm742, %v1828, 0
        %v1840 = vsel %vm742, %v1829, 0
        %1842 = vmatpush.msra.mxu0 0.0
        %1843 = vmatpush.msra.mxu0 0.0
        %1844 = vmatpush.msra.mxu0 0.0
        %1845 = vmatpush.msra.mxu0 0.0
        %1846 = vmatpush.msra.mxu0 0.0
        %1847 = vmatpush.msra.mxu0 0.0
        %1848 = vmatpush.msra.mxu0 0.0
        %1849 = vmatpush.msra.mxu0 0.0
        %1850 = vmatpush.msra.mxu0 0.0
        %1851 = vmatpush.msra.mxu0 0.0
        %1852 = vmatpush.msra.mxu0 0.0
        %1853 = vmatpush.msra.mxu0 0.0
        %1854 = vmatpush.msra.mxu0 %v757
        %1855 = vmatpush.msra.mxu0 %v446
        %1856 = vmatpush.msra.mxu0 %v445
        %1857 = vmatpush.msra.mxu0 %v444
        %1858 = vmatmul.f32.gmra.mxu0 %v1831
        %v1859 = vpop.f32.mrf.mxu0
        %v1860 = vadd.f32 0.0, %v1859
        %1861 = vmatmul.f32.gmra.mxu0 %v1834
        %v1862 = vpop.f32.mrf.mxu0
        %v1863 = vadd.f32 0.0, %v1862
        %1864 = vmatmul.f32.gmra.mxu0 %v1837
        %v1865 = vpop.f32.mrf.mxu0
        %v1866 = vadd.f32 0.0, %v1865
        %1867 = vmatmul.f32.gmra.mxu0 %v1840
        %v1868 = vpop.f32.mrf.mxu0
        %v1869 = vadd.f32 0.0, %v1868
        %1870 = vdwg.mxu0
        %v1872 = vsel %vm755, %v1869, 0
        %1874 = vmatpush.msra.mxu0 0.0
        %1875 = vmatpush.msra.mxu0 0.0
        %1876 = vmatpush.msra.mxu0 0.0
        %1877 = vmatpush.msra.mxu0 0.0
        %1878 = vmatpush.msra.mxu0 0.0
        %1879 = vmatpush.msra.mxu0 0.0
        %1880 = vmatpush.msra.mxu0 0.0
        %1881 = vmatpush.msra.mxu0 0.0
        %1882 = vmatpush.msra.mxu0 0.0
        %1883 = vmatpush.msra.mxu0 0.0
        %1884 = vmatpush.msra.mxu0 0.0
        %1885 = vmatpush.msra.mxu0 0.0
        %1886 = vmatpush.msra.mxu0 %v1872
        %1887 = vmatpush.msra.mxu0 %v1866
        %1888 = vmatpush.msra.mxu0 %v1863
        %1889 = vmatpush.msra.mxu0 %v1860
        %1890 = vmatmul.f32.gmra.mxu0 %v789
        %v1891 = vpop.f32.mrf.mxu0
        %v1892 = vadd.f32 0.0, %v1891
        %1893 = vmatmul.f32.gmra.mxu0 %v792
        %v1894 = vpop.f32.mrf.mxu0
        %v1895 = vadd.f32 0.0, %v1894
        %1896 = vdwg.mxu0
        %s1897 = scalar_lea.vmem [#allocation2], 48
        %1898 = vst.msk [vmem:[%s1897] sm:$0xff] %vm820, %v1892
        %1899 = vst.msk [vmem:[%s1897 + $0x8] sm:$0xff] %vm820, %v1895
        %s1900 = sld [smem:[#allocation4 + $0x200]]
        %v1901 = vstv %s1900
        %v1902 = vmul.f32 %v1901, %v438
        %v1903 = vmul.f32 %v1901, %v439
        %v1904 = vmul.f32 %v1901, %v440
        %v1905 = vmul.f32 %v1901, %v441
        %s1906 = sld [smem:[#allocation4 + $0x201]]
        %v1907 = vstv %s1906
        %v1908 = vmul.f32 %v1907, %v438
        %v1909 = vmul.f32 %v1907, %v439
        %v1910 = vmul.f32 %v1907, %v440
        %v1911 = vmul.f32 %v1907, %v441
        %1916 = vrot.lane.b32.xlu0 %v1908, 127
        %v1917 = vpop.permute.xlu0 %1916
        %1918 = vrot.lane.b32.xlu0 %v1909, 127
        %v1919 = vpop.permute.xlu0 %1918
        %1920 = vrot.lane.b32.xlu0 %v1910, 127
        %v1921 = vpop.permute.xlu0 %1920
        %1922 = vrot.lane.b32.xlu0 %v1911, 127
        %v1923 = vpop.permute.xlu0 %1922
        %v1928 = vadd.f32 %v1902, %v1917
        %v1929 = vadd.f32 %v1903, %v1919
        %v1930 = vadd.f32 %v1904, %v1921
        %v1931 = vadd.f32 %v1905, %v1923
        %s1932 = sld [smem:[#allocation4 + $0x202]]
        %v1933 = vstv %s1932
        %v1934 = vmul.f32 %v1933, %v438
        %v1935 = vmul.f32 %v1933, %v439
        %v1936 = vmul.f32 %v1933, %v440
        %v1937 = vmul.f32 %v1933, %v441
        %1942 = vrot.lane.b32.xlu0 %v1934, 126
        %v1943 = vpop.permute.xlu0 %1942
        %1944 = vrot.lane.b32.xlu0 %v1935, 126
        %v1945 = vpop.permute.xlu0 %1944
        %1946 = vrot.lane.b32.xlu0 %v1936, 126
        %v1947 = vpop.permute.xlu0 %1946
        %1948 = vrot.lane.b32.xlu0 %v1937, 126
        %v1949 = vpop.permute.xlu0 %1948
        %v1954 = vadd.f32 %v1928, %v1943
        %v1955 = vadd.f32 %v1929, %v1945
        %v1956 = vadd.f32 %v1930, %v1947
        %v1957 = vadd.f32 %v1931, %v1949
        %s1958 = sld [smem:[#allocation4 + $0x203]]
        %v1959 = vstv %s1958
        %v1960 = vmul.f32 %v1959, %v438
        %v1961 = vmul.f32 %v1959, %v439
        %v1962 = vmul.f32 %v1959, %v440
        %v1963 = vmul.f32 %v1959, %v441
        %v1968 = vrot.slane %v1960, 1
        %v1969 = vrot.slane %v1961, 1
        %v1970 = vsel %vm519, %v1968, %v1969
        %v1971 = vrot.slane %v1962, 1
        %v1972 = vsel %vm519, %v1969, %v1971
        %v1973 = vrot.slane %v1963, 1
        %v1974 = vsel %vm519, %v1971, %v1973
        %v1979 = vadd.f32 %v1954, %v1970
        %v1980 = vadd.f32 %v1955, %v1972
        %v1981 = vadd.f32 %v1956, %v1974
        %v1982 = vadd.f32 %v1957, %v1973
        %s1983 = sld [smem:[#allocation4 + $0x204]]
        %v1984 = vstv %s1983
        %v1985 = vmul.f32 %v1984, %v438
        %v1986 = vmul.f32 %v1984, %v439
        %v1987 = vmul.f32 %v1984, %v440
        %v1988 = vmul.f32 %v1984, %v441
        %v1993 = vrot.slane %v1985, 1
        %v1994 = vrot.slane %v1986, 1
        %v1995 = vsel %vm519, %v1993, %v1994
        %v1996 = vrot.slane %v1987, 1
        %v1997 = vsel %vm519, %v1994, %v1996
        %v1998 = vrot.slane %v1988, 1
        %v1999 = vsel %vm519, %v1996, %v1998
        %2000 = vrot.lane.b32.xlu0 %v1995, 127
        %v2001 = vpop.permute.xlu0 %2000
        %2002 = vrot.lane.b32.xlu0 %v1997, 127
        %v2003 = vpop.permute.xlu0 %2002
        %2004 = vrot.lane.b32.xlu0 %v1999, 127
        %v2005 = vpop.permute.xlu0 %2004
        %2006 = vrot.lane.b32.xlu0 %v1998, 127
        %v2007 = vpop.permute.xlu0 %2006
        %v2012 = vadd.f32 %v1979, %v2001
        %v2013 = vadd.f32 %v1980, %v2003
        %v2014 = vadd.f32 %v1981, %v2005
        %v2015 = vadd.f32 %v1982, %v2007
        %s2016 = sld [smem:[#allocation4 + $0x205]]
        %v2017 = vstv %s2016
        %v2018 = vmul.f32 %v2017, %v438
        %v2019 = vmul.f32 %v2017, %v439
        %v2020 = vmul.f32 %v2017, %v440
        %v2021 = vmul.f32 %v2017, %v441
        %v2026 = vrot.slane %v2018, 1
        %v2027 = vrot.slane %v2019, 1
        %v2028 = vsel %vm519, %v2026, %v2027
        %v2029 = vrot.slane %v2020, 1
        %v2030 = vsel %vm519, %v2027, %v2029
        %v2031 = vrot.slane %v2021, 1
        %v2032 = vsel %vm519, %v2029, %v2031
        %2033 = vrot.lane.b32.xlu0 %v2028, 126
        %v2034 = vpop.permute.xlu0 %2033
        %2035 = vrot.lane.b32.xlu0 %v2030, 126
        %v2036 = vpop.permute.xlu0 %2035
        %2037 = vrot.lane.b32.xlu0 %v2032, 126
        %v2038 = vpop.permute.xlu0 %2037
        %2039 = vrot.lane.b32.xlu0 %v2031, 126
        %v2040 = vpop.permute.xlu0 %2039
        %v2045 = vadd.f32 %v2012, %v2034
        %v2046 = vadd.f32 %v2013, %v2036
        %v2047 = vadd.f32 %v2014, %v2038
        %v2048 = vadd.f32 %v2015, %v2040
        %s2049 = sld [smem:[#allocation4 + $0x206]]
        %v2050 = vstv %s2049
        %v2051 = vmul.f32 %v2050, %v438
        %v2052 = vmul.f32 %v2050, %v439
        %v2053 = vmul.f32 %v2050, %v440
        %v2054 = vmul.f32 %v2050, %v441
        %v2059 = vrot.slane %v2051, 2
        %v2060 = vrot.slane %v2052, 2
        %v2061 = vsel %vm611, %v2059, %v2060
        %v2062 = vrot.slane %v2053, 2
        %v2063 = vsel %vm611, %v2060, %v2062
        %v2064 = vrot.slane %v2054, 2
        %v2065 = vsel %vm611, %v2062, %v2064
        %v2070 = vadd.f32 %v2045, %v2061
        %v2071 = vadd.f32 %v2046, %v2063
        %v2072 = vadd.f32 %v2047, %v2065
        %v2073 = vadd.f32 %v2048, %v2064
        %s2074 = sld [smem:[#allocation4 + $0x207]]
        %v2075 = vstv %s2074
        %v2076 = vmul.f32 %v2075, %v438
        %v2077 = vmul.f32 %v2075, %v439
        %v2078 = vmul.f32 %v2075, %v440
        %v2079 = vmul.f32 %v2075, %v441
        %v2084 = vrot.slane %v2076, 2
        %v2085 = vrot.slane %v2077, 2
        %v2086 = vsel %vm611, %v2084, %v2085
        %v2087 = vrot.slane %v2078, 2
        %v2088 = vsel %vm611, %v2085, %v2087
        %v2089 = vrot.slane %v2079, 2
        %v2090 = vsel %vm611, %v2087, %v2089
        %2091 = vrot.lane.b32.xlu0 %v2086, 127
        %v2092 = vpop.permute.xlu0 %2091
        %2093 = vrot.lane.b32.xlu0 %v2088, 127
        %v2094 = vpop.permute.xlu0 %2093
        %2095 = vrot.lane.b32.xlu0 %v2090, 127
        %v2096 = vpop.permute.xlu0 %2095
        %2097 = vrot.lane.b32.xlu0 %v2089, 127
        %v2098 = vpop.permute.xlu0 %2097
        %v2103 = vadd.f32 %v2070, %v2092
        %v2104 = vadd.f32 %v2071, %v2094
        %v2105 = vadd.f32 %v2072, %v2096
        %v2106 = vadd.f32 %v2073, %v2098
        %s2107 = sld [smem:[#allocation4 + $0x208]]
        %v2108 = vstv %s2107
        %v2109 = vmul.f32 %v2108, %v438
        %v2110 = vmul.f32 %v2108, %v439
        %v2111 = vmul.f32 %v2108, %v440
        %v2112 = vmul.f32 %v2108, %v441
        %v2117 = vrot.slane %v2109, 2
        %v2118 = vrot.slane %v2110, 2
        %v2119 = vsel %vm611, %v2117, %v2118
        %v2120 = vrot.slane %v2111, 2
        %v2121 = vsel %vm611, %v2118, %v2120
        %v2122 = vrot.slane %v2112, 2
        %v2123 = vsel %vm611, %v2120, %v2122
        %2124 = vrot.lane.b32.xlu0 %v2119, 126
        %v2125 = vpop.permute.xlu0 %2124
        %2126 = vrot.lane.b32.xlu0 %v2121, 126
        %v2127 = vpop.permute.xlu0 %2126
        %2128 = vrot.lane.b32.xlu0 %v2123, 126
        %v2129 = vpop.permute.xlu0 %2128
        %2130 = vrot.lane.b32.xlu0 %v2122, 126
        %v2131 = vpop.permute.xlu0 %2130
        %v2136 = vadd.f32 %v2103, %v2125
        %v2137 = vadd.f32 %v2104, %v2127
        %v2138 = vadd.f32 %v2105, %v2129
        %v2139 = vadd.f32 %v2106, %v2131
        %s2140 = sld [smem:[#allocation7 + $0x4]]
        %v2141 = vstv %s2140
        %v2142 = vadd.f32 %v2136, %v2141
        %v2143 = vadd.f32 %v2137, %v2141
        %v2144 = vadd.f32 %v2138, %v2141
        %v2145 = vadd.f32 %v2139, %v2141
        %v2146 = vmax.f32 %v2142, 0.0
        %v2147 = vmax.f32 %v2143, 0.0
        %v2148 = vmax.f32 %v2144, 0.0
        %v2149 = vmax.f32 %v2145, 0.0
        %v2154 = vrot.slane %v2146, 1
        %v2155 = vrot.slane %v2147, 1
        %v2156 = vsel %vm519, %v2154, %v2155
        %v2157 = vrot.slane %v2148, 1
        %v2158 = vsel %vm519, %v2155, %v2157
        %v2159 = vrot.slane %v2149, 1
        %v2160 = vsel %vm519, %v2157, %v2159
        %v2165 = vmax.f32 %v2146, %v2156
        %v2166 = vmax.f32 %v2147, %v2158
        %v2167 = vmax.f32 %v2148, %v2160
        %v2168 = vmax.f32 %v2149, %v2159
        %2173 = vrot.lane.b32.xlu0 %v2165, 127
        %v2174 = vpop.permute.xlu0 %2173
        %2175 = vrot.lane.b32.xlu0 %v2166, 127
        %v2176 = vpop.permute.xlu0 %2175
        %2177 = vrot.lane.b32.xlu0 %v2167, 127
        %v2178 = vpop.permute.xlu0 %2177
        %2179 = vrot.lane.b32.xlu0 %v2168, 127
        %v2180 = vpop.permute.xlu0 %2179
        %v2185 = vmax.f32 %v2165, %v2174
        %v2186 = vmax.f32 %v2166, %v2176
        %v2187 = vmax.f32 %v2167, %v2178
        %v2188 = vmax.f32 %v2168, %v2180
        %v2190 = vsel %vm742, %v2185, 0
        %v2193 = vsel %vm742, %v2186, 0
        %v2196 = vsel %vm742, %v2187, 0
        %v2199 = vsel %vm742, %v2188, 0
        %2201 = vmatpush.msra.mxu0 0.0
        %2202 = vmatpush.msra.mxu0 0.0
        %2203 = vmatpush.msra.mxu0 0.0
        %2204 = vmatpush.msra.mxu0 0.0
        %2205 = vmatpush.msra.mxu0 0.0
        %2206 = vmatpush.msra.mxu0 0.0
        %2207 = vmatpush.msra.mxu0 0.0
        %2208 = vmatpush.msra.mxu0 0.0
        %2209 = vmatpush.msra.mxu0 0.0
        %2210 = vmatpush.msra.mxu0 0.0
        %2211 = vmatpush.msra.mxu0 0.0
        %2212 = vmatpush.msra.mxu0 0.0
        %2213 = vmatpush.msra.mxu0 %v757
        %2214 = vmatpush.msra.mxu0 %v446
        %2215 = vmatpush.msra.mxu0 %v445
        %2216 = vmatpush.msra.mxu0 %v444
        %2217 = vmatmul.f32.gmra.mxu0 %v2190
        %v2218 = vpop.f32.mrf.mxu0
        %v2219 = vadd.f32 0.0, %v2218
        %2220 = vmatmul.f32.gmra.mxu0 %v2193
        %v2221 = vpop.f32.mrf.mxu0
        %v2222 = vadd.f32 0.0, %v2221
        %2223 = vmatmul.f32.gmra.mxu0 %v2196
        %v2224 = vpop.f32.mrf.mxu0
        %v2225 = vadd.f32 0.0, %v2224
        %2226 = vmatmul.f32.gmra.mxu0 %v2199
        %v2227 = vpop.f32.mrf.mxu0
        %v2228 = vadd.f32 0.0, %v2227
        %2229 = vdwg.mxu0
        %v2231 = vsel %vm755, %v2228, 0
        %2233 = vmatpush.msra.mxu0 0.0
        %2234 = vmatpush.msra.mxu0 0.0
        %2235 = vmatpush.msra.mxu0 0.0
        %2236 = vmatpush.msra.mxu0 0.0
        %2237 = vmatpush.msra.mxu0 0.0
        %2238 = vmatpush.msra.mxu0 0.0
        %2239 = vmatpush.msra.mxu0 0.0
        %2240 = vmatpush.msra.mxu0 0.0
        %2241 = vmatpush.msra.mxu0 0.0
        %2242 = vmatpush.msra.mxu0 0.0
        %2243 = vmatpush.msra.mxu0 0.0
        %2244 = vmatpush.msra.mxu0 0.0
        %2245 = vmatpush.msra.mxu0 %v2231
        %2246 = vmatpush.msra.mxu0 %v2225
        %2247 = vmatpush.msra.mxu0 %v2222
        %2248 = vmatpush.msra.mxu0 %v2219
        %2249 = vmatmul.f32.gmra.mxu0 %v789
        %v2250 = vpop.f32.mrf.mxu0
        %v2251 = vadd.f32 0.0, %v2250
        %2252 = vmatmul.f32.gmra.mxu0 %v792
        %v2253 = vpop.f32.mrf.mxu0
        %v2254 = vadd.f32 0.0, %v2253
        %2255 = vdwg.mxu0
        %s2256 = scalar_lea.vmem [#allocation2], 64
        %2257 = vst.msk [vmem:[%s2256] sm:$0xff] %vm820, %v2251
        %2258 = vst.msk [vmem:[%s2256 + $0x8] sm:$0xff] %vm820, %v2254
        %s2259 = sld [smem:[#allocation4 + $0x280]]
        %v2260 = vstv %s2259
        %v2261 = vmul.f32 %v2260, %v438
        %v2262 = vmul.f32 %v2260, %v439
        %v2263 = vmul.f32 %v2260, %v440
        %v2264 = vmul.f32 %v2260, %v441
        %s2265 = sld [smem:[#allocation4 + $0x281]]
        %v2266 = vstv %s2265
        %v2267 = vmul.f32 %v2266, %v438
        %v2268 = vmul.f32 %v2266, %v439
        %v2269 = vmul.f32 %v2266, %v440
        %v2270 = vmul.f32 %v2266, %v441
        %2275 = vrot.lane.b32.xlu0 %v2267, 127
        %v2276 = vpop.permute.xlu0 %2275
        %2277 = vrot.lane.b32.xlu0 %v2268, 127
        %v2278 = vpop.permute.xlu0 %2277
        %2279 = vrot.lane.b32.xlu0 %v2269, 127
        %v2280 = vpop.permute.xlu0 %2279
        %2281 = vrot.lane.b32.xlu0 %v2270, 127
        %v2282 = vpop.permute.xlu0 %2281
        %v2287 = vadd.f32 %v2261, %v2276
        %v2288 = vadd.f32 %v2262, %v2278
        %v2289 = vadd.f32 %v2263, %v2280
        %v2290 = vadd.f32 %v2264, %v2282
        %s2291 = sld [smem:[#allocation4 + $0x282]]
        %v2292 = vstv %s2291
        %v2293 = vmul.f32 %v2292, %v438
        %v2294 = vmul.f32 %v2292, %v439
        %v2295 = vmul.f32 %v2292, %v440
        %v2296 = vmul.f32 %v2292, %v441
        %2301 = vrot.lane.b32.xlu0 %v2293, 126
        %v2302 = vpop.permute.xlu0 %2301
        %2303 = vrot.lane.b32.xlu0 %v2294, 126
        %v2304 = vpop.permute.xlu0 %2303
        %2305 = vrot.lane.b32.xlu0 %v2295, 126
        %v2306 = vpop.permute.xlu0 %2305
        %2307 = vrot.lane.b32.xlu0 %v2296, 126
        %v2308 = vpop.permute.xlu0 %2307
        %v2313 = vadd.f32 %v2287, %v2302
        %v2314 = vadd.f32 %v2288, %v2304
        %v2315 = vadd.f32 %v2289, %v2306
        %v2316 = vadd.f32 %v2290, %v2308
        %s2317 = sld [smem:[#allocation4 + $0x283]]
        %v2318 = vstv %s2317
        %v2319 = vmul.f32 %v2318, %v438
        %v2320 = vmul.f32 %v2318, %v439
        %v2321 = vmul.f32 %v2318, %v440
        %v2322 = vmul.f32 %v2318, %v441
        %v2327 = vrot.slane %v2319, 1
        %v2328 = vrot.slane %v2320, 1
        %v2329 = vsel %vm519, %v2327, %v2328
        %v2330 = vrot.slane %v2321, 1
        %v2331 = vsel %vm519, %v2328, %v2330
        %v2332 = vrot.slane %v2322, 1
        %v2333 = vsel %vm519, %v2330, %v2332
        %v2338 = vadd.f32 %v2313, %v2329
        %v2339 = vadd.f32 %v2314, %v2331
        %v2340 = vadd.f32 %v2315, %v2333
        %v2341 = vadd.f32 %v2316, %v2332
        %s2342 = sld [smem:[#allocation4 + $0x284]]
        %v2343 = vstv %s2342
        %v2344 = vmul.f32 %v2343, %v438
        %v2345 = vmul.f32 %v2343, %v439
        %v2346 = vmul.f32 %v2343, %v440
        %v2347 = vmul.f32 %v2343, %v441
        %v2352 = vrot.slane %v2344, 1
        %v2353 = vrot.slane %v2345, 1
        %v2354 = vsel %vm519, %v2352, %v2353
        %v2355 = vrot.slane %v2346, 1
        %v2356 = vsel %vm519, %v2353, %v2355
        %v2357 = vrot.slane %v2347, 1
        %v2358 = vsel %vm519, %v2355, %v2357
        %2359 = vrot.lane.b32.xlu0 %v2354, 127
        %v2360 = vpop.permute.xlu0 %2359
        %2361 = vrot.lane.b32.xlu0 %v2356, 127
        %v2362 = vpop.permute.xlu0 %2361
        %2363 = vrot.lane.b32.xlu0 %v2358, 127
        %v2364 = vpop.permute.xlu0 %2363
        %2365 = vrot.lane.b32.xlu0 %v2357, 127
        %v2366 = vpop.permute.xlu0 %2365
        %v2371 = vadd.f32 %v2338, %v2360
        %v2372 = vadd.f32 %v2339, %v2362
        %v2373 = vadd.f32 %v2340, %v2364
        %v2374 = vadd.f32 %v2341, %v2366
        %s2375 = sld [smem:[#allocation4 + $0x285]]
        %v2376 = vstv %s2375
        %v2377 = vmul.f32 %v2376, %v438
        %v2378 = vmul.f32 %v2376, %v439
        %v2379 = vmul.f32 %v2376, %v440
        %v2380 = vmul.f32 %v2376, %v441
        %v2385 = vrot.slane %v2377, 1
        %v2386 = vrot.slane %v2378, 1
        %v2387 = vsel %vm519, %v2385, %v2386
        %v2388 = vrot.slane %v2379, 1
        %v2389 = vsel %vm519, %v2386, %v2388
        %v2390 = vrot.slane %v2380, 1
        %v2391 = vsel %vm519, %v2388, %v2390
        %2392 = vrot.lane.b32.xlu0 %v2387, 126
        %v2393 = vpop.permute.xlu0 %2392
        %2394 = vrot.lane.b32.xlu0 %v2389, 126
        %v2395 = vpop.permute.xlu0 %2394
        %2396 = vrot.lane.b32.xlu0 %v2391, 126
        %v2397 = vpop.permute.xlu0 %2396
        %2398 = vrot.lane.b32.xlu0 %v2390, 126
        %v2399 = vpop.permute.xlu0 %2398
        %v2404 = vadd.f32 %v2371, %v2393
        %v2405 = vadd.f32 %v2372, %v2395
        %v2406 = vadd.f32 %v2373, %v2397
        %v2407 = vadd.f32 %v2374, %v2399
        %s2408 = sld [smem:[#allocation4 + $0x286]]
        %v2409 = vstv %s2408
        %v2410 = vmul.f32 %v2409, %v438
        %v2411 = vmul.f32 %v2409, %v439
        %v2412 = vmul.f32 %v2409, %v440
        %v2413 = vmul.f32 %v2409, %v441
        %v2418 = vrot.slane %v2410, 2
        %v2419 = vrot.slane %v2411, 2
        %v2420 = vsel %vm611, %v2418, %v2419
        %v2421 = vrot.slane %v2412, 2
        %v2422 = vsel %vm611, %v2419, %v2421
        %v2423 = vrot.slane %v2413, 2
        %v2424 = vsel %vm611, %v2421, %v2423
        %v2429 = vadd.f32 %v2404, %v2420
        %v2430 = vadd.f32 %v2405, %v2422
        %v2431 = vadd.f32 %v2406, %v2424
        %v2432 = vadd.f32 %v2407, %v2423
        %s2433 = sld [smem:[#allocation4 + $0x287]]
        %v2434 = vstv %s2433
        %v2435 = vmul.f32 %v2434, %v438
        %v2436 = vmul.f32 %v2434, %v439
        %v2437 = vmul.f32 %v2434, %v440
        %v2438 = vmul.f32 %v2434, %v441
        %v2443 = vrot.slane %v2435, 2
        %v2444 = vrot.slane %v2436, 2
        %v2445 = vsel %vm611, %v2443, %v2444
        %v2446 = vrot.slane %v2437, 2
        %v2447 = vsel %vm611, %v2444, %v2446
        %v2448 = vrot.slane %v2438, 2
        %v2449 = vsel %vm611, %v2446, %v2448
        %2450 = vrot.lane.b32.xlu0 %v2445, 127
        %v2451 = vpop.permute.xlu0 %2450
        %2452 = vrot.lane.b32.xlu0 %v2447, 127
        %v2453 = vpop.permute.xlu0 %2452
        %2454 = vrot.lane.b32.xlu0 %v2449, 127
        %v2455 = vpop.permute.xlu0 %2454
        %2456 = vrot.lane.b32.xlu0 %v2448, 127
        %v2457 = vpop.permute.xlu0 %2456
        %v2462 = vadd.f32 %v2429, %v2451
        %v2463 = vadd.f32 %v2430, %v2453
        %v2464 = vadd.f32 %v2431, %v2455
        %v2465 = vadd.f32 %v2432, %v2457
        %s2466 = sld [smem:[#allocation4 + $0x288]]
        %v2467 = vstv %s2466
        %v2468 = vmul.f32 %v2467, %v438
        %v2469 = vmul.f32 %v2467, %v439
        %v2470 = vmul.f32 %v2467, %v440
        %v2471 = vmul.f32 %v2467, %v441
        %v2476 = vrot.slane %v2468, 2
        %v2477 = vrot.slane %v2469, 2
        %v2478 = vsel %vm611, %v2476, %v2477
        %v2479 = vrot.slane %v2470, 2
        %v2480 = vsel %vm611, %v2477, %v2479
        %v2481 = vrot.slane %v2471, 2
        %v2482 = vsel %vm611, %v2479, %v2481
        %2483 = vrot.lane.b32.xlu0 %v2478, 126
        %v2484 = vpop.permute.xlu0 %2483
        %2485 = vrot.lane.b32.xlu0 %v2480, 126
        %v2486 = vpop.permute.xlu0 %2485
        %2487 = vrot.lane.b32.xlu0 %v2482, 126
        %v2488 = vpop.permute.xlu0 %2487
        %2489 = vrot.lane.b32.xlu0 %v2481, 126
        %v2490 = vpop.permute.xlu0 %2489
        %v2495 = vadd.f32 %v2462, %v2484
        %v2496 = vadd.f32 %v2463, %v2486
        %v2497 = vadd.f32 %v2464, %v2488
        %v2498 = vadd.f32 %v2465, %v2490
        %s2499 = sld [smem:[#allocation7 + $0x5]]
        %v2500 = vstv %s2499
        %v2501 = vadd.f32 %v2495, %v2500
        %v2502 = vadd.f32 %v2496, %v2500
        %v2503 = vadd.f32 %v2497, %v2500
        %v2504 = vadd.f32 %v2498, %v2500
        %v2505 = vmax.f32 %v2501, 0.0
        %v2506 = vmax.f32 %v2502, 0.0
        %v2507 = vmax.f32 %v2503, 0.0
        %v2508 = vmax.f32 %v2504, 0.0
        %v2513 = vrot.slane %v2505, 1
        %v2514 = vrot.slane %v2506, 1
        %v2515 = vsel %vm519, %v2513, %v2514
        %v2516 = vrot.slane %v2507, 1
        %v2517 = vsel %vm519, %v2514, %v2516
        %v2518 = vrot.slane %v2508, 1
        %v2519 = vsel %vm519, %v2516, %v2518
        %v2524 = vmax.f32 %v2505, %v2515
        %v2525 = vmax.f32 %v2506, %v2517
        %v2526 = vmax.f32 %v2507, %v2519
        %v2527 = vmax.f32 %v2508, %v2518
        %2532 = vrot.lane.b32.xlu0 %v2524, 127
        %v2533 = vpop.permute.xlu0 %2532
        %2534 = vrot.lane.b32.xlu0 %v2525, 127
        %v2535 = vpop.permute.xlu0 %2534
        %2536 = vrot.lane.b32.xlu0 %v2526, 127
        %v2537 = vpop.permute.xlu0 %2536
        %2538 = vrot.lane.b32.xlu0 %v2527, 127
        %v2539 = vpop.permute.xlu0 %2538
        %v2544 = vmax.f32 %v2524, %v2533
        %v2545 = vmax.f32 %v2525, %v2535
        %v2546 = vmax.f32 %v2526, %v2537
        %v2547 = vmax.f32 %v2527, %v2539
        %v2549 = vsel %vm742, %v2544, 0
        %v2552 = vsel %vm742, %v2545, 0
        %v2555 = vsel %vm742, %v2546, 0
        %v2558 = vsel %vm742, %v2547, 0
        %2560 = vmatpush.msra.mxu0 0.0
        %2561 = vmatpush.msra.mxu0 0.0
        %2562 = vmatpush.msra.mxu0 0.0
        %2563 = vmatpush.msra.mxu0 0.0
        %2564 = vmatpush.msra.mxu0 0.0
        %2565 = vmatpush.msra.mxu0 0.0
        %2566 = vmatpush.msra.mxu0 0.0
        %2567 = vmatpush.msra.mxu0 0.0
        %2568 = vmatpush.msra.mxu0 0.0
        %2569 = vmatpush.msra.mxu0 0.0
        %2570 = vmatpush.msra.mxu0 0.0
        %2571 = vmatpush.msra.mxu0 0.0
        %2572 = vmatpush.msra.mxu0 %v757
        %2573 = vmatpush.msra.mxu0 %v446
        %2574 = vmatpush.msra.mxu0 %v445
        %2575 = vmatpush.msra.mxu0 %v444
        %2576 = vmatmul.f32.gmra.mxu0 %v2549
        %v2577 = vpop.f32.mrf.mxu0
        %v2578 = vadd.f32 0.0, %v2577
        %2579 = vmatmul.f32.gmra.mxu0 %v2552
        %v2580 = vpop.f32.mrf.mxu0
        %v2581 = vadd.f32 0.0, %v2580
        %2582 = vmatmul.f32.gmra.mxu0 %v2555
        %v2583 = vpop.f32.mrf.mxu0
        %v2584 = vadd.f32 0.0, %v2583
        %2585 = vmatmul.f32.gmra.mxu0 %v2558
        %v2586 = vpop.f32.mrf.mxu0
        %v2587 = vadd.f32 0.0, %v2586
        %2588 = vdwg.mxu0
        %v2590 = vsel %vm755, %v2587, 0
        %2592 = vmatpush.msra.mxu0 0.0
        %2593 = vmatpush.msra.mxu0 0.0
        %2594 = vmatpush.msra.mxu0 0.0
        %2595 = vmatpush.msra.mxu0 0.0
        %2596 = vmatpush.msra.mxu0 0.0
        %2597 = vmatpush.msra.mxu0 0.0
        %2598 = vmatpush.msra.mxu0 0.0
        %2599 = vmatpush.msra.mxu0 0.0
        %2600 = vmatpush.msra.mxu0 0.0
        %2601 = vmatpush.msra.mxu0 0.0
        %2602 = vmatpush.msra.mxu0 0.0
        %2603 = vmatpush.msra.mxu0 0.0
        %2604 = vmatpush.msra.mxu0 %v2590
        %2605 = vmatpush.msra.mxu0 %v2584
        %2606 = vmatpush.msra.mxu0 %v2581
        %2607 = vmatpush.msra.mxu0 %v2578
        %2608 = vmatmul.f32.gmra.mxu0 %v789
        %v2609 = vpop.f32.mrf.mxu0
        %v2610 = vadd.f32 0.0, %v2609
        %2611 = vmatmul.f32.gmra.mxu0 %v792
        %v2612 = vpop.f32.mrf.mxu0
        %v2613 = vadd.f32 0.0, %v2612
        %2614 = vdwg.mxu0
        %s2615 = scalar_lea.vmem [#allocation2], 80
        %2616 = vst.msk [vmem:[%s2615] sm:$0xff] %vm820, %v2610
        %2617 = vst.msk [vmem:[%s2615 + $0x8] sm:$0xff] %vm820, %v2613
        %s2618 = sld [smem:[#allocation4 + $0x300]]
        %v2619 = vstv %s2618
        %v2620 = vmul.f32 %v2619, %v438
        %v2621 = vmul.f32 %v2619, %v439
        %v2622 = vmul.f32 %v2619, %v440
        %v2623 = vmul.f32 %v2619, %v441
        %s2624 = sld [smem:[#allocation4 + $0x301]]
        %v2625 = vstv %s2624
        %v2626 = vmul.f32 %v2625, %v438
        %v2627 = vmul.f32 %v2625, %v439
        %v2628 = vmul.f32 %v2625, %v440
        %v2629 = vmul.f32 %v2625, %v441
        %2634 = vrot.lane.b32.xlu0 %v2626, 127
        %v2635 = vpop.permute.xlu0 %2634
        %2636 = vrot.lane.b32.xlu0 %v2627, 127
        %v2637 = vpop.permute.xlu0 %2636
        %2638 = vrot.lane.b32.xlu0 %v2628, 127
        %v2639 = vpop.permute.xlu0 %2638
        %2640 = vrot.lane.b32.xlu0 %v2629, 127
        %v2641 = vpop.permute.xlu0 %2640
        %v2646 = vadd.f32 %v2620, %v2635
        %v2647 = vadd.f32 %v2621, %v2637
        %v2648 = vadd.f32 %v2622, %v2639
        %v2649 = vadd.f32 %v2623, %v2641
        %s2650 = sld [smem:[#allocation4 + $0x302]]
        %v2651 = vstv %s2650
        %v2652 = vmul.f32 %v2651, %v438
        %v2653 = vmul.f32 %v2651, %v439
        %v2654 = vmul.f32 %v2651, %v440
        %v2655 = vmul.f32 %v2651, %v441
        %2660 = vrot.lane.b32.xlu0 %v2652, 126
        %v2661 = vpop.permute.xlu0 %2660
        %2662 = vrot.lane.b32.xlu0 %v2653, 126
        %v2663 = vpop.permute.xlu0 %2662
        %2664 = vrot.lane.b32.xlu0 %v2654, 126
        %v2665 = vpop.permute.xlu0 %2664
        %2666 = vrot.lane.b32.xlu0 %v2655, 126
        %v2667 = vpop.permute.xlu0 %2666
        %v2672 = vadd.f32 %v2646, %v2661
        %v2673 = vadd.f32 %v2647, %v2663
        %v2674 = vadd.f32 %v2648, %v2665
        %v2675 = vadd.f32 %v2649, %v2667
        %s2676 = sld [smem:[#allocation4 + $0x303]]
        %v2677 = vstv %s2676
        %v2678 = vmul.f32 %v2677, %v438
        %v2679 = vmul.f32 %v2677, %v439
        %v2680 = vmul.f32 %v2677, %v440
        %v2681 = vmul.f32 %v2677, %v441
        %v2686 = vrot.slane %v2678, 1
        %v2687 = vrot.slane %v2679, 1
        %v2688 = vsel %vm519, %v2686, %v2687
        %v2689 = vrot.slane %v2680, 1
        %v2690 = vsel %vm519, %v2687, %v2689
        %v2691 = vrot.slane %v2681, 1
        %v2692 = vsel %vm519, %v2689, %v2691
        %v2697 = vadd.f32 %v2672, %v2688
        %v2698 = vadd.f32 %v2673, %v2690
        %v2699 = vadd.f32 %v2674, %v2692
        %v2700 = vadd.f32 %v2675, %v2691
        %s2701 = sld [smem:[#allocation4 + $0x304]]
        %v2702 = vstv %s2701
        %v2703 = vmul.f32 %v2702, %v438
        %v2704 = vmul.f32 %v2702, %v439
        %v2705 = vmul.f32 %v2702, %v440
        %v2706 = vmul.f32 %v2702, %v441
        %v2711 = vrot.slane %v2703, 1
        %v2712 = vrot.slane %v2704, 1
        %v2713 = vsel %vm519, %v2711, %v2712
        %v2714 = vrot.slane %v2705, 1
        %v2715 = vsel %vm519, %v2712, %v2714
        %v2716 = vrot.slane %v2706, 1
        %v2717 = vsel %vm519, %v2714, %v2716
        %2718 = vrot.lane.b32.xlu0 %v2713, 127
        %v2719 = vpop.permute.xlu0 %2718
        %2720 = vrot.lane.b32.xlu0 %v2715, 127
        %v2721 = vpop.permute.xlu0 %2720
        %2722 = vrot.lane.b32.xlu0 %v2717, 127
        %v2723 = vpop.permute.xlu0 %2722
        %2724 = vrot.lane.b32.xlu0 %v2716, 127
        %v2725 = vpop.permute.xlu0 %2724
        %v2730 = vadd.f32 %v2697, %v2719
        %v2731 = vadd.f32 %v2698, %v2721
        %v2732 = vadd.f32 %v2699, %v2723
        %v2733 = vadd.f32 %v2700, %v2725
        %s2734 = sld [smem:[#allocation4 + $0x305]]
        %v2735 = vstv %s2734
        %v2736 = vmul.f32 %v2735, %v438
        %v2737 = vmul.f32 %v2735, %v439
        %v2738 = vmul.f32 %v2735, %v440
        %v2739 = vmul.f32 %v2735, %v441
        %v2744 = vrot.slane %v2736, 1
        %v2745 = vrot.slane %v2737, 1
        %v2746 = vsel %vm519, %v2744, %v2745
        %v2747 = vrot.slane %v2738, 1
        %v2748 = vsel %vm519, %v2745, %v2747
        %v2749 = vrot.slane %v2739, 1
        %v2750 = vsel %vm519, %v2747, %v2749
        %2751 = vrot.lane.b32.xlu0 %v2746, 126
        %v2752 = vpop.permute.xlu0 %2751
        %2753 = vrot.lane.b32.xlu0 %v2748, 126
        %v2754 = vpop.permute.xlu0 %2753
        %2755 = vrot.lane.b32.xlu0 %v2750, 126
        %v2756 = vpop.permute.xlu0 %2755
        %2757 = vrot.lane.b32.xlu0 %v2749, 126
        %v2758 = vpop.permute.xlu0 %2757
        %v2763 = vadd.f32 %v2730, %v2752
        %v2764 = vadd.f32 %v2731, %v2754
        %v2765 = vadd.f32 %v2732, %v2756
        %v2766 = vadd.f32 %v2733, %v2758
        %s2767 = sld [smem:[#allocation4 + $0x306]]
        %v2768 = vstv %s2767
        %v2769 = vmul.f32 %v2768, %v438
        %v2770 = vmul.f32 %v2768, %v439
        %v2771 = vmul.f32 %v2768, %v440
        %v2772 = vmul.f32 %v2768, %v441
        %v2777 = vrot.slane %v2769, 2
        %v2778 = vrot.slane %v2770, 2
        %v2779 = vsel %vm611, %v2777, %v2778
        %v2780 = vrot.slane %v2771, 2
        %v2781 = vsel %vm611, %v2778, %v2780
        %v2782 = vrot.slane %v2772, 2
        %v2783 = vsel %vm611, %v2780, %v2782
        %v2788 = vadd.f32 %v2763, %v2779
        %v2789 = vadd.f32 %v2764, %v2781
        %v2790 = vadd.f32 %v2765, %v2783
        %v2791 = vadd.f32 %v2766, %v2782
        %s2792 = sld [smem:[#allocation4 + $0x307]]
        %v2793 = vstv %s2792
        %v2794 = vmul.f32 %v2793, %v438
        %v2795 = vmul.f32 %v2793, %v439
        %v2796 = vmul.f32 %v2793, %v440
        %v2797 = vmul.f32 %v2793, %v441
        %v2802 = vrot.slane %v2794, 2
        %v2803 = vrot.slane %v2795, 2
        %v2804 = vsel %vm611, %v2802, %v2803
        %v2805 = vrot.slane %v2796, 2
        %v2806 = vsel %vm611, %v2803, %v2805
        %v2807 = vrot.slane %v2797, 2
        %v2808 = vsel %vm611, %v2805, %v2807
        %2809 = vrot.lane.b32.xlu0 %v2804, 127
        %v2810 = vpop.permute.xlu0 %2809
        %2811 = vrot.lane.b32.xlu0 %v2806, 127
        %v2812 = vpop.permute.xlu0 %2811
        %2813 = vrot.lane.b32.xlu0 %v2808, 127
        %v2814 = vpop.permute.xlu0 %2813
        %2815 = vrot.lane.b32.xlu0 %v2807, 127
        %v2816 = vpop.permute.xlu0 %2815
        %v2821 = vadd.f32 %v2788, %v2810
        %v2822 = vadd.f32 %v2789, %v2812
        %v2823 = vadd.f32 %v2790, %v2814
        %v2824 = vadd.f32 %v2791, %v2816
        %s2825 = sld [smem:[#allocation4 + $0x308]]
        %v2826 = vstv %s2825
        %v2827 = vmul.f32 %v2826, %v438
        %v2828 = vmul.f32 %v2826, %v439
        %v2829 = vmul.f32 %v2826, %v440
        %v2830 = vmul.f32 %v2826, %v441
        %v2835 = vrot.slane %v2827, 2
        %v2836 = vrot.slane %v2828, 2
        %v2837 = vsel %vm611, %v2835, %v2836
        %v2838 = vrot.slane %v2829, 2
        %v2839 = vsel %vm611, %v2836, %v2838
        %v2840 = vrot.slane %v2830, 2
        %v2841 = vsel %vm611, %v2838, %v2840
        %2842 = vrot.lane.b32.xlu0 %v2837, 126
        %v2843 = vpop.permute.xlu0 %2842
        %2844 = vrot.lane.b32.xlu0 %v2839, 126
        %v2845 = vpop.permute.xlu0 %2844
        %2846 = vrot.lane.b32.xlu0 %v2841, 126
        %v2847 = vpop.permute.xlu0 %2846
        %2848 = vrot.lane.b32.xlu0 %v2840, 126
        %v2849 = vpop.permute.xlu0 %2848
        %v2854 = vadd.f32 %v2821, %v2843
        %v2855 = vadd.f32 %v2822, %v2845
        %v2856 = vadd.f32 %v2823, %v2847
        %v2857 = vadd.f32 %v2824, %v2849
        %s2858 = sld [smem:[#allocation7 + $0x6]]
        %v2859 = vstv %s2858
        %v2860 = vadd.f32 %v2854, %v2859
        %v2861 = vadd.f32 %v2855, %v2859
        %v2862 = vadd.f32 %v2856, %v2859
        %v2863 = vadd.f32 %v2857, %v2859
        %v2864 = vmax.f32 %v2860, 0.0
        %v2865 = vmax.f32 %v2861, 0.0
        %v2866 = vmax.f32 %v2862, 0.0
        %v2867 = vmax.f32 %v2863, 0.0
        %v2872 = vrot.slane %v2864, 1
        %v2873 = vrot.slane %v2865, 1
        %v2874 = vsel %vm519, %v2872, %v2873
        %v2875 = vrot.slane %v2866, 1
        %v2876 = vsel %vm519, %v2873, %v2875
        %v2877 = vrot.slane %v2867, 1
        %v2878 = vsel %vm519, %v2875, %v2877
        %v2883 = vmax.f32 %v2864, %v2874
        %v2884 = vmax.f32 %v2865, %v2876
        %v2885 = vmax.f32 %v2866, %v2878
        %v2886 = vmax.f32 %v2867, %v2877
        %2891 = vrot.lane.b32.xlu0 %v2883, 127
        %v2892 = vpop.permute.xlu0 %2891
        %2893 = vrot.lane.b32.xlu0 %v2884, 127
        %v2894 = vpop.permute.xlu0 %2893
        %2895 = vrot.lane.b32.xlu0 %v2885, 127
        %v2896 = vpop.permute.xlu0 %2895
        %2897 = vrot.lane.b32.xlu0 %v2886, 127
        %v2898 = vpop.permute.xlu0 %2897
        %v2903 = vmax.f32 %v2883, %v2892
        %v2904 = vmax.f32 %v2884, %v2894
        %v2905 = vmax.f32 %v2885, %v2896
        %v2906 = vmax.f32 %v2886, %v2898
        %v2908 = vsel %vm742, %v2903, 0
        %v2911 = vsel %vm742, %v2904, 0
        %v2914 = vsel %vm742, %v2905, 0
        %v2917 = vsel %vm742, %v2906, 0
        %2919 = vmatpush.msra.mxu0 0.0
        %2920 = vmatpush.msra.mxu0 0.0
        %2921 = vmatpush.msra.mxu0 0.0
        %2922 = vmatpush.msra.mxu0 0.0
        %2923 = vmatpush.msra.mxu0 0.0
        %2924 = vmatpush.msra.mxu0 0.0
        %2925 = vmatpush.msra.mxu0 0.0
        %2926 = vmatpush.msra.mxu0 0.0
        %2927 = vmatpush.msra.mxu0 0.0
        %2928 = vmatpush.msra.mxu0 0.0
        %2929 = vmatpush.msra.mxu0 0.0
        %2930 = vmatpush.msra.mxu0 0.0
        %2931 = vmatpush.msra.mxu0 %v757
        %2932 = vmatpush.msra.mxu0 %v446
        %2933 = vmatpush.msra.mxu0 %v445
        %2934 = vmatpush.msra.mxu0 %v444
        %2935 = vmatmul.f32.gmra.mxu0 %v2908
        %v2936 = vpop.f32.mrf.mxu0
        %v2937 = vadd.f32 0.0, %v2936
        %2938 = vmatmul.f32.gmra.mxu0 %v2911
        %v2939 = vpop.f32.mrf.mxu0
        %v2940 = vadd.f32 0.0, %v2939
        %2941 = vmatmul.f32.gmra.mxu0 %v2914
        %v2942 = vpop.f32.mrf.mxu0
        %v2943 = vadd.f32 0.0, %v2942
        %2944 = vmatmul.f32.gmra.mxu0 %v2917
        %v2945 = vpop.f32.mrf.mxu0
        %v2946 = vadd.f32 0.0, %v2945
        %2947 = vdwg.mxu0
        %v2949 = vsel %vm755, %v2946, 0
        %2951 = vmatpush.msra.mxu0 0.0
        %2952 = vmatpush.msra.mxu0 0.0
        %2953 = vmatpush.msra.mxu0 0.0
        %2954 = vmatpush.msra.mxu0 0.0
        %2955 = vmatpush.msra.mxu0 0.0
        %2956 = vmatpush.msra.mxu0 0.0
        %2957 = vmatpush.msra.mxu0 0.0
        %2958 = vmatpush.msra.mxu0 0.0
        %2959 = vmatpush.msra.mxu0 0.0
        %2960 = vmatpush.msra.mxu0 0.0
        %2961 = vmatpush.msra.mxu0 0.0
        %2962 = vmatpush.msra.mxu0 0.0
        %2963 = vmatpush.msra.mxu0 %v2949
        %2964 = vmatpush.msra.mxu0 %v2943
        %2965 = vmatpush.msra.mxu0 %v2940
        %2966 = vmatpush.msra.mxu0 %v2937
        %2967 = vmatmul.f32.gmra.mxu0 %v789
        %v2968 = vpop.f32.mrf.mxu0
        %v2969 = vadd.f32 0.0, %v2968
        %2970 = vmatmul.f32.gmra.mxu0 %v792
        %v2971 = vpop.f32.mrf.mxu0
        %v2972 = vadd.f32 0.0, %v2971
        %2973 = vdwg.mxu0
        %s2974 = scalar_lea.vmem [#allocation2], 96
        %2975 = vst.msk [vmem:[%s2974] sm:$0xff] %vm820, %v2969
        %2976 = vst.msk [vmem:[%s2974 + $0x8] sm:$0xff] %vm820, %v2972
        %s2977 = sld [smem:[#allocation4 + $0x380]]
        %v2978 = vstv %s2977
        %v2979 = vmul.f32 %v2978, %v438
        %v2980 = vmul.f32 %v2978, %v439
        %v2981 = vmul.f32 %v2978, %v440
        %v2982 = vmul.f32 %v2978, %v441
        %s2983 = sld [smem:[#allocation4 + $0x381]]
        %v2984 = vstv %s2983
        %v2985 = vmul.f32 %v2984, %v438
        %v2986 = vmul.f32 %v2984, %v439
        %v2987 = vmul.f32 %v2984, %v440
        %v2988 = vmul.f32 %v2984, %v441
        %2993 = vrot.lane.b32.xlu0 %v2985, 127
        %v2994 = vpop.permute.xlu0 %2993
        %2995 = vrot.lane.b32.xlu0 %v2986, 127
        %v2996 = vpop.permute.xlu0 %2995
        %2997 = vrot.lane.b32.xlu0 %v2987, 127
        %v2998 = vpop.permute.xlu0 %2997
        %2999 = vrot.lane.b32.xlu0 %v2988, 127
        %v3000 = vpop.permute.xlu0 %2999
        %v3005 = vadd.f32 %v2979, %v2994
        %v3006 = vadd.f32 %v2980, %v2996
        %v3007 = vadd.f32 %v2981, %v2998
        %v3008 = vadd.f32 %v2982, %v3000
        %s3009 = sld [smem:[#allocation4 + $0x382]]
        %v3010 = vstv %s3009
        %v3011 = vmul.f32 %v3010, %v438
        %v3012 = vmul.f32 %v3010, %v439
        %v3013 = vmul.f32 %v3010, %v440
        %v3014 = vmul.f32 %v3010, %v441
        %3019 = vrot.lane.b32.xlu0 %v3011, 126
        %v3020 = vpop.permute.xlu0 %3019
        %3021 = vrot.lane.b32.xlu0 %v3012, 126
        %v3022 = vpop.permute.xlu0 %3021
        %3023 = vrot.lane.b32.xlu0 %v3013, 126
        %v3024 = vpop.permute.xlu0 %3023
        %3025 = vrot.lane.b32.xlu0 %v3014, 126
        %v3026 = vpop.permute.xlu0 %3025
        %v3031 = vadd.f32 %v3005, %v3020
        %v3032 = vadd.f32 %v3006, %v3022
        %v3033 = vadd.f32 %v3007, %v3024
        %v3034 = vadd.f32 %v3008, %v3026
        %s3035 = sld [smem:[#allocation4 + $0x383]]
        %v3036 = vstv %s3035
        %v3037 = vmul.f32 %v3036, %v438
        %v3038 = vmul.f32 %v3036, %v439
        %v3039 = vmul.f32 %v3036, %v440
        %v3040 = vmul.f32 %v3036, %v441
        %v3045 = vrot.slane %v3037, 1
        %v3046 = vrot.slane %v3038, 1
        %v3047 = vsel %vm519, %v3045, %v3046
        %v3048 = vrot.slane %v3039, 1
        %v3049 = vsel %vm519, %v3046, %v3048
        %v3050 = vrot.slane %v3040, 1
        %v3051 = vsel %vm519, %v3048, %v3050
        %v3056 = vadd.f32 %v3031, %v3047
        %v3057 = vadd.f32 %v3032, %v3049
        %v3058 = vadd.f32 %v3033, %v3051
        %v3059 = vadd.f32 %v3034, %v3050
        %s3060 = sld [smem:[#allocation4 + $0x384]]
        %v3061 = vstv %s3060
        %v3062 = vmul.f32 %v3061, %v438
        %v3063 = vmul.f32 %v3061, %v439
        %v3064 = vmul.f32 %v3061, %v440
        %v3065 = vmul.f32 %v3061, %v441
        %v3070 = vrot.slane %v3062, 1
        %v3071 = vrot.slane %v3063, 1
        %v3072 = vsel %vm519, %v3070, %v3071
        %v3073 = vrot.slane %v3064, 1
        %v3074 = vsel %vm519, %v3071, %v3073
        %v3075 = vrot.slane %v3065, 1
        %v3076 = vsel %vm519, %v3073, %v3075
        %3077 = vrot.lane.b32.xlu0 %v3072, 127
        %v3078 = vpop.permute.xlu0 %3077
        %3079 = vrot.lane.b32.xlu0 %v3074, 127
        %v3080 = vpop.permute.xlu0 %3079
        %3081 = vrot.lane.b32.xlu0 %v3076, 127
        %v3082 = vpop.permute.xlu0 %3081
        %3083 = vrot.lane.b32.xlu0 %v3075, 127
        %v3084 = vpop.permute.xlu0 %3083
        %v3089 = vadd.f32 %v3056, %v3078
        %v3090 = vadd.f32 %v3057, %v3080
        %v3091 = vadd.f32 %v3058, %v3082
        %v3092 = vadd.f32 %v3059, %v3084
        %s3093 = sld [smem:[#allocation4 + $0x385]]
        %v3094 = vstv %s3093
        %v3095 = vmul.f32 %v3094, %v438
        %v3096 = vmul.f32 %v3094, %v439
        %v3097 = vmul.f32 %v3094, %v440
        %v3098 = vmul.f32 %v3094, %v441
        %v3103 = vrot.slane %v3095, 1
        %v3104 = vrot.slane %v3096, 1
        %v3105 = vsel %vm519, %v3103, %v3104
        %v3106 = vrot.slane %v3097, 1
        %v3107 = vsel %vm519, %v3104, %v3106
        %v3108 = vrot.slane %v3098, 1
        %v3109 = vsel %vm519, %v3106, %v3108
        %3110 = vrot.lane.b32.xlu0 %v3105, 126
        %v3111 = vpop.permute.xlu0 %3110
        %3112 = vrot.lane.b32.xlu0 %v3107, 126
        %v3113 = vpop.permute.xlu0 %3112
        %3114 = vrot.lane.b32.xlu0 %v3109, 126
        %v3115 = vpop.permute.xlu0 %3114
        %3116 = vrot.lane.b32.xlu0 %v3108, 126
        %v3117 = vpop.permute.xlu0 %3116
        %v3122 = vadd.f32 %v3089, %v3111
        %v3123 = vadd.f32 %v3090, %v3113
        %v3124 = vadd.f32 %v3091, %v3115
        %v3125 = vadd.f32 %v3092, %v3117
        %s3126 = sld [smem:[#allocation4 + $0x386]]
        %v3127 = vstv %s3126
        %v3128 = vmul.f32 %v3127, %v438
        %v3129 = vmul.f32 %v3127, %v439
        %v3130 = vmul.f32 %v3127, %v440
        %v3131 = vmul.f32 %v3127, %v441
        %v3136 = vrot.slane %v3128, 2
        %v3137 = vrot.slane %v3129, 2
        %v3138 = vsel %vm611, %v3136, %v3137
        %v3139 = vrot.slane %v3130, 2
        %v3140 = vsel %vm611, %v3137, %v3139
        %v3141 = vrot.slane %v3131, 2
        %v3142 = vsel %vm611, %v3139, %v3141
        %v3147 = vadd.f32 %v3122, %v3138
        %v3148 = vadd.f32 %v3123, %v3140
        %v3149 = vadd.f32 %v3124, %v3142
        %v3150 = vadd.f32 %v3125, %v3141
        %s3151 = sld [smem:[#allocation4 + $0x387]]
        %v3152 = vstv %s3151
        %v3153 = vmul.f32 %v3152, %v438
        %v3154 = vmul.f32 %v3152, %v439
        %v3155 = vmul.f32 %v3152, %v440
        %v3156 = vmul.f32 %v3152, %v441
        %v3161 = vrot.slane %v3153, 2
        %v3162 = vrot.slane %v3154, 2
        %v3163 = vsel %vm611, %v3161, %v3162
        %v3164 = vrot.slane %v3155, 2
        %v3165 = vsel %vm611, %v3162, %v3164
        %v3166 = vrot.slane %v3156, 2
        %v3167 = vsel %vm611, %v3164, %v3166
        %3168 = vrot.lane.b32.xlu0 %v3163, 127
        %v3169 = vpop.permute.xlu0 %3168
        %3170 = vrot.lane.b32.xlu0 %v3165, 127
        %v3171 = vpop.permute.xlu0 %3170
        %3172 = vrot.lane.b32.xlu0 %v3167, 127
        %v3173 = vpop.permute.xlu0 %3172
        %3174 = vrot.lane.b32.xlu0 %v3166, 127
        %v3175 = vpop.permute.xlu0 %3174
        %v3180 = vadd.f32 %v3147, %v3169
        %v3181 = vadd.f32 %v3148, %v3171
        %v3182 = vadd.f32 %v3149, %v3173
        %v3183 = vadd.f32 %v3150, %v3175
        %s3184 = sld [smem:[#allocation4 + $0x388]]
        %v3185 = vstv %s3184
        %v3186 = vmul.f32 %v3185, %v438
        %v3187 = vmul.f32 %v3185, %v439
        %v3188 = vmul.f32 %v3185, %v440
        %v3189 = vmul.f32 %v3185, %v441
        %v3194 = vrot.slane %v3186, 2
        %v3195 = vrot.slane %v3187, 2
        %v3196 = vsel %vm611, %v3194, %v3195
        %v3197 = vrot.slane %v3188, 2
        %v3198 = vsel %vm611, %v3195, %v3197
        %v3199 = vrot.slane %v3189, 2
        %v3200 = vsel %vm611, %v3197, %v3199
        %3201 = vrot.lane.b32.xlu0 %v3196, 126
        %v3202 = vpop.permute.xlu0 %3201
        %3203 = vrot.lane.b32.xlu0 %v3198, 126
        %v3204 = vpop.permute.xlu0 %3203
        %3205 = vrot.lane.b32.xlu0 %v3200, 126
        %v3206 = vpop.permute.xlu0 %3205
        %3207 = vrot.lane.b32.xlu0 %v3199, 126
        %v3208 = vpop.permute.xlu0 %3207
        %v3213 = vadd.f32 %v3180, %v3202
        %v3214 = vadd.f32 %v3181, %v3204
        %v3215 = vadd.f32 %v3182, %v3206
        %v3216 = vadd.f32 %v3183, %v3208
        %s3217 = sld [smem:[#allocation7 + $0x7]]
        %v3218 = vstv %s3217
        %v3219 = vadd.f32 %v3213, %v3218
        %v3220 = vadd.f32 %v3214, %v3218
        %v3221 = vadd.f32 %v3215, %v3218
        %v3222 = vadd.f32 %v3216, %v3218
        %v3223 = vmax.f32 %v3219, 0.0
        %v3224 = vmax.f32 %v3220, 0.0
        %v3225 = vmax.f32 %v3221, 0.0
        %v3226 = vmax.f32 %v3222, 0.0
        %v3231 = vrot.slane %v3223, 1
        %v3232 = vrot.slane %v3224, 1
        %v3233 = vsel %vm519, %v3231, %v3232
        %v3234 = vrot.slane %v3225, 1
        %v3235 = vsel %vm519, %v3232, %v3234
        %v3236 = vrot.slane %v3226, 1
        %v3237 = vsel %vm519, %v3234, %v3236
        %v3242 = vmax.f32 %v3223, %v3233
        %v3243 = vmax.f32 %v3224, %v3235
        %v3244 = vmax.f32 %v3225, %v3237
        %v3245 = vmax.f32 %v3226, %v3236
        %3250 = vrot.lane.b32.xlu0 %v3242, 127
        %v3251 = vpop.permute.xlu0 %3250
        %3252 = vrot.lane.b32.xlu0 %v3243, 127
        %v3253 = vpop.permute.xlu0 %3252
        %3254 = vrot.lane.b32.xlu0 %v3244, 127
        %v3255 = vpop.permute.xlu0 %3254
        %3256 = vrot.lane.b32.xlu0 %v3245, 127
        %v3257 = vpop.permute.xlu0 %3256
        %v3262 = vmax.f32 %v3242, %v3251
        %v3263 = vmax.f32 %v3243, %v3253
        %v3264 = vmax.f32 %v3244, %v3255
        %v3265 = vmax.f32 %v3245, %v3257
        %v3267 = vsel %vm742, %v3262, 0
        %v3270 = vsel %vm742, %v3263, 0
        %v3273 = vsel %vm742, %v3264, 0
        %v3276 = vsel %vm742, %v3265, 0
        %3278 = vmatpush.msra.mxu0 0.0
        %3279 = vmatpush.msra.mxu0 0.0
        %3280 = vmatpush.msra.mxu0 0.0
        %3281 = vmatpush.msra.mxu0 0.0
        %3282 = vmatpush.msra.mxu0 0.0
        %3283 = vmatpush.msra.mxu0 0.0
        %3284 = vmatpush.msra.mxu0 0.0
        %3285 = vmatpush.msra.mxu0 0.0
        %3286 = vmatpush.msra.mxu0 0.0
        %3287 = vmatpush.msra.mxu0 0.0
        %3288 = vmatpush.msra.mxu0 0.0
        %3289 = vmatpush.msra.mxu0 0.0
        %3290 = vmatpush.msra.mxu0 %v757
        %3291 = vmatpush.msra.mxu0 %v446
        %3292 = vmatpush.msra.mxu0 %v445
        %3293 = vmatpush.msra.mxu0 %v444
        %3294 = vmatmul.f32.gmra.mxu0 %v3267
        %v3295 = vpop.f32.mrf.mxu0
        %v3296 = vadd.f32 0.0, %v3295
        %3297 = vmatmul.f32.gmra.mxu0 %v3270
        %v3298 = vpop.f32.mrf.mxu0
        %v3299 = vadd.f32 0.0, %v3298
        %3300 = vmatmul.f32.gmra.mxu0 %v3273
        %v3301 = vpop.f32.mrf.mxu0
        %v3302 = vadd.f32 0.0, %v3301
        %3303 = vmatmul.f32.gmra.mxu0 %v3276
        %v3304 = vpop.f32.mrf.mxu0
        %v3305 = vadd.f32 0.0, %v3304
        %3306 = vdwg.mxu0
        %v3308 = vsel %vm755, %v3305, 0
        %3310 = vmatpush.msra.mxu0 0.0
        %3311 = vmatpush.msra.mxu0 0.0
        %3312 = vmatpush.msra.mxu0 0.0
        %3313 = vmatpush.msra.mxu0 0.0
        %3314 = vmatpush.msra.mxu0 0.0
        %3315 = vmatpush.msra.mxu0 0.0
        %3316 = vmatpush.msra.mxu0 0.0
        %3317 = vmatpush.msra.mxu0 0.0
        %3318 = vmatpush.msra.mxu0 0.0
        %3319 = vmatpush.msra.mxu0 0.0
        %3320 = vmatpush.msra.mxu0 0.0
        %3321 = vmatpush.msra.mxu0 0.0
        %3322 = vmatpush.msra.mxu0 %v3308
        %3323 = vmatpush.msra.mxu0 %v3302
        %3324 = vmatpush.msra.mxu0 %v3299
        %3325 = vmatpush.msra.mxu0 %v3296
        %3326 = vmatmul.f32.gmra.mxu0 %v789
        %v3327 = vpop.f32.mrf.mxu0
        %v3328 = vadd.f32 0.0, %v3327
        %3329 = vmatmul.f32.gmra.mxu0 %v792
        %v3330 = vpop.f32.mrf.mxu0
        %v3331 = vadd.f32 0.0, %v3330
        %3332 = vdwg.mxu0
        %s3333 = scalar_lea.vmem [#allocation2], 112
        %3334 = vst.msk [vmem:[%s3333] sm:$0xff] %vm820, %v3328
        %3335 = vst.msk [vmem:[%s3333 + $0x8] sm:$0xff] %vm820, %v3331
        loop: start=0, step=1, limit=16
        $region81: #{cnn_forward.1} parent=63 // loop_pre_header
          _
        $region82: #{cnn_forward.1} parent=63 // loop_header
          %s3337 = sphi 0, %s3341
          %p3338 = scmp.ge.s32.totalorder %s3337, 16
        $region83: #{cnn_forward.1} parent=63 // loop_header_branch
          %3340 = sbr.rel (%p3338) target = $region87
        $region84: #{cnn_forward.1} parent=63 // loop_body
          %v3342 = vld [vmem:[#allocation2] sm:$0xff]
          %v3343 = vld [vmem:[#allocation2 + $0x8] sm:$0xff]
          %s3344 = smul.u32 %s3337, 128
          %s3345 = sld [smem:[#allocation9 + %s3344]]
          %v3346 = vstv %s3345
          %v3347 = vmul.f32 %v3346, %v3342
          %v3348 = vmul.f32 %v3346, %v3343
          %v3349 = vadd.f32 %v3347, 0.0
          %v3350 = vadd.f32 %v3348, 0.0
          %s3351 = sadd.s32 %s3344, 1
          %s3352 = sld [smem:[#allocation9 + %s3351]]
          %v3353 = vstv %s3352
          %v3354 = vmul.f32 %v3353, %v3342
          %v3355 = vmul.f32 %v3353, %v3343
          %3358 = vrot.lane.b32.xlu0 %v3354, 127
          %v3359 = vpop.permute.xlu0 %3358
          %3360 = vrot.lane.b32.xlu0 %v3355, 127
          %v3361 = vpop.permute.xlu0 %3360
          %v3364 = vadd.f32 %v3349, %v3359
          %v3365 = vadd.f32 %v3350, %v3361
          %s3366 = sadd.s32 %s3344, 2
          %s3367 = sld [smem:[#allocation9 + %s3366]]
          %v3368 = vstv %s3367
          %v3369 = vmul.f32 %v3368, %v3342
          %v3370 = vmul.f32 %v3368, %v3343
          %3373 = vrot.lane.b32.xlu0 %v3369, 126
          %v3374 = vpop.permute.xlu0 %3373
          %3375 = vrot.lane.b32.xlu0 %v3370, 126
          %v3376 = vpop.permute.xlu0 %3375
          %v3379 = vadd.f32 %v3364, %v3374
          %v3380 = vadd.f32 %v3365, %v3376
          %s3381 = sadd.s32 %s3344, 3
          %s3382 = sld [smem:[#allocation9 + %s3381]]
          %v3383 = vstv %s3382
          %v3384 = vmul.f32 %v3383, %v3342
          %v3385 = vmul.f32 %v3383, %v3343
          %v3388 = vrot.slane %v3384, 1
          %v3389 = vrot.slane %v3385, 1
          %v3390 = vsel %vm519, %v3388, %v3389
          %v3393 = vadd.f32 %v3379, %v3390
          %v3394 = vadd.f32 %v3380, %v3389
          %s3395 = sadd.s32 %s3344, 4
          %s3396 = sld [smem:[#allocation9 + %s3395]]
          %v3397 = vstv %s3396
          %v3398 = vmul.f32 %v3397, %v3342
          %v3399 = vmul.f32 %v3397, %v3343
          %v3402 = vrot.slane %v3398, 1
          %v3403 = vrot.slane %v3399, 1
          %v3404 = vsel %vm519, %v3402, %v3403
          %3405 = vrot.lane.b32.xlu0 %v3404, 127
          %v3406 = vpop.permute.xlu0 %3405
          %3407 = vrot.lane.b32.xlu0 %v3403, 127
          %v3408 = vpop.permute.xlu0 %3407
          %v3411 = vadd.f32 %v3393, %v3406
          %v3412 = vadd.f32 %v3394, %v3408
          %s3413 = sadd.s32 %s3344, 5
          %s3414 = sld [smem:[#allocation9 + %s3413]]
          %v3415 = vstv %s3414
          %v3416 = vmul.f32 %v3415, %v3342
          %v3417 = vmul.f32 %v3415, %v3343
          %v3420 = vrot.slane %v3416, 1
          %v3421 = vrot.slane %v3417, 1
          %v3422 = vsel %vm519, %v3420, %v3421
          %3423 = vrot.lane.b32.xlu0 %v3422, 126
          %v3424 = vpop.permute.xlu0 %3423
          %3425 = vrot.lane.b32.xlu0 %v3421, 126
          %v3426 = vpop.permute.xlu0 %3425
          %v3429 = vadd.f32 %v3411, %v3424
          %v3430 = vadd.f32 %v3412, %v3426
          %s3431 = sadd.s32 %s3344, 6
          %s3432 = sld [smem:[#allocation9 + %s3431]]
          %v3433 = vstv %s3432
          %v3434 = vmul.f32 %v3433, %v3342
          %v3435 = vmul.f32 %v3433, %v3343
          %v3438 = vrot.slane %v3434, 2
          %v3439 = vrot.slane %v3435, 2
          %v3440 = vsel %vm611, %v3438, %v3439
          %v3443 = vadd.f32 %v3429, %v3440
          %v3444 = vadd.f32 %v3430, %v3439
          %s3445 = sadd.s32 %s3344, 7
          %s3446 = sld [smem:[#allocation9 + %s3445]]
          %v3447 = vstv %s3446
          %v3448 = vmul.f32 %v3447, %v3342
          %v3449 = vmul.f32 %v3447, %v3343
          %v3452 = vrot.slane %v3448, 2
          %v3453 = vrot.slane %v3449, 2
          %v3454 = vsel %vm611, %v3452, %v3453
          %3455 = vrot.lane.b32.xlu0 %v3454, 127
          %v3456 = vpop.permute.xlu0 %3455
          %3457 = vrot.lane.b32.xlu0 %v3453, 127
          %v3458 = vpop.permute.xlu0 %3457
          %v3461 = vadd.f32 %v3443, %v3456
          %v3462 = vadd.f32 %v3444, %v3458
          %s3463 = sadd.s32 %s3344, 8
          %s3464 = sld [smem:[#allocation9 + %s3463]]
          %v3465 = vstv %s3464
          %v3466 = vmul.f32 %v3465, %v3342
          %v3467 = vmul.f32 %v3465, %v3343
          %v3470 = vrot.slane %v3466, 2
          %v3471 = vrot.slane %v3467, 2
          %v3472 = vsel %vm611, %v3470, %v3471
          %3473 = vrot.lane.b32.xlu0 %v3472, 126
          %v3474 = vpop.permute.xlu0 %3473
          %3475 = vrot.lane.b32.xlu0 %v3471, 126
          %v3476 = vpop.permute.xlu0 %3475
          %v3479 = vadd.f32 %v3461, %v3474
          %v3480 = vadd.f32 %v3462, %v3476
          %v3481 = vld [vmem:[%s1179] sm:$0xff]
          %v3482 = vld [vmem:[%s1179 + $0x8] sm:$0xff]
          %s3483 = sadd.s32 %s3344, 9
          %s3484 = sld [smem:[#allocation9 + %s3483]]
          %v3485 = vstv %s3484
          %v3486 = vmul.f32 %v3485, %v3481
          %v3487 = vmul.f32 %v3485, %v3482
          %v3488 = vadd.f32 %v3479, %v3486
          %v3489 = vadd.f32 %v3480, %v3487
          %s3490 = sadd.s32 %s3344, 10
          %s3491 = sld [smem:[#allocation9 + %s3490]]
          %v3492 = vstv %s3491
          %v3493 = vmul.f32 %v3492, %v3481
          %v3494 = vmul.f32 %v3492, %v3482
          %3497 = vrot.lane.b32.xlu0 %v3493, 127
          %v3498 = vpop.permute.xlu0 %3497
          %3499 = vrot.lane.b32.xlu0 %v3494, 127
          %v3500 = vpop.permute.xlu0 %3499
          %v3503 = vadd.f32 %v3488, %v3498
          %v3504 = vadd.f32 %v3489, %v3500
          %s3505 = sadd.s32 %s3344, 11
          %s3506 = sld [smem:[#allocation9 + %s3505]]
          %v3507 = vstv %s3506
          %v3508 = vmul.f32 %v3507, %v3481
          %v3509 = vmul.f32 %v3507, %v3482
          %3512 = vrot.lane.b32.xlu0 %v3508, 126
          %v3513 = vpop.permute.xlu0 %3512
          %3514 = vrot.lane.b32.xlu0 %v3509, 126
          %v3515 = vpop.permute.xlu0 %3514
          %v3518 = vadd.f32 %v3503, %v3513
          %v3519 = vadd.f32 %v3504, %v3515
          %s3520 = sadd.s32 %s3344, 12
          %s3521 = sld [smem:[#allocation9 + %s3520]]
          %v3522 = vstv %s3521
          %v3523 = vmul.f32 %v3522, %v3481
          %v3524 = vmul.f32 %v3522, %v3482
          %v3527 = vrot.slane %v3523, 1
          %v3528 = vrot.slane %v3524, 1
          %v3529 = vsel %vm519, %v3527, %v3528
          %v3532 = vadd.f32 %v3518, %v3529
          %v3533 = vadd.f32 %v3519, %v3528
          %s3534 = sadd.s32 %s3344, 13
          %s3535 = sld [smem:[#allocation9 + %s3534]]
          %v3536 = vstv %s3535
          %v3537 = vmul.f32 %v3536, %v3481
          %v3538 = vmul.f32 %v3536, %v3482
          %v3541 = vrot.slane %v3537, 1
          %v3542 = vrot.slane %v3538, 1
          %v3543 = vsel %vm519, %v3541, %v3542
          %3544 = vrot.lane.b32.xlu0 %v3543, 127
          %v3545 = vpop.permute.xlu0 %3544
          %3546 = vrot.lane.b32.xlu0 %v3542, 127
          %v3547 = vpop.permute.xlu0 %3546
          %v3550 = vadd.f32 %v3532, %v3545
          %v3551 = vadd.f32 %v3533, %v3547
          %s3552 = sadd.s32 %s3344, 14
          %s3553 = sld [smem:[#allocation9 + %s3552]]
          %v3554 = vstv %s3553
          %v3555 = vmul.f32 %v3554, %v3481
          %v3556 = vmul.f32 %v3554, %v3482
          %v3559 = vrot.slane %v3555, 1
          %v3560 = vrot.slane %v3556, 1
          %v3561 = vsel %vm519, %v3559, %v3560
          %3562 = vrot.lane.b32.xlu0 %v3561, 126
          %v3563 = vpop.permute.xlu0 %3562
          %3564 = vrot.lane.b32.xlu0 %v3560, 126
          %v3565 = vpop.permute.xlu0 %3564
          %v3568 = vadd.f32 %v3550, %v3563
          %v3569 = vadd.f32 %v3551, %v3565
          %s3570 = sadd.s32 %s3344, 15
          %s3571 = sld [smem:[#allocation9 + %s3570]]
          %v3572 = vstv %s3571
          %v3573 = vmul.f32 %v3572, %v3481
          %v3574 = vmul.f32 %v3572, %v3482
          %v3577 = vrot.slane %v3573, 2
          %v3578 = vrot.slane %v3574, 2
          %v3579 = vsel %vm611, %v3577, %v3578
          %v3582 = vadd.f32 %v3568, %v3579
          %v3583 = vadd.f32 %v3569, %v3578
          %s3584 = sadd.s32 %s3344, 16
          %s3585 = sld [smem:[#allocation9 + %s3584]]
          %v3586 = vstv %s3585
          %v3587 = vmul.f32 %v3586, %v3481
          %v3588 = vmul.f32 %v3586, %v3482
          %v3591 = vrot.slane %v3587, 2
          %v3592 = vrot.slane %v3588, 2
          %v3593 = vsel %vm611, %v3591, %v3592
          %3594 = vrot.lane.b32.xlu0 %v3593, 127
          %v3595 = vpop.permute.xlu0 %3594
          %3596 = vrot.lane.b32.xlu0 %v3592, 127
          %v3597 = vpop.permute.xlu0 %3596
          %v3600 = vadd.f32 %v3582, %v3595
          %v3601 = vadd.f32 %v3583, %v3597
          %s3602 = sadd.s32 %s3344, 17
          %s3603 = sld [smem:[#allocation9 + %s3602]]
          %v3604 = vstv %s3603
          %v3605 = vmul.f32 %v3604, %v3481
          %v3606 = vmul.f32 %v3604, %v3482
          %v3609 = vrot.slane %v3605, 2
          %v3610 = vrot.slane %v3606, 2
          %v3611 = vsel %vm611, %v3609, %v3610
          %3612 = vrot.lane.b32.xlu0 %v3611, 126
          %v3613 = vpop.permute.xlu0 %3612
          %3614 = vrot.lane.b32.xlu0 %v3610, 126
          %v3615 = vpop.permute.xlu0 %3614
          %v3618 = vadd.f32 %v3600, %v3613
          %v3619 = vadd.f32 %v3601, %v3615
          %v3620 = vld [vmem:[%s1538] sm:$0xff]
          %v3621 = vld [vmem:[%s1538 + $0x8] sm:$0xff]
          %s3622 = sadd.s32 %s3344, 18
          %s3623 = sld [smem:[#allocation9 + %s3622]]
          %v3624 = vstv %s3623
          %v3625 = vmul.f32 %v3624, %v3620
          %v3626 = vmul.f32 %v3624, %v3621
          %v3627 = vadd.f32 %v3618, %v3625
          %v3628 = vadd.f32 %v3619, %v3626
          %s3629 = sadd.s32 %s3344, 19
          %s3630 = sld [smem:[#allocation9 + %s3629]]
          %v3631 = vstv %s3630
          %v3632 = vmul.f32 %v3631, %v3620
          %v3633 = vmul.f32 %v3631, %v3621
          %3636 = vrot.lane.b32.xlu0 %v3632, 127
          %v3637 = vpop.permute.xlu0 %3636
          %3638 = vrot.lane.b32.xlu0 %v3633, 127
          %v3639 = vpop.permute.xlu0 %3638
          %v3642 = vadd.f32 %v3627, %v3637
          %v3643 = vadd.f32 %v3628, %v3639
          %s3644 = sadd.s32 %s3344, 20
          %s3645 = sld [smem:[#allocation9 + %s3644]]
          %v3646 = vstv %s3645
          %v3647 = vmul.f32 %v3646, %v3620
          %v3648 = vmul.f32 %v3646, %v3621
          %3651 = vrot.lane.b32.xlu0 %v3647, 126
          %v3652 = vpop.permute.xlu0 %3651
          %3653 = vrot.lane.b32.xlu0 %v3648, 126
          %v3654 = vpop.permute.xlu0 %3653
          %v3657 = vadd.f32 %v3642, %v3652
          %v3658 = vadd.f32 %v3643, %v3654
          %s3659 = sadd.s32 %s3344, 21
          %s3660 = sld [smem:[#allocation9 + %s3659]]
          %v3661 = vstv %s3660
          %v3662 = vmul.f32 %v3661, %v3620
          %v3663 = vmul.f32 %v3661, %v3621
          %v3666 = vrot.slane %v3662, 1
          %v3667 = vrot.slane %v3663, 1
          %v3668 = vsel %vm519, %v3666, %v3667
          %v3671 = vadd.f32 %v3657, %v3668
          %v3672 = vadd.f32 %v3658, %v3667
          %s3673 = sadd.s32 %s3344, 22
          %s3674 = sld [smem:[#allocation9 + %s3673]]
          %v3675 = vstv %s3674
          %v3676 = vmul.f32 %v3675, %v3620
          %v3677 = vmul.f32 %v3675, %v3621
          %v3680 = vrot.slane %v3676, 1
          %v3681 = vrot.slane %v3677, 1
          %v3682 = vsel %vm519, %v3680, %v3681
          %3683 = vrot.lane.b32.xlu0 %v3682, 127
          %v3684 = vpop.permute.xlu0 %3683
          %3685 = vrot.lane.b32.xlu0 %v3681, 127
          %v3686 = vpop.permute.xlu0 %3685
          %v3689 = vadd.f32 %v3671, %v3684
          %v3690 = vadd.f32 %v3672, %v3686
          %s3691 = sadd.s32 %s3344, 23
          %s3692 = sld [smem:[#allocation9 + %s3691]]
          %v3693 = vstv %s3692
          %v3694 = vmul.f32 %v3693, %v3620
          %v3695 = vmul.f32 %v3693, %v3621
          %v3698 = vrot.slane %v3694, 1
          %v3699 = vrot.slane %v3695, 1
          %v3700 = vsel %vm519, %v3698, %v3699
          %3701 = vrot.lane.b32.xlu0 %v3700, 126
          %v3702 = vpop.permute.xlu0 %3701
          %3703 = vrot.lane.b32.xlu0 %v3699, 126
          %v3704 = vpop.permute.xlu0 %3703
          %v3707 = vadd.f32 %v3689, %v3702
          %v3708 = vadd.f32 %v3690, %v3704
          %s3709 = sadd.s32 %s3344, 24
          %s3710 = sld [smem:[#allocation9 + %s3709]]
          %v3711 = vstv %s3710
          %v3712 = vmul.f32 %v3711, %v3620
          %v3713 = vmul.f32 %v3711, %v3621
          %v3716 = vrot.slane %v3712, 2
          %v3717 = vrot.slane %v3713, 2
          %v3718 = vsel %vm611, %v3716, %v3717
          %v3721 = vadd.f32 %v3707, %v3718
          %v3722 = vadd.f32 %v3708, %v3717
          %s3723 = sadd.s32 %s3344, 25
          %s3724 = sld [smem:[#allocation9 + %s3723]]
          %v3725 = vstv %s3724
          %v3726 = vmul.f32 %v3725, %v3620
          %v3727 = vmul.f32 %v3725, %v3621
          %v3730 = vrot.slane %v3726, 2
          %v3731 = vrot.slane %v3727, 2
          %v3732 = vsel %vm611, %v3730, %v3731
          %3733 = vrot.lane.b32.xlu0 %v3732, 127
          %v3734 = vpop.permute.xlu0 %3733
          %3735 = vrot.lane.b32.xlu0 %v3731, 127
          %v3736 = vpop.permute.xlu0 %3735
          %v3739 = vadd.f32 %v3721, %v3734
          %v3740 = vadd.f32 %v3722, %v3736
          %s3741 = sadd.s32 %s3344, 26
          %s3742 = sld [smem:[#allocation9 + %s3741]]
          %v3743 = vstv %s3742
          %v3744 = vmul.f32 %v3743, %v3620
          %v3745 = vmul.f32 %v3743, %v3621
          %v3748 = vrot.slane %v3744, 2
          %v3749 = vrot.slane %v3745, 2
          %v3750 = vsel %vm611, %v3748, %v3749
          %3751 = vrot.lane.b32.xlu0 %v3750, 126
          %v3752 = vpop.permute.xlu0 %3751
          %3753 = vrot.lane.b32.xlu0 %v3749, 126
          %v3754 = vpop.permute.xlu0 %3753
          %v3757 = vadd.f32 %v3739, %v3752
          %v3758 = vadd.f32 %v3740, %v3754
          %v3759 = vld [vmem:[%s1897] sm:$0xff]
          %v3760 = vld [vmem:[%s1897 + $0x8] sm:$0xff]
          %s3761 = sadd.s32 %s3344, 27
          %s3762 = sld [smem:[#allocation9 + %s3761]]
          %v3763 = vstv %s3762
          %v3764 = vmul.f32 %v3763, %v3759
          %v3765 = vmul.f32 %v3763, %v3760
          %v3766 = vadd.f32 %v3757, %v3764
          %v3767 = vadd.f32 %v3758, %v3765
          %s3768 = sadd.s32 %s3344, 28
          %s3769 = sld [smem:[#allocation9 + %s3768]]
          %v3770 = vstv %s3769
          %v3771 = vmul.f32 %v3770, %v3759
          %v3772 = vmul.f32 %v3770, %v3760
          %3775 = vrot.lane.b32.xlu0 %v3771, 127
          %v3776 = vpop.permute.xlu0 %3775
          %3777 = vrot.lane.b32.xlu0 %v3772, 127
          %v3778 = vpop.permute.xlu0 %3777
          %v3781 = vadd.f32 %v3766, %v3776
          %v3782 = vadd.f32 %v3767, %v3778
          %s3783 = sadd.s32 %s3344, 29
          %s3784 = sld [smem:[#allocation9 + %s3783]]
          %v3785 = vstv %s3784
          %v3786 = vmul.f32 %v3785, %v3759
          %v3787 = vmul.f32 %v3785, %v3760
          %3790 = vrot.lane.b32.xlu0 %v3786, 126
          %v3791 = vpop.permute.xlu0 %3790
          %3792 = vrot.lane.b32.xlu0 %v3787, 126
          %v3793 = vpop.permute.xlu0 %3792
          %v3796 = vadd.f32 %v3781, %v3791
          %v3797 = vadd.f32 %v3782, %v3793
          %s3798 = sadd.s32 %s3344, 30
          %s3799 = sld [smem:[#allocation9 + %s3798]]
          %v3800 = vstv %s3799
          %v3801 = vmul.f32 %v3800, %v3759
          %v3802 = vmul.f32 %v3800, %v3760
          %v3805 = vrot.slane %v3801, 1
          %v3806 = vrot.slane %v3802, 1
          %v3807 = vsel %vm519, %v3805, %v3806
          %v3810 = vadd.f32 %v3796, %v3807
          %v3811 = vadd.f32 %v3797, %v3806
          %s3812 = sadd.s32 %s3344, 31
          %s3813 = sld [smem:[#allocation9 + %s3812]]
          %v3814 = vstv %s3813
          %v3815 = vmul.f32 %v3814, %v3759
          %v3816 = vmul.f32 %v3814, %v3760
          %v3819 = vrot.slane %v3815, 1
          %v3820 = vrot.slane %v3816, 1
          %v3821 = vsel %vm519, %v3819, %v3820
          %3822 = vrot.lane.b32.xlu0 %v3821, 127
          %v3823 = vpop.permute.xlu0 %3822
          %3824 = vrot.lane.b32.xlu0 %v3820, 127
          %v3825 = vpop.permute.xlu0 %3824
          %v3828 = vadd.f32 %v3810, %v3823
          %v3829 = vadd.f32 %v3811, %v3825
          %s3830 = sadd.s32 %s3344, 32
          %s3831 = sld [smem:[#allocation9 + %s3830]]
          %v3832 = vstv %s3831
          %v3833 = vmul.f32 %v3832, %v3759
          %v3834 = vmul.f32 %v3832, %v3760
          %v3837 = vrot.slane %v3833, 1
          %v3838 = vrot.slane %v3834, 1
          %v3839 = vsel %vm519, %v3837, %v3838
          %3840 = vrot.lane.b32.xlu0 %v3839, 126
          %v3841 = vpop.permute.xlu0 %3840
          %3842 = vrot.lane.b32.xlu0 %v3838, 126
          %v3843 = vpop.permute.xlu0 %3842
          %v3846 = vadd.f32 %v3828, %v3841
          %v3847 = vadd.f32 %v3829, %v3843
          %s3848 = sadd.s32 %s3344, 33
          %s3849 = sld [smem:[#allocation9 + %s3848]]
          %v3850 = vstv %s3849
          %v3851 = vmul.f32 %v3850, %v3759
          %v3852 = vmul.f32 %v3850, %v3760
          %v3855 = vrot.slane %v3851, 2
          %v3856 = vrot.slane %v3852, 2
          %v3857 = vsel %vm611, %v3855, %v3856
          %v3860 = vadd.f32 %v3846, %v3857
          %v3861 = vadd.f32 %v3847, %v3856
          %s3862 = sadd.s32 %s3344, 34
          %s3863 = sld [smem:[#allocation9 + %s3862]]
          %v3864 = vstv %s3863
          %v3865 = vmul.f32 %v3864, %v3759
          %v3866 = vmul.f32 %v3864, %v3760
          %v3869 = vrot.slane %v3865, 2
          %v3870 = vrot.slane %v3866, 2
          %v3871 = vsel %vm611, %v3869, %v3870
          %3872 = vrot.lane.b32.xlu0 %v3871, 127
          %v3873 = vpop.permute.xlu0 %3872
          %3874 = vrot.lane.b32.xlu0 %v3870, 127
          %v3875 = vpop.permute.xlu0 %3874
          %v3878 = vadd.f32 %v3860, %v3873
          %v3879 = vadd.f32 %v3861, %v3875
          %s3880 = sadd.s32 %s3344, 35
          %s3881 = sld [smem:[#allocation9 + %s3880]]
          %v3882 = vstv %s3881
          %v3883 = vmul.f32 %v3882, %v3759
          %v3884 = vmul.f32 %v3882, %v3760
          %v3887 = vrot.slane %v3883, 2
          %v3888 = vrot.slane %v3884, 2
          %v3889 = vsel %vm611, %v3887, %v3888
          %3890 = vrot.lane.b32.xlu0 %v3889, 126
          %v3891 = vpop.permute.xlu0 %3890
          %3892 = vrot.lane.b32.xlu0 %v3888, 126
          %v3893 = vpop.permute.xlu0 %3892
          %v3896 = vadd.f32 %v3878, %v3891
          %v3897 = vadd.f32 %v3879, %v3893
          %v3898 = vld [vmem:[%s2256] sm:$0xff]
          %v3899 = vld [vmem:[%s2256 + $0x8] sm:$0xff]
          %s3900 = sadd.s32 %s3344, 36
          %s3901 = sld [smem:[#allocation9 + %s3900]]
          %v3902 = vstv %s3901
          %v3903 = vmul.f32 %v3902, %v3898
          %v3904 = vmul.f32 %v3902, %v3899
          %v3905 = vadd.f32 %v3896, %v3903
          %v3906 = vadd.f32 %v3897, %v3904
          %s3907 = sadd.s32 %s3344, 37
          %s3908 = sld [smem:[#allocation9 + %s3907]]
          %v3909 = vstv %s3908
          %v3910 = vmul.f32 %v3909, %v3898
          %v3911 = vmul.f32 %v3909, %v3899
          %3914 = vrot.lane.b32.xlu0 %v3910, 127
          %v3915 = vpop.permute.xlu0 %3914
          %3916 = vrot.lane.b32.xlu0 %v3911, 127
          %v3917 = vpop.permute.xlu0 %3916
          %v3920 = vadd.f32 %v3905, %v3915
          %v3921 = vadd.f32 %v3906, %v3917
          %s3922 = sadd.s32 %s3344, 38
          %s3923 = sld [smem:[#allocation9 + %s3922]]
          %v3924 = vstv %s3923
          %v3925 = vmul.f32 %v3924, %v3898
          %v3926 = vmul.f32 %v3924, %v3899
          %3929 = vrot.lane.b32.xlu0 %v3925, 126
          %v3930 = vpop.permute.xlu0 %3929
          %3931 = vrot.lane.b32.xlu0 %v3926, 126
          %v3932 = vpop.permute.xlu0 %3931
          %v3935 = vadd.f32 %v3920, %v3930
          %v3936 = vadd.f32 %v3921, %v3932
          %s3937 = sadd.s32 %s3344, 39
          %s3938 = sld [smem:[#allocation9 + %s3937]]
          %v3939 = vstv %s3938
          %v3940 = vmul.f32 %v3939, %v3898
          %v3941 = vmul.f32 %v3939, %v3899
          %v3944 = vrot.slane %v3940, 1
          %v3945 = vrot.slane %v3941, 1
          %v3946 = vsel %vm519, %v3944, %v3945
          %v3949 = vadd.f32 %v3935, %v3946
          %v3950 = vadd.f32 %v3936, %v3945
          %s3951 = sadd.s32 %s3344, 40
          %s3952 = sld [smem:[#allocation9 + %s3951]]
          %v3953 = vstv %s3952
          %v3954 = vmul.f32 %v3953, %v3898
          %v3955 = vmul.f32 %v3953, %v3899
          %v3958 = vrot.slane %v3954, 1
          %v3959 = vrot.slane %v3955, 1
          %v3960 = vsel %vm519, %v3958, %v3959
          %3961 = vrot.lane.b32.xlu0 %v3960, 127
          %v3962 = vpop.permute.xlu0 %3961
          %3963 = vrot.lane.b32.xlu0 %v3959, 127
          %v3964 = vpop.permute.xlu0 %3963
          %v3967 = vadd.f32 %v3949, %v3962
          %v3968 = vadd.f32 %v3950, %v3964
          %s3969 = sadd.s32 %s3344, 41
          %s3970 = sld [smem:[#allocation9 + %s3969]]
          %v3971 = vstv %s3970
          %v3972 = vmul.f32 %v3971, %v3898
          %v3973 = vmul.f32 %v3971, %v3899
          %v3976 = vrot.slane %v3972, 1
          %v3977 = vrot.slane %v3973, 1
          %v3978 = vsel %vm519, %v3976, %v3977
          %3979 = vrot.lane.b32.xlu0 %v3978, 126
          %v3980 = vpop.permute.xlu0 %3979
          %3981 = vrot.lane.b32.xlu0 %v3977, 126
          %v3982 = vpop.permute.xlu0 %3981
          %v3985 = vadd.f32 %v3967, %v3980
          %v3986 = vadd.f32 %v3968, %v3982
          %s3987 = sadd.s32 %s3344, 42
          %s3988 = sld [smem:[#allocation9 + %s3987]]
          %v3989 = vstv %s3988
          %v3990 = vmul.f32 %v3989, %v3898
          %v3991 = vmul.f32 %v3989, %v3899
          %v3994 = vrot.slane %v3990, 2
          %v3995 = vrot.slane %v3991, 2
          %v3996 = vsel %vm611, %v3994, %v3995
          %v3999 = vadd.f32 %v3985, %v3996
          %v4000 = vadd.f32 %v3986, %v3995
          %s4001 = sadd.s32 %s3344, 43
          %s4002 = sld [smem:[#allocation9 + %s4001]]
          %v4003 = vstv %s4002
          %v4004 = vmul.f32 %v4003, %v3898
          %v4005 = vmul.f32 %v4003, %v3899
          %v4008 = vrot.slane %v4004, 2
          %v4009 = vrot.slane %v4005, 2
          %v4010 = vsel %vm611, %v4008, %v4009
          %4011 = vrot.lane.b32.xlu0 %v4010, 127
          %v4012 = vpop.permute.xlu0 %4011
          %4013 = vrot.lane.b32.xlu0 %v4009, 127
          %v4014 = vpop.permute.xlu0 %4013
          %v4017 = vadd.f32 %v3999, %v4012
          %v4018 = vadd.f32 %v4000, %v4014
          %s4019 = sadd.s32 %s3344, 44
          %s4020 = sld [smem:[#allocation9 + %s4019]]
          %v4021 = vstv %s4020
          %v4022 = vmul.f32 %v4021, %v3898
          %v4023 = vmul.f32 %v4021, %v3899
          %v4026 = vrot.slane %v4022, 2
          %v4027 = vrot.slane %v4023, 2
          %v4028 = vsel %vm611, %v4026, %v4027
          %4029 = vrot.lane.b32.xlu0 %v4028, 126
          %v4030 = vpop.permute.xlu0 %4029
          %4031 = vrot.lane.b32.xlu0 %v4027, 126
          %v4032 = vpop.permute.xlu0 %4031
          %v4035 = vadd.f32 %v4017, %v4030
          %v4036 = vadd.f32 %v4018, %v4032
          %v4037 = vld [vmem:[%s2615] sm:$0xff]
          %v4038 = vld [vmem:[%s2615 + $0x8] sm:$0xff]
          %s4039 = sadd.s32 %s3344, 45
          %s4040 = sld [smem:[#allocation9 + %s4039]]
          %v4041 = vstv %s4040
          %v4042 = vmul.f32 %v4041, %v4037
          %v4043 = vmul.f32 %v4041, %v4038
          %v4044 = vadd.f32 %v4035, %v4042
          %v4045 = vadd.f32 %v4036, %v4043
          %s4046 = sadd.s32 %s3344, 46
          %s4047 = sld [smem:[#allocation9 + %s4046]]
          %v4048 = vstv %s4047
          %v4049 = vmul.f32 %v4048, %v4037
          %v4050 = vmul.f32 %v4048, %v4038
          %4053 = vrot.lane.b32.xlu0 %v4049, 127
          %v4054 = vpop.permute.xlu0 %4053
          %4055 = vrot.lane.b32.xlu0 %v4050, 127
          %v4056 = vpop.permute.xlu0 %4055
          %v4059 = vadd.f32 %v4044, %v4054
          %v4060 = vadd.f32 %v4045, %v4056
          %s4061 = sadd.s32 %s3344, 47
          %s4062 = sld [smem:[#allocation9 + %s4061]]
          %v4063 = vstv %s4062
          %v4064 = vmul.f32 %v4063, %v4037
          %v4065 = vmul.f32 %v4063, %v4038
          %4068 = vrot.lane.b32.xlu0 %v4064, 126
          %v4069 = vpop.permute.xlu0 %4068
          %4070 = vrot.lane.b32.xlu0 %v4065, 126
          %v4071 = vpop.permute.xlu0 %4070
          %v4074 = vadd.f32 %v4059, %v4069
          %v4075 = vadd.f32 %v4060, %v4071
          %s4076 = sadd.s32 %s3344, 48
          %s4077 = sld [smem:[#allocation9 + %s4076]]
          %v4078 = vstv %s4077
          %v4079 = vmul.f32 %v4078, %v4037
          %v4080 = vmul.f32 %v4078, %v4038
          %v4083 = vrot.slane %v4079, 1
          %v4084 = vrot.slane %v4080, 1
          %v4085 = vsel %vm519, %v4083, %v4084
          %v4088 = vadd.f32 %v4074, %v4085
          %v4089 = vadd.f32 %v4075, %v4084
          %s4090 = sadd.s32 %s3344, 49
          %s4091 = sld [smem:[#allocation9 + %s4090]]
          %v4092 = vstv %s4091
          %v4093 = vmul.f32 %v4092, %v4037
          %v4094 = vmul.f32 %v4092, %v4038
          %v4097 = vrot.slane %v4093, 1
          %v4098 = vrot.slane %v4094, 1
          %v4099 = vsel %vm519, %v4097, %v4098
          %4100 = vrot.lane.b32.xlu0 %v4099, 127
          %v4101 = vpop.permute.xlu0 %4100
          %4102 = vrot.lane.b32.xlu0 %v4098, 127
          %v4103 = vpop.permute.xlu0 %4102
          %v4106 = vadd.f32 %v4088, %v4101
          %v4107 = vadd.f32 %v4089, %v4103
          %s4108 = sadd.s32 %s3344, 50
          %s4109 = sld [smem:[#allocation9 + %s4108]]
          %v4110 = vstv %s4109
          %v4111 = vmul.f32 %v4110, %v4037
          %v4112 = vmul.f32 %v4110, %v4038
          %v4115 = vrot.slane %v4111, 1
          %v4116 = vrot.slane %v4112, 1
          %v4117 = vsel %vm519, %v4115, %v4116
          %4118 = vrot.lane.b32.xlu0 %v4117, 126
          %v4119 = vpop.permute.xlu0 %4118
          %4120 = vrot.lane.b32.xlu0 %v4116, 126
          %v4121 = vpop.permute.xlu0 %4120
          %v4124 = vadd.f32 %v4106, %v4119
          %v4125 = vadd.f32 %v4107, %v4121
          %s4126 = sadd.s32 %s3344, 51
          %s4127 = sld [smem:[#allocation9 + %s4126]]
          %v4128 = vstv %s4127
          %v4129 = vmul.f32 %v4128, %v4037
          %v4130 = vmul.f32 %v4128, %v4038
          %v4133 = vrot.slane %v4129, 2
          %v4134 = vrot.slane %v4130, 2
          %v4135 = vsel %vm611, %v4133, %v4134
          %v4138 = vadd.f32 %v4124, %v4135
          %v4139 = vadd.f32 %v4125, %v4134
          %s4140 = sadd.s32 %s3344, 52
          %s4141 = sld [smem:[#allocation9 + %s4140]]
          %v4142 = vstv %s4141
          %v4143 = vmul.f32 %v4142, %v4037
          %v4144 = vmul.f32 %v4142, %v4038
          %v4147 = vrot.slane %v4143, 2
          %v4148 = vrot.slane %v4144, 2
          %v4149 = vsel %vm611, %v4147, %v4148
          %4150 = vrot.lane.b32.xlu0 %v4149, 127
          %v4151 = vpop.permute.xlu0 %4150
          %4152 = vrot.lane.b32.xlu0 %v4148, 127
          %v4153 = vpop.permute.xlu0 %4152
          %v4156 = vadd.f32 %v4138, %v4151
          %v4157 = vadd.f32 %v4139, %v4153
          %s4158 = sadd.s32 %s3344, 53
          %s4159 = sld [smem:[#allocation9 + %s4158]]
          %v4160 = vstv %s4159
          %v4161 = vmul.f32 %v4160, %v4037
          %v4162 = vmul.f32 %v4160, %v4038
          %v4165 = vrot.slane %v4161, 2
          %v4166 = vrot.slane %v4162, 2
          %v4167 = vsel %vm611, %v4165, %v4166
          %4168 = vrot.lane.b32.xlu0 %v4167, 126
          %v4169 = vpop.permute.xlu0 %4168
          %4170 = vrot.lane.b32.xlu0 %v4166, 126
          %v4171 = vpop.permute.xlu0 %4170
          %v4174 = vadd.f32 %v4156, %v4169
          %v4175 = vadd.f32 %v4157, %v4171
          %v4176 = vld [vmem:[%s2974] sm:$0xff]
          %v4177 = vld [vmem:[%s2974 + $0x8] sm:$0xff]
          %s4178 = sadd.s32 %s3344, 54
          %s4179 = sld [smem:[#allocation9 + %s4178]]
          %v4180 = vstv %s4179
          %v4181 = vmul.f32 %v4180, %v4176
          %v4182 = vmul.f32 %v4180, %v4177
          %v4183 = vadd.f32 %v4174, %v4181
          %v4184 = vadd.f32 %v4175, %v4182
          %s4185 = sadd.s32 %s3344, 55
          %s4186 = sld [smem:[#allocation9 + %s4185]]
          %v4187 = vstv %s4186
          %v4188 = vmul.f32 %v4187, %v4176
          %v4189 = vmul.f32 %v4187, %v4177
          %4192 = vrot.lane.b32.xlu0 %v4188, 127
          %v4193 = vpop.permute.xlu0 %4192
          %4194 = vrot.lane.b32.xlu0 %v4189, 127
          %v4195 = vpop.permute.xlu0 %4194
          %v4198 = vadd.f32 %v4183, %v4193
          %v4199 = vadd.f32 %v4184, %v4195
          %s4200 = sadd.s32 %s3344, 56
          %s4201 = sld [smem:[#allocation9 + %s4200]]
          %v4202 = vstv %s4201
          %v4203 = vmul.f32 %v4202, %v4176
          %v4204 = vmul.f32 %v4202, %v4177
          %4207 = vrot.lane.b32.xlu0 %v4203, 126
          %v4208 = vpop.permute.xlu0 %4207
          %4209 = vrot.lane.b32.xlu0 %v4204, 126
          %v4210 = vpop.permute.xlu0 %4209
          %v4213 = vadd.f32 %v4198, %v4208
          %v4214 = vadd.f32 %v4199, %v4210
          %s4215 = sadd.s32 %s3344, 57
          %s4216 = sld [smem:[#allocation9 + %s4215]]
          %v4217 = vstv %s4216
          %v4218 = vmul.f32 %v4217, %v4176
          %v4219 = vmul.f32 %v4217, %v4177
          %v4222 = vrot.slane %v4218, 1
          %v4223 = vrot.slane %v4219, 1
          %v4224 = vsel %vm519, %v4222, %v4223
          %v4227 = vadd.f32 %v4213, %v4224
          %v4228 = vadd.f32 %v4214, %v4223
          %s4229 = sadd.s32 %s3344, 58
          %s4230 = sld [smem:[#allocation9 + %s4229]]
          %v4231 = vstv %s4230
          %v4232 = vmul.f32 %v4231, %v4176
          %v4233 = vmul.f32 %v4231, %v4177
          %v4236 = vrot.slane %v4232, 1
          %v4237 = vrot.slane %v4233, 1
          %v4238 = vsel %vm519, %v4236, %v4237
          %4239 = vrot.lane.b32.xlu0 %v4238, 127
          %v4240 = vpop.permute.xlu0 %4239
          %4241 = vrot.lane.b32.xlu0 %v4237, 127
          %v4242 = vpop.permute.xlu0 %4241
          %v4245 = vadd.f32 %v4227, %v4240
          %v4246 = vadd.f32 %v4228, %v4242
          %s4247 = sadd.s32 %s3344, 59
          %s4248 = sld [smem:[#allocation9 + %s4247]]
          %v4249 = vstv %s4248
          %v4250 = vmul.f32 %v4249, %v4176
          %v4251 = vmul.f32 %v4249, %v4177
          %v4254 = vrot.slane %v4250, 1
          %v4255 = vrot.slane %v4251, 1
          %v4256 = vsel %vm519, %v4254, %v4255
          %4257 = vrot.lane.b32.xlu0 %v4256, 126
          %v4258 = vpop.permute.xlu0 %4257
          %4259 = vrot.lane.b32.xlu0 %v4255, 126
          %v4260 = vpop.permute.xlu0 %4259
          %v4263 = vadd.f32 %v4245, %v4258
          %v4264 = vadd.f32 %v4246, %v4260
          %s4265 = sadd.s32 %s3344, 60
          %s4266 = sld [smem:[#allocation9 + %s4265]]
          %v4267 = vstv %s4266
          %v4268 = vmul.f32 %v4267, %v4176
          %v4269 = vmul.f32 %v4267, %v4177
          %v4272 = vrot.slane %v4268, 2
          %v4273 = vrot.slane %v4269, 2
          %v4274 = vsel %vm611, %v4272, %v4273
          %v4277 = vadd.f32 %v4263, %v4274
          %v4278 = vadd.f32 %v4264, %v4273
          %s4279 = sadd.s32 %s3344, 61
          %s4280 = sld [smem:[#allocation9 + %s4279]]
          %v4281 = vstv %s4280
          %v4282 = vmul.f32 %v4281, %v4176
          %v4283 = vmul.f32 %v4281, %v4177
          %v4286 = vrot.slane %v4282, 2
          %v4287 = vrot.slane %v4283, 2
          %v4288 = vsel %vm611, %v4286, %v4287
          %4289 = vrot.lane.b32.xlu0 %v4288, 127
          %v4290 = vpop.permute.xlu0 %4289
          %4291 = vrot.lane.b32.xlu0 %v4287, 127
          %v4292 = vpop.permute.xlu0 %4291
          %v4295 = vadd.f32 %v4277, %v4290
          %v4296 = vadd.f32 %v4278, %v4292
          %s4297 = sadd.s32 %s3344, 62
          %s4298 = sld [smem:[#allocation9 + %s4297]]
          %v4299 = vstv %s4298
          %v4300 = vmul.f32 %v4299, %v4176
          %v4301 = vmul.f32 %v4299, %v4177
          %v4304 = vrot.slane %v4300, 2
          %v4305 = vrot.slane %v4301, 2
          %v4306 = vsel %vm611, %v4304, %v4305
          %4307 = vrot.lane.b32.xlu0 %v4306, 126
          %v4308 = vpop.permute.xlu0 %4307
          %4309 = vrot.lane.b32.xlu0 %v4305, 126
          %v4310 = vpop.permute.xlu0 %4309
          %v4313 = vadd.f32 %v4295, %v4308
          %v4314 = vadd.f32 %v4296, %v4310
          %v4315 = vld [vmem:[%s3333] sm:$0xff]
          %v4316 = vld [vmem:[%s3333 + $0x8] sm:$0xff]
          %s4317 = sadd.s32 %s3344, 63
          %s4318 = sld [smem:[#allocation9 + %s4317]]
          %v4319 = vstv %s4318
          %v4320 = vmul.f32 %v4319, %v4315
          %v4321 = vmul.f32 %v4319, %v4316
          %v4322 = vadd.f32 %v4313, %v4320
          %v4323 = vadd.f32 %v4314, %v4321
          %s4324 = sadd.s32 %s3344, 64
          %s4325 = sld [smem:[#allocation9 + %s4324]]
          %v4326 = vstv %s4325
          %v4327 = vmul.f32 %v4326, %v4315
          %v4328 = vmul.f32 %v4326, %v4316
          %4331 = vrot.lane.b32.xlu0 %v4327, 127
          %v4332 = vpop.permute.xlu0 %4331
          %4333 = vrot.lane.b32.xlu0 %v4328, 127
          %v4334 = vpop.permute.xlu0 %4333
          %v4337 = vadd.f32 %v4322, %v4332
          %v4338 = vadd.f32 %v4323, %v4334
          %s4339 = sadd.s32 %s3344, 65
          %s4340 = sld [smem:[#allocation9 + %s4339]]
          %v4341 = vstv %s4340
          %v4342 = vmul.f32 %v4341, %v4315
          %v4343 = vmul.f32 %v4341, %v4316
          %4346 = vrot.lane.b32.xlu0 %v4342, 126
          %v4347 = vpop.permute.xlu0 %4346
          %4348 = vrot.lane.b32.xlu0 %v4343, 126
          %v4349 = vpop.permute.xlu0 %4348
          %v4352 = vadd.f32 %v4337, %v4347
          %v4353 = vadd.f32 %v4338, %v4349
          %s4354 = sadd.s32 %s3344, 66
          %s4355 = sld [smem:[#allocation9 + %s4354]]
          %v4356 = vstv %s4355
          %v4357 = vmul.f32 %v4356, %v4315
          %v4358 = vmul.f32 %v4356, %v4316
          %v4361 = vrot.slane %v4357, 1
          %v4362 = vrot.slane %v4358, 1
          %v4363 = vsel %vm519, %v4361, %v4362
          %v4366 = vadd.f32 %v4352, %v4363
          %v4367 = vadd.f32 %v4353, %v4362
          %s4368 = sadd.s32 %s3344, 67
          %s4369 = sld [smem:[#allocation9 + %s4368]]
          %v4370 = vstv %s4369
          %v4371 = vmul.f32 %v4370, %v4315
          %v4372 = vmul.f32 %v4370, %v4316
          %v4375 = vrot.slane %v4371, 1
          %v4376 = vrot.slane %v4372, 1
          %v4377 = vsel %vm519, %v4375, %v4376
          %4378 = vrot.lane.b32.xlu0 %v4377, 127
          %v4379 = vpop.permute.xlu0 %4378
          %4380 = vrot.lane.b32.xlu0 %v4376, 127
          %v4381 = vpop.permute.xlu0 %4380
          %v4384 = vadd.f32 %v4366, %v4379
          %v4385 = vadd.f32 %v4367, %v4381
          %s4386 = sadd.s32 %s3344, 68
          %s4387 = sld [smem:[#allocation9 + %s4386]]
          %v4388 = vstv %s4387
          %v4389 = vmul.f32 %v4388, %v4315
          %v4390 = vmul.f32 %v4388, %v4316
          %v4393 = vrot.slane %v4389, 1
          %v4394 = vrot.slane %v4390, 1
          %v4395 = vsel %vm519, %v4393, %v4394
          %4396 = vrot.lane.b32.xlu0 %v4395, 126
          %v4397 = vpop.permute.xlu0 %4396
          %4398 = vrot.lane.b32.xlu0 %v4394, 126
          %v4399 = vpop.permute.xlu0 %4398
          %v4402 = vadd.f32 %v4384, %v4397
          %v4403 = vadd.f32 %v4385, %v4399
          %s4404 = sadd.s32 %s3344, 69
          %s4405 = sld [smem:[#allocation9 + %s4404]]
          %v4406 = vstv %s4405
          %v4407 = vmul.f32 %v4406, %v4315
          %v4408 = vmul.f32 %v4406, %v4316
          %v4411 = vrot.slane %v4407, 2
          %v4412 = vrot.slane %v4408, 2
          %v4413 = vsel %vm611, %v4411, %v4412
          %v4416 = vadd.f32 %v4402, %v4413
          %v4417 = vadd.f32 %v4403, %v4412
          %s4418 = sadd.s32 %s3344, 70
          %s4419 = sld [smem:[#allocation9 + %s4418]]
          %v4420 = vstv %s4419
          %v4421 = vmul.f32 %v4420, %v4315
          %v4422 = vmul.f32 %v4420, %v4316
          %v4425 = vrot.slane %v4421, 2
          %v4426 = vrot.slane %v4422, 2
          %v4427 = vsel %vm611, %v4425, %v4426
          %4428 = vrot.lane.b32.xlu0 %v4427, 127
          %v4429 = vpop.permute.xlu0 %4428
          %4430 = vrot.lane.b32.xlu0 %v4426, 127
          %v4431 = vpop.permute.xlu0 %4430
          %v4434 = vadd.f32 %v4416, %v4429
          %v4435 = vadd.f32 %v4417, %v4431
          %s4436 = sadd.s32 %s3344, 71
          %s4437 = sld [smem:[#allocation9 + %s4436]]
          %v4438 = vstv %s4437
          %v4439 = vmul.f32 %v4438, %v4315
          %v4440 = vmul.f32 %v4438, %v4316
          %v4443 = vrot.slane %v4439, 2
          %v4444 = vrot.slane %v4440, 2
          %v4445 = vsel %vm611, %v4443, %v4444
          %4446 = vrot.lane.b32.xlu0 %v4445, 126
          %v4447 = vpop.permute.xlu0 %4446
          %4448 = vrot.lane.b32.xlu0 %v4444, 126
          %v4449 = vpop.permute.xlu0 %4448
          %v4452 = vadd.f32 %v4434, %v4447
          %v4453 = vadd.f32 %v4435, %v4449
          %s4454 = sld [smem:[#allocation10 + %s3337]]
          %v4455 = vstv %s4454
          %v4456 = vadd.f32 %v4452, %v4455
          %v4457 = vadd.f32 %v4453, %v4455
          %v4458 = vmax.f32 %v4456, 0.0
          %v4459 = vmax.f32 %v4457, 0.0
          %v4462 = vrot.slane %v4458, 1
          %v4463 = vrot.slane %v4459, 1
          %v4464 = vsel %vm519, %v4462, %v4463
          %v4467 = vmax.f32 %v4458, %v4464
          %v4468 = vmax.f32 %v4459, %v4463
          %4471 = vrot.lane.b32.xlu0 %v4467, 127
          %v4472 = vpop.permute.xlu0 %4471
          %4473 = vrot.lane.b32.xlu0 %v4468, 127
          %v4474 = vpop.permute.xlu0 %4473
          %v4477 = vmax.f32 %v4467, %v4472
          %v4478 = vmax.f32 %v4468, %v4474
          %vm4479 = vcmask 105472
          %v4481 = vsel %vm4479, %v4477, 0
          %v4484 = vsel %vm4479, %v4478, 0
          %vm4486 = vcmask 1044480
          %v4488 = vsel %vm4486, %v450, 0
          %4490 = vmatpush.msra.mxu0 0.0
          %4491 = vmatpush.msra.mxu0 0.0
          %4492 = vmatpush.msra.mxu0 0.0
          %4493 = vmatpush.msra.mxu0 0.0
          %4494 = vmatpush.msra.mxu0 0.0
          %4495 = vmatpush.msra.mxu0 0.0
          %4496 = vmatpush.msra.mxu0 0.0
          %4497 = vmatpush.msra.mxu0 0.0
          %4498 = vmatpush.msra.mxu0 0.0
          %4499 = vmatpush.msra.mxu0 0.0
          %4500 = vmatpush.msra.mxu0 0.0
          %4501 = vmatpush.msra.mxu0 0.0
          %4502 = vmatpush.msra.mxu0 0.0
          %4503 = vmatpush.msra.mxu0 0.0
          %4504 = vmatpush.msra.mxu0 %v4488
          %4505 = vmatpush.msra.mxu0 %v449
          %4506 = vmatmul.f32.gmra.mxu0 %v4481
          %v4507 = vpop.f32.mrf.mxu0
          %v4508 = vadd.f32 0.0, %v4507
          %4509 = vmatmul.f32.gmra.mxu0 %v4484
          %v4510 = vpop.f32.mrf.mxu0
          %v4511 = vadd.f32 0.0, %v4510
          %4512 = vdwg.mxu0
          %v4514 = vsel %vm4479, %v448, 0
          %v4517 = vsel %vm4486, %v4511, 0
          %4519 = vmatpush.msra.mxu0 0.0
          %4520 = vmatpush.msra.mxu0 0.0
          %4521 = vmatpush.msra.mxu0 0.0
          %4522 = vmatpush.msra.mxu0 0.0
          %4523 = vmatpush.msra.mxu0 0.0
          %4524 = vmatpush.msra.mxu0 0.0
          %4525 = vmatpush.msra.mxu0 0.0
          %4526 = vmatpush.msra.mxu0 0.0
          %4527 = vmatpush.msra.mxu0 0.0
          %4528 = vmatpush.msra.mxu0 0.0
          %4529 = vmatpush.msra.mxu0 0.0
          %4530 = vmatpush.msra.mxu0 0.0
          %4531 = vmatpush.msra.mxu0 0.0
          %4532 = vmatpush.msra.mxu0 0.0
          %4533 = vmatpush.msra.mxu0 %v4517
          %4534 = vmatpush.msra.mxu0 %v4508
          %4535 = vmatmul.f32.gmra.mxu0 %v4514
          %v4536 = vpop.f32.mrf.mxu0
          %v4537 = vadd.f32 0.0, %v4536
          %4538 = vdwg.mxu0
          %s4539 = smul.u32 %s3337, 8
          %s4540 = scalar_lea.vmem [#allocation3], %s4539
          %vm4541 = vcmask 55296
          %4542 = vst.msk [vmem:[%s4540] sm:$0x7f] %vm4541, %v4537
        $region85: #{cnn_forward.1} parent=63 // loop_footer
          %s3341 = sadd.s32 1, %s3337
        $region86: #{cnn_forward.1} parent=63 // loop_footer_branch
          %3336 = sbr.rel target = $region82
        $region87: #{cnn_forward.1} parent=63 // loop_exit
          _
        %v4543 = vld [vmem:[%s10] sm:$0x1]
        %v4544 = vld [vmem:[#allocation3] sm:$0x7f]
        %v4545 = vld [vmem:[%s9] sm:$0x7f]
        %vm4546 = vcmask 56320
        %v4548 = vsel %vm4546, %v4544, 0
        %v4551 = vsel %vm519, %v4545, 0
        %4553 = vmatpush.msra.mxu0 0.0
        %4554 = vmatpush.msra.mxu0 0.0
        %4555 = vmatpush.msra.mxu0 0.0
        %4556 = vmatpush.msra.mxu0 0.0
        %4557 = vmatpush.msra.mxu0 0.0
        %4558 = vmatpush.msra.mxu0 0.0
        %4559 = vmatpush.msra.mxu0 0.0
        %4560 = vmatpush.msra.mxu0 0.0
        %4561 = vmatpush.msra.mxu0 0.0
        %4562 = vmatpush.msra.mxu0 0.0
        %4563 = vmatpush.msra.mxu0 0.0
        %4564 = vmatpush.msra.mxu0 0.0
        %4565 = vmatpush.msra.mxu0 0.0
        %4566 = vmatpush.msra.mxu0 0.0
        %4567 = vmatpush.msra.mxu0 0.0
        %4568 = vmatpush.msra.mxu0 %v4551
        %4569 = vmatmul.f32.gmra.mxu0 %v4548
        %v4570 = vpop.f32.mrf.mxu0
        %v4571 = vadd.f32 0.0, %v4570
        %4572 = vdwg.mxu0
        %v4573 = vadd.f32 %v4543, %v4571
        %4575 = vst [vmem:[#allocation1] sm:$0xff] %v4571
        %s4576 = scalar_lea.vmem [#allocation1], 1
        %v4577 = vld [vmem:[%s4576] ss:$9 sm:$0xff]
        %4578 = vrot.lane.b32.xlu0 %v4577, 118
        %v4579 = vpop.permute.xlu0 %4578
        %v4581 = vadd.f32 %v4573, %v4579
        %4582 = vst [vmem:[#allocation1] sm:$0xff] %v4571
        %s4583 = scalar_lea.vmem [#allocation1], 2
        %v4584 = vld [vmem:[%s4583] ss:$9 sm:$0xff]
        %4585 = vrot.lane.b32.xlu0 %v4584, 108
        %v4586 = vpop.permute.xlu0 %4585
        %v4588 = vadd.f32 %v4581, %v4586
        %4589 = vst [vmem:[#allocation1] sm:$0xff] %v4571
        %s4590 = scalar_lea.vmem [#allocation1], 3
        %v4591 = vld [vmem:[%s4590] ss:$9 sm:$0xff]
        %4592 = vrot.lane.b32.xlu0 %v4591, 98
        %v4593 = vpop.permute.xlu0 %4592
        %v4595 = vadd.f32 %v4588, %v4593
        %4596 = vst [vmem:[#allocation1] sm:$0xff] %v4571
        %s4597 = scalar_lea.vmem [#allocation1], 4
        %v4598 = vld [vmem:[%s4597] ss:$9 sm:$0xff]
        %4599 = vrot.lane.b32.xlu0 %v4598, 88
        %v4600 = vpop.permute.xlu0 %4599
        %v4602 = vadd.f32 %v4595, %v4600
        %4603 = vst [vmem:[#allocation1] sm:$0xff] %v4571
        %s4604 = scalar_lea.vmem [#allocation1], 5
        %v4605 = vld [vmem:[%s4604] ss:$9 sm:$0xff]
        %4606 = vrot.lane.b32.xlu0 %v4605, 78
        %v4607 = vpop.permute.xlu0 %4606
        %v4609 = vadd.f32 %v4602, %v4607
        %4610 = vst [vmem:[#allocation1] sm:$0xff] %v4571
        %s4611 = scalar_lea.vmem [#allocation1], 6
        %v4612 = vld [vmem:[%s4611] ss:$9 sm:$0xff]
        %4613 = vrot.lane.b32.xlu0 %v4612, 68
        %v4614 = vpop.permute.xlu0 %4613
        %v4616 = vadd.f32 %v4609, %v4614
        %s4617 = scalar_lea.vmem [#allocation3], 8
        %v4618 = vld [vmem:[%s4617] sm:$0x7f]
        %s4619 = scalar_lea.vmem %s9, 8
        %v4620 = vld [vmem:[%s4619] sm:$0x7f]
        %v4622 = vsel %vm4546, %v4618, 0
        %v4625 = vsel %vm519, %v4620, 0
        %4627 = vmatpush.msra.mxu0 0.0
        %4628 = vmatpush.msra.mxu0 0.0
        %4629 = vmatpush.msra.mxu0 0.0
        %4630 = vmatpush.msra.mxu0 0.0
        %4631 = vmatpush.msra.mxu0 0.0
        %4632 = vmatpush.msra.mxu0 0.0
        %4633 = vmatpush.msra.mxu0 0.0
        %4634 = vmatpush.msra.mxu0 0.0
        %4635 = vmatpush.msra.mxu0 0.0
        %4636 = vmatpush.msra.mxu0 0.0
        %4637 = vmatpush.msra.mxu0 0.0
        %4638 = vmatpush.msra.mxu0 0.0
        %4639 = vmatpush.msra.mxu0 0.0
        %4640 = vmatpush.msra.mxu0 0.0
        %4641 = vmatpush.msra.mxu0 0.0
        %4642 = vmatpush.msra.mxu0 %v4625
        %4643 = vmatmul.f32.gmra.mxu0 %v4622
        %v4644 = vpop.f32.mrf.mxu0
        %v4645 = vadd.f32 0.0, %v4644
        %4646 = vdwg.mxu0
        %v4647 = vadd.f32 %v4616, %v4645
        %4649 = vst [vmem:[#allocation1] sm:$0xff] %v4645
        %s4650 = scalar_lea.vmem [#allocation1], 1
        %v4651 = vld [vmem:[%s4650] ss:$9 sm:$0xff]
        %4652 = vrot.lane.b32.xlu0 %v4651, 118
        %v4653 = vpop.permute.xlu0 %4652
        %v4655 = vadd.f32 %v4647, %v4653
        %4656 = vst [vmem:[#allocation1] sm:$0xff] %v4645
        %s4657 = scalar_lea.vmem [#allocation1], 2
        %v4658 = vld [vmem:[%s4657] ss:$9 sm:$0xff]
        %4659 = vrot.lane.b32.xlu0 %v4658, 108
        %v4660 = vpop.permute.xlu0 %4659
        %v4662 = vadd.f32 %v4655, %v4660
        %4663 = vst [vmem:[#allocation1] sm:$0xff] %v4645
        %s4664 = scalar_lea.vmem [#allocation1], 3
        %v4665 = vld [vmem:[%s4664] ss:$9 sm:$0xff]
        %4666 = vrot.lane.b32.xlu0 %v4665, 98
        %v4667 = vpop.permute.xlu0 %4666
        %v4669 = vadd.f32 %v4662, %v4667
        %4670 = vst [vmem:[#allocation1] sm:$0xff] %v4645
        %s4671 = scalar_lea.vmem [#allocation1], 4
        %v4672 = vld [vmem:[%s4671] ss:$9 sm:$0xff]
        %4673 = vrot.lane.b32.xlu0 %v4672, 88
        %v4674 = vpop.permute.xlu0 %4673
        %v4676 = vadd.f32 %v4669, %v4674
        %4677 = vst [vmem:[#allocation1] sm:$0xff] %v4645
        %s4678 = scalar_lea.vmem [#allocation1], 5
        %v4679 = vld [vmem:[%s4678] ss:$9 sm:$0xff]
        %4680 = vrot.lane.b32.xlu0 %v4679, 78
        %v4681 = vpop.permute.xlu0 %4680
        %v4683 = vadd.f32 %v4676, %v4681
        %4684 = vst [vmem:[#allocation1] sm:$0xff] %v4645
        %s4685 = scalar_lea.vmem [#allocation1], 6
        %v4686 = vld [vmem:[%s4685] ss:$9 sm:$0xff]
        %4687 = vrot.lane.b32.xlu0 %v4686, 68
        %v4688 = vpop.permute.xlu0 %4687
        %v4690 = vadd.f32 %v4683, %v4688
        %s4691 = scalar_lea.vmem [#allocation3], 16
        %v4692 = vld [vmem:[%s4691] sm:$0x7f]
        %s4693 = scalar_lea.vmem %s9, 16
        %v4694 = vld [vmem:[%s4693] sm:$0x7f]
        %v4696 = vsel %vm4546, %v4692, 0
        %v4699 = vsel %vm519, %v4694, 0
        %4701 = vmatpush.msra.mxu0 0.0
        %4702 = vmatpush.msra.mxu0 0.0
        %4703 = vmatpush.msra.mxu0 0.0
        %4704 = vmatpush.msra.mxu0 0.0
        %4705 = vmatpush.msra.mxu0 0.0
        %4706 = vmatpush.msra.mxu0 0.0
        %4707 = vmatpush.msra.mxu0 0.0
        %4708 = vmatpush.msra.mxu0 0.0
        %4709 = vmatpush.msra.mxu0 0.0
        %4710 = vmatpush.msra.mxu0 0.0
        %4711 = vmatpush.msra.mxu0 0.0
        %4712 = vmatpush.msra.mxu0 0.0
        %4713 = vmatpush.msra.mxu0 0.0
        %4714 = vmatpush.msra.mxu0 0.0
        %4715 = vmatpush.msra.mxu0 0.0
        %4716 = vmatpush.msra.mxu0 %v4699
        %4717 = vmatmul.f32.gmra.mxu0 %v4696
        %v4718 = vpop.f32.mrf.mxu0
        %v4719 = vadd.f32 0.0, %v4718
        %4720 = vdwg.mxu0
        %v4721 = vadd.f32 %v4690, %v4719
        %4723 = vst [vmem:[#allocation1] sm:$0xff] %v4719
        %s4724 = scalar_lea.vmem [#allocation1], 1
        %v4725 = vld [vmem:[%s4724] ss:$9 sm:$0xff]
        %4726 = vrot.lane.b32.xlu0 %v4725, 118
        %v4727 = vpop.permute.xlu0 %4726
        %v4729 = vadd.f32 %v4721, %v4727
        %4730 = vst [vmem:[#allocation1] sm:$0xff] %v4719
        %s4731 = scalar_lea.vmem [#allocation1], 2
        %v4732 = vld [vmem:[%s4731] ss:$9 sm:$0xff]
        %4733 = vrot.lane.b32.xlu0 %v4732, 108
        %v4734 = vpop.permute.xlu0 %4733
        %v4736 = vadd.f32 %v4729, %v4734
        %4737 = vst [vmem:[#allocation1] sm:$0xff] %v4719
        %s4738 = scalar_lea.vmem [#allocation1], 3
        %v4739 = vld [vmem:[%s4738] ss:$9 sm:$0xff]
        %4740 = vrot.lane.b32.xlu0 %v4739, 98
        %v4741 = vpop.permute.xlu0 %4740
        %v4743 = vadd.f32 %v4736, %v4741
        %4744 = vst [vmem:[#allocation1] sm:$0xff] %v4719
        %s4745 = scalar_lea.vmem [#allocation1], 4
        %v4746 = vld [vmem:[%s4745] ss:$9 sm:$0xff]
        %4747 = vrot.lane.b32.xlu0 %v4746, 88
        %v4748 = vpop.permute.xlu0 %4747
        %v4750 = vadd.f32 %v4743, %v4748
        %4751 = vst [vmem:[#allocation1] sm:$0xff] %v4719
        %s4752 = scalar_lea.vmem [#allocation1], 5
        %v4753 = vld [vmem:[%s4752] ss:$9 sm:$0xff]
        %4754 = vrot.lane.b32.xlu0 %v4753, 78
        %v4755 = vpop.permute.xlu0 %4754
        %v4757 = vadd.f32 %v4750, %v4755
        %4758 = vst [vmem:[#allocation1] sm:$0xff] %v4719
        %s4759 = scalar_lea.vmem [#allocation1], 6
        %v4760 = vld [vmem:[%s4759] ss:$9 sm:$0xff]
        %4761 = vrot.lane.b32.xlu0 %v4760, 68
        %v4762 = vpop.permute.xlu0 %4761
        %v4764 = vadd.f32 %v4757, %v4762
        %s4765 = scalar_lea.vmem [#allocation3], 24
        %v4766 = vld [vmem:[%s4765] sm:$0x7f]
        %s4767 = scalar_lea.vmem %s9, 24
        %v4768 = vld [vmem:[%s4767] sm:$0x7f]
        %v4770 = vsel %vm4546, %v4766, 0
        %v4773 = vsel %vm519, %v4768, 0
        %4775 = vmatpush.msra.mxu0 0.0
        %4776 = vmatpush.msra.mxu0 0.0
        %4777 = vmatpush.msra.mxu0 0.0
        %4778 = vmatpush.msra.mxu0 0.0
        %4779 = vmatpush.msra.mxu0 0.0
        %4780 = vmatpush.msra.mxu0 0.0
        %4781 = vmatpush.msra.mxu0 0.0
        %4782 = vmatpush.msra.mxu0 0.0
        %4783 = vmatpush.msra.mxu0 0.0
        %4784 = vmatpush.msra.mxu0 0.0
        %4785 = vmatpush.msra.mxu0 0.0
        %4786 = vmatpush.msra.mxu0 0.0
        %4787 = vmatpush.msra.mxu0 0.0
        %4788 = vmatpush.msra.mxu0 0.0
        %4789 = vmatpush.msra.mxu0 0.0
        %4790 = vmatpush.msra.mxu0 %v4773
        %4791 = vmatmul.f32.gmra.mxu0 %v4770
        %v4792 = vpop.f32.mrf.mxu0
        %v4793 = vadd.f32 0.0, %v4792
        %4794 = vdwg.mxu0
        %v4795 = vadd.f32 %v4764, %v4793
        %4797 = vst [vmem:[#allocation1] sm:$0xff] %v4793
        %s4798 = scalar_lea.vmem [#allocation1], 1
        %v4799 = vld [vmem:[%s4798] ss:$9 sm:$0xff]
        %4800 = vrot.lane.b32.xlu0 %v4799, 118
        %v4801 = vpop.permute.xlu0 %4800
        %v4803 = vadd.f32 %v4795, %v4801
        %4804 = vst [vmem:[#allocation1] sm:$0xff] %v4793
        %s4805 = scalar_lea.vmem [#allocation1], 2
        %v4806 = vld [vmem:[%s4805] ss:$9 sm:$0xff]
        %4807 = vrot.lane.b32.xlu0 %v4806, 108
        %v4808 = vpop.permute.xlu0 %4807
        %v4810 = vadd.f32 %v4803, %v4808
        %4811 = vst [vmem:[#allocation1] sm:$0xff] %v4793
        %s4812 = scalar_lea.vmem [#allocation1], 3
        %v4813 = vld [vmem:[%s4812] ss:$9 sm:$0xff]
        %4814 = vrot.lane.b32.xlu0 %v4813, 98
        %v4815 = vpop.permute.xlu0 %4814
        %v4817 = vadd.f32 %v4810, %v4815
        %4818 = vst [vmem:[#allocation1] sm:$0xff] %v4793
        %s4819 = scalar_lea.vmem [#allocation1], 4
        %v4820 = vld [vmem:[%s4819] ss:$9 sm:$0xff]
        %4821 = vrot.lane.b32.xlu0 %v4820, 88
        %v4822 = vpop.permute.xlu0 %4821
        %v4824 = vadd.f32 %v4817, %v4822
        %4825 = vst [vmem:[#allocation1] sm:$0xff] %v4793
        %s4826 = scalar_lea.vmem [#allocation1], 5
        %v4827 = vld [vmem:[%s4826] ss:$9 sm:$0xff]
        %4828 = vrot.lane.b32.xlu0 %v4827, 78
        %v4829 = vpop.permute.xlu0 %4828
        %v4831 = vadd.f32 %v4824, %v4829
        %4832 = vst [vmem:[#allocation1] sm:$0xff] %v4793
        %s4833 = scalar_lea.vmem [#allocation1], 6
        %v4834 = vld [vmem:[%s4833] ss:$9 sm:$0xff]
        %4835 = vrot.lane.b32.xlu0 %v4834, 68
        %v4836 = vpop.permute.xlu0 %4835
        %v4838 = vadd.f32 %v4831, %v4836
        %s4839 = scalar_lea.vmem [#allocation3], 32
        %v4840 = vld [vmem:[%s4839] sm:$0x7f]
        %s4841 = scalar_lea.vmem %s9, 32
        %v4842 = vld [vmem:[%s4841] sm:$0x7f]
        %v4844 = vsel %vm4546, %v4840, 0
        %v4847 = vsel %vm519, %v4842, 0
        %4849 = vmatpush.msra.mxu0 0.0
        %4850 = vmatpush.msra.mxu0 0.0
        %4851 = vmatpush.msra.mxu0 0.0
        %4852 = vmatpush.msra.mxu0 0.0
        %4853 = vmatpush.msra.mxu0 0.0
        %4854 = vmatpush.msra.mxu0 0.0
        %4855 = vmatpush.msra.mxu0 0.0
        %4856 = vmatpush.msra.mxu0 0.0
        %4857 = vmatpush.msra.mxu0 0.0
        %4858 = vmatpush.msra.mxu0 0.0
        %4859 = vmatpush.msra.mxu0 0.0
        %4860 = vmatpush.msra.mxu0 0.0
        %4861 = vmatpush.msra.mxu0 0.0
        %4862 = vmatpush.msra.mxu0 0.0
        %4863 = vmatpush.msra.mxu0 0.0
        %4864 = vmatpush.msra.mxu0 %v4847
        %4865 = vmatmul.f32.gmra.mxu0 %v4844
        %v4866 = vpop.f32.mrf.mxu0
        %v4867 = vadd.f32 0.0, %v4866
        %4868 = vdwg.mxu0
        %v4869 = vadd.f32 %v4838, %v4867
        %4871 = vst [vmem:[#allocation1] sm:$0xff] %v4867
        %s4872 = scalar_lea.vmem [#allocation1], 1
        %v4873 = vld [vmem:[%s4872] ss:$9 sm:$0xff]
        %4874 = vrot.lane.b32.xlu0 %v4873, 118
        %v4875 = vpop.permute.xlu0 %4874
        %v4877 = vadd.f32 %v4869, %v4875
        %4878 = vst [vmem:[#allocation1] sm:$0xff] %v4867
        %s4879 = scalar_lea.vmem [#allocation1], 2
        %v4880 = vld [vmem:[%s4879] ss:$9 sm:$0xff]
        %4881 = vrot.lane.b32.xlu0 %v4880, 108
        %v4882 = vpop.permute.xlu0 %4881
        %v4884 = vadd.f32 %v4877, %v4882
        %4885 = vst [vmem:[#allocation1] sm:$0xff] %v4867
        %s4886 = scalar_lea.vmem [#allocation1], 3
        %v4887 = vld [vmem:[%s4886] ss:$9 sm:$0xff]
        %4888 = vrot.lane.b32.xlu0 %v4887, 98
        %v4889 = vpop.permute.xlu0 %4888
        %v4891 = vadd.f32 %v4884, %v4889
        %4892 = vst [vmem:[#allocation1] sm:$0xff] %v4867
        %s4893 = scalar_lea.vmem [#allocation1], 4
        %v4894 = vld [vmem:[%s4893] ss:$9 sm:$0xff]
        %4895 = vrot.lane.b32.xlu0 %v4894, 88
        %v4896 = vpop.permute.xlu0 %4895
        %v4898 = vadd.f32 %v4891, %v4896
        %4899 = vst [vmem:[#allocation1] sm:$0xff] %v4867
        %s4900 = scalar_lea.vmem [#allocation1], 5
        %v4901 = vld [vmem:[%s4900] ss:$9 sm:$0xff]
        %4902 = vrot.lane.b32.xlu0 %v4901, 78
        %v4903 = vpop.permute.xlu0 %4902
        %v4905 = vadd.f32 %v4898, %v4903
        %4906 = vst [vmem:[#allocation1] sm:$0xff] %v4867
        %s4907 = scalar_lea.vmem [#allocation1], 6
        %v4908 = vld [vmem:[%s4907] ss:$9 sm:$0xff]
        %4909 = vrot.lane.b32.xlu0 %v4908, 68
        %v4910 = vpop.permute.xlu0 %4909
        %v4912 = vadd.f32 %v4905, %v4910
        %s4913 = scalar_lea.vmem [#allocation3], 40
        %v4914 = vld [vmem:[%s4913] sm:$0x7f]
        %s4915 = scalar_lea.vmem %s9, 40
        %v4916 = vld [vmem:[%s4915] sm:$0x7f]
        %v4918 = vsel %vm4546, %v4914, 0
        %v4921 = vsel %vm519, %v4916, 0
        %4923 = vmatpush.msra.mxu0 0.0
        %4924 = vmatpush.msra.mxu0 0.0
        %4925 = vmatpush.msra.mxu0 0.0
        %4926 = vmatpush.msra.mxu0 0.0
        %4927 = vmatpush.msra.mxu0 0.0
        %4928 = vmatpush.msra.mxu0 0.0
        %4929 = vmatpush.msra.mxu0 0.0
        %4930 = vmatpush.msra.mxu0 0.0
        %4931 = vmatpush.msra.mxu0 0.0
        %4932 = vmatpush.msra.mxu0 0.0
        %4933 = vmatpush.msra.mxu0 0.0
        %4934 = vmatpush.msra.mxu0 0.0
        %4935 = vmatpush.msra.mxu0 0.0
        %4936 = vmatpush.msra.mxu0 0.0
        %4937 = vmatpush.msra.mxu0 0.0
        %4938 = vmatpush.msra.mxu0 %v4921
        %4939 = vmatmul.f32.gmra.mxu0 %v4918
        %v4940 = vpop.f32.mrf.mxu0
        %v4941 = vadd.f32 0.0, %v4940
        %4942 = vdwg.mxu0
        %v4943 = vadd.f32 %v4912, %v4941
        %4945 = vst [vmem:[#allocation1] sm:$0xff] %v4941
        %s4946 = scalar_lea.vmem [#allocation1], 1
        %v4947 = vld [vmem:[%s4946] ss:$9 sm:$0xff]
        %4948 = vrot.lane.b32.xlu0 %v4947, 118
        %v4949 = vpop.permute.xlu0 %4948
        %v4951 = vadd.f32 %v4943, %v4949
        %4952 = vst [vmem:[#allocation1] sm:$0xff] %v4941
        %s4953 = scalar_lea.vmem [#allocation1], 2
        %v4954 = vld [vmem:[%s4953] ss:$9 sm:$0xff]
        %4955 = vrot.lane.b32.xlu0 %v4954, 108
        %v4956 = vpop.permute.xlu0 %4955
        %v4958 = vadd.f32 %v4951, %v4956
        %4959 = vst [vmem:[#allocation1] sm:$0xff] %v4941
        %s4960 = scalar_lea.vmem [#allocation1], 3
        %v4961 = vld [vmem:[%s4960] ss:$9 sm:$0xff]
        %4962 = vrot.lane.b32.xlu0 %v4961, 98
        %v4963 = vpop.permute.xlu0 %4962
        %v4965 = vadd.f32 %v4958, %v4963
        %4966 = vst [vmem:[#allocation1] sm:$0xff] %v4941
        %s4967 = scalar_lea.vmem [#allocation1], 4
        %v4968 = vld [vmem:[%s4967] ss:$9 sm:$0xff]
        %4969 = vrot.lane.b32.xlu0 %v4968, 88
        %v4970 = vpop.permute.xlu0 %4969
        %v4972 = vadd.f32 %v4965, %v4970
        %4973 = vst [vmem:[#allocation1] sm:$0xff] %v4941
        %s4974 = scalar_lea.vmem [#allocation1], 5
        %v4975 = vld [vmem:[%s4974] ss:$9 sm:$0xff]
        %4976 = vrot.lane.b32.xlu0 %v4975, 78
        %v4977 = vpop.permute.xlu0 %4976
        %v4979 = vadd.f32 %v4972, %v4977
        %4980 = vst [vmem:[#allocation1] sm:$0xff] %v4941
        %s4981 = scalar_lea.vmem [#allocation1], 6
        %v4982 = vld [vmem:[%s4981] ss:$9 sm:$0xff]
        %4983 = vrot.lane.b32.xlu0 %v4982, 68
        %v4984 = vpop.permute.xlu0 %4983
        %v4986 = vadd.f32 %v4979, %v4984
        %s4987 = scalar_lea.vmem [#allocation3], 48
        %v4988 = vld [vmem:[%s4987] sm:$0x7f]
        %s4989 = scalar_lea.vmem %s9, 48
        %v4990 = vld [vmem:[%s4989] sm:$0x7f]
        %v4992 = vsel %vm4546, %v4988, 0
        %v4995 = vsel %vm519, %v4990, 0
        %4997 = vmatpush.msra.mxu0 0.0
        %4998 = vmatpush.msra.mxu0 0.0
        %4999 = vmatpush.msra.mxu0 0.0
        %5000 = vmatpush.msra.mxu0 0.0
        %5001 = vmatpush.msra.mxu0 0.0
        %5002 = vmatpush.msra.mxu0 0.0
        %5003 = vmatpush.msra.mxu0 0.0
        %5004 = vmatpush.msra.mxu0 0.0
        %5005 = vmatpush.msra.mxu0 0.0
        %5006 = vmatpush.msra.mxu0 0.0
        %5007 = vmatpush.msra.mxu0 0.0
        %5008 = vmatpush.msra.mxu0 0.0
        %5009 = vmatpush.msra.mxu0 0.0
        %5010 = vmatpush.msra.mxu0 0.0
        %5011 = vmatpush.msra.mxu0 0.0
        %5012 = vmatpush.msra.mxu0 %v4995
        %5013 = vmatmul.f32.gmra.mxu0 %v4992
        %v5014 = vpop.f32.mrf.mxu0
        %v5015 = vadd.f32 0.0, %v5014
        %5016 = vdwg.mxu0
        %v5017 = vadd.f32 %v4986, %v5015
        %5019 = vst [vmem:[#allocation1] sm:$0xff] %v5015
        %s5020 = scalar_lea.vmem [#allocation1], 1
        %v5021 = vld [vmem:[%s5020] ss:$9 sm:$0xff]
        %5022 = vrot.lane.b32.xlu0 %v5021, 118
        %v5023 = vpop.permute.xlu0 %5022
        %v5025 = vadd.f32 %v5017, %v5023
        %5026 = vst [vmem:[#allocation1] sm:$0xff] %v5015
        %s5027 = scalar_lea.vmem [#allocation1], 2
        %v5028 = vld [vmem:[%s5027] ss:$9 sm:$0xff]
        %5029 = vrot.lane.b32.xlu0 %v5028, 108
        %v5030 = vpop.permute.xlu0 %5029
        %v5032 = vadd.f32 %v5025, %v5030
        %5033 = vst [vmem:[#allocation1] sm:$0xff] %v5015
        %s5034 = scalar_lea.vmem [#allocation1], 3
        %v5035 = vld [vmem:[%s5034] ss:$9 sm:$0xff]
        %5036 = vrot.lane.b32.xlu0 %v5035, 98
        %v5037 = vpop.permute.xlu0 %5036
        %v5039 = vadd.f32 %v5032, %v5037
        %5040 = vst [vmem:[#allocation1] sm:$0xff] %v5015
        %s5041 = scalar_lea.vmem [#allocation1], 4
        %v5042 = vld [vmem:[%s5041] ss:$9 sm:$0xff]
        %5043 = vrot.lane.b32.xlu0 %v5042, 88
        %v5044 = vpop.permute.xlu0 %5043
        %v5046 = vadd.f32 %v5039, %v5044
        %5047 = vst [vmem:[#allocation1] sm:$0xff] %v5015
        %s5048 = scalar_lea.vmem [#allocation1], 5
        %v5049 = vld [vmem:[%s5048] ss:$9 sm:$0xff]
        %5050 = vrot.lane.b32.xlu0 %v5049, 78
        %v5051 = vpop.permute.xlu0 %5050
        %v5053 = vadd.f32 %v5046, %v5051
        %5054 = vst [vmem:[#allocation1] sm:$0xff] %v5015
        %s5055 = scalar_lea.vmem [#allocation1], 6
        %v5056 = vld [vmem:[%s5055] ss:$9 sm:$0xff]
        %5057 = vrot.lane.b32.xlu0 %v5056, 68
        %v5058 = vpop.permute.xlu0 %5057
        %v5060 = vadd.f32 %v5053, %v5058
        %s5061 = scalar_lea.vmem [#allocation3], 56
        %v5062 = vld [vmem:[%s5061] sm:$0x7f]
        %s5063 = scalar_lea.vmem %s9, 56
        %v5064 = vld [vmem:[%s5063] sm:$0x7f]
        %v5066 = vsel %vm4546, %v5062, 0
        %v5069 = vsel %vm519, %v5064, 0
        %5071 = vmatpush.msra.mxu0 0.0
        %5072 = vmatpush.msra.mxu0 0.0
        %5073 = vmatpush.msra.mxu0 0.0
        %5074 = vmatpush.msra.mxu0 0.0
        %5075 = vmatpush.msra.mxu0 0.0
        %5076 = vmatpush.msra.mxu0 0.0
        %5077 = vmatpush.msra.mxu0 0.0
        %5078 = vmatpush.msra.mxu0 0.0
        %5079 = vmatpush.msra.mxu0 0.0
        %5080 = vmatpush.msra.mxu0 0.0
        %5081 = vmatpush.msra.mxu0 0.0
        %5082 = vmatpush.msra.mxu0 0.0
        %5083 = vmatpush.msra.mxu0 0.0
        %5084 = vmatpush.msra.mxu0 0.0
        %5085 = vmatpush.msra.mxu0 0.0
        %5086 = vmatpush.msra.mxu0 %v5069
        %5087 = vmatmul.f32.gmra.mxu0 %v5066
        %v5088 = vpop.f32.mrf.mxu0
        %v5089 = vadd.f32 0.0, %v5088
        %5090 = vdwg.mxu0
        %v5091 = vadd.f32 %v5060, %v5089
        %5093 = vst [vmem:[#allocation1] sm:$0xff] %v5089
        %s5094 = scalar_lea.vmem [#allocation1], 1
        %v5095 = vld [vmem:[%s5094] ss:$9 sm:$0xff]
        %5096 = vrot.lane.b32.xlu0 %v5095, 118
        %v5097 = vpop.permute.xlu0 %5096
        %v5099 = vadd.f32 %v5091, %v5097
        %5100 = vst [vmem:[#allocation1] sm:$0xff] %v5089
        %s5101 = scalar_lea.vmem [#allocation1], 2
        %v5102 = vld [vmem:[%s5101] ss:$9 sm:$0xff]
        %5103 = vrot.lane.b32.xlu0 %v5102, 108
        %v5104 = vpop.permute.xlu0 %5103
        %v5106 = vadd.f32 %v5099, %v5104
        %5107 = vst [vmem:[#allocation1] sm:$0xff] %v5089
        %s5108 = scalar_lea.vmem [#allocation1], 3
        %v5109 = vld [vmem:[%s5108] ss:$9 sm:$0xff]
        %5110 = vrot.lane.b32.xlu0 %v5109, 98
        %v5111 = vpop.permute.xlu0 %5110
        %v5113 = vadd.f32 %v5106, %v5111
        %5114 = vst [vmem:[#allocation1] sm:$0xff] %v5089
        %s5115 = scalar_lea.vmem [#allocation1], 4
        %v5116 = vld [vmem:[%s5115] ss:$9 sm:$0xff]
        %5117 = vrot.lane.b32.xlu0 %v5116, 88
        %v5118 = vpop.permute.xlu0 %5117
        %v5120 = vadd.f32 %v5113, %v5118
        %5121 = vst [vmem:[#allocation1] sm:$0xff] %v5089
        %s5122 = scalar_lea.vmem [#allocation1], 5
        %v5123 = vld [vmem:[%s5122] ss:$9 sm:$0xff]
        %5124 = vrot.lane.b32.xlu0 %v5123, 78
        %v5125 = vpop.permute.xlu0 %5124
        %v5127 = vadd.f32 %v5120, %v5125
        %5128 = vst [vmem:[#allocation1] sm:$0xff] %v5089
        %s5129 = scalar_lea.vmem [#allocation1], 6
        %v5130 = vld [vmem:[%s5129] ss:$9 sm:$0xff]
        %5131 = vrot.lane.b32.xlu0 %v5130, 68
        %v5132 = vpop.permute.xlu0 %5131
        %v5134 = vadd.f32 %v5127, %v5132
        %s5135 = scalar_lea.vmem [#allocation3], 64
        %v5136 = vld [vmem:[%s5135] sm:$0x7f]
        %s5137 = scalar_lea.vmem %s9, 64
        %v5138 = vld [vmem:[%s5137] sm:$0x7f]
        %v5140 = vsel %vm4546, %v5136, 0
        %v5143 = vsel %vm519, %v5138, 0
        %5145 = vmatpush.msra.mxu0 0.0
        %5146 = vmatpush.msra.mxu0 0.0
        %5147 = vmatpush.msra.mxu0 0.0
        %5148 = vmatpush.msra.mxu0 0.0
        %5149 = vmatpush.msra.mxu0 0.0
        %5150 = vmatpush.msra.mxu0 0.0
        %5151 = vmatpush.msra.mxu0 0.0
        %5152 = vmatpush.msra.mxu0 0.0
        %5153 = vmatpush.msra.mxu0 0.0
        %5154 = vmatpush.msra.mxu0 0.0
        %5155 = vmatpush.msra.mxu0 0.0
        %5156 = vmatpush.msra.mxu0 0.0
        %5157 = vmatpush.msra.mxu0 0.0
        %5158 = vmatpush.msra.mxu0 0.0
        %5159 = vmatpush.msra.mxu0 0.0
        %5160 = vmatpush.msra.mxu0 %v5143
        %5161 = vmatmul.f32.gmra.mxu0 %v5140
        %v5162 = vpop.f32.mrf.mxu0
        %v5163 = vadd.f32 0.0, %v5162
        %5164 = vdwg.mxu0
        %v5165 = vadd.f32 %v5134, %v5163
        %5167 = vst [vmem:[#allocation1] sm:$0xff] %v5163
        %s5168 = scalar_lea.vmem [#allocation1], 1
        %v5169 = vld [vmem:[%s5168] ss:$9 sm:$0xff]
        %5170 = vrot.lane.b32.xlu0 %v5169, 118
        %v5171 = vpop.permute.xlu0 %5170
        %v5173 = vadd.f32 %v5165, %v5171
        %5174 = vst [vmem:[#allocation1] sm:$0xff] %v5163
        %s5175 = scalar_lea.vmem [#allocation1], 2
        %v5176 = vld [vmem:[%s5175] ss:$9 sm:$0xff]
        %5177 = vrot.lane.b32.xlu0 %v5176, 108
        %v5178 = vpop.permute.xlu0 %5177
        %v5180 = vadd.f32 %v5173, %v5178
        %5181 = vst [vmem:[#allocation1] sm:$0xff] %v5163
        %s5182 = scalar_lea.vmem [#allocation1], 3
        %v5183 = vld [vmem:[%s5182] ss:$9 sm:$0xff]
        %5184 = vrot.lane.b32.xlu0 %v5183, 98
        %v5185 = vpop.permute.xlu0 %5184
        %v5187 = vadd.f32 %v5180, %v5185
        %5188 = vst [vmem:[#allocation1] sm:$0xff] %v5163
        %s5189 = scalar_lea.vmem [#allocation1], 4
        %v5190 = vld [vmem:[%s5189] ss:$9 sm:$0xff]
        %5191 = vrot.lane.b32.xlu0 %v5190, 88
        %v5192 = vpop.permute.xlu0 %5191
        %v5194 = vadd.f32 %v5187, %v5192
        %5195 = vst [vmem:[#allocation1] sm:$0xff] %v5163
        %s5196 = scalar_lea.vmem [#allocation1], 5
        %v5197 = vld [vmem:[%s5196] ss:$9 sm:$0xff]
        %5198 = vrot.lane.b32.xlu0 %v5197, 78
        %v5199 = vpop.permute.xlu0 %5198
        %v5201 = vadd.f32 %v5194, %v5199
        %5202 = vst [vmem:[#allocation1] sm:$0xff] %v5163
        %s5203 = scalar_lea.vmem [#allocation1], 6
        %v5204 = vld [vmem:[%s5203] ss:$9 sm:$0xff]
        %5205 = vrot.lane.b32.xlu0 %v5204, 68
        %v5206 = vpop.permute.xlu0 %5205
        %v5208 = vadd.f32 %v5201, %v5206
        %s5209 = scalar_lea.vmem [#allocation3], 72
        %v5210 = vld [vmem:[%s5209] sm:$0x7f]
        %s5211 = scalar_lea.vmem %s9, 72
        %v5212 = vld [vmem:[%s5211] sm:$0x7f]
        %v5214 = vsel %vm4546, %v5210, 0
        %v5217 = vsel %vm519, %v5212, 0
        %5219 = vmatpush.msra.mxu0 0.0
        %5220 = vmatpush.msra.mxu0 0.0
        %5221 = vmatpush.msra.mxu0 0.0
        %5222 = vmatpush.msra.mxu0 0.0
        %5223 = vmatpush.msra.mxu0 0.0
        %5224 = vmatpush.msra.mxu0 0.0
        %5225 = vmatpush.msra.mxu0 0.0
        %5226 = vmatpush.msra.mxu0 0.0
        %5227 = vmatpush.msra.mxu0 0.0
        %5228 = vmatpush.msra.mxu0 0.0
        %5229 = vmatpush.msra.mxu0 0.0
        %5230 = vmatpush.msra.mxu0 0.0
        %5231 = vmatpush.msra.mxu0 0.0
        %5232 = vmatpush.msra.mxu0 0.0
        %5233 = vmatpush.msra.mxu0 0.0
        %5234 = vmatpush.msra.mxu0 %v5217
        %5235 = vmatmul.f32.gmra.mxu0 %v5214
        %v5236 = vpop.f32.mrf.mxu0
        %v5237 = vadd.f32 0.0, %v5236
        %5238 = vdwg.mxu0
        %v5239 = vadd.f32 %v5208, %v5237
        %5241 = vst [vmem:[#allocation1] sm:$0xff] %v5237
        %s5242 = scalar_lea.vmem [#allocation1], 1
        %v5243 = vld [vmem:[%s5242] ss:$9 sm:$0xff]
        %5244 = vrot.lane.b32.xlu0 %v5243, 118
        %v5245 = vpop.permute.xlu0 %5244
        %v5247 = vadd.f32 %v5239, %v5245
        %5248 = vst [vmem:[#allocation1] sm:$0xff] %v5237
        %s5249 = scalar_lea.vmem [#allocation1], 2
        %v5250 = vld [vmem:[%s5249] ss:$9 sm:$0xff]
        %5251 = vrot.lane.b32.xlu0 %v5250, 108
        %v5252 = vpop.permute.xlu0 %5251
        %v5254 = vadd.f32 %v5247, %v5252
        %5255 = vst [vmem:[#allocation1] sm:$0xff] %v5237
        %s5256 = scalar_lea.vmem [#allocation1], 3
        %v5257 = vld [vmem:[%s5256] ss:$9 sm:$0xff]
        %5258 = vrot.lane.b32.xlu0 %v5257, 98
        %v5259 = vpop.permute.xlu0 %5258
        %v5261 = vadd.f32 %v5254, %v5259
        %5262 = vst [vmem:[#allocation1] sm:$0xff] %v5237
        %s5263 = scalar_lea.vmem [#allocation1], 4
        %v5264 = vld [vmem:[%s5263] ss:$9 sm:$0xff]
        %5265 = vrot.lane.b32.xlu0 %v5264, 88
        %v5266 = vpop.permute.xlu0 %5265
        %v5268 = vadd.f32 %v5261, %v5266
        %5269 = vst [vmem:[#allocation1] sm:$0xff] %v5237
        %s5270 = scalar_lea.vmem [#allocation1], 5
        %v5271 = vld [vmem:[%s5270] ss:$9 sm:$0xff]
        %5272 = vrot.lane.b32.xlu0 %v5271, 78
        %v5273 = vpop.permute.xlu0 %5272
        %v5275 = vadd.f32 %v5268, %v5273
        %5276 = vst [vmem:[#allocation1] sm:$0xff] %v5237
        %s5277 = scalar_lea.vmem [#allocation1], 6
        %v5278 = vld [vmem:[%s5277] ss:$9 sm:$0xff]
        %5279 = vrot.lane.b32.xlu0 %v5278, 68
        %v5280 = vpop.permute.xlu0 %5279
        %v5282 = vadd.f32 %v5275, %v5280
        %s5283 = scalar_lea.vmem [#allocation3], 80
        %v5284 = vld [vmem:[%s5283] sm:$0x7f]
        %s5285 = scalar_lea.vmem %s9, 80
        %v5286 = vld [vmem:[%s5285] sm:$0x7f]
        %v5288 = vsel %vm4546, %v5284, 0
        %v5291 = vsel %vm519, %v5286, 0
        %5293 = vmatpush.msra.mxu0 0.0
        %5294 = vmatpush.msra.mxu0 0.0
        %5295 = vmatpush.msra.mxu0 0.0
        %5296 = vmatpush.msra.mxu0 0.0
        %5297 = vmatpush.msra.mxu0 0.0
        %5298 = vmatpush.msra.mxu0 0.0
        %5299 = vmatpush.msra.mxu0 0.0
        %5300 = vmatpush.msra.mxu0 0.0
        %5301 = vmatpush.msra.mxu0 0.0
        %5302 = vmatpush.msra.mxu0 0.0
        %5303 = vmatpush.msra.mxu0 0.0
        %5304 = vmatpush.msra.mxu0 0.0
        %5305 = vmatpush.msra.mxu0 0.0
        %5306 = vmatpush.msra.mxu0 0.0
        %5307 = vmatpush.msra.mxu0 0.0
        %5308 = vmatpush.msra.mxu0 %v5291
        %5309 = vmatmul.f32.gmra.mxu0 %v5288
        %v5310 = vpop.f32.mrf.mxu0
        %v5311 = vadd.f32 0.0, %v5310
        %5312 = vdwg.mxu0
        %v5313 = vadd.f32 %v5282, %v5311
        %5315 = vst [vmem:[#allocation1] sm:$0xff] %v5311
        %s5316 = scalar_lea.vmem [#allocation1], 1
        %v5317 = vld [vmem:[%s5316] ss:$9 sm:$0xff]
        %5318 = vrot.lane.b32.xlu0 %v5317, 118
        %v5319 = vpop.permute.xlu0 %5318
        %v5321 = vadd.f32 %v5313, %v5319
        %5322 = vst [vmem:[#allocation1] sm:$0xff] %v5311
        %s5323 = scalar_lea.vmem [#allocation1], 2
        %v5324 = vld [vmem:[%s5323] ss:$9 sm:$0xff]
        %5325 = vrot.lane.b32.xlu0 %v5324, 108
        %v5326 = vpop.permute.xlu0 %5325
        %v5328 = vadd.f32 %v5321, %v5326
        %5329 = vst [vmem:[#allocation1] sm:$0xff] %v5311
        %s5330 = scalar_lea.vmem [#allocation1], 3
        %v5331 = vld [vmem:[%s5330] ss:$9 sm:$0xff]
        %5332 = vrot.lane.b32.xlu0 %v5331, 98
        %v5333 = vpop.permute.xlu0 %5332
        %v5335 = vadd.f32 %v5328, %v5333
        %5336 = vst [vmem:[#allocation1] sm:$0xff] %v5311
        %s5337 = scalar_lea.vmem [#allocation1], 4
        %v5338 = vld [vmem:[%s5337] ss:$9 sm:$0xff]
        %5339 = vrot.lane.b32.xlu0 %v5338, 88
        %v5340 = vpop.permute.xlu0 %5339
        %v5342 = vadd.f32 %v5335, %v5340
        %5343 = vst [vmem:[#allocation1] sm:$0xff] %v5311
        %s5344 = scalar_lea.vmem [#allocation1], 5
        %v5345 = vld [vmem:[%s5344] ss:$9 sm:$0xff]
        %5346 = vrot.lane.b32.xlu0 %v5345, 78
        %v5347 = vpop.permute.xlu0 %5346
        %v5349 = vadd.f32 %v5342, %v5347
        %5350 = vst [vmem:[#allocation1] sm:$0xff] %v5311
        %s5351 = scalar_lea.vmem [#allocation1], 6
        %v5352 = vld [vmem:[%s5351] ss:$9 sm:$0xff]
        %5353 = vrot.lane.b32.xlu0 %v5352, 68
        %v5354 = vpop.permute.xlu0 %5353
        %v5356 = vadd.f32 %v5349, %v5354
        %s5357 = scalar_lea.vmem [#allocation3], 88
        %v5358 = vld [vmem:[%s5357] sm:$0x7f]
        %s5359 = scalar_lea.vmem %s9, 88
        %v5360 = vld [vmem:[%s5359] sm:$0x7f]
        %v5362 = vsel %vm4546, %v5358, 0
        %v5365 = vsel %vm519, %v5360, 0
        %5367 = vmatpush.msra.mxu0 0.0
        %5368 = vmatpush.msra.mxu0 0.0
        %5369 = vmatpush.msra.mxu0 0.0
        %5370 = vmatpush.msra.mxu0 0.0
        %5371 = vmatpush.msra.mxu0 0.0
        %5372 = vmatpush.msra.mxu0 0.0
        %5373 = vmatpush.msra.mxu0 0.0
        %5374 = vmatpush.msra.mxu0 0.0
        %5375 = vmatpush.msra.mxu0 0.0
        %5376 = vmatpush.msra.mxu0 0.0
        %5377 = vmatpush.msra.mxu0 0.0
        %5378 = vmatpush.msra.mxu0 0.0
        %5379 = vmatpush.msra.mxu0 0.0
        %5380 = vmatpush.msra.mxu0 0.0
        %5381 = vmatpush.msra.mxu0 0.0
        %5382 = vmatpush.msra.mxu0 %v5365
        %5383 = vmatmul.f32.gmra.mxu0 %v5362
        %v5384 = vpop.f32.mrf.mxu0
        %v5385 = vadd.f32 0.0, %v5384
        %5386 = vdwg.mxu0
        %v5387 = vadd.f32 %v5356, %v5385
        %5389 = vst [vmem:[#allocation1] sm:$0xff] %v5385
        %s5390 = scalar_lea.vmem [#allocation1], 1
        %v5391 = vld [vmem:[%s5390] ss:$9 sm:$0xff]
        %5392 = vrot.lane.b32.xlu0 %v5391, 118
        %v5393 = vpop.permute.xlu0 %5392
        %v5395 = vadd.f32 %v5387, %v5393
        %5396 = vst [vmem:[#allocation1] sm:$0xff] %v5385
        %s5397 = scalar_lea.vmem [#allocation1], 2
        %v5398 = vld [vmem:[%s5397] ss:$9 sm:$0xff]
        %5399 = vrot.lane.b32.xlu0 %v5398, 108
        %v5400 = vpop.permute.xlu0 %5399
        %v5402 = vadd.f32 %v5395, %v5400
        %5403 = vst [vmem:[#allocation1] sm:$0xff] %v5385
        %s5404 = scalar_lea.vmem [#allocation1], 3
        %v5405 = vld [vmem:[%s5404] ss:$9 sm:$0xff]
        %5406 = vrot.lane.b32.xlu0 %v5405, 98
        %v5407 = vpop.permute.xlu0 %5406
        %v5409 = vadd.f32 %v5402, %v5407
        %5410 = vst [vmem:[#allocation1] sm:$0xff] %v5385
        %s5411 = scalar_lea.vmem [#allocation1], 4
        %v5412 = vld [vmem:[%s5411] ss:$9 sm:$0xff]
        %5413 = vrot.lane.b32.xlu0 %v5412, 88
        %v5414 = vpop.permute.xlu0 %5413
        %v5416 = vadd.f32 %v5409, %v5414
        %5417 = vst [vmem:[#allocation1] sm:$0xff] %v5385
        %s5418 = scalar_lea.vmem [#allocation1], 5
        %v5419 = vld [vmem:[%s5418] ss:$9 sm:$0xff]
        %5420 = vrot.lane.b32.xlu0 %v5419, 78
        %v5421 = vpop.permute.xlu0 %5420
        %v5423 = vadd.f32 %v5416, %v5421
        %5424 = vst [vmem:[#allocation1] sm:$0xff] %v5385
        %s5425 = scalar_lea.vmem [#allocation1], 6
        %v5426 = vld [vmem:[%s5425] ss:$9 sm:$0xff]
        %5427 = vrot.lane.b32.xlu0 %v5426, 68
        %v5428 = vpop.permute.xlu0 %5427
        %v5430 = vadd.f32 %v5423, %v5428
        %s5431 = scalar_lea.vmem [#allocation3], 96
        %v5432 = vld [vmem:[%s5431] sm:$0x7f]
        %s5433 = scalar_lea.vmem %s9, 96
        %v5434 = vld [vmem:[%s5433] sm:$0x7f]
        %v5436 = vsel %vm4546, %v5432, 0
        %v5439 = vsel %vm519, %v5434, 0
        %5441 = vmatpush.msra.mxu0 0.0
        %5442 = vmatpush.msra.mxu0 0.0
        %5443 = vmatpush.msra.mxu0 0.0
        %5444 = vmatpush.msra.mxu0 0.0
        %5445 = vmatpush.msra.mxu0 0.0
        %5446 = vmatpush.msra.mxu0 0.0
        %5447 = vmatpush.msra.mxu0 0.0
        %5448 = vmatpush.msra.mxu0 0.0
        %5449 = vmatpush.msra.mxu0 0.0
        %5450 = vmatpush.msra.mxu0 0.0
        %5451 = vmatpush.msra.mxu0 0.0
        %5452 = vmatpush.msra.mxu0 0.0
        %5453 = vmatpush.msra.mxu0 0.0
        %5454 = vmatpush.msra.mxu0 0.0
        %5455 = vmatpush.msra.mxu0 0.0
        %5456 = vmatpush.msra.mxu0 %v5439
        %5457 = vmatmul.f32.gmra.mxu0 %v5436
        %v5458 = vpop.f32.mrf.mxu0
        %v5459 = vadd.f32 0.0, %v5458
        %5460 = vdwg.mxu0
        %v5461 = vadd.f32 %v5430, %v5459
        %5463 = vst [vmem:[#allocation1] sm:$0xff] %v5459
        %s5464 = scalar_lea.vmem [#allocation1], 1
        %v5465 = vld [vmem:[%s5464] ss:$9 sm:$0xff]
        %5466 = vrot.lane.b32.xlu0 %v5465, 118
        %v5467 = vpop.permute.xlu0 %5466
        %v5469 = vadd.f32 %v5461, %v5467
        %5470 = vst [vmem:[#allocation1] sm:$0xff] %v5459
        %s5471 = scalar_lea.vmem [#allocation1], 2
        %v5472 = vld [vmem:[%s5471] ss:$9 sm:$0xff]
        %5473 = vrot.lane.b32.xlu0 %v5472, 108
        %v5474 = vpop.permute.xlu0 %5473
        %v5476 = vadd.f32 %v5469, %v5474
        %5477 = vst [vmem:[#allocation1] sm:$0xff] %v5459
        %s5478 = scalar_lea.vmem [#allocation1], 3
        %v5479 = vld [vmem:[%s5478] ss:$9 sm:$0xff]
        %5480 = vrot.lane.b32.xlu0 %v5479, 98
        %v5481 = vpop.permute.xlu0 %5480
        %v5483 = vadd.f32 %v5476, %v5481
        %5484 = vst [vmem:[#allocation1] sm:$0xff] %v5459
        %s5485 = scalar_lea.vmem [#allocation1], 4
        %v5486 = vld [vmem:[%s5485] ss:$9 sm:$0xff]
        %5487 = vrot.lane.b32.xlu0 %v5486, 88
        %v5488 = vpop.permute.xlu0 %5487
        %v5490 = vadd.f32 %v5483, %v5488
        %5491 = vst [vmem:[#allocation1] sm:$0xff] %v5459
        %s5492 = scalar_lea.vmem [#allocation1], 5
        %v5493 = vld [vmem:[%s5492] ss:$9 sm:$0xff]
        %5494 = vrot.lane.b32.xlu0 %v5493, 78
        %v5495 = vpop.permute.xlu0 %5494
        %v5497 = vadd.f32 %v5490, %v5495
        %5498 = vst [vmem:[#allocation1] sm:$0xff] %v5459
        %s5499 = scalar_lea.vmem [#allocation1], 6
        %v5500 = vld [vmem:[%s5499] ss:$9 sm:$0xff]
        %5501 = vrot.lane.b32.xlu0 %v5500, 68
        %v5502 = vpop.permute.xlu0 %5501
        %v5504 = vadd.f32 %v5497, %v5502
        %s5505 = scalar_lea.vmem [#allocation3], 104
        %v5506 = vld [vmem:[%s5505] sm:$0x7f]
        %s5507 = scalar_lea.vmem %s9, 104
        %v5508 = vld [vmem:[%s5507] sm:$0x7f]
        %v5510 = vsel %vm4546, %v5506, 0
        %v5513 = vsel %vm519, %v5508, 0
        %5515 = vmatpush.msra.mxu0 0.0
        %5516 = vmatpush.msra.mxu0 0.0
        %5517 = vmatpush.msra.mxu0 0.0
        %5518 = vmatpush.msra.mxu0 0.0
        %5519 = vmatpush.msra.mxu0 0.0
        %5520 = vmatpush.msra.mxu0 0.0
        %5521 = vmatpush.msra.mxu0 0.0
        %5522 = vmatpush.msra.mxu0 0.0
        %5523 = vmatpush.msra.mxu0 0.0
        %5524 = vmatpush.msra.mxu0 0.0
        %5525 = vmatpush.msra.mxu0 0.0
        %5526 = vmatpush.msra.mxu0 0.0
        %5527 = vmatpush.msra.mxu0 0.0
        %5528 = vmatpush.msra.mxu0 0.0
        %5529 = vmatpush.msra.mxu0 0.0
        %5530 = vmatpush.msra.mxu0 %v5513
        %5531 = vmatmul.f32.gmra.mxu0 %v5510
        %v5532 = vpop.f32.mrf.mxu0
        %v5533 = vadd.f32 0.0, %v5532
        %5534 = vdwg.mxu0
        %v5535 = vadd.f32 %v5504, %v5533
        %5537 = vst [vmem:[#allocation1] sm:$0xff] %v5533
        %s5538 = scalar_lea.vmem [#allocation1], 1
        %v5539 = vld [vmem:[%s5538] ss:$9 sm:$0xff]
        %5540 = vrot.lane.b32.xlu0 %v5539, 118
        %v5541 = vpop.permute.xlu0 %5540
        %v5543 = vadd.f32 %v5535, %v5541
        %5544 = vst [vmem:[#allocation1] sm:$0xff] %v5533
        %s5545 = scalar_lea.vmem [#allocation1], 2
        %v5546 = vld [vmem:[%s5545] ss:$9 sm:$0xff]
        %5547 = vrot.lane.b32.xlu0 %v5546, 108
        %v5548 = vpop.permute.xlu0 %5547
        %v5550 = vadd.f32 %v5543, %v5548
        %5551 = vst [vmem:[#allocation1] sm:$0xff] %v5533
        %s5552 = scalar_lea.vmem [#allocation1], 3
        %v5553 = vld [vmem:[%s5552] ss:$9 sm:$0xff]
        %5554 = vrot.lane.b32.xlu0 %v5553, 98
        %v5555 = vpop.permute.xlu0 %5554
        %v5557 = vadd.f32 %v5550, %v5555
        %5558 = vst [vmem:[#allocation1] sm:$0xff] %v5533
        %s5559 = scalar_lea.vmem [#allocation1], 4
        %v5560 = vld [vmem:[%s5559] ss:$9 sm:$0xff]
        %5561 = vrot.lane.b32.xlu0 %v5560, 88
        %v5562 = vpop.permute.xlu0 %5561
        %v5564 = vadd.f32 %v5557, %v5562
        %5565 = vst [vmem:[#allocation1] sm:$0xff] %v5533
        %s5566 = scalar_lea.vmem [#allocation1], 5
        %v5567 = vld [vmem:[%s5566] ss:$9 sm:$0xff]
        %5568 = vrot.lane.b32.xlu0 %v5567, 78
        %v5569 = vpop.permute.xlu0 %5568
        %v5571 = vadd.f32 %v5564, %v5569
        %5572 = vst [vmem:[#allocation1] sm:$0xff] %v5533
        %s5573 = scalar_lea.vmem [#allocation1], 6
        %v5574 = vld [vmem:[%s5573] ss:$9 sm:$0xff]
        %5575 = vrot.lane.b32.xlu0 %v5574, 68
        %v5576 = vpop.permute.xlu0 %5575
        %v5578 = vadd.f32 %v5571, %v5576
        %s5579 = scalar_lea.vmem [#allocation3], 112
        %v5580 = vld [vmem:[%s5579] sm:$0x7f]
        %s5581 = scalar_lea.vmem %s9, 112
        %v5582 = vld [vmem:[%s5581] sm:$0x7f]
        %v5584 = vsel %vm4546, %v5580, 0
        %v5587 = vsel %vm519, %v5582, 0
        %5589 = vmatpush.msra.mxu0 0.0
        %5590 = vmatpush.msra.mxu0 0.0
        %5591 = vmatpush.msra.mxu0 0.0
        %5592 = vmatpush.msra.mxu0 0.0
        %5593 = vmatpush.msra.mxu0 0.0
        %5594 = vmatpush.msra.mxu0 0.0
        %5595 = vmatpush.msra.mxu0 0.0
        %5596 = vmatpush.msra.mxu0 0.0
        %5597 = vmatpush.msra.mxu0 0.0
        %5598 = vmatpush.msra.mxu0 0.0
        %5599 = vmatpush.msra.mxu0 0.0
        %5600 = vmatpush.msra.mxu0 0.0
        %5601 = vmatpush.msra.mxu0 0.0
        %5602 = vmatpush.msra.mxu0 0.0
        %5603 = vmatpush.msra.mxu0 0.0
        %5604 = vmatpush.msra.mxu0 %v5587
        %5605 = vmatmul.f32.gmra.mxu0 %v5584
        %v5606 = vpop.f32.mrf.mxu0
        %v5607 = vadd.f32 0.0, %v5606
        %5608 = vdwg.mxu0
        %v5609 = vadd.f32 %v5578, %v5607
        %5611 = vst [vmem:[#allocation1] sm:$0xff] %v5607
        %s5612 = scalar_lea.vmem [#allocation1], 1
        %v5613 = vld [vmem:[%s5612] ss:$9 sm:$0xff]
        %5614 = vrot.lane.b32.xlu0 %v5613, 118
        %v5615 = vpop.permute.xlu0 %5614
        %v5617 = vadd.f32 %v5609, %v5615
        %5618 = vst [vmem:[#allocation1] sm:$0xff] %v5607
        %s5619 = scalar_lea.vmem [#allocation1], 2
        %v5620 = vld [vmem:[%s5619] ss:$9 sm:$0xff]
        %5621 = vrot.lane.b32.xlu0 %v5620, 108
        %v5622 = vpop.permute.xlu0 %5621
        %v5624 = vadd.f32 %v5617, %v5622
        %5625 = vst [vmem:[#allocation1] sm:$0xff] %v5607
        %s5626 = scalar_lea.vmem [#allocation1], 3
        %v5627 = vld [vmem:[%s5626] ss:$9 sm:$0xff]
        %5628 = vrot.lane.b32.xlu0 %v5627, 98
        %v5629 = vpop.permute.xlu0 %5628
        %v5631 = vadd.f32 %v5624, %v5629
        %5632 = vst [vmem:[#allocation1] sm:$0xff] %v5607
        %s5633 = scalar_lea.vmem [#allocation1], 4
        %v5634 = vld [vmem:[%s5633] ss:$9 sm:$0xff]
        %5635 = vrot.lane.b32.xlu0 %v5634, 88
        %v5636 = vpop.permute.xlu0 %5635
        %v5638 = vadd.f32 %v5631, %v5636
        %5639 = vst [vmem:[#allocation1] sm:$0xff] %v5607
        %s5640 = scalar_lea.vmem [#allocation1], 5
        %v5641 = vld [vmem:[%s5640] ss:$9 sm:$0xff]
        %5642 = vrot.lane.b32.xlu0 %v5641, 78
        %v5643 = vpop.permute.xlu0 %5642
        %v5645 = vadd.f32 %v5638, %v5643
        %5646 = vst [vmem:[#allocation1] sm:$0xff] %v5607
        %s5647 = scalar_lea.vmem [#allocation1], 6
        %v5648 = vld [vmem:[%s5647] ss:$9 sm:$0xff]
        %5649 = vrot.lane.b32.xlu0 %v5648, 68
        %v5650 = vpop.permute.xlu0 %5649
        %v5652 = vadd.f32 %v5645, %v5650
        %s5653 = scalar_lea.vmem [#allocation3], 120
        %v5654 = vld [vmem:[%s5653] sm:$0x7f]
        %s5655 = scalar_lea.vmem %s9, 120
        %v5656 = vld [vmem:[%s5655] sm:$0x7f]
        %v5658 = vsel %vm4546, %v5654, 0
        %v5661 = vsel %vm519, %v5656, 0
        %5663 = vmatpush.msra.mxu0 0.0
        %5664 = vmatpush.msra.mxu0 0.0
        %5665 = vmatpush.msra.mxu0 0.0
        %5666 = vmatpush.msra.mxu0 0.0
        %5667 = vmatpush.msra.mxu0 0.0
        %5668 = vmatpush.msra.mxu0 0.0
        %5669 = vmatpush.msra.mxu0 0.0
        %5670 = vmatpush.msra.mxu0 0.0
        %5671 = vmatpush.msra.mxu0 0.0
        %5672 = vmatpush.msra.mxu0 0.0
        %5673 = vmatpush.msra.mxu0 0.0
        %5674 = vmatpush.msra.mxu0 0.0
        %5675 = vmatpush.msra.mxu0 0.0
        %5676 = vmatpush.msra.mxu0 0.0
        %5677 = vmatpush.msra.mxu0 0.0
        %5678 = vmatpush.msra.mxu0 %v5661
        %5679 = vmatmul.f32.gmra.mxu0 %v5658
        %v5680 = vpop.f32.mrf.mxu0
        %v5681 = vadd.f32 0.0, %v5680
        %5682 = vdwg.mxu0
        %v5683 = vadd.f32 %v5652, %v5681
        %5685 = vst [vmem:[#allocation1] sm:$0xff] %v5681
        %s5686 = scalar_lea.vmem [#allocation1], 1
        %v5687 = vld [vmem:[%s5686] ss:$9 sm:$0xff]
        %5688 = vrot.lane.b32.xlu0 %v5687, 118
        %v5689 = vpop.permute.xlu0 %5688
        %v5691 = vadd.f32 %v5683, %v5689
        %5692 = vst [vmem:[#allocation1] sm:$0xff] %v5681
        %s5693 = scalar_lea.vmem [#allocation1], 2
        %v5694 = vld [vmem:[%s5693] ss:$9 sm:$0xff]
        %5695 = vrot.lane.b32.xlu0 %v5694, 108
        %v5696 = vpop.permute.xlu0 %5695
        %v5698 = vadd.f32 %v5691, %v5696
        %5699 = vst [vmem:[#allocation1] sm:$0xff] %v5681
        %s5700 = scalar_lea.vmem [#allocation1], 3
        %v5701 = vld [vmem:[%s5700] ss:$9 sm:$0xff]
        %5702 = vrot.lane.b32.xlu0 %v5701, 98
        %v5703 = vpop.permute.xlu0 %5702
        %v5705 = vadd.f32 %v5698, %v5703
        %5706 = vst [vmem:[#allocation1] sm:$0xff] %v5681
        %s5707 = scalar_lea.vmem [#allocation1], 4
        %v5708 = vld [vmem:[%s5707] ss:$9 sm:$0xff]
        %5709 = vrot.lane.b32.xlu0 %v5708, 88
        %v5710 = vpop.permute.xlu0 %5709
        %v5712 = vadd.f32 %v5705, %v5710
        %5713 = vst [vmem:[#allocation1] sm:$0xff] %v5681
        %s5714 = scalar_lea.vmem [#allocation1], 5
        %v5715 = vld [vmem:[%s5714] ss:$9 sm:$0xff]
        %5716 = vrot.lane.b32.xlu0 %v5715, 78
        %v5717 = vpop.permute.xlu0 %5716
        %v5719 = vadd.f32 %v5712, %v5717
        %5720 = vst [vmem:[#allocation1] sm:$0xff] %v5681
        %s5721 = scalar_lea.vmem [#allocation1], 6
        %v5722 = vld [vmem:[%s5721] ss:$9 sm:$0xff]
        %5723 = vrot.lane.b32.xlu0 %v5722, 68
        %v5724 = vpop.permute.xlu0 %5723
        %v5726 = vadd.f32 %v5719, %v5724
        %vm5727 = vcmask 73728
        %5728 = vst.msk [vmem:[%s432] sm:$0x1] %vm5727, %v5726
        %s5729 = sand.u32 %s272, 1
        %s5730 = scalar_lea.sflag [#allocation5], %s5729
        %s5731 = sand.u32 %s272, 1
        %s5732 = scalar_lea.vmem [#allocation12], %s5731
        // Predicated region
        $region88: #{cnn_forward.1} parent=63 // pred_check
          %p5733 = pneg %p282
        $region89: #{cnn_forward.1} parent=63 // pred_check_branch
          %5735 = sbr.rel (%p5733) target = $region91
        $region90: #{cnn_forward.1} parent=63 // pred_region
          %5737 = vsyncadd %s5730, 0
          %s5738 = scalar_lea.hbm %s11, %s28
          %s5740 = sshll.u32 %s5732, 4
          %s5741 = int_to_ptr.vmem [resolvable:$true] %s5740
          %s5742 = sshll.u32 %s5738, 4
          %s5743 = int_to_ptr.hbm [resolvable:$true] %s5742
          %5745 = dma.vmem_to_hbm [thread:$0]  %s5741, 16, %s5743, %s5730
        $region91: #{cnn_forward.1} parent=63 // pred_fallthru
          _
      $region64: #{cnn_forward.1} parent=5 // pred_fallthru
        _
      %p5746 = scmp.le.s32.totalorder 2, %s23
      // Predicated region
      $region92: #{cnn_forward.1} parent=5 // pred_check
        %p5747 = pneg %p5746
      $region93: #{cnn_forward.1} parent=5 // pred_check_branch
        %5749 = sbr.rel (%p5747) target = $region95
      $region94: #{cnn_forward.1} parent=5 // pred_region
        %s5750 = ssub.s32 %s23, 2
        // Predicated region
        $region96: #{cnn_forward.1} parent=94 // pred_check
          %p5751 = pneg %p288
        $region97: #{cnn_forward.1} parent=94 // pred_check_branch
          %5753 = sbr.rel (%p5751) target = $region99
        $region98: #{cnn_forward.1} parent=94 // pred_region
          %s5754 = sand.u32 %s273, 1
          %s5755 = scalar_lea.sflag [#allocation5], %s5754
          %s5756 = sand.u32 %s273, 1
          %s5757 = scalar_lea.vmem [#allocation12], %s5756
          %5759 = dma.done %s5755, 16
        $region99: #{cnn_forward.1} parent=94 // pred_fallthru
          _
      $region95: #{cnn_forward.1} parent=5 // pred_fallthru
        _
    $region6: #{cnn_forward.1} parent=1 // loop_footer
      %s27 = sadd.s32 1, %s23
    $region7: #{cnn_forward.1} parent=1 // loop_footer_branch
      %22 = sbr.rel target = $region3
    $region8: #{cnn_forward.1} parent=1 // loop_exit
      _
    %5760 = vsyncpa [#allocation5], 1
    %s5761 = scalar_lea.sflag [#allocation5], 1
    %5762 = vsyncpa %s5761, 1
    %5763 = vsyncpa [#allocation6], 1
    %s5764 = scalar_lea.sflag [#allocation6], 1
    %5765 = vsyncpa %s5764, 1
    %5766 = vsyncpa [#allocation8], 1
    %5767 = vsyncpa [#allocation11], 1

</llo_original>
